<compile_context>
chip_gen: v7x
topology: tpu7x:2x2x1
jax: 0.10.0
libtpu: 0.0.40
codegen_flags: <defaults>
</compile_context>

<pallas_src>
import functools

import jax
import jax.numpy as jnp
from jax import lax
from jax.experimental import pallas as pl
from jax.experimental.pallas import tpu as pltpu


def find_pad(filter_size):
    """Mirror of the PyTorch helper FindPad (int filter size)."""
    return int((filter_size - 1) / 2)


# ----------------------------------------------------------------------------
# Pallas kernel: all D output depth planes for one (batch n, depth parity rd).
# ----------------------------------------------------------------------------
def _convt_kernel(x_ref, w_ref, b_ref, o_ref, *, D, H, W):
    # x_ref: (1, D+1, H+1, W, 12*Cin)   bf16 folded input volume for batch n
    # w_ref: (1, 2, 12*Cin, 2*Cout)     bf16 phase weights for this depth parity
    # b_ref: (1, 2*Cout)                f32  bias duplicated per width parity
    # o_ref: (D, 1, H, 2, W, 2*Cout)    f32  output block for (n, rd)
    rd = pl.program_id(1)
    kin = x_ref.shape[-1]
    cout2 = o_ref.shape[-1]

    # Hoisted once per grid step (not per depth plane): weight loads + bias bcast.
    w_rh = [w_ref[0, 0], w_ref[0, 1]]                        # 2 x (12*Cin, 2*Cout)
    bias = jnp.broadcast_to(b_ref[...], (H * W, cout2))      # (H*W, 2*Cout) f32

    for q in range(D):                       # static unroll over output depth planes
        plane = x_ref[0, q + rd]             # (H+1, W, 12*Cin): cheap leading-dim index
        for rh in range(2):                  # two output-height parities
            # Leading-dim slice + reshape: layout-preserving (W is the sublane dim).
            lhs = plane[rh:rh + H].reshape(H * W, kin)
            acc = jnp.dot(lhs, w_rh[rh], preferred_element_type=jnp.float32)
            # Direct lane-dense (8,128)-tile store of this parity — no stack/interleave.
            o_ref[q, 0, :, rh] = (acc + bias).reshape(H, W, cout2)


# ----------------------------------------------------------------------------
# Host-side weight / layout preparation (trace-time, fused by XLA)
# ----------------------------------------------------------------------------
def _build_phase_weights(w_torch):
    """(Cin, Cout, 4, 4, 4) PyTorch ConvTranspose3d weight ->
    (2, 2, 12*Cin, 2*Cout) phase weights indexed by [rd, rh].

    Row block index = w*4*Cin + (ad*2 + ah)*Cin  (matches the input channel fold:
    width window offset w outer, (depth, height) taps inner).  Column block = rw*Cout.
    Tap identity: k(r, a) = 3 - r - 2*a; width: aw = w - rw, contributes iff aw in {0,1}.
    """
    cin, cout = w_torch.shape[0], w_torch.shape[1]
    zeros = jnp.zeros((cin, cout), w_torch.dtype)
    per_rd = []
    for rd in range(2):
        per_rh = []
        for rh in range(2):
            rows = []
            for w in range(3):
                for ad in range(2):
                    for ah in range(2):
                        cols = []
                        for rw in range(2):
                            aw = w - rw
                            if aw in (0, 1):
                                cols.append(w_torch[:, :,
                                                    3 - rd - 2 * ad,
                                                    3 - rh - 2 * ah,
                                                    3 - rw - 2 * aw])
                            else:
                                cols.append(zeros)
                        rows.append(jnp.concatenate(cols, axis=1))    # (Cin, 2*Cout)
            per_rh.append(jnp.concatenate(rows, axis=0))              # (12*Cin, 2*Cout)
        per_rd.append(jnp.stack(per_rh))
    return jnp.stack(per_rd)                                          # (2,2,12Cin,2Cout)


def transpose_wrapper_forward(x_ncdhw, weight, bias, output_size, PAR):
    """Pallas equivalent of TransposeWrapper.forward(input, output_size)."""
    K = int(PAR["TransposeSize"])
    S = int(PAR["TransposeStride"])
    P = find_pad(K)
    # TODO(synk): only the standard K=4, S=2 (pad=1) configuration is implemented.
    assert (K, S, P) == (4, 2, 1), "unsupported TransposeSize/TransposeStride"

    N, Cin, D, H, W = x_ncdhw.shape
    Cout = weight.shape[1]
    Dout, Hout, Wout = (int(s) for s in output_size[-3:])
    # TODO(synk): output_padding=1 (odd output_size) path not implemented.
    assert (Dout, Hout, Wout) == (2 * D, 2 * H, 2 * W), "only 2x output_size supported"

    # ---- trace-time layout prep (the input is 8x fewer voxels than the output) ----
    # TODO(synk): if the surrounding model can run NDHWC end-to-end, drop these
    # two transposes (each is a full HBM pass comparable to the kernel itself).
    x = jnp.transpose(x_ncdhw, (0, 2, 3, 4, 1))                    # NDHWC
    xp = jnp.pad(x, ((0, 0), (1, 1), (1, 1), (1, 1), (0, 0)))      # 1-voxel halo
    # (kd, kh) tap fold -> 4*Cin, channel block (ad*2 + ah)
    xc = jnp.concatenate(
        [xp[:, :D + 1, :H + 1], xp[:, :D + 1, 1:],
         xp[:, 1:, :H + 1],     xp[:, 1:, 1:]],
        axis=-1)                                                   # (N, D+1, H+1, W+2, 4Cin)
    # width-offset fold -> 12*Cin, channel block w*4 + (ad*2 + ah); bf16 for the MXU
    xcw = jnp.concatenate(
        [xc[..., 0:W, :], xc[..., 1:W + 1, :], xc[..., 2:W + 2, :]],
        axis=-1).astype(jnp.bfloat16)                              # (N, D+1, H+1, W, 12Cin)

    wt = _build_phase_weights(weight).astype(jnp.bfloat16)         # (2, 2, 12Cin, 2Cout)
    b2 = jnp.concatenate([bias, bias]).reshape(1, 2 * Cout).astype(jnp.float32)

    kin = 12 * Cin
    out_elems = N * (2 * D) * (2 * H) * (2 * W) * Cout
    cost = pl.CostEstimate(
        flops=2 * N * 2 * D * 2 * H * W * kin * 2 * Cout,
        transcendentals=0,
        bytes_accessed=xcw.size * 2 + wt.size * 2 + b2.size * 4 + out_elems * 4,
    )

    kernel = functools.partial(_convt_kernel, D=D, H=H, W=W)
    out_folded = pl.pallas_call(
        kernel,
        out_shape=jax.ShapeDtypeStruct((N * D, 2, H, 2, W, 2 * Cout), jnp.float32),
        grid=(N, 2),
        in_specs=[
            # whole folded volume of batch n (same block for both rd steps -> one DMA)
            pl.BlockSpec((1, D + 1, H + 1, W, kin), lambda n, r: (n, 0, 0, 0, 0)),
            # this depth-parity's phase weights; bias constant -> VMEM resident
            pl.BlockSpec((1, 2, kin, 2 * Cout), lambda n, r: (r, 0, 0, 0)),
            pl.BlockSpec((1, 2 * Cout), lambda n, r: (0, 0)),
        ],
        out_specs=pl.BlockSpec((D, 1, H, 2, W, 2 * Cout),
                               lambda n, r: (n, r, 0, 0, 0, 0)),
        compiler_params=pltpu.CompilerParams(
            dimension_semantics=("parallel", "parallel")),
        cost_estimate=cost,
    )(xcw, wt, b2)

    # (N*D, 2, H, 2, W, 2*Cout) -> (N, 2D, 2H, 2W, Cout): contiguous reshape (free).
    out_ndhwc = out_folded.reshape(N, 2 * D, 2 * H, 2 * W, Cout)
    return jnp.transpose(out_ndhwc, (0, 4, 1, 2, 3))               # back to NCDHW


# ----------------------------------------------------------------------------
# Pure-XLA reference (ConvTranspose3d as a dilated conv) for a correctness check
# ----------------------------------------------------------------------------
def convtranspose3d_ref(x_ncdhw, weight, bias):
    wf = jnp.transpose(weight[:, :, ::-1, ::-1, ::-1], (1, 0, 2, 3, 4))   # OIDHW
    y = lax.conv_general_dilated(
        x_ncdhw, wf,
        window_strides=(1, 1, 1),
        padding=((2, 2), (2, 2), (2, 2)),
        lhs_dilation=(2, 2, 2),
        dimension_numbers=("NCDHW", "OIDHW", "NCDHW"))
    return y + bias.reshape(1, -1, 1, 1, 1)


# ----------------------------------------------------------------------------
if __name__ == "__main__":
    key = jax.random.PRNGKey(0)
    kx, kw, kb = jax.random.split(key, 3)

    # Small decoder-like shapes: batch=2, 64 -> 64 channels, 8^3 -> 16^3 volume.
    N, Cin, Cout, D, H, W = 2, 64, 64, 8, 8, 8
    PAR = {"TransposeSize": 4, "TransposeStride": 2}
    output_size = (N, Cout, 2 * D, 2 * H, 2 * W)   # torch passes the target shape

    x = jax.random.normal(kx, (N, Cin, D, H, W), jnp.float32)
    scale = float(Cin * PAR["TransposeSize"] ** 3) ** -0.5
    # PyTorch ConvTranspose3d weight layout: (Cin, Cout, K, K, K)
    weight = jax.random.normal(kw, (Cin, Cout, 4, 4, 4), jnp.float32) * scale
    bias = jax.random.normal(kb, (Cout,), jnp.float32) * 0.01

    fwd = jax.jit(lambda a, w, b: transpose_wrapper_forward(a, w, b, output_size, PAR))
    out = jax.block_until_ready(fwd(x, weight, bias))

    assert out.shape == (N, Cout, 2 * D, 2 * H, 2 * W), out.shape
    assert bool(jnp.all(jnp.isfinite(out)))

    ref = jax.block_until_ready(jax.jit(convtranspose3d_ref)(x, weight, bias))
    max_err = float(jnp.max(jnp.abs(out - ref)))
    assert max_err < 5e-2, f"mismatch vs reference: max abs err = {max_err}"

    print("KERNEL_OK")
</pallas_src>

<mosaic_0001>
module attributes {stable_mosaic.version = 11 : i64} {
  func.func @_convt_kernel(%arg0: i32, %arg1: i32, %arg2: memref<1x9x9x8x768xbf16, #tpu.memory_space<vmem>>, %arg3: memref<1x2x768x128xbf16, #tpu.memory_space<vmem>>, %arg4: memref<1x128xf32, #tpu.memory_space<vmem>>, %arg5: memref<8x1x8x2x8x128xf32, #tpu.memory_space<vmem>>) attributes {dimension_semantics = [#tpu.dimension_semantics<parallel>, #tpu.dimension_semantics<parallel>], iteration_bounds = array<i64: 2, 2>, scalar_prefetch = 0 : i64, scratch_operands = 0 : i64, tpu.core_type = #tpu.core_type<tc>, window_params = [{transform_indices = @transform_0, window_bounds = array<i64: 1, 9, 9, 8, 768>}, {transform_indices = @transform_1, window_bounds = array<i64: 1, 2, 768, 128>}, {pipeline_mode = #tpu.pipeline_mode<synchronous>, transform_indices = @transform_2, window_bounds = array<i64: 1, 128>}, {transform_indices = @transform_3, window_bounds = array<i64: 8, 1, 8, 2, 8, 128>}]} {
    %c0 = arith.constant 0 : index
    %c0_0 = arith.constant 0 : index
    %c0_1 = arith.constant 0 : index
    %c0_2 = arith.constant 0 : index
    %0 = vector.load %arg3[%c0, %c0_0, %c0_1, %c0_2] : memref<1x2x768x128xbf16, #tpu.memory_space<vmem>>, vector<1x1x768x128xbf16>
    %1 = vector.shape_cast %0 : vector<1x1x768x128xbf16> to vector<768x128xbf16>
    %c0_3 = arith.constant 0 : index
    %c1 = arith.constant 1 : index
    %c0_4 = arith.constant 0 : index
    %c0_5 = arith.constant 0 : index
    %2 = vector.load %arg3[%c0_3, %c1, %c0_4, %c0_5] : memref<1x2x768x128xbf16, #tpu.memory_space<vmem>>, vector<1x1x768x128xbf16>
    %3 = vector.shape_cast %2 : vector<1x1x768x128xbf16> to vector<768x128xbf16>
    %c0_6 = arith.constant 0 : index
    %c0_7 = arith.constant 0 : index
    %4 = vector.load %arg4[%c0_6, %c0_7] : memref<1x128xf32, #tpu.memory_space<vmem>>, vector<1x128xf32>
    %5 = vector.shape_cast %4 : vector<1x128xf32> to vector<1x128xf32>
    %6 = vector.broadcast %5 : vector<1x128xf32> to vector<64x128xf32>
    %c0_i32 = arith.constant 0 : i32
    %7 = arith.addi %c0_i32, %arg1 : i32
    %c0_8 = arith.constant 0 : index
    %8 = arith.index_cast %7 : i32 to index
    %c0_9 = arith.constant 0 : index
    %c0_10 = arith.constant 0 : index
    %c0_11 = arith.constant 0 : index
    %9 = vector.load %arg2[%c0_8, %8, %c0_9, %c0_10, %c0_11] : memref<1x9x9x8x768xbf16, #tpu.memory_space<vmem>>, vector<1x1x9x8x768xbf16>
    %10 = vector.shape_cast %9 : vector<1x1x9x8x768xbf16> to vector<9x8x768xbf16>
    %11 = vector.extract_strided_slice %10 {offsets = [0, 0, 0], sizes = [8, 8, 768], strides = [1, 1, 1]} : vector<9x8x768xbf16> to vector<8x8x768xbf16>
    %12 = vector.shape_cast %11 : vector<8x8x768xbf16> to vector<64x768xbf16>
    %cst = arith.constant dense<0.000000e+00> : vector<64x128xf32>
    %13 = tpu.matmul %12, %1, %cst {dimension_numbers = #tpu.dot_dimension_numbers<[1], [0], [0], [1], [0, 0, 1, 1], [], []>} : vector<64x768xbf16>, vector<768x128xbf16>, vector<64x128xf32> -> vector<64x128xf32>
    %14 = arith.addf %13, %6 : vector<64x128xf32>
    %15 = vector.shape_cast %14 : vector<64x128xf32> to vector<8x8x128xf32>
    %c0_12 = arith.constant 0 : index
    %c0_13 = arith.constant 0 : index
    %c0_14 = arith.constant 0 : index
    %c0_15 = arith.constant 0 : index
    %c0_16 = arith.constant 0 : index
    %c0_17 = arith.constant 0 : index
    %16 = vector.load %arg5[%c0_12, %c0_13, %c0_14, %c0_15, %c0_16, %c0_17] : memref<8x1x8x2x8x128xf32, #tpu.memory_space<vmem>>, vector<1x1x8x1x8x128xf32>
    %17 = vector.shape_cast %16 : vector<1x1x8x1x8x128xf32> to vector<8x8x128xf32>
    %18 = vector.shape_cast %15 : vector<8x8x128xf32> to vector<1x1x8x1x8x128xf32>
    tpu.vector_store %arg5[%c0_12, %c0_13, %c0_14, %c0_15, %c0_16, %c0_17], %18 {strides = array<i32>} : memref<8x1x8x2x8x128xf32, #tpu.memory_space<vmem>>, vector<1x1x8x1x8x128xf32>,
    %19 = vector.extract_strided_slice %10 {offsets = [1, 0, 0], sizes = [8, 8, 768], strides = [1, 1, 1]} : vector<9x8x768xbf16> to vector<8x8x768xbf16>
    %20 = vector.shape_cast %19 : vector<8x8x768xbf16> to vector<64x768xbf16>
    %cst_18 = arith.constant dense<0.000000e+00> : vector<64x128xf32>
    %21 = tpu.matmul %20, %3, %cst_18 {dimension_numbers = #tpu.dot_dimension_numbers<[1], [0], [0], [1], [0, 0, 1, 1], [], []>} : vector<64x768xbf16>, vector<768x128xbf16>, vector<64x128xf32> -> vector<64x128xf32>
    %22 = arith.addf %21, %6 : vector<64x128xf32>
    %23 = vector.shape_cast %22 : vector<64x128xf32> to vector<8x8x128xf32>
    %c0_19 = arith.constant 0 : index
    %c0_20 = arith.constant 0 : index
    %c0_21 = arith.constant 0 : index
    %c1_22 = arith.constant 1 : index
    %c0_23 = arith.constant 0 : index
    %c0_24 = arith.constant 0 : index
    %24 = vector.load %arg5[%c0_19, %c0_20, %c0_21, %c1_22, %c0_23, %c0_24] : memref<8x1x8x2x8x128xf32, #tpu.memory_space<vmem>>, vector<1x1x8x1x8x128xf32>
    %25 = vector.shape_cast %24 : vector<1x1x8x1x8x128xf32> to vector<8x8x128xf32>
    %26 = vector.shape_cast %23 : vector<8x8x128xf32> to vector<1x1x8x1x8x128xf32>
    tpu.vector_store %arg5[%c0_19, %c0_20, %c0_21, %c1_22, %c0_23, %c0_24], %26 {strides = array<i32>} : memref<8x1x8x2x8x128xf32, #tpu.memory_space<vmem>>, vector<1x1x8x1x8x128xf32>,
    %c1_i32 = arith.constant 1 : i32
    %27 = arith.addi %c1_i32, %arg1 : i32
    %c0_25 = arith.constant 0 : index
    %28 = arith.index_cast %27 : i32 to index
    %c0_26 = arith.constant 0 : index
    %c0_27 = arith.constant 0 : index
    %c0_28 = arith.constant 0 : index
    %29 = vector.load %arg2[%c0_25, %28, %c0_26, %c0_27, %c0_28] : memref<1x9x9x8x768xbf16, #tpu.memory_space<vmem>>, vector<1x1x9x8x768xbf16>
    %30 = vector.shape_cast %29 : vector<1x1x9x8x768xbf16> to vector<9x8x768xbf16>
    %31 = vector.extract_strided_slice %30 {offsets = [0, 0, 0], sizes = [8, 8, 768], strides = [1, 1, 1]} : vector<9x8x768xbf16> to vector<8x8x768xbf16>
    %32 = vector.shape_cast %31 : vector<8x8x768xbf16> to vector<64x768xbf16>
    %cst_29 = arith.constant dense<0.000000e+00> : vector<64x128xf32>
    %33 = tpu.matmul %32, %1, %cst_29 {dimension_numbers = #tpu.dot_dimension_numbers<[1], [0], [0], [1], [0, 0, 1, 1], [], []>} : vector<64x768xbf16>, vector<768x128xbf16>, vector<64x128xf32> -> vector<64x128xf32>
    %34 = arith.addf %33, %6 : vector<64x128xf32>
    %35 = vector.shape_cast %34 : vector<64x128xf32> to vector<8x8x128xf32>
    %c1_30 = arith.constant 1 : index
    %c0_31 = arith.constant 0 : index
    %c0_32 = arith.constant 0 : index
    %c0_33 = arith.constant 0 : index
    %c0_34 = arith.constant 0 : index
    %c0_35 = arith.constant 0 : index
    %36 = vector.load %arg5[%c1_30, %c0_31, %c0_32, %c0_33, %c0_34, %c0_35] : memref<8x1x8x2x8x128xf32, #tpu.memory_space<vmem>>, vector<1x1x8x1x8x128xf32>
    %37 = vector.shape_cast %36 : vector<1x1x8x1x8x128xf32> to vector<8x8x128xf32>
    %38 = vector.shape_cast %35 : vector<8x8x128xf32> to vector<1x1x8x1x8x128xf32>
    tpu.vector_store %arg5[%c1_30, %c0_31, %c0_32, %c0_33, %c0_34, %c0_35], %38 {strides = array<i32>} : memref<8x1x8x2x8x128xf32, #tpu.memory_space<vmem>>, vector<1x1x8x1x8x128xf32>,
    %39 = vector.extract_strided_slice %30 {offsets = [1, 0, 0], sizes = [8, 8, 768], strides = [1, 1, 1]} : vector<9x8x768xbf16> to vector<8x8x768xbf16>
    %40 = vector.shape_cast %39 : vector<8x8x768xbf16> to vector<64x768xbf16>
    %cst_36 = arith.constant dense<0.000000e+00> : vector<64x128xf32>
    %41 = tpu.matmul %40, %3, %cst_36 {dimension_numbers = #tpu.dot_dimension_numbers<[1], [0], [0], [1], [0, 0, 1, 1], [], []>} : vector<64x768xbf16>, vector<768x128xbf16>, vector<64x128xf32> -> vector<64x128xf32>
    %42 = arith.addf %41, %6 : vector<64x128xf32>
    %43 = vector.shape_cast %42 : vector<64x128xf32> to vector<8x8x128xf32>
    %c1_37 = arith.constant 1 : index
    %c0_38 = arith.constant 0 : index
    %c0_39 = arith.constant 0 : index
    %c1_40 = arith.constant 1 : index
    %c0_41 = arith.constant 0 : index
    %c0_42 = arith.constant 0 : index
    %44 = vector.load %arg5[%c1_37, %c0_38, %c0_39, %c1_40, %c0_41, %c0_42] : memref<8x1x8x2x8x128xf32, #tpu.memory_space<vmem>>, vector<1x1x8x1x8x128xf32>
    %45 = vector.shape_cast %44 : vector<1x1x8x1x8x128xf32> to vector<8x8x128xf32>
    %46 = vector.shape_cast %43 : vector<8x8x128xf32> to vector<1x1x8x1x8x128xf32>
    tpu.vector_store %arg5[%c1_37, %c0_38, %c0_39, %c1_40, %c0_41, %c0_42], %46 {strides = array<i32>} : memref<8x1x8x2x8x128xf32, #tpu.memory_space<vmem>>, vector<1x1x8x1x8x128xf32>,
    %c2_i32 = arith.constant 2 : i32
    %47 = arith.addi %c2_i32, %arg1 : i32
    %c0_43 = arith.constant 0 : index
    %48 = arith.index_cast %47 : i32 to index
    %c0_44 = arith.constant 0 : index
    %c0_45 = arith.constant 0 : index
    %c0_46 = arith.constant 0 : index
    %49 = vector.load %arg2[%c0_43, %48, %c0_44, %c0_45, %c0_46] : memref<1x9x9x8x768xbf16, #tpu.memory_space<vmem>>, vector<1x1x9x8x768xbf16>
    %50 = vector.shape_cast %49 : vector<1x1x9x8x768xbf16> to vector<9x8x768xbf16>
    %51 = vector.extract_strided_slice %50 {offsets = [0, 0, 0], sizes = [8, 8, 768], strides = [1, 1, 1]} : vector<9x8x768xbf16> to vector<8x8x768xbf16>
    %52 = vector.shape_cast %51 : vector<8x8x768xbf16> to vector<64x768xbf16>
    %cst_47 = arith.constant dense<0.000000e+00> : vector<64x128xf32>
    %53 = tpu.matmul %52, %1, %cst_47 {dimension_numbers = #tpu.dot_dimension_numbers<[1], [0], [0], [1], [0, 0, 1, 1], [], []>} : vector<64x768xbf16>, vector<768x128xbf16>, vector<64x128xf32> -> vector<64x128xf32>
    %54 = arith.addf %53, %6 : vector<64x128xf32>
    %55 = vector.shape_cast %54 : vector<64x128xf32> to vector<8x8x128xf32>
    %c2 = arith.constant 2 : index
    %c0_48 = arith.constant 0 : index
    %c0_49 = arith.constant 0 : index
    %c0_50 = arith.constant 0 : index
    %c0_51 = arith.constant 0 : index
    %c0_52 = arith.constant 0 : index
    %56 = vector.load %arg5[%c2, %c0_48, %c0_49, %c0_50, %c0_51, %c0_52] : memref<8x1x8x2x8x128xf32, #tpu.memory_space<vmem>>, vector<1x1x8x1x8x128xf32>
    %57 = vector.shape_cast %56 : vector<1x1x8x1x8x128xf32> to vector<8x8x128xf32>
    %58 = vector.shape_cast %55 : vector<8x8x128xf32> to vector<1x1x8x1x8x128xf32>
    tpu.vector_store %arg5[%c2, %c0_48, %c0_49, %c0_50, %c0_51, %c0_52], %58 {strides = array<i32>} : memref<8x1x8x2x8x128xf32, #tpu.memory_space<vmem>>, vector<1x1x8x1x8x128xf32>,
    %59 = vector.extract_strided_slice %50 {offsets = [1, 0, 0], sizes = [8, 8, 768], strides = [1, 1, 1]} : vector<9x8x768xbf16> to vector<8x8x768xbf16>
    %60 = vector.shape_cast %59 : vector<8x8x768xbf16> to vector<64x768xbf16>
    %cst_53 = arith.constant dense<0.000000e+00> : vector<64x128xf32>
    %61 = tpu.matmul %60, %3, %cst_53 {dimension_numbers = #tpu.dot_dimension_numbers<[1], [0], [0], [1], [0, 0, 1, 1], [], []>} : vector<64x768xbf16>, vector<768x128xbf16>, vector<64x128xf32> -> vector<64x128xf32>
    %62 = arith.addf %61, %6 : vector<64x128xf32>
    %63 = vector.shape_cast %62 : vector<64x128xf32> to vector<8x8x128xf32>
    %c2_54 = arith.constant 2 : index
    %c0_55 = arith.constant 0 : index
    %c0_56 = arith.constant 0 : index
    %c1_57 = arith.constant 1 : index
    %c0_58 = arith.constant 0 : index
    %c0_59 = arith.constant 0 : index
    %64 = vector.load %arg5[%c2_54, %c0_55, %c0_56, %c1_57, %c0_58, %c0_59] : memref<8x1x8x2x8x128xf32, #tpu.memory_space<vmem>>, vector<1x1x8x1x8x128xf32>
    %65 = vector.shape_cast %64 : vector<1x1x8x1x8x128xf32> to vector<8x8x128xf32>
    %66 = vector.shape_cast %63 : vector<8x8x128xf32> to vector<1x1x8x1x8x128xf32>
    tpu.vector_store %arg5[%c2_54, %c0_55, %c0_56, %c1_57, %c0_58, %c0_59], %66 {strides = array<i32>} : memref<8x1x8x2x8x128xf32, #tpu.memory_space<vmem>>, vector<1x1x8x1x8x128xf32>,
    %c3_i32 = arith.constant 3 : i32
    %67 = arith.addi %c3_i32, %arg1 : i32
    %c0_60 = arith.constant 0 : index
    %68 = arith.index_cast %67 : i32 to index
    %c0_61 = arith.constant 0 : index
    %c0_62 = arith.constant 0 : index
    %c0_63 = arith.constant 0 : index
    %69 = vector.load %arg2[%c0_60, %68, %c0_61, %c0_62, %c0_63] : memref<1x9x9x8x768xbf16, #tpu.memory_space<vmem>>, vector<1x1x9x8x768xbf16>
    %70 = vector.shape_cast %69 : vector<1x1x9x8x768xbf16> to vector<9x8x768xbf16>
    %71 = vector.extract_strided_slice %70 {offsets = [0, 0, 0], sizes = [8, 8, 768], strides = [1, 1, 1]} : vector<9x8x768xbf16> to vector<8x8x768xbf16>
    %72 = vector.shape_cast %71 : vector<8x8x768xbf16> to vector<64x768xbf16>
    %cst_64 = arith.constant dense<0.000000e+00> : vector<64x128xf32>
    %73 = tpu.matmul %72, %1, %cst_64 {dimension_numbers = #tpu.dot_dimension_numbers<[1], [0], [0], [1], [0, 0, 1, 1], [], []>} : vector<64x768xbf16>, vector<768x128xbf16>, vector<64x128xf32> -> vector<64x128xf32>
    %74 = arith.addf %73, %6 : vector<64x128xf32>
    %75 = vector.shape_cast %74 : vector<64x128xf32> to vector<8x8x128xf32>
    %c3 = arith.constant 3 : index
    %c0_65 = arith.constant 0 : index
    %c0_66 = arith.constant 0 : index
    %c0_67 = arith.constant 0 : index
    %c0_68 = arith.constant 0 : index
    %c0_69 = arith.constant 0 : index
    %76 = vector.load %arg5[%c3, %c0_65, %c0_66, %c0_67, %c0_68, %c0_69] : memref<8x1x8x2x8x128xf32, #tpu.memory_space<vmem>>, vector<1x1x8x1x8x128xf32>
    %77 = vector.shape_cast %76 : vector<1x1x8x1x8x128xf32> to vector<8x8x128xf32>
    %78 = vector.shape_cast %75 : vector<8x8x128xf32> to vector<1x1x8x1x8x128xf32>
    tpu.vector_store %arg5[%c3, %c0_65, %c0_66, %c0_67, %c0_68, %c0_69], %78 {strides = array<i32>} : memref<8x1x8x2x8x128xf32, #tpu.memory_space<vmem>>, vector<1x1x8x1x8x128xf32>,
    %79 = vector.extract_strided_slice %70 {offsets = [1, 0, 0], sizes = [8, 8, 768], strides = [1, 1, 1]} : vector<9x8x768xbf16> to vector<8x8x768xbf16>
    %80 = vector.shape_cast %79 : vector<8x8x768xbf16> to vector<64x768xbf16>
    %cst_70 = arith.constant dense<0.000000e+00> : vector<64x128xf32>
    %81 = tpu.matmul %80, %3, %cst_70 {dimension_numbers = #tpu.dot_dimension_numbers<[1], [0], [0], [1], [0, 0, 1, 1], [], []>} : vector<64x768xbf16>, vector<768x128xbf16>, vector<64x128xf32> -> vector<64x128xf32>
    %82 = arith.addf %81, %6 : vector<64x128xf32>
    %83 = vector.shape_cast %82 : vector<64x128xf32> to vector<8x8x128xf32>
    %c3_71 = arith.constant 3 : index
    %c0_72 = arith.constant 0 : index
    %c0_73 = arith.constant 0 : index
    %c1_74 = arith.constant 1 : index
    %c0_75 = arith.constant 0 : index
    %c0_76 = arith.constant 0 : index
    %84 = vector.load %arg5[%c3_71, %c0_72, %c0_73, %c1_74, %c0_75, %c0_76] : memref<8x1x8x2x8x128xf32, #tpu.memory_space<vmem>>, vector<1x1x8x1x8x128xf32>
    %85 = vector.shape_cast %84 : vector<1x1x8x1x8x128xf32> to vector<8x8x128xf32>
    %86 = vector.shape_cast %83 : vector<8x8x128xf32> to vector<1x1x8x1x8x128xf32>
    tpu.vector_store %arg5[%c3_71, %c0_72, %c0_73, %c1_74, %c0_75, %c0_76], %86 {strides = array<i32>} : memref<8x1x8x2x8x128xf32, #tpu.memory_space<vmem>>, vector<1x1x8x1x8x128xf32>,
    %c4_i32 = arith.constant 4 : i32
    %87 = arith.addi %c4_i32, %arg1 : i32
    %c0_77 = arith.constant 0 : index
    %88 = arith.index_cast %87 : i32 to index
    %c0_78 = arith.constant 0 : index
    %c0_79 = arith.constant 0 : index
    %c0_80 = arith.constant 0 : index
    %89 = vector.load %arg2[%c0_77, %88, %c0_78, %c0_79, %c0_80] : memref<1x9x9x8x768xbf16, #tpu.memory_space<vmem>>, vector<1x1x9x8x768xbf16>
    %90 = vector.shape_cast %89 : vector<1x1x9x8x768xbf16> to vector<9x8x768xbf16>
    %91 = vector.extract_strided_slice %90 {offsets = [0, 0, 0], sizes = [8, 8, 768], strides = [1, 1, 1]} : vector<9x8x768xbf16> to vector<8x8x768xbf16>
    %92 = vector.shape_cast %91 : vector<8x8x768xbf16> to vector<64x768xbf16>
    %cst_81 = arith.constant dense<0.000000e+00> : vector<64x128xf32>
    %93 = tpu.matmul %92, %1, %cst_81 {dimension_numbers = #tpu.dot_dimension_numbers<[1], [0], [0], [1], [0, 0, 1, 1], [], []>} : vector<64x768xbf16>, vector<768x128xbf16>, vector<64x128xf32> -> vector<64x128xf32>
    %94 = arith.addf %93, %6 : vector<64x128xf32>
    %95 = vector.shape_cast %94 : vector<64x128xf32> to vector<8x8x128xf32>
    %c4 = arith.constant 4 : index
    %c0_82 = arith.constant 0 : index
    %c0_83 = arith.constant 0 : index
    %c0_84 = arith.constant 0 : index
    %c0_85 = arith.constant 0 : index
    %c0_86 = arith.constant 0 : index
    %96 = vector.load %arg5[%c4, %c0_82, %c0_83, %c0_84, %c0_85, %c0_86] : memref<8x1x8x2x8x128xf32, #tpu.memory_space<vmem>>, vector<1x1x8x1x8x128xf32>
    %97 = vector.shape_cast %96 : vector<1x1x8x1x8x128xf32> to vector<8x8x128xf32>
    %98 = vector.shape_cast %95 : vector<8x8x128xf32> to vector<1x1x8x1x8x128xf32>
    tpu.vector_store %arg5[%c4, %c0_82, %c0_83, %c0_84, %c0_85, %c0_86], %98 {strides = array<i32>} : memref<8x1x8x2x8x128xf32, #tpu.memory_space<vmem>>, vector<1x1x8x1x8x128xf32>,
    %99 = vector.extract_strided_slice %90 {offsets = [1, 0, 0], sizes = [8, 8, 768], strides = [1, 1, 1]} : vector<9x8x768xbf16> to vector<8x8x768xbf16>
    %100 = vector.shape_cast %99 : vector<8x8x768xbf16> to vector<64x768xbf16>
    %cst_87 = arith.constant dense<0.000000e+00> : vector<64x128xf32>
    %101 = tpu.matmul %100, %3, %cst_87 {dimension_numbers = #tpu.dot_dimension_numbers<[1], [0], [0], [1], [0, 0, 1, 1], [], []>} : vector<64x768xbf16>, vector<768x128xbf16>, vector<64x128xf32> -> vector<64x128xf32>
    %102 = arith.addf %101, %6 : vector<64x128xf32>
    %103 = vector.shape_cast %102 : vector<64x128xf32> to vector<8x8x128xf32>
    %c4_88 = arith.constant 4 : index
    %c0_89 = arith.constant 0 : index
    %c0_90 = arith.constant 0 : index
    %c1_91 = arith.constant 1 : index
    %c0_92 = arith.constant 0 : index
    %c0_93 = arith.constant 0 : index
    %104 = vector.load %arg5[%c4_88, %c0_89, %c0_90, %c1_91, %c0_92, %c0_93] : memref<8x1x8x2x8x128xf32, #tpu.memory_space<vmem>>, vector<1x1x8x1x8x128xf32>
    %105 = vector.shape_cast %104 : vector<1x1x8x1x8x128xf32> to vector<8x8x128xf32>
    %106 = vector.shape_cast %103 : vector<8x8x128xf32> to vector<1x1x8x1x8x128xf32>
    tpu.vector_store %arg5[%c4_88, %c0_89, %c0_90, %c1_91, %c0_92, %c0_93], %106 {strides = array<i32>} : memref<8x1x8x2x8x128xf32, #tpu.memory_space<vmem>>, vector<1x1x8x1x8x128xf32>,
    %c5_i32 = arith.constant 5 : i32
    %107 = arith.addi %c5_i32, %arg1 : i32
    %c0_94 = arith.constant 0 : index
    %108 = arith.index_cast %107 : i32 to index
    %c0_95 = arith.constant 0 : index
    %c0_96 = arith.constant 0 : index
    %c0_97 = arith.constant 0 : index
    %109 = vector.load %arg2[%c0_94, %108, %c0_95, %c0_96, %c0_97] : memref<1x9x9x8x768xbf16, #tpu.memory_space<vmem>>, vector<1x1x9x8x768xbf16>
    %110 = vector.shape_cast %109 : vector<1x1x9x8x768xbf16> to vector<9x8x768xbf16>
    %111 = vector.extract_strided_slice %110 {offsets = [0, 0, 0], sizes = [8, 8, 768], strides = [1, 1, 1]} : vector<9x8x768xbf16> to vector<8x8x768xbf16>
    %112 = vector.shape_cast %111 : vector<8x8x768xbf16> to vector<64x768xbf16>
    %cst_98 = arith.constant dense<0.000000e+00> : vector<64x128xf32>
    %113 = tpu.matmul %112, %1, %cst_98 {dimension_numbers = #tpu.dot_dimension_numbers<[1], [0], [0], [1], [0, 0, 1, 1], [], []>} : vector<64x768xbf16>, vector<768x128xbf16>, vector<64x128xf32> -> vector<64x128xf32>
    %114 = arith.addf %113, %6 : vector<64x128xf32>
    %115 = vector.shape_cast %114 : vector<64x128xf32> to vector<8x8x128xf32>
    %c5 = arith.constant 5 : index
    %c0_99 = arith.constant 0 : index
    %c0_100 = arith.constant 0 : index
    %c0_101 = arith.constant 0 : index
    %c0_102 = arith.constant 0 : index
    %c0_103 = arith.constant 0 : index
    %116 = vector.load %arg5[%c5, %c0_99, %c0_100, %c0_101, %c0_102, %c0_103] : memref<8x1x8x2x8x128xf32, #tpu.memory_space<vmem>>, vector<1x1x8x1x8x128xf32>
    %117 = vector.shape_cast %116 : vector<1x1x8x1x8x128xf32> to vector<8x8x128xf32>
    %118 = vector.shape_cast %115 : vector<8x8x128xf32> to vector<1x1x8x1x8x128xf32>
    tpu.vector_store %arg5[%c5, %c0_99, %c0_100, %c0_101, %c0_102, %c0_103], %118 {strides = array<i32>} : memref<8x1x8x2x8x128xf32, #tpu.memory_space<vmem>>, vector<1x1x8x1x8x128xf32>,
    %119 = vector.extract_strided_slice %110 {offsets = [1, 0, 0], sizes = [8, 8, 768], strides = [1, 1, 1]} : vector<9x8x768xbf16> to vector<8x8x768xbf16>
    %120 = vector.shape_cast %119 : vector<8x8x768xbf16> to vector<64x768xbf16>
    %cst_104 = arith.constant dense<0.000000e+00> : vector<64x128xf32>
    %121 = tpu.matmul %120, %3, %cst_104 {dimension_numbers = #tpu.dot_dimension_numbers<[1], [0], [0], [1], [0, 0, 1, 1], [], []>} : vector<64x768xbf16>, vector<768x128xbf16>, vector<64x128xf32> -> vector<64x128xf32>
    %122 = arith.addf %121, %6 : vector<64x128xf32>
    %123 = vector.shape_cast %122 : vector<64x128xf32> to vector<8x8x128xf32>
    %c5_105 = arith.constant 5 : index
    %c0_106 = arith.constant 0 : index
    %c0_107 = arith.constant 0 : index
    %c1_108 = arith.constant 1 : index
    %c0_109 = arith.constant 0 : index
    %c0_110 = arith.constant 0 : index
    %124 = vector.load %arg5[%c5_105, %c0_106, %c0_107, %c1_108, %c0_109, %c0_110] : memref<8x1x8x2x8x128xf32, #tpu.memory_space<vmem>>, vector<1x1x8x1x8x128xf32>
    %125 = vector.shape_cast %124 : vector<1x1x8x1x8x128xf32> to vector<8x8x128xf32>
    %126 = vector.shape_cast %123 : vector<8x8x128xf32> to vector<1x1x8x1x8x128xf32>
    tpu.vector_store %arg5[%c5_105, %c0_106, %c0_107, %c1_108, %c0_109, %c0_110], %126 {strides = array<i32>} : memref<8x1x8x2x8x128xf32, #tpu.memory_space<vmem>>, vector<1x1x8x1x8x128xf32>,
    %c6_i32 = arith.constant 6 : i32
    %127 = arith.addi %c6_i32, %arg1 : i32
    %c0_111 = arith.constant 0 : index
    %128 = arith.index_cast %127 : i32 to index
    %c0_112 = arith.constant 0 : index
    %c0_113 = arith.constant 0 : index
    %c0_114 = arith.constant 0 : index
    %129 = vector.load %arg2[%c0_111, %128, %c0_112, %c0_113, %c0_114] : memref<1x9x9x8x768xbf16, #tpu.memory_space<vmem>>, vector<1x1x9x8x768xbf16>
    %130 = vector.shape_cast %129 : vector<1x1x9x8x768xbf16> to vector<9x8x768xbf16>
    %131 = vector.extract_strided_slice %130 {offsets = [0, 0, 0], sizes = [8, 8, 768], strides = [1, 1, 1]} : vector<9x8x768xbf16> to vector<8x8x768xbf16>
    %132 = vector.shape_cast %131 : vector<8x8x768xbf16> to vector<64x768xbf16>
    %cst_115 = arith.constant dense<0.000000e+00> : vector<64x128xf32>
    %133 = tpu.matmul %132, %1, %cst_115 {dimension_numbers = #tpu.dot_dimension_numbers<[1], [0], [0], [1], [0, 0, 1, 1], [], []>} : vector<64x768xbf16>, vector<768x128xbf16>, vector<64x128xf32> -> vector<64x128xf32>
    %134 = arith.addf %133, %6 : vector<64x128xf32>
    %135 = vector.shape_cast %134 : vector<64x128xf32> to vector<8x8x128xf32>
    %c6 = arith.constant 6 : index
    %c0_116 = arith.constant 0 : index
    %c0_117 = arith.constant 0 : index
    %c0_118 = arith.constant 0 : index
    %c0_119 = arith.constant 0 : index
    %c0_120 = arith.constant 0 : index
    %136 = vector.load %arg5[%c6, %c0_116, %c0_117, %c0_118, %c0_119, %c0_120] : memref<8x1x8x2x8x128xf32, #tpu.memory_space<vmem>>, vector<1x1x8x1x8x128xf32>
    %137 = vector.shape_cast %136 : vector<1x1x8x1x8x128xf32> to vector<8x8x128xf32>
    %138 = vector.shape_cast %135 : vector<8x8x128xf32> to vector<1x1x8x1x8x128xf32>
    tpu.vector_store %arg5[%c6, %c0_116, %c0_117, %c0_118, %c0_119, %c0_120], %138 {strides = array<i32>} : memref<8x1x8x2x8x128xf32, #tpu.memory_space<vmem>>, vector<1x1x8x1x8x128xf32>,
    %139 = vector.extract_strided_slice %130 {offsets = [1, 0, 0], sizes = [8, 8, 768], strides = [1, 1, 1]} : vector<9x8x768xbf16> to vector<8x8x768xbf16>
    %140 = vector.shape_cast %139 : vector<8x8x768xbf16> to vector<64x768xbf16>
    %cst_121 = arith.constant dense<0.000000e+00> : vector<64x128xf32>
    %141 = tpu.matmul %140, %3, %cst_121 {dimension_numbers = #tpu.dot_dimension_numbers<[1], [0], [0], [1], [0, 0, 1, 1], [], []>} : vector<64x768xbf16>, vector<768x128xbf16>, vector<64x128xf32> -> vector<64x128xf32>
    %142 = arith.addf %141, %6 : vector<64x128xf32>
    %143 = vector.shape_cast %142 : vector<64x128xf32> to vector<8x8x128xf32>
    %c6_122 = arith.constant 6 : index
    %c0_123 = arith.constant 0 : index
    %c0_124 = arith.constant 0 : index
    %c1_125 = arith.constant 1 : index
    %c0_126 = arith.constant 0 : index
    %c0_127 = arith.constant 0 : index
    %144 = vector.load %arg5[%c6_122, %c0_123, %c0_124, %c1_125, %c0_126, %c0_127] : memref<8x1x8x2x8x128xf32, #tpu.memory_space<vmem>>, vector<1x1x8x1x8x128xf32>
    %145 = vector.shape_cast %144 : vector<1x1x8x1x8x128xf32> to vector<8x8x128xf32>
    %146 = vector.shape_cast %143 : vector<8x8x128xf32> to vector<1x1x8x1x8x128xf32>
    tpu.vector_store %arg5[%c6_122, %c0_123, %c0_124, %c1_125, %c0_126, %c0_127], %146 {strides = array<i32>} : memref<8x1x8x2x8x128xf32, #tpu.memory_space<vmem>>, vector<1x1x8x1x8x128xf32>,
    %c7_i32 = arith.constant 7 : i32
    %147 = arith.addi %c7_i32, %arg1 : i32
    %c0_128 = arith.constant 0 : index
    %148 = arith.index_cast %147 : i32 to index
    %c0_129 = arith.constant 0 : index
    %c0_130 = arith.constant 0 : index
    %c0_131 = arith.constant 0 : index
    %149 = vector.load %arg2[%c0_128, %148, %c0_129, %c0_130, %c0_131] : memref<1x9x9x8x768xbf16, #tpu.memory_space<vmem>>, vector<1x1x9x8x768xbf16>
    %150 = vector.shape_cast %149 : vector<1x1x9x8x768xbf16> to vector<9x8x768xbf16>
    %151 = vector.extract_strided_slice %150 {offsets = [0, 0, 0], sizes = [8, 8, 768], strides = [1, 1, 1]} : vector<9x8x768xbf16> to vector<8x8x768xbf16>
    %152 = vector.shape_cast %151 : vector<8x8x768xbf16> to vector<64x768xbf16>
    %cst_132 = arith.constant dense<0.000000e+00> : vector<64x128xf32>
    %153 = tpu.matmul %152, %1, %cst_132 {dimension_numbers = #tpu.dot_dimension_numbers<[1], [0], [0], [1], [0, 0, 1, 1], [], []>} : vector<64x768xbf16>, vector<768x128xbf16>, vector<64x128xf32> -> vector<64x128xf32>
    %154 = arith.addf %153, %6 : vector<64x128xf32>
    %155 = vector.shape_cast %154 : vector<64x128xf32> to vector<8x8x128xf32>
    %c7 = arith.constant 7 : index
    %c0_133 = arith.constant 0 : index
    %c0_134 = arith.constant 0 : index
    %c0_135 = arith.constant 0 : index
    %c0_136 = arith.constant 0 : index
    %c0_137 = arith.constant 0 : index
    %156 = vector.load %arg5[%c7, %c0_133, %c0_134, %c0_135, %c0_136, %c0_137] : memref<8x1x8x2x8x128xf32, #tpu.memory_space<vmem>>, vector<1x1x8x1x8x128xf32>
    %157 = vector.shape_cast %156 : vector<1x1x8x1x8x128xf32> to vector<8x8x128xf32>
    %158 = vector.shape_cast %155 : vector<8x8x128xf32> to vector<1x1x8x1x8x128xf32>
    tpu.vector_store %arg5[%c7, %c0_133, %c0_134, %c0_135, %c0_136, %c0_137], %158 {strides = array<i32>} : memref<8x1x8x2x8x128xf32, #tpu.memory_space<vmem>>, vector<1x1x8x1x8x128xf32>,
    %159 = vector.extract_strided_slice %150 {offsets = [1, 0, 0], sizes = [8, 8, 768], strides = [1, 1, 1]} : vector<9x8x768xbf16> to vector<8x8x768xbf16>
    %160 = vector.shape_cast %159 : vector<8x8x768xbf16> to vector<64x768xbf16>
    %cst_138 = arith.constant dense<0.000000e+00> : vector<64x128xf32>
    %161 = tpu.matmul %160, %3, %cst_138 {dimension_numbers = #tpu.dot_dimension_numbers<[1], [0], [0], [1], [0, 0, 1, 1], [], []>} : vector<64x768xbf16>, vector<768x128xbf16>, vector<64x128xf32> -> vector<64x128xf32>
    %162 = arith.addf %161, %6 : vector<64x128xf32>
    %163 = vector.shape_cast %162 : vector<64x128xf32> to vector<8x8x128xf32>
    %c7_139 = arith.constant 7 : index
    %c0_140 = arith.constant 0 : index
    %c0_141 = arith.constant 0 : index
    %c1_142 = arith.constant 1 : index
    %c0_143 = arith.constant 0 : index
    %c0_144 = arith.constant 0 : index
    %164 = vector.load %arg5[%c7_139, %c0_140, %c0_141, %c1_142, %c0_143, %c0_144] : memref<8x1x8x2x8x128xf32, #tpu.memory_space<vmem>>, vector<1x1x8x1x8x128xf32>
    %165 = vector.shape_cast %164 : vector<1x1x8x1x8x128xf32> to vector<8x8x128xf32>
    %166 = vector.shape_cast %163 : vector<8x8x128xf32> to vector<1x1x8x1x8x128xf32>
    tpu.vector_store %arg5[%c7_139, %c0_140, %c0_141, %c1_142, %c0_143, %c0_144], %166 {strides = array<i32>} : memref<8x1x8x2x8x128xf32, #tpu.memory_space<vmem>>, vector<1x1x8x1x8x128xf32>,
    return
  }
  func.func @transform_0(%arg0: i32, %arg1: i32) -> (i32, i32, i32, i32, i32) {
    %c0_i32 = arith.constant 0 : i32
    %c0_i32_0 = arith.constant 0 : i32
    %c0_i32_1 = arith.constant 0 : i32
    %c0_i32_2 = arith.constant 0 : i32
    %c0_i32_3 = arith.constant 0 : i32
    return %arg0, %c0_i32, %c0_i32_0, %c0_i32_1, %c0_i32_2 : i32, i32, i32, i32, i32
  }
  func.func @transform_1(%arg0: i32, %arg1: i32) -> (i32, i32, i32, i32) {
    %c0_i32 = arith.constant 0 : i32
    %c0_i32_0 = arith.constant 0 : i32
    %c0_i32_1 = arith.constant 0 : i32
    %c0_i32_2 = arith.constant 0 : i32
    return %arg1, %c0_i32, %c0_i32_0, %c0_i32_1 : i32, i32, i32, i32
  }
  func.func @transform_2(%arg0: i32, %arg1: i32) -> (i32, i32) {
    %c0_i32 = arith.constant 0 : i32
    %c0_i32_0 = arith.constant 0 : i32
    %c0_i32_1 = arith.constant 0 : i32
    return %c0_i32, %c0_i32_0 : i32, i32
  }
  func.func @transform_3(%arg0: i32, %arg1: i32) -> (i32, i32, i32, i32, i32, i32) {
    %c0_i32 = arith.constant 0 : i32
    %c0_i32_0 = arith.constant 0 : i32
    %c0_i32_1 = arith.constant 0 : i32
    %c0_i32_2 = arith.constant 0 : i32
    %c0_i32_3 = arith.constant 0 : i32
    return %arg0, %arg1, %c0_i32, %c0_i32_0, %c0_i32_1, %c0_i32_2 : i32, i32, i32, i32, i32, i32
  }
}

</mosaic_0001>

<llo_original>
// kernel: _lambda_.1
$region0: #{_lambda_.1}
  #allocation0 [shape = 'u32[]', space=smem, size = 0x4, offset = 0x4, fixed_abs, tag = 'smem constant byte address 0x4 - core index']
  #allocation1 [shape = 'u32[144,128]{1,0:T(1,128)}', space=vmem, size = 0x12000, scoped, tag = 'internal scratch']
  %s0 = inlined_call_operand.vmem [shape: bf16[2,9,9,8,768], index: 0, kind: input, shape index: {}]
  %s1 = inlined_call_operand.vmem [shape: bf16[2,2,768,128], index: 1, kind: input, shape index: {}]
  %s2 = inlined_call_operand.vmem [shape: f32[1,128], index: 2, kind: input, shape index: {}]
  %s3 = inlined_call_operand.vmem [shape: f32[16,2,8,2,8,128], index: 3, kind: output, shape index: {}]
  %s4 = sld [smem:[#allocation0]]
  $region79: #{_lambda_.1} parent=0
    _
  %s6 = ssub.s32 1, %s4
  %s7 = scalar_select 0, %s6, %s4
  $region1: #{_lambda_.1} parent=0
    #allocation2 [shape = 'u8[1048576]{0}', space=vmem, size = 0x100000, scoped, tag = 'output window, operand 0']
    loop: start=0, step=1, limit=6
    $region2: #{_lambda_.1} parent=1 // loop_pre_header
      _
    $region3: #{_lambda_.1} parent=1 // loop_header
      %s9 = sphi 0, %s13
      %p10 = scmp.ge.s32.totalorder %s9, 6
      %s16 = sphi 0, %s28
      %s17 = sphi 0, %s24
      %s18 = sphi 0, %s16
      %s19 = sphi 0, %s17
      %s20 = sphi 0, %s18
      %s21 = sphi 0, %s19
      %s31 = sphi 0, %s33
      %s34 = sphi 0, %s31
      %s35 = sphi 0, %s34
      %s51 = sphi 0, %s35
      %s57 = sphi 0, %s59
      %s60 = sphi 0, %s57
      %s61 = sphi 0, %s60
      %s77 = sphi 0, %s61
      %s81 = sphi 0, %s81
      %s83 = sphi 0, %s81
      %s84 = sphi 0, %s83
      %s98 = sphi 0, %s84
      %s106 = sphi 0, %s108
      %s109 = sphi 0, %s106
      %s110 = sphi 0, %s109
      %s126 = sphi 0, %s110
    $region4: #{_lambda_.1} parent=1 // loop_header_branch
      %12 = sbr.rel (%p10) target = $region8
    $region5: #{_lambda_.1} parent=1 // loop_body
      %s14 = ssub.s32 %s9, 1
      %s15 = ssub.s32 %s9, 2
      %s22 = sadd.s32 1, %s17
      %p23 = scmp.ge.s32.totalorder %s22, 2
      %s24 = scalar_select %p23, 0, %s22
      %s25 = sadd.s32 1, %s16
      %s26 = scalar_select %p23, %s25, %s16
      %p27 = scmp.ge.s32.totalorder %s26, 2
      %s28 = scalar_select %p27, 0, %s26
      %s29 = ssub.s32 %s16, %s28
      %p30 = scmp.eq.s32.totalorder %s29, 0
      %s32 = sadd.s32 %s31, 1
      %s33 = scalar_select %p30, %s31, %s32
      %p36 = pneg %p30
      %p37 = scmp.eq.s32.totalorder %s9, 3
      %p38 = por %p36, %p37
      %p39 = scmp.ne.s32.totalorder %s31, %s34
      %p40 = scmp.eq.s32.totalorder %s9, 0
      %p41 = por %p39, %p40
      %p42 = scmp.ne.s32.totalorder %s31, %s34
      %p43 = scmp.eq.s32.totalorder %s14, 3
      %p44 = por %p42, %p43
      %p45 = scmp.ne.s32.totalorder %s34, %s35
      %p46 = scmp.eq.s32.totalorder %s14, 0
      %p47 = por %p45, %p46
      %p48 = scmp.ne.s32.totalorder %s34, %s35
      %p49 = scmp.eq.s32.totalorder %s15, 3
      %p50 = por %p48, %p49
      %p52 = scmp.ne.s32.totalorder %s35, %s51
      %p53 = scmp.eq.s32.totalorder %s15, 0
      %p54 = por %p52, %p53
      %s55 = ssub.s32 %s17, %s24
      %p56 = scmp.eq.s32.totalorder %s55, 0
      %s58 = sadd.s32 %s57, 1
      %s59 = scalar_select %p56, %s57, %s58
      %p62 = pneg %p56
      %p63 = scmp.eq.s32.totalorder %s9, 3
      %p64 = por %p62, %p63
      %p65 = scmp.ne.s32.totalorder %s57, %s60
      %p66 = scmp.eq.s32.totalorder %s9, 0
      %p67 = por %p65, %p66
      %p68 = scmp.ne.s32.totalorder %s57, %s60
      %p69 = scmp.eq.s32.totalorder %s14, 3
      %p70 = por %p68, %p69
      %p71 = scmp.ne.s32.totalorder %s60, %s61
      %p72 = scmp.eq.s32.totalorder %s14, 0
      %p73 = por %p71, %p72
      %p74 = scmp.ne.s32.totalorder %s60, %s61
      %p75 = scmp.eq.s32.totalorder %s15, 3
      %p76 = por %p74, %p75
      %p78 = scmp.ne.s32.totalorder %s61, %s77
      %p79 = scmp.eq.s32.totalorder %s15, 0
      %p80 = por %p78, %p79
      %s82 = sadd.s32 %s81, 1
      %p85 = scmp.eq.s32.totalorder %s9, 3
      %p86 = scmp.ne.s32.totalorder %s81, %s83
      %p87 = scmp.eq.s32.totalorder %s9, 0
      %p88 = por %p86, %p87
      %p89 = scmp.ne.s32.totalorder %s81, %s83
      %p90 = scmp.eq.s32.totalorder %s14, 3
      %p91 = por %p89, %p90
      %p92 = scmp.ne.s32.totalorder %s83, %s84
      %p93 = scmp.eq.s32.totalorder %s14, 0
      %p94 = por %p92, %p93
      %p95 = scmp.ne.s32.totalorder %s83, %s84
      %p96 = scmp.eq.s32.totalorder %s15, 3
      %p97 = por %p95, %p96
      %p99 = scmp.ne.s32.totalorder %s84, %s98
      %p100 = scmp.eq.s32.totalorder %s15, 0
      %p101 = por %p99, %p100
      %s102 = ssub.s32 %s16, %s28
      %s103 = ssub.s32 %s17, %s24
      %s104 = sor.u32 %s102, %s103
      %p105 = scmp.eq.s32.totalorder %s104, 0
      %s107 = sadd.s32 %s106, 1
      %s108 = scalar_select %p105, %s106, %s107
      %p111 = pneg %p105
      %p112 = scmp.eq.s32.totalorder %s9, 3
      %p113 = por %p111, %p112
      %p114 = scmp.ne.s32.totalorder %s106, %s109
      %p115 = scmp.eq.s32.totalorder %s9, 0
      %p116 = por %p114, %p115
      %p117 = scmp.ne.s32.totalorder %s106, %s109
      %p118 = scmp.eq.s32.totalorder %s14, 3
      %p119 = por %p117, %p118
      %p120 = scmp.ne.s32.totalorder %s109, %s110
      %p121 = scmp.eq.s32.totalorder %s14, 0
      %p122 = por %p120, %p121
      %p123 = scmp.ne.s32.totalorder %s109, %s110
      %p124 = scmp.eq.s32.totalorder %s15, 3
      %p125 = por %p123, %p124
      %p127 = scmp.ne.s32.totalorder %s110, %s126
      %p128 = scmp.eq.s32.totalorder %s15, 0
      %p129 = por %p127, %p128
      %p130 = scmp.le.s32.totalorder 1, %s9
      %p131 = scmp.lt.s32.totalorder %s9, 5
      %p132 = pnand %p130, %p131
      %p133 = pneg %p132
      // Predicated region
      $region9: #{_lambda_.1} parent=5 // pred_check
        _
      $region10: #{_lambda_.1} parent=5 // pred_check_branch
        %135 = sbr.rel (%p132) target = $region12
      $region11: #{_lambda_.1} parent=5 // pred_region
        %s136 = ssub.s32 %s9, 1
        // Predicated region
        $region13: #{_lambda_.1} parent=11 // pred_check
          %p137 = pneg %p94
        $region14: #{_lambda_.1} parent=11 // pred_check_branch
          %139 = sbr.rel (%p137) target = $region16
        $region15: #{_lambda_.1} parent=11 // pred_region
          _
        $region16: #{_lambda_.1} parent=11 // pred_fallthru
          _
      $region12: #{_lambda_.1} parent=5 // pred_fallthru
        _
      %p140 = scmp.lt.s32.totalorder %s9, 4
      // Predicated region
      $region17: #{_lambda_.1} parent=5 // pred_check
        %p141 = pneg %p140
      $region18: #{_lambda_.1} parent=5 // pred_check_branch
        %143 = sbr.rel (%p141) target = $region20
      $region19: #{_lambda_.1} parent=5 // pred_region
        // Predicated region
        $region21: #{_lambda_.1} parent=19 // pred_check
          %p144 = pneg %p41
        $region22: #{_lambda_.1} parent=19 // pred_check_branch
          %146 = sbr.rel (%p144) target = $region24
        $region23: #{_lambda_.1} parent=19 // pred_region
          %p147 = scmp.lt.s32.totalorder %s16, 1
          %s148 = scalar_select %p147, %s16, 1
          %s149 = smul.addr %s148, 486
          %s150 = smul.addr %s149, 4
          %s151 = scalar_lea.vmem %s0, %s150
        $region24: #{_lambda_.1} parent=19 // pred_fallthru
          _
        // Predicated region
        $region25: #{_lambda_.1} parent=19 // pred_check
          %p152 = pneg %p67
        $region26: #{_lambda_.1} parent=19 // pred_check_branch
          %154 = sbr.rel (%p152) target = $region28
        $region27: #{_lambda_.1} parent=19 // pred_region
          %p155 = scmp.lt.s32.totalorder %s17, 1
          %s156 = scalar_select %p155, %s17, 1
          %s157 = smul.addr %s156, 192
          %s158 = smul.addr %s157, 4
          %s159 = scalar_lea.vmem %s1, %s158
        $region28: #{_lambda_.1} parent=19 // pred_fallthru
          _
      $region20: #{_lambda_.1} parent=5 // pred_fallthru
        _
      %p160 = scmp.le.s32.totalorder 1, %s9
      %p161 = scmp.lt.s32.totalorder %s9, 5
      %p162 = pnand %p160, %p161
      %p163 = pneg %p162
      // Predicated region
      $region29: #{_lambda_.1} parent=5 // pred_check
        _
      $region30: #{_lambda_.1} parent=5 // pred_check_branch
        %165 = sbr.rel (%p162) target = $region32
      $region31: #{_lambda_.1} parent=5 // pred_region
        %s166 = ssub.s32 %s9, 1
        %p167 = scmp.lt.s32.totalorder %s18, 1
        %s168 = scalar_select %p167, %s18, 1
        %s169 = smul.addr %s168, 486
        %s170 = smul.addr %s169, 4
        %s171 = scalar_lea.vmem %s0, %s170
        %p172 = pneg %p47
        %p173 = pneg %p44
        %p174 = scmp.lt.s32.totalorder %s19, 1
        %s175 = scalar_select %p174, %s19, 1
        %s176 = smul.addr %s175, 192
        %s177 = smul.addr %s176, 4
        %s178 = scalar_lea.vmem %s1, %s177
        %p179 = pneg %p73
        %p180 = pneg %p70
        %p181 = pneg %p94
        %p182 = pneg %p91
        %p183 = pneg %p122
        %p184 = pneg %p119
        %s185 = sand.u32 %s109, 1
        %s186 = sand.u32 %s109, 1
        %s187 = smul.addr %s186, 1024
        %s188 = scalar_lea.vmem [#allocation2], %s187
        %p189 = scmp.lt.s32.totalorder %s18, 1
        %s190 = scalar_select %p189, %s18, 1
        %s191 = smul.addr %s190, 486
        %s192 = smul.addr %s191, 4
        %s193 = scalar_lea.vmem %s0, %s192
        %p194 = scmp.lt.s32.totalorder %s19, 1
        %s195 = scalar_select %p194, %s19, 1
        %s196 = smul.addr %s195, 192
        %s197 = smul.addr %s196, 4
        %s198 = scalar_lea.vmem %s1, %s197
        %s199 = smul.u32 8, %s18
        %v201 = vld [vmem:[%s198] sm:$0xf]
        %v202 = vld [vmem:[%s198 + $0x4] sm:$0xf]
        %v203 = vld [vmem:[%s198 + $0x8] sm:$0xf]
        %v204 = vld [vmem:[%s198 + $0xc] sm:$0xf]
        %v205 = vld [vmem:[%s198 + $0x10] sm:$0xf]
        %v206 = vld [vmem:[%s198 + $0x14] sm:$0xf]
        %v207 = vld [vmem:[%s198 + $0x18] sm:$0xf]
        %v208 = vld [vmem:[%s198 + $0x1c] sm:$0xf]
        %v209 = vld [vmem:[%s198 + $0x20] sm:$0xf]
        %v210 = vld [vmem:[%s198 + $0x24] sm:$0xf]
        %v211 = vld [vmem:[%s198 + $0x28] sm:$0xf]
        %v212 = vld [vmem:[%s198 + $0x2c] sm:$0xf]
        %v213 = vld [vmem:[%s198 + $0x30] sm:$0xf]
        %v214 = vld [vmem:[%s198 + $0x34] sm:$0xf]
        %v215 = vld [vmem:[%s198 + $0x38] sm:$0xf]
        %v216 = vld [vmem:[%s198 + $0x3c] sm:$0xf]
        %v217 = vld [vmem:[%s198 + $0x40] sm:$0xf]
        %v218 = vld [vmem:[%s198 + $0x44] sm:$0xf]
        %v219 = vld [vmem:[%s198 + $0x48] sm:$0xf]
        %v220 = vld [vmem:[%s198 + $0x4c] sm:$0xf]
        %v221 = vld [vmem:[%s198 + $0x50] sm:$0xf]
        %v222 = vld [vmem:[%s198 + $0x54] sm:$0xf]
        %v223 = vld [vmem:[%s198 + $0x58] sm:$0xf]
        %v224 = vld [vmem:[%s198 + $0x5c] sm:$0xf]
        %v225 = vld [vmem:[%s198 + $0x60] sm:$0xf]
        %v226 = vld [vmem:[%s198 + $0x64] sm:$0xf]
        %v227 = vld [vmem:[%s198 + $0x68] sm:$0xf]
        %v228 = vld [vmem:[%s198 + $0x6c] sm:$0xf]
        %v229 = vld [vmem:[%s198 + $0x70] sm:$0xf]
        %v230 = vld [vmem:[%s198 + $0x74] sm:$0xf]
        %v231 = vld [vmem:[%s198 + $0x78] sm:$0xf]
        %v232 = vld [vmem:[%s198 + $0x7c] sm:$0xf]
        %v233 = vld [vmem:[%s198 + $0x80] sm:$0xf]
        %v234 = vld [vmem:[%s198 + $0x84] sm:$0xf]
        %v235 = vld [vmem:[%s198 + $0x88] sm:$0xf]
        %v236 = vld [vmem:[%s198 + $0x8c] sm:$0xf]
        %v237 = vld [vmem:[%s198 + $0x90] sm:$0xf]
        %v238 = vld [vmem:[%s198 + $0x94] sm:$0xf]
        %v239 = vld [vmem:[%s198 + $0x98] sm:$0xf]
        %v240 = vld [vmem:[%s198 + $0x9c] sm:$0xf]
        %v241 = vld [vmem:[%s198 + $0xa0] sm:$0xf]
        %v242 = vld [vmem:[%s198 + $0xa4] sm:$0xf]
        %v243 = vld [vmem:[%s198 + $0xa8] sm:$0xf]
        %v244 = vld [vmem:[%s198 + $0xac] sm:$0xf]
        %v245 = vld [vmem:[%s198 + $0xb0] sm:$0xf]
        %v246 = vld [vmem:[%s198 + $0xb4] sm:$0xf]
        %v247 = vld [vmem:[%s198 + $0xb8] sm:$0xf]
        %v248 = vld [vmem:[%s198 + $0xbc] sm:$0xf]
        %v249 = vld [vmem:[%s198 + $0xc0] sm:$0xf]
        %v250 = vld [vmem:[%s198 + $0xc4] sm:$0xf]
        %v251 = vld [vmem:[%s198 + $0xc8] sm:$0xf]
        %v252 = vld [vmem:[%s198 + $0xcc] sm:$0xf]
        %v253 = vld [vmem:[%s198 + $0xd0] sm:$0xf]
        %v254 = vld [vmem:[%s198 + $0xd4] sm:$0xf]
        %v255 = vld [vmem:[%s198 + $0xd8] sm:$0xf]
        %v256 = vld [vmem:[%s198 + $0xdc] sm:$0xf]
        %v257 = vld [vmem:[%s198 + $0xe0] sm:$0xf]
        %v258 = vld [vmem:[%s198 + $0xe4] sm:$0xf]
        %v259 = vld [vmem:[%s198 + $0xe8] sm:$0xf]
        %v260 = vld [vmem:[%s198 + $0xec] sm:$0xf]
        %v261 = vld [vmem:[%s198 + $0xf0] sm:$0xf]
        %v262 = vld [vmem:[%s198 + $0xf4] sm:$0xf]
        %v263 = vld [vmem:[%s198 + $0xf8] sm:$0xf]
        %v264 = vld [vmem:[%s198 + $0xfc] sm:$0xf]
        %v265 = vld [vmem:[%s198 + $0x100] sm:$0xf]
        %v266 = vld [vmem:[%s198 + $0x104] sm:$0xf]
        %v267 = vld [vmem:[%s198 + $0x108] sm:$0xf]
        %v268 = vld [vmem:[%s198 + $0x10c] sm:$0xf]
        %v269 = vld [vmem:[%s198 + $0x110] sm:$0xf]
        %v270 = vld [vmem:[%s198 + $0x114] sm:$0xf]
        %v271 = vld [vmem:[%s198 + $0x118] sm:$0xf]
        %v272 = vld [vmem:[%s198 + $0x11c] sm:$0xf]
        %v273 = vld [vmem:[%s198 + $0x120] sm:$0xf]
        %v274 = vld [vmem:[%s198 + $0x124] sm:$0xf]
        %v275 = vld [vmem:[%s198 + $0x128] sm:$0xf]
        %v276 = vld [vmem:[%s198 + $0x12c] sm:$0xf]
        %v277 = vld [vmem:[%s198 + $0x130] sm:$0xf]
        %v278 = vld [vmem:[%s198 + $0x134] sm:$0xf]
        %v279 = vld [vmem:[%s198 + $0x138] sm:$0xf]
        %v280 = vld [vmem:[%s198 + $0x13c] sm:$0xf]
        %v281 = vld [vmem:[%s198 + $0x140] sm:$0xf]
        %v282 = vld [vmem:[%s198 + $0x144] sm:$0xf]
        %v283 = vld [vmem:[%s198 + $0x148] sm:$0xf]
        %v284 = vld [vmem:[%s198 + $0x14c] sm:$0xf]
        %v285 = vld [vmem:[%s198 + $0x150] sm:$0xf]
        %v286 = vld [vmem:[%s198 + $0x154] sm:$0xf]
        %v287 = vld [vmem:[%s198 + $0x158] sm:$0xf]
        %v288 = vld [vmem:[%s198 + $0x15c] sm:$0xf]
        %v289 = vld [vmem:[%s198 + $0x160] sm:$0xf]
        %v290 = vld [vmem:[%s198 + $0x164] sm:$0xf]
        %v291 = vld [vmem:[%s198 + $0x168] sm:$0xf]
        %v292 = vld [vmem:[%s198 + $0x16c] sm:$0xf]
        %v293 = vld [vmem:[%s198 + $0x170] sm:$0xf]
        %v294 = vld [vmem:[%s198 + $0x174] sm:$0xf]
        %v295 = vld [vmem:[%s198 + $0x178] sm:$0xf]
        %v296 = vld [vmem:[%s198 + $0x17c] sm:$0xf]
        %s297 = scalar_lea.vmem %s198, 384
        %v298 = vld [vmem:[%s297] sm:$0xf]
        %v299 = vld [vmem:[%s297 + $0x4] sm:$0xf]
        %v300 = vld [vmem:[%s297 + $0x8] sm:$0xf]
        %v301 = vld [vmem:[%s297 + $0xc] sm:$0xf]
        %v302 = vld [vmem:[%s297 + $0x10] sm:$0xf]
        %v303 = vld [vmem:[%s297 + $0x14] sm:$0xf]
        %v304 = vld [vmem:[%s297 + $0x18] sm:$0xf]
        %v305 = vld [vmem:[%s297 + $0x1c] sm:$0xf]
        %v306 = vld [vmem:[%s297 + $0x20] sm:$0xf]
        %v307 = vld [vmem:[%s297 + $0x24] sm:$0xf]
        %v308 = vld [vmem:[%s297 + $0x28] sm:$0xf]
        %v309 = vld [vmem:[%s297 + $0x2c] sm:$0xf]
        %v310 = vld [vmem:[%s297 + $0x30] sm:$0xf]
        %v311 = vld [vmem:[%s297 + $0x34] sm:$0xf]
        %v312 = vld [vmem:[%s297 + $0x38] sm:$0xf]
        %v313 = vld [vmem:[%s297 + $0x3c] sm:$0xf]
        %v314 = vld [vmem:[%s297 + $0x40] sm:$0xf]
        %v315 = vld [vmem:[%s297 + $0x44] sm:$0xf]
        %v316 = vld [vmem:[%s297 + $0x48] sm:$0xf]
        %v317 = vld [vmem:[%s297 + $0x4c] sm:$0xf]
        %v318 = vld [vmem:[%s297 + $0x50] sm:$0xf]
        %v319 = vld [vmem:[%s297 + $0x54] sm:$0xf]
        %v320 = vld [vmem:[%s297 + $0x58] sm:$0xf]
        %v321 = vld [vmem:[%s297 + $0x5c] sm:$0xf]
        %v322 = vld [vmem:[%s297 + $0x60] sm:$0xf]
        %v323 = vld [vmem:[%s297 + $0x64] sm:$0xf]
        %v324 = vld [vmem:[%s297 + $0x68] sm:$0xf]
        %v325 = vld [vmem:[%s297 + $0x6c] sm:$0xf]
        %v326 = vld [vmem:[%s297 + $0x70] sm:$0xf]
        %v327 = vld [vmem:[%s297 + $0x74] sm:$0xf]
        %v328 = vld [vmem:[%s297 + $0x78] sm:$0xf]
        %v329 = vld [vmem:[%s297 + $0x7c] sm:$0xf]
        %v330 = vld [vmem:[%s297 + $0x80] sm:$0xf]
        %v331 = vld [vmem:[%s297 + $0x84] sm:$0xf]
        %v332 = vld [vmem:[%s297 + $0x88] sm:$0xf]
        %v333 = vld [vmem:[%s297 + $0x8c] sm:$0xf]
        %v334 = vld [vmem:[%s297 + $0x90] sm:$0xf]
        %v335 = vld [vmem:[%s297 + $0x94] sm:$0xf]
        %v336 = vld [vmem:[%s297 + $0x98] sm:$0xf]
        %v337 = vld [vmem:[%s297 + $0x9c] sm:$0xf]
        %v338 = vld [vmem:[%s297 + $0xa0] sm:$0xf]
        %v339 = vld [vmem:[%s297 + $0xa4] sm:$0xf]
        %v340 = vld [vmem:[%s297 + $0xa8] sm:$0xf]
        %v341 = vld [vmem:[%s297 + $0xac] sm:$0xf]
        %v342 = vld [vmem:[%s297 + $0xb0] sm:$0xf]
        %v343 = vld [vmem:[%s297 + $0xb4] sm:$0xf]
        %v344 = vld [vmem:[%s297 + $0xb8] sm:$0xf]
        %v345 = vld [vmem:[%s297 + $0xbc] sm:$0xf]
        %v346 = vld [vmem:[%s297 + $0xc0] sm:$0xf]
        %v347 = vld [vmem:[%s297 + $0xc4] sm:$0xf]
        %v348 = vld [vmem:[%s297 + $0xc8] sm:$0xf]
        %v349 = vld [vmem:[%s297 + $0xcc] sm:$0xf]
        %v350 = vld [vmem:[%s297 + $0xd0] sm:$0xf]
        %v351 = vld [vmem:[%s297 + $0xd4] sm:$0xf]
        %v352 = vld [vmem:[%s297 + $0xd8] sm:$0xf]
        %v353 = vld [vmem:[%s297 + $0xdc] sm:$0xf]
        %v354 = vld [vmem:[%s297 + $0xe0] sm:$0xf]
        %v355 = vld [vmem:[%s297 + $0xe4] sm:$0xf]
        %v356 = vld [vmem:[%s297 + $0xe8] sm:$0xf]
        %v357 = vld [vmem:[%s297 + $0xec] sm:$0xf]
        %v358 = vld [vmem:[%s297 + $0xf0] sm:$0xf]
        %v359 = vld [vmem:[%s297 + $0xf4] sm:$0xf]
        %v360 = vld [vmem:[%s297 + $0xf8] sm:$0xf]
        %v361 = vld [vmem:[%s297 + $0xfc] sm:$0xf]
        %v362 = vld [vmem:[%s297 + $0x100] sm:$0xf]
        %v363 = vld [vmem:[%s297 + $0x104] sm:$0xf]
        %v364 = vld [vmem:[%s297 + $0x108] sm:$0xf]
        %v365 = vld [vmem:[%s297 + $0x10c] sm:$0xf]
        %v366 = vld [vmem:[%s297 + $0x110] sm:$0xf]
        %v367 = vld [vmem:[%s297 + $0x114] sm:$0xf]
        %v368 = vld [vmem:[%s297 + $0x118] sm:$0xf]
        %v369 = vld [vmem:[%s297 + $0x11c] sm:$0xf]
        %v370 = vld [vmem:[%s297 + $0x120] sm:$0xf]
        %v371 = vld [vmem:[%s297 + $0x124] sm:$0xf]
        %v372 = vld [vmem:[%s297 + $0x128] sm:$0xf]
        %v373 = vld [vmem:[%s297 + $0x12c] sm:$0xf]
        %v374 = vld [vmem:[%s297 + $0x130] sm:$0xf]
        %v375 = vld [vmem:[%s297 + $0x134] sm:$0xf]
        %v376 = vld [vmem:[%s297 + $0x138] sm:$0xf]
        %v377 = vld [vmem:[%s297 + $0x13c] sm:$0xf]
        %v378 = vld [vmem:[%s297 + $0x140] sm:$0xf]
        %v379 = vld [vmem:[%s297 + $0x144] sm:$0xf]
        %v380 = vld [vmem:[%s297 + $0x148] sm:$0xf]
        %v381 = vld [vmem:[%s297 + $0x14c] sm:$0xf]
        %v382 = vld [vmem:[%s297 + $0x150] sm:$0xf]
        %v383 = vld [vmem:[%s297 + $0x154] sm:$0xf]
        %v384 = vld [vmem:[%s297 + $0x158] sm:$0xf]
        %v385 = vld [vmem:[%s297 + $0x15c] sm:$0xf]
        %v386 = vld [vmem:[%s297 + $0x160] sm:$0xf]
        %v387 = vld [vmem:[%s297 + $0x164] sm:$0xf]
        %v388 = vld [vmem:[%s297 + $0x168] sm:$0xf]
        %v389 = vld [vmem:[%s297 + $0x16c] sm:$0xf]
        %v390 = vld [vmem:[%s297 + $0x170] sm:$0xf]
        %v391 = vld [vmem:[%s297 + $0x174] sm:$0xf]
        %v392 = vld [vmem:[%s297 + $0x178] sm:$0xf]
        %v393 = vld [vmem:[%s297 + $0x17c] sm:$0xf]
        %v394 = vld [vmem:[%s2] sm:$0x1]
        %v396 = vlaneseq
        %v397 = vshrl.u32 %v396, 7
        %v398 = vsub.s32 0, %v397
        %v399 = vrot.slane %v394, %v398
        %s401 = smul.u32 %s19, 54
        %s402 = smul.addr %s401, 4
        %s403 = scalar_lea.vmem %s193, %s402
        %v404 = vld [vmem:[%s403] sm:$0xff]
        %v405 = vld [vmem:[%s403 + $0x8] sm:$0xff]
        %v406 = vld [vmem:[%s403 + $0x10] sm:$0xff]
        %v407 = vld [vmem:[%s403 + $0x18] sm:$0xff]
        %v408 = vld [vmem:[%s403 + $0x20] sm:$0xff]
        %v409 = vld [vmem:[%s403 + $0x28] sm:$0xff]
        %v410 = vld [vmem:[%s403 + $0x30] sm:$0xff]
        %v411 = vld [vmem:[%s403 + $0x38] sm:$0xff]
        %v412 = vld [vmem:[%s403 + $0x40] sm:$0xff]
        %v413 = vld [vmem:[%s403 + $0x48] sm:$0xff]
        %v414 = vld [vmem:[%s403 + $0x50] sm:$0xff]
        %v415 = vld [vmem:[%s403 + $0x58] sm:$0xff]
        %v416 = vld [vmem:[%s403 + $0x60] sm:$0xff]
        %v417 = vld [vmem:[%s403 + $0x68] sm:$0xff]
        %v418 = vld [vmem:[%s403 + $0x70] sm:$0xff]
        %v419 = vld [vmem:[%s403 + $0x78] sm:$0xff]
        %v420 = vld [vmem:[%s403 + $0x80] sm:$0xff]
        %v421 = vld [vmem:[%s403 + $0x88] sm:$0xff]
        %v422 = vld [vmem:[%s403 + $0x90] sm:$0xff]
        %v423 = vld [vmem:[%s403 + $0x98] sm:$0xff]
        %v424 = vld [vmem:[%s403 + $0xa0] sm:$0xff]
        %v425 = vld [vmem:[%s403 + $0xa8] sm:$0xff]
        %v426 = vld [vmem:[%s403 + $0xb0] sm:$0xff]
        %v427 = vld [vmem:[%s403 + $0xb8] sm:$0xff]
        %v428 = vld [vmem:[%s403 + $0xc0] sm:$0xff]
        %v429 = vld [vmem:[%s403 + $0xc8] sm:$0xff]
        %v430 = vld [vmem:[%s403 + $0xd0] sm:$0xff]
        %v455 = vunpack.c.l.b16 %v404
        %v456 = vunpack.c.h.b16 %v404
        %v457 = vunpack.c.l.b16 %v405
        %v458 = vunpack.c.h.b16 %v405
        %v459 = vunpack.c.l.b16 %v406
        %v460 = vunpack.c.h.b16 %v406
        %v461 = vunpack.c.l.b16 %v407
        %v462 = vunpack.c.h.b16 %v407
        %v463 = vunpack.c.l.b16 %v408
        %v464 = vunpack.c.h.b16 %v408
        %v465 = vunpack.c.l.b16 %v409
        %v466 = vunpack.c.h.b16 %v409
        %v467 = vunpack.c.l.b16 %v410
        %v468 = vunpack.c.h.b16 %v410
        %v469 = vunpack.c.l.b16 %v411
        %v470 = vunpack.c.h.b16 %v411
        %v471 = vunpack.c.l.b16 %v412
        %v472 = vunpack.c.h.b16 %v412
        %v473 = vunpack.c.l.b16 %v413
        %v474 = vunpack.c.h.b16 %v413
        %v475 = vunpack.c.l.b16 %v414
        %v476 = vunpack.c.h.b16 %v414
        %v477 = vunpack.c.l.b16 %v415
        %v478 = vunpack.c.h.b16 %v415
        %v479 = vunpack.c.l.b16 %v416
        %v480 = vunpack.c.h.b16 %v416
        %v481 = vunpack.c.l.b16 %v417
        %v482 = vunpack.c.h.b16 %v417
        %v483 = vunpack.c.l.b16 %v418
        %v484 = vunpack.c.h.b16 %v418
        %v485 = vunpack.c.l.b16 %v419
        %v486 = vunpack.c.h.b16 %v419
        %v487 = vunpack.c.l.b16 %v420
        %v488 = vunpack.c.h.b16 %v420
        %v489 = vunpack.c.l.b16 %v421
        %v490 = vunpack.c.h.b16 %v421
        %v491 = vunpack.c.l.b16 %v422
        %v492 = vunpack.c.h.b16 %v422
        %v493 = vunpack.c.l.b16 %v423
        %v494 = vunpack.c.h.b16 %v423
        %v495 = vunpack.c.l.b16 %v424
        %v496 = vunpack.c.h.b16 %v424
        %v497 = vunpack.c.l.b16 %v425
        %v498 = vunpack.c.h.b16 %v425
        %v499 = vunpack.c.l.b16 %v426
        %v500 = vunpack.c.h.b16 %v426
        %v501 = vunpack.c.l.b16 %v427
        %v502 = vunpack.c.h.b16 %v427
        %v503 = vpack.c.b16 %v461, %v455
        %v504 = vpack.c.b16 %v462, %v456
        %v505 = vpack.c.b16 %v463, %v457
        %v506 = vpack.c.b16 %v464, %v458
        %v507 = vpack.c.b16 %v465, %v459
        %v508 = vpack.c.b16 %v466, %v460
        %v509 = vpack.c.b16 %v473, %v467
        %v510 = vpack.c.b16 %v474, %v468
        %v511 = vpack.c.b16 %v475, %v469
        %v512 = vpack.c.b16 %v476, %v470
        %v513 = vpack.c.b16 %v477, %v471
        %v514 = vpack.c.b16 %v478, %v472
        %v515 = vpack.c.b16 %v485, %v479
        %v516 = vpack.c.b16 %v486, %v480
        %v517 = vpack.c.b16 %v487, %v481
        %v518 = vpack.c.b16 %v488, %v482
        %v519 = vpack.c.b16 %v489, %v483
        %v520 = vpack.c.b16 %v490, %v484
        %v521 = vpack.c.b16 %v497, %v491
        %v522 = vpack.c.b16 %v498, %v492
        %v523 = vpack.c.b16 %v499, %v493
        %v524 = vpack.c.b16 %v500, %v494
        %v525 = vpack.c.b16 %v501, %v495
        %v526 = vpack.c.b16 %v502, %v496
        %v647 = vunpack.c.l.b16 %v201
        %v648 = vunpack.c.l.b16 %v202
        %v649 = vunpack.c.l.b16 %v203
        %v650 = vunpack.c.l.b16 %v204
        %v651 = vunpack.c.l.b16 %v205
        %v652 = vunpack.c.l.b16 %v206
        %v653 = vunpack.c.l.b16 %v207
        %v654 = vunpack.c.l.b16 %v208
        %v655 = vunpack.c.l.b16 %v209
        %v656 = vunpack.c.l.b16 %v210
        %v657 = vunpack.c.l.b16 %v211
        %v658 = vunpack.c.l.b16 %v212
        %v659 = vunpack.c.l.b16 %v213
        %v660 = vunpack.c.l.b16 %v214
        %v661 = vunpack.c.l.b16 %v215
        %v662 = vunpack.c.l.b16 %v216
        %v663 = vunpack.c.l.b16 %v217
        %v664 = vunpack.c.l.b16 %v218
        %v665 = vunpack.c.l.b16 %v219
        %v666 = vunpack.c.l.b16 %v220
        %v667 = vunpack.c.l.b16 %v221
        %v668 = vunpack.c.l.b16 %v222
        %v669 = vunpack.c.l.b16 %v223
        %v670 = vunpack.c.l.b16 %v224
        %v671 = vunpack.c.l.b16 %v225
        %v672 = vunpack.c.l.b16 %v226
        %v673 = vunpack.c.l.b16 %v227
        %v674 = vunpack.c.l.b16 %v228
        %v675 = vunpack.c.l.b16 %v229
        %v676 = vunpack.c.l.b16 %v230
        %v677 = vunpack.c.l.b16 %v231
        %v678 = vunpack.c.l.b16 %v232
        %v679 = vunpack.c.l.b16 %v233
        %v680 = vunpack.c.l.b16 %v234
        %v681 = vunpack.c.l.b16 %v235
        %v682 = vunpack.c.l.b16 %v236
        %v683 = vunpack.c.l.b16 %v237
        %v684 = vunpack.c.l.b16 %v238
        %v685 = vunpack.c.l.b16 %v239
        %v686 = vunpack.c.l.b16 %v240
        %v687 = vunpack.c.l.b16 %v241
        %v688 = vunpack.c.l.b16 %v242
        %v689 = vunpack.c.l.b16 %v243
        %v690 = vunpack.c.l.b16 %v244
        %v691 = vunpack.c.l.b16 %v245
        %v692 = vunpack.c.l.b16 %v246
        %v693 = vunpack.c.l.b16 %v247
        %v694 = vunpack.c.l.b16 %v248
        %v695 = vunpack.c.l.b16 %v249
        %v696 = vunpack.c.l.b16 %v250
        %v697 = vunpack.c.l.b16 %v251
        %v698 = vunpack.c.l.b16 %v252
        %v699 = vunpack.c.l.b16 %v253
        %v700 = vunpack.c.l.b16 %v254
        %v701 = vunpack.c.l.b16 %v255
        %v702 = vunpack.c.l.b16 %v256
        %v703 = vunpack.c.l.b16 %v257
        %v704 = vunpack.c.l.b16 %v258
        %v705 = vunpack.c.l.b16 %v259
        %v706 = vunpack.c.l.b16 %v260
        %v707 = vunpack.c.l.b16 %v261
        %v708 = vunpack.c.l.b16 %v262
        %v709 = vunpack.c.l.b16 %v263
        %v710 = vunpack.c.l.b16 %v264
        %v711 = vunpack.c.l.b16 %v265
        %v712 = vunpack.c.l.b16 %v266
        %v713 = vunpack.c.l.b16 %v267
        %v714 = vunpack.c.l.b16 %v268
        %v715 = vunpack.c.l.b16 %v269
        %v716 = vunpack.c.l.b16 %v270
        %v717 = vunpack.c.l.b16 %v271
        %v718 = vunpack.c.l.b16 %v272
        %v719 = vunpack.c.l.b16 %v273
        %v720 = vunpack.c.l.b16 %v274
        %v721 = vunpack.c.l.b16 %v275
        %v722 = vunpack.c.l.b16 %v276
        %v723 = vunpack.c.l.b16 %v277
        %v724 = vunpack.c.l.b16 %v278
        %v725 = vunpack.c.l.b16 %v279
        %v726 = vunpack.c.l.b16 %v280
        %v727 = vunpack.c.l.b16 %v281
        %v728 = vunpack.c.l.b16 %v282
        %v729 = vunpack.c.l.b16 %v283
        %v730 = vunpack.c.l.b16 %v284
        %v731 = vunpack.c.l.b16 %v285
        %v732 = vunpack.c.l.b16 %v286
        %v733 = vunpack.c.l.b16 %v287
        %v734 = vunpack.c.l.b16 %v288
        %v735 = vunpack.c.l.b16 %v289
        %v736 = vunpack.c.l.b16 %v290
        %v737 = vunpack.c.l.b16 %v291
        %v738 = vunpack.c.l.b16 %v292
        %v739 = vunpack.c.l.b16 %v293
        %v740 = vunpack.c.l.b16 %v294
        %v741 = vunpack.c.l.b16 %v295
        %v742 = vunpack.c.l.b16 %v296
        %v743 = vpack.c.b16 %v648, %v647
        %v744 = vpack.c.b16 %v650, %v649
        %v745 = vpack.c.b16 %v652, %v651
        %v746 = vpack.c.b16 %v654, %v653
        %v747 = vpack.c.b16 %v656, %v655
        %v748 = vpack.c.b16 %v658, %v657
        %v749 = vpack.c.b16 %v660, %v659
        %v750 = vpack.c.b16 %v662, %v661
        %v751 = vpack.c.b16 %v664, %v663
        %v752 = vpack.c.b16 %v666, %v665
        %v753 = vpack.c.b16 %v668, %v667
        %v754 = vpack.c.b16 %v670, %v669
        %v755 = vpack.c.b16 %v672, %v671
        %v756 = vpack.c.b16 %v674, %v673
        %v757 = vpack.c.b16 %v676, %v675
        %v758 = vpack.c.b16 %v678, %v677
        %v759 = vpack.c.b16 %v680, %v679
        %v760 = vpack.c.b16 %v682, %v681
        %v761 = vpack.c.b16 %v684, %v683
        %v762 = vpack.c.b16 %v686, %v685
        %v763 = vpack.c.b16 %v688, %v687
        %v764 = vpack.c.b16 %v690, %v689
        %v765 = vpack.c.b16 %v692, %v691
        %v766 = vpack.c.b16 %v694, %v693
        %v767 = vpack.c.b16 %v696, %v695
        %v768 = vpack.c.b16 %v698, %v697
        %v769 = vpack.c.b16 %v700, %v699
        %v770 = vpack.c.b16 %v702, %v701
        %v771 = vpack.c.b16 %v704, %v703
        %v772 = vpack.c.b16 %v706, %v705
        %v773 = vpack.c.b16 %v708, %v707
        %v774 = vpack.c.b16 %v710, %v709
        %v775 = vpack.c.b16 %v712, %v711
        %v776 = vpack.c.b16 %v714, %v713
        %v777 = vpack.c.b16 %v716, %v715
        %v778 = vpack.c.b16 %v718, %v717
        %v779 = vpack.c.b16 %v720, %v719
        %v780 = vpack.c.b16 %v722, %v721
        %v781 = vpack.c.b16 %v724, %v723
        %v782 = vpack.c.b16 %v726, %v725
        %v783 = vpack.c.b16 %v728, %v727
        %v784 = vpack.c.b16 %v730, %v729
        %v785 = vpack.c.b16 %v732, %v731
        %v786 = vpack.c.b16 %v734, %v733
        %v787 = vpack.c.b16 %v736, %v735
        %v788 = vpack.c.b16 %v738, %v737
        %v789 = vpack.c.b16 %v740, %v739
        %v790 = vpack.c.b16 %v742, %v741
        %839 = vmatprep.subr.bf16.mxu0 0
        %840 = vmatpush1.bf16.msra.mxu0 %v743
        %841 = vmatprep.subr.bf16.mxu0 0
        %842 = vmatpush1.bf16.msra.mxu0 %v744
        %843 = vmatprep.subr.bf16.mxu0 0
        %844 = vmatpush1.bf16.msra.mxu0 %v745
        %845 = vmatprep.subr.bf16.mxu0 0
        %846 = vmatpush1.bf16.msra.mxu0 %v746
        %847 = vmatprep.subr.bf16.mxu0 0
        %848 = vmatpush1.bf16.msra.mxu0 %v747
        %849 = vmatprep.subr.bf16.mxu0 0
        %850 = vmatpush1.bf16.msra.mxu0 %v748
        %851 = vmatprep.subr.bf16.mxu0 0
        %852 = vmatpush1.bf16.msra.mxu0 %v749
        %853 = vmatprep.subr.bf16.mxu0 0
        %854 = vmatpush1.bf16.msra.mxu0 %v750
        %855 = vmatprep.subr.bf16.mxu0 0
        %856 = vmatpush1.bf16.msra.mxu0 %v751
        %857 = vmatprep.subr.bf16.mxu0 0
        %858 = vmatpush1.bf16.msra.mxu0 %v752
        %859 = vmatprep.subr.bf16.mxu0 0
        %860 = vmatpush1.bf16.msra.mxu0 %v753
        %861 = vmatprep.subr.bf16.mxu0 0
        %862 = vmatpush1.bf16.msra.mxu0 %v754
        %863 = vmatprep.subr.bf16.mxu0 0
        %864 = vmatpush1.bf16.msra.mxu0 %v755
        %865 = vmatprep.subr.bf16.mxu0 0
        %866 = vmatpush1.bf16.msra.mxu0 %v756
        %867 = vmatprep.subr.bf16.mxu0 0
        %868 = vmatpush1.bf16.msra.mxu0 %v757
        %869 = vmatprep.subr.bf16.mxu0 0
        %870 = vmatpush1.bf16.msra.mxu0 %v758
        %871 = vmatprep.mubr.bf16.mxu0 %v504
        %872 = vmatmul.mubr.bf16.gmra.mrb[0].mxu0 %v503
        %v873 = vpop.f32.mrb[0].mxu0
        %v874 = vadd.f32 %v399, %v873
        %v875 = vpop.f32.mrb[0].mxu0
        %v876 = vpop.f32.mrb[0].mxu0
        %v877 = vadd.f32 %v399, %v876
        %v878 = vpop.f32.mrb[0].mxu0
        %879 = vmatprep.mubr.bf16.mxu0 %v510
        %880 = vmatmul.mubr.bf16.gmra.mrb[0].mxu0 %v509
        %v881 = vpop.f32.mrb[0].mxu0
        %v882 = vadd.f32 %v399, %v881
        %v883 = vpop.f32.mrb[0].mxu0
        %v884 = vpop.f32.mrb[0].mxu0
        %v885 = vadd.f32 %v399, %v884
        %v886 = vpop.f32.mrb[0].mxu0
        %887 = vmatprep.mubr.bf16.mxu0 %v516
        %888 = vmatmul.mubr.bf16.gmra.mrb[0].mxu0 %v515
        %v889 = vpop.f32.mrb[0].mxu0
        %v890 = vadd.f32 %v399, %v889
        %v891 = vpop.f32.mrb[0].mxu0
        %v892 = vpop.f32.mrb[0].mxu0
        %v893 = vadd.f32 %v399, %v892
        %v894 = vpop.f32.mrb[0].mxu0
        %895 = vmatprep.mubr.bf16.mxu0 %v522
        %896 = vmatmul.mubr.bf16.gmra.mrb[0].mxu0 %v521
        %v897 = vpop.f32.mrb[0].mxu0
        %v898 = vadd.f32 %v399, %v897
        %v899 = vpop.f32.mrb[0].mxu0
        %v900 = vpop.f32.mrb[0].mxu0
        %v901 = vadd.f32 %v399, %v900
        %v902 = vpop.f32.mrb[0].mxu0
        %903 = vdwg.mxu0
        %904 = vmatprep.subr.bf16.mxu0 0
        %905 = vmatpush1.bf16.msra.mxu0 %v759
        %906 = vmatprep.subr.bf16.mxu0 0
        %907 = vmatpush1.bf16.msra.mxu0 %v760
        %908 = vmatprep.subr.bf16.mxu0 0
        %909 = vmatpush1.bf16.msra.mxu0 %v761
        %910 = vmatprep.subr.bf16.mxu0 0
        %911 = vmatpush1.bf16.msra.mxu0 %v762
        %912 = vmatprep.subr.bf16.mxu0 0
        %913 = vmatpush1.bf16.msra.mxu0 %v763
        %914 = vmatprep.subr.bf16.mxu0 0
        %915 = vmatpush1.bf16.msra.mxu0 %v764
        %916 = vmatprep.subr.bf16.mxu0 0
        %917 = vmatpush1.bf16.msra.mxu0 %v765
        %918 = vmatprep.subr.bf16.mxu0 0
        %919 = vmatpush1.bf16.msra.mxu0 %v766
        %920 = vmatprep.subr.bf16.mxu0 0
        %921 = vmatpush1.bf16.msra.mxu0 %v767
        %922 = vmatprep.subr.bf16.mxu0 0
        %923 = vmatpush1.bf16.msra.mxu0 %v768
        %924 = vmatprep.subr.bf16.mxu0 0
        %925 = vmatpush1.bf16.msra.mxu0 %v769
        %926 = vmatprep.subr.bf16.mxu0 0
        %927 = vmatpush1.bf16.msra.mxu0 %v770
        %928 = vmatprep.subr.bf16.mxu0 0
        %929 = vmatpush1.bf16.msra.mxu0 %v771
        %930 = vmatprep.subr.bf16.mxu0 0
        %931 = vmatpush1.bf16.msra.mxu0 %v772
        %932 = vmatprep.subr.bf16.mxu0 0
        %933 = vmatpush1.bf16.msra.mxu0 %v773
        %934 = vmatprep.subr.bf16.mxu0 0
        %935 = vmatpush1.bf16.msra.mxu0 %v774
        %936 = vmatprep.mubr.bf16.mxu0 %v506
        %937 = vmatmul.mubr.bf16.gmra.mrb[0].mxu0 %v505
        %v938 = vpop.f32.mrb[0].mxu0
        %v939 = vadd.f32 %v874, %v938
        %v940 = vpop.f32.mrb[0].mxu0
        %v941 = vpop.f32.mrb[0].mxu0
        %v942 = vadd.f32 %v877, %v941
        %v943 = vpop.f32.mrb[0].mxu0
        %944 = vmatprep.mubr.bf16.mxu0 %v512
        %945 = vmatmul.mubr.bf16.gmra.mrb[0].mxu0 %v511
        %v946 = vpop.f32.mrb[0].mxu0
        %v947 = vadd.f32 %v882, %v946
        %v948 = vpop.f32.mrb[0].mxu0
        %v949 = vpop.f32.mrb[0].mxu0
        %v950 = vadd.f32 %v885, %v949
        %v951 = vpop.f32.mrb[0].mxu0
        %952 = vmatprep.mubr.bf16.mxu0 %v518
        %953 = vmatmul.mubr.bf16.gmra.mrb[0].mxu0 %v517
        %v954 = vpop.f32.mrb[0].mxu0
        %v955 = vadd.f32 %v890, %v954
        %v956 = vpop.f32.mrb[0].mxu0
        %v957 = vpop.f32.mrb[0].mxu0
        %v958 = vadd.f32 %v893, %v957
        %v959 = vpop.f32.mrb[0].mxu0
        %960 = vmatprep.mubr.bf16.mxu0 %v524
        %961 = vmatmul.mubr.bf16.gmra.mrb[0].mxu0 %v523
        %v962 = vpop.f32.mrb[0].mxu0
        %v963 = vadd.f32 %v898, %v962
        %v964 = vpop.f32.mrb[0].mxu0
        %v965 = vpop.f32.mrb[0].mxu0
        %v966 = vadd.f32 %v901, %v965
        %v967 = vpop.f32.mrb[0].mxu0
        %968 = vdwg.mxu0
        %969 = vmatprep.subr.bf16.mxu0 0
        %970 = vmatpush1.bf16.msra.mxu0 %v775
        %971 = vmatprep.subr.bf16.mxu0 0
        %972 = vmatpush1.bf16.msra.mxu0 %v776
        %973 = vmatprep.subr.bf16.mxu0 0
        %974 = vmatpush1.bf16.msra.mxu0 %v777
        %975 = vmatprep.subr.bf16.mxu0 0
        %976 = vmatpush1.bf16.msra.mxu0 %v778
        %977 = vmatprep.subr.bf16.mxu0 0
        %978 = vmatpush1.bf16.msra.mxu0 %v779
        %979 = vmatprep.subr.bf16.mxu0 0
        %980 = vmatpush1.bf16.msra.mxu0 %v780
        %981 = vmatprep.subr.bf16.mxu0 0
        %982 = vmatpush1.bf16.msra.mxu0 %v781
        %983 = vmatprep.subr.bf16.mxu0 0
        %984 = vmatpush1.bf16.msra.mxu0 %v782
        %985 = vmatprep.subr.bf16.mxu0 0
        %986 = vmatpush1.bf16.msra.mxu0 %v783
        %987 = vmatprep.subr.bf16.mxu0 0
        %988 = vmatpush1.bf16.msra.mxu0 %v784
        %989 = vmatprep.subr.bf16.mxu0 0
        %990 = vmatpush1.bf16.msra.mxu0 %v785
        %991 = vmatprep.subr.bf16.mxu0 0
        %992 = vmatpush1.bf16.msra.mxu0 %v786
        %993 = vmatprep.subr.bf16.mxu0 0
        %994 = vmatpush1.bf16.msra.mxu0 %v787
        %995 = vmatprep.subr.bf16.mxu0 0
        %996 = vmatpush1.bf16.msra.mxu0 %v788
        %997 = vmatprep.subr.bf16.mxu0 0
        %998 = vmatpush1.bf16.msra.mxu0 %v789
        %999 = vmatprep.subr.bf16.mxu0 0
        %1000 = vmatpush1.bf16.msra.mxu0 %v790
        %1001 = vmatprep.mubr.bf16.mxu0 %v508
        %1002 = vmatmul.mubr.bf16.gmra.mrb[0].mxu0 %v507
        %v1003 = vpop.f32.mrb[0].mxu0
        %v1004 = vadd.f32 %v939, %v1003
        %v1005 = vpop.f32.mrb[0].mxu0
        %v1006 = vpop.f32.mrb[0].mxu0
        %v1007 = vadd.f32 %v942, %v1006
        %v1008 = vpop.f32.mrb[0].mxu0
        %1009 = vmatprep.mubr.bf16.mxu0 %v514
        %1010 = vmatmul.mubr.bf16.gmra.mrb[0].mxu0 %v513
        %v1011 = vpop.f32.mrb[0].mxu0
        %v1012 = vadd.f32 %v947, %v1011
        %v1013 = vpop.f32.mrb[0].mxu0
        %v1014 = vpop.f32.mrb[0].mxu0
        %v1015 = vadd.f32 %v950, %v1014
        %v1016 = vpop.f32.mrb[0].mxu0
        %1017 = vmatprep.mubr.bf16.mxu0 %v520
        %1018 = vmatmul.mubr.bf16.gmra.mrb[0].mxu0 %v519
        %v1019 = vpop.f32.mrb[0].mxu0
        %v1020 = vadd.f32 %v955, %v1019
        %v1021 = vpop.f32.mrb[0].mxu0
        %v1022 = vpop.f32.mrb[0].mxu0
        %v1023 = vadd.f32 %v958, %v1022
        %v1024 = vpop.f32.mrb[0].mxu0
        %1025 = vmatprep.mubr.bf16.mxu0 %v526
        %1026 = vmatmul.mubr.bf16.gmra.mrb[0].mxu0 %v525
        %v1027 = vpop.f32.mrb[0].mxu0
        %v1028 = vadd.f32 %v963, %v1027
        %v1029 = vpop.f32.mrb[0].mxu0
        %v1030 = vpop.f32.mrb[0].mxu0
        %v1031 = vadd.f32 %v966, %v1030
        %v1032 = vpop.f32.mrb[0].mxu0
        %1033 = vdwg.mxu0
        %1034 = vst [vmem:[%s188] sm:$0xff] %v1004
        %1035 = vst [vmem:[%s188 + $0x10] sm:$0xff] %v1007
        %1036 = vst [vmem:[%s188 + $0x20] sm:$0xff] %v1012
        %1037 = vst [vmem:[%s188 + $0x30] sm:$0xff] %v1015
        %1038 = vst [vmem:[%s188 + $0x40] sm:$0xff] %v1020
        %1039 = vst [vmem:[%s188 + $0x50] sm:$0xff] %v1023
        %1040 = vst [vmem:[%s188 + $0x60] sm:$0xff] %v1028
        %1041 = vst [vmem:[%s188 + $0x70] sm:$0xff] %v1031
        %v1045 = vunpack.c.l.b16 %v428
        %v1046 = vunpack.c.h.b16 %v428
        %v1047 = vunpack.c.l.b16 %v429
        %v1048 = vunpack.c.h.b16 %v429
        %v1049 = vunpack.c.l.b16 %v430
        %v1050 = vunpack.c.h.b16 %v430
        %v1051 = vpack.c.b16 %v467, %v461
        %v1052 = vpack.c.b16 %v468, %v462
        %v1053 = vpack.c.b16 %v469, %v463
        %v1054 = vpack.c.b16 %v470, %v464
        %v1055 = vpack.c.b16 %v471, %v465
        %v1056 = vpack.c.b16 %v472, %v466
        %v1057 = vpack.c.b16 %v479, %v473
        %v1058 = vpack.c.b16 %v480, %v474
        %v1059 = vpack.c.b16 %v481, %v475
        %v1060 = vpack.c.b16 %v482, %v476
        %v1061 = vpack.c.b16 %v483, %v477
        %v1062 = vpack.c.b16 %v484, %v478
        %v1063 = vpack.c.b16 %v491, %v485
        %v1064 = vpack.c.b16 %v492, %v486
        %v1065 = vpack.c.b16 %v493, %v487
        %v1066 = vpack.c.b16 %v494, %v488
        %v1067 = vpack.c.b16 %v495, %v489
        %v1068 = vpack.c.b16 %v496, %v490
        %v1069 = vpack.c.b16 %v1045, %v497
        %v1070 = vpack.c.b16 %v1046, %v498
        %v1071 = vpack.c.b16 %v1047, %v499
        %v1072 = vpack.c.b16 %v1048, %v500
        %v1073 = vpack.c.b16 %v1049, %v501
        %v1074 = vpack.c.b16 %v1050, %v502
        %v1195 = vunpack.c.l.b16 %v298
        %v1196 = vunpack.c.l.b16 %v299
        %v1197 = vunpack.c.l.b16 %v300
        %v1198 = vunpack.c.l.b16 %v301
        %v1199 = vunpack.c.l.b16 %v302
        %v1200 = vunpack.c.l.b16 %v303
        %v1201 = vunpack.c.l.b16 %v304
        %v1202 = vunpack.c.l.b16 %v305
        %v1203 = vunpack.c.l.b16 %v306
        %v1204 = vunpack.c.l.b16 %v307
        %v1205 = vunpack.c.l.b16 %v308
        %v1206 = vunpack.c.l.b16 %v309
        %v1207 = vunpack.c.l.b16 %v310
        %v1208 = vunpack.c.l.b16 %v311
        %v1209 = vunpack.c.l.b16 %v312
        %v1210 = vunpack.c.l.b16 %v313
        %v1211 = vunpack.c.l.b16 %v314
        %v1212 = vunpack.c.l.b16 %v315
        %v1213 = vunpack.c.l.b16 %v316
        %v1214 = vunpack.c.l.b16 %v317
        %v1215 = vunpack.c.l.b16 %v318
        %v1216 = vunpack.c.l.b16 %v319
        %v1217 = vunpack.c.l.b16 %v320
        %v1218 = vunpack.c.l.b16 %v321
        %v1219 = vunpack.c.l.b16 %v322
        %v1220 = vunpack.c.l.b16 %v323
        %v1221 = vunpack.c.l.b16 %v324
        %v1222 = vunpack.c.l.b16 %v325
        %v1223 = vunpack.c.l.b16 %v326
        %v1224 = vunpack.c.l.b16 %v327
        %v1225 = vunpack.c.l.b16 %v328
        %v1226 = vunpack.c.l.b16 %v329
        %v1227 = vunpack.c.l.b16 %v330
        %v1228 = vunpack.c.l.b16 %v331
        %v1229 = vunpack.c.l.b16 %v332
        %v1230 = vunpack.c.l.b16 %v333
        %v1231 = vunpack.c.l.b16 %v334
        %v1232 = vunpack.c.l.b16 %v335
        %v1233 = vunpack.c.l.b16 %v336
        %v1234 = vunpack.c.l.b16 %v337
        %v1235 = vunpack.c.l.b16 %v338
        %v1236 = vunpack.c.l.b16 %v339
        %v1237 = vunpack.c.l.b16 %v340
        %v1238 = vunpack.c.l.b16 %v341
        %v1239 = vunpack.c.l.b16 %v342
        %v1240 = vunpack.c.l.b16 %v343
        %v1241 = vunpack.c.l.b16 %v344
        %v1242 = vunpack.c.l.b16 %v345
        %v1243 = vunpack.c.l.b16 %v346
        %v1244 = vunpack.c.l.b16 %v347
        %v1245 = vunpack.c.l.b16 %v348
        %v1246 = vunpack.c.l.b16 %v349
        %v1247 = vunpack.c.l.b16 %v350
        %v1248 = vunpack.c.l.b16 %v351
        %v1249 = vunpack.c.l.b16 %v352
        %v1250 = vunpack.c.l.b16 %v353
        %v1251 = vunpack.c.l.b16 %v354
        %v1252 = vunpack.c.l.b16 %v355
        %v1253 = vunpack.c.l.b16 %v356
        %v1254 = vunpack.c.l.b16 %v357
        %v1255 = vunpack.c.l.b16 %v358
        %v1256 = vunpack.c.l.b16 %v359
        %v1257 = vunpack.c.l.b16 %v360
        %v1258 = vunpack.c.l.b16 %v361
        %v1259 = vunpack.c.l.b16 %v362
        %v1260 = vunpack.c.l.b16 %v363
        %v1261 = vunpack.c.l.b16 %v364
        %v1262 = vunpack.c.l.b16 %v365
        %v1263 = vunpack.c.l.b16 %v366
        %v1264 = vunpack.c.l.b16 %v367
        %v1265 = vunpack.c.l.b16 %v368
        %v1266 = vunpack.c.l.b16 %v369
        %v1267 = vunpack.c.l.b16 %v370
        %v1268 = vunpack.c.l.b16 %v371
        %v1269 = vunpack.c.l.b16 %v372
        %v1270 = vunpack.c.l.b16 %v373
        %v1271 = vunpack.c.l.b16 %v374
        %v1272 = vunpack.c.l.b16 %v375
        %v1273 = vunpack.c.l.b16 %v376
        %v1274 = vunpack.c.l.b16 %v377
        %v1275 = vunpack.c.l.b16 %v378
        %v1276 = vunpack.c.l.b16 %v379
        %v1277 = vunpack.c.l.b16 %v380
        %v1278 = vunpack.c.l.b16 %v381
        %v1279 = vunpack.c.l.b16 %v382
        %v1280 = vunpack.c.l.b16 %v383
        %v1281 = vunpack.c.l.b16 %v384
        %v1282 = vunpack.c.l.b16 %v385
        %v1283 = vunpack.c.l.b16 %v386
        %v1284 = vunpack.c.l.b16 %v387
        %v1285 = vunpack.c.l.b16 %v388
        %v1286 = vunpack.c.l.b16 %v389
        %v1287 = vunpack.c.l.b16 %v390
        %v1288 = vunpack.c.l.b16 %v391
        %v1289 = vunpack.c.l.b16 %v392
        %v1290 = vunpack.c.l.b16 %v393
        %v1291 = vpack.c.b16 %v1196, %v1195
        %v1292 = vpack.c.b16 %v1198, %v1197
        %v1293 = vpack.c.b16 %v1200, %v1199
        %v1294 = vpack.c.b16 %v1202, %v1201
        %v1295 = vpack.c.b16 %v1204, %v1203
        %v1296 = vpack.c.b16 %v1206, %v1205
        %v1297 = vpack.c.b16 %v1208, %v1207
        %v1298 = vpack.c.b16 %v1210, %v1209
        %v1299 = vpack.c.b16 %v1212, %v1211
        %v1300 = vpack.c.b16 %v1214, %v1213
        %v1301 = vpack.c.b16 %v1216, %v1215
        %v1302 = vpack.c.b16 %v1218, %v1217
        %v1303 = vpack.c.b16 %v1220, %v1219
        %v1304 = vpack.c.b16 %v1222, %v1221
        %v1305 = vpack.c.b16 %v1224, %v1223
        %v1306 = vpack.c.b16 %v1226, %v1225
        %v1307 = vpack.c.b16 %v1228, %v1227
        %v1308 = vpack.c.b16 %v1230, %v1229
        %v1309 = vpack.c.b16 %v1232, %v1231
        %v1310 = vpack.c.b16 %v1234, %v1233
        %v1311 = vpack.c.b16 %v1236, %v1235
        %v1312 = vpack.c.b16 %v1238, %v1237
        %v1313 = vpack.c.b16 %v1240, %v1239
        %v1314 = vpack.c.b16 %v1242, %v1241
        %v1315 = vpack.c.b16 %v1244, %v1243
        %v1316 = vpack.c.b16 %v1246, %v1245
        %v1317 = vpack.c.b16 %v1248, %v1247
        %v1318 = vpack.c.b16 %v1250, %v1249
        %v1319 = vpack.c.b16 %v1252, %v1251
        %v1320 = vpack.c.b16 %v1254, %v1253
        %v1321 = vpack.c.b16 %v1256, %v1255
        %v1322 = vpack.c.b16 %v1258, %v1257
        %v1323 = vpack.c.b16 %v1260, %v1259
        %v1324 = vpack.c.b16 %v1262, %v1261
        %v1325 = vpack.c.b16 %v1264, %v1263
        %v1326 = vpack.c.b16 %v1266, %v1265
        %v1327 = vpack.c.b16 %v1268, %v1267
        %v1328 = vpack.c.b16 %v1270, %v1269
        %v1329 = vpack.c.b16 %v1272, %v1271
        %v1330 = vpack.c.b16 %v1274, %v1273
        %v1331 = vpack.c.b16 %v1276, %v1275
        %v1332 = vpack.c.b16 %v1278, %v1277
        %v1333 = vpack.c.b16 %v1280, %v1279
        %v1334 = vpack.c.b16 %v1282, %v1281
        %v1335 = vpack.c.b16 %v1284, %v1283
        %v1336 = vpack.c.b16 %v1286, %v1285
        %v1337 = vpack.c.b16 %v1288, %v1287
        %v1338 = vpack.c.b16 %v1290, %v1289
        %1387 = vmatprep.subr.bf16.mxu0 0
        %1388 = vmatpush1.bf16.msra.mxu0 %v1291
        %1389 = vmatprep.subr.bf16.mxu0 0
        %1390 = vmatpush1.bf16.msra.mxu0 %v1292
        %1391 = vmatprep.subr.bf16.mxu0 0
        %1392 = vmatpush1.bf16.msra.mxu0 %v1293
        %1393 = vmatprep.subr.bf16.mxu0 0
        %1394 = vmatpush1.bf16.msra.mxu0 %v1294
        %1395 = vmatprep.subr.bf16.mxu0 0
        %1396 = vmatpush1.bf16.msra.mxu0 %v1295
        %1397 = vmatprep.subr.bf16.mxu0 0
        %1398 = vmatpush1.bf16.msra.mxu0 %v1296
        %1399 = vmatprep.subr.bf16.mxu0 0
        %1400 = vmatpush1.bf16.msra.mxu0 %v1297
        %1401 = vmatprep.subr.bf16.mxu0 0
        %1402 = vmatpush1.bf16.msra.mxu0 %v1298
        %1403 = vmatprep.subr.bf16.mxu0 0
        %1404 = vmatpush1.bf16.msra.mxu0 %v1299
        %1405 = vmatprep.subr.bf16.mxu0 0
        %1406 = vmatpush1.bf16.msra.mxu0 %v1300
        %1407 = vmatprep.subr.bf16.mxu0 0
        %1408 = vmatpush1.bf16.msra.mxu0 %v1301
        %1409 = vmatprep.subr.bf16.mxu0 0
        %1410 = vmatpush1.bf16.msra.mxu0 %v1302
        %1411 = vmatprep.subr.bf16.mxu0 0
        %1412 = vmatpush1.bf16.msra.mxu0 %v1303
        %1413 = vmatprep.subr.bf16.mxu0 0
        %1414 = vmatpush1.bf16.msra.mxu0 %v1304
        %1415 = vmatprep.subr.bf16.mxu0 0
        %1416 = vmatpush1.bf16.msra.mxu0 %v1305
        %1417 = vmatprep.subr.bf16.mxu0 0
        %1418 = vmatpush1.bf16.msra.mxu0 %v1306
        %1419 = vmatprep.mubr.bf16.mxu0 %v1052
        %1420 = vmatmul.mubr.bf16.gmra.mrb[0].mxu0 %v1051
        %v1421 = vpop.f32.mrb[0].mxu0
        %v1422 = vadd.f32 %v399, %v1421
        %v1423 = vpop.f32.mrb[0].mxu0
        %v1424 = vpop.f32.mrb[0].mxu0
        %v1425 = vadd.f32 %v399, %v1424
        %v1426 = vpop.f32.mrb[0].mxu0
        %1427 = vmatprep.mubr.bf16.mxu0 %v1058
        %1428 = vmatmul.mubr.bf16.gmra.mrb[0].mxu0 %v1057
        %v1429 = vpop.f32.mrb[0].mxu0
        %v1430 = vadd.f32 %v399, %v1429
        %v1431 = vpop.f32.mrb[0].mxu0
        %v1432 = vpop.f32.mrb[0].mxu0
        %v1433 = vadd.f32 %v399, %v1432
        %v1434 = vpop.f32.mrb[0].mxu0
        %1435 = vmatprep.mubr.bf16.mxu0 %v1064
        %1436 = vmatmul.mubr.bf16.gmra.mrb[0].mxu0 %v1063
        %v1437 = vpop.f32.mrb[0].mxu0
        %v1438 = vadd.f32 %v399, %v1437
        %v1439 = vpop.f32.mrb[0].mxu0
        %v1440 = vpop.f32.mrb[0].mxu0
        %v1441 = vadd.f32 %v399, %v1440
        %v1442 = vpop.f32.mrb[0].mxu0
        %1443 = vmatprep.mubr.bf16.mxu0 %v1070
        %1444 = vmatmul.mubr.bf16.gmra.mrb[0].mxu0 %v1069
        %v1445 = vpop.f32.mrb[0].mxu0
        %v1446 = vadd.f32 %v399, %v1445
        %v1447 = vpop.f32.mrb[0].mxu0
        %v1448 = vpop.f32.mrb[0].mxu0
        %v1449 = vadd.f32 %v399, %v1448
        %v1450 = vpop.f32.mrb[0].mxu0
        %1451 = vdwg.mxu0
        %1452 = vmatprep.subr.bf16.mxu0 0
        %1453 = vmatpush1.bf16.msra.mxu0 %v1307
        %1454 = vmatprep.subr.bf16.mxu0 0
        %1455 = vmatpush1.bf16.msra.mxu0 %v1308
        %1456 = vmatprep.subr.bf16.mxu0 0
        %1457 = vmatpush1.bf16.msra.mxu0 %v1309
        %1458 = vmatprep.subr.bf16.mxu0 0
        %1459 = vmatpush1.bf16.msra.mxu0 %v1310
        %1460 = vmatprep.subr.bf16.mxu0 0
        %1461 = vmatpush1.bf16.msra.mxu0 %v1311
        %1462 = vmatprep.subr.bf16.mxu0 0
        %1463 = vmatpush1.bf16.msra.mxu0 %v1312
        %1464 = vmatprep.subr.bf16.mxu0 0
        %1465 = vmatpush1.bf16.msra.mxu0 %v1313
        %1466 = vmatprep.subr.bf16.mxu0 0
        %1467 = vmatpush1.bf16.msra.mxu0 %v1314
        %1468 = vmatprep.subr.bf16.mxu0 0
        %1469 = vmatpush1.bf16.msra.mxu0 %v1315
        %1470 = vmatprep.subr.bf16.mxu0 0
        %1471 = vmatpush1.bf16.msra.mxu0 %v1316
        %1472 = vmatprep.subr.bf16.mxu0 0
        %1473 = vmatpush1.bf16.msra.mxu0 %v1317
        %1474 = vmatprep.subr.bf16.mxu0 0
        %1475 = vmatpush1.bf16.msra.mxu0 %v1318
        %1476 = vmatprep.subr.bf16.mxu0 0
        %1477 = vmatpush1.bf16.msra.mxu0 %v1319
        %1478 = vmatprep.subr.bf16.mxu0 0
        %1479 = vmatpush1.bf16.msra.mxu0 %v1320
        %1480 = vmatprep.subr.bf16.mxu0 0
        %1481 = vmatpush1.bf16.msra.mxu0 %v1321
        %1482 = vmatprep.subr.bf16.mxu0 0
        %1483 = vmatpush1.bf16.msra.mxu0 %v1322
        %1484 = vmatprep.mubr.bf16.mxu0 %v1054
        %1485 = vmatmul.mubr.bf16.gmra.mrb[0].mxu0 %v1053
        %v1486 = vpop.f32.mrb[0].mxu0
        %v1487 = vadd.f32 %v1422, %v1486
        %v1488 = vpop.f32.mrb[0].mxu0
        %v1489 = vpop.f32.mrb[0].mxu0
        %v1490 = vadd.f32 %v1425, %v1489
        %v1491 = vpop.f32.mrb[0].mxu0
        %1492 = vmatprep.mubr.bf16.mxu0 %v1060
        %1493 = vmatmul.mubr.bf16.gmra.mrb[0].mxu0 %v1059
        %v1494 = vpop.f32.mrb[0].mxu0
        %v1495 = vadd.f32 %v1430, %v1494
        %v1496 = vpop.f32.mrb[0].mxu0
        %v1497 = vpop.f32.mrb[0].mxu0
        %v1498 = vadd.f32 %v1433, %v1497
        %v1499 = vpop.f32.mrb[0].mxu0
        %1500 = vmatprep.mubr.bf16.mxu0 %v1066
        %1501 = vmatmul.mubr.bf16.gmra.mrb[0].mxu0 %v1065
        %v1502 = vpop.f32.mrb[0].mxu0
        %v1503 = vadd.f32 %v1438, %v1502
        %v1504 = vpop.f32.mrb[0].mxu0
        %v1505 = vpop.f32.mrb[0].mxu0
        %v1506 = vadd.f32 %v1441, %v1505
        %v1507 = vpop.f32.mrb[0].mxu0
        %1508 = vmatprep.mubr.bf16.mxu0 %v1072
        %1509 = vmatmul.mubr.bf16.gmra.mrb[0].mxu0 %v1071
        %v1510 = vpop.f32.mrb[0].mxu0
        %v1511 = vadd.f32 %v1446, %v1510
        %v1512 = vpop.f32.mrb[0].mxu0
        %v1513 = vpop.f32.mrb[0].mxu0
        %v1514 = vadd.f32 %v1449, %v1513
        %v1515 = vpop.f32.mrb[0].mxu0
        %1516 = vdwg.mxu0
        %1517 = vmatprep.subr.bf16.mxu0 0
        %1518 = vmatpush1.bf16.msra.mxu0 %v1323
        %1519 = vmatprep.subr.bf16.mxu0 0
        %1520 = vmatpush1.bf16.msra.mxu0 %v1324
        %1521 = vmatprep.subr.bf16.mxu0 0
        %1522 = vmatpush1.bf16.msra.mxu0 %v1325
        %1523 = vmatprep.subr.bf16.mxu0 0
        %1524 = vmatpush1.bf16.msra.mxu0 %v1326
        %1525 = vmatprep.subr.bf16.mxu0 0
        %1526 = vmatpush1.bf16.msra.mxu0 %v1327
        %1527 = vmatprep.subr.bf16.mxu0 0
        %1528 = vmatpush1.bf16.msra.mxu0 %v1328
        %1529 = vmatprep.subr.bf16.mxu0 0
        %1530 = vmatpush1.bf16.msra.mxu0 %v1329
        %1531 = vmatprep.subr.bf16.mxu0 0
        %1532 = vmatpush1.bf16.msra.mxu0 %v1330
        %1533 = vmatprep.subr.bf16.mxu0 0
        %1534 = vmatpush1.bf16.msra.mxu0 %v1331
        %1535 = vmatprep.subr.bf16.mxu0 0
        %1536 = vmatpush1.bf16.msra.mxu0 %v1332
        %1537 = vmatprep.subr.bf16.mxu0 0
        %1538 = vmatpush1.bf16.msra.mxu0 %v1333
        %1539 = vmatprep.subr.bf16.mxu0 0
        %1540 = vmatpush1.bf16.msra.mxu0 %v1334
        %1541 = vmatprep.subr.bf16.mxu0 0
        %1542 = vmatpush1.bf16.msra.mxu0 %v1335
        %1543 = vmatprep.subr.bf16.mxu0 0
        %1544 = vmatpush1.bf16.msra.mxu0 %v1336
        %1545 = vmatprep.subr.bf16.mxu0 0
        %1546 = vmatpush1.bf16.msra.mxu0 %v1337
        %1547 = vmatprep.subr.bf16.mxu0 0
        %1548 = vmatpush1.bf16.msra.mxu0 %v1338
        %1549 = vmatprep.mubr.bf16.mxu0 %v1056
        %1550 = vmatmul.mubr.bf16.gmra.mrb[0].mxu0 %v1055
        %v1551 = vpop.f32.mrb[0].mxu0
        %v1552 = vadd.f32 %v1487, %v1551
        %v1553 = vpop.f32.mrb[0].mxu0
        %v1554 = vpop.f32.mrb[0].mxu0
        %v1555 = vadd.f32 %v1490, %v1554
        %v1556 = vpop.f32.mrb[0].mxu0
        %1557 = vmatprep.mubr.bf16.mxu0 %v1062
        %1558 = vmatmul.mubr.bf16.gmra.mrb[0].mxu0 %v1061
        %v1559 = vpop.f32.mrb[0].mxu0
        %v1560 = vadd.f32 %v1495, %v1559
        %v1561 = vpop.f32.mrb[0].mxu0
        %v1562 = vpop.f32.mrb[0].mxu0
        %v1563 = vadd.f32 %v1498, %v1562
        %v1564 = vpop.f32.mrb[0].mxu0
        %1565 = vmatprep.mubr.bf16.mxu0 %v1068
        %1566 = vmatmul.mubr.bf16.gmra.mrb[0].mxu0 %v1067
        %v1567 = vpop.f32.mrb[0].mxu0
        %v1568 = vadd.f32 %v1503, %v1567
        %v1569 = vpop.f32.mrb[0].mxu0
        %v1570 = vpop.f32.mrb[0].mxu0
        %v1571 = vadd.f32 %v1506, %v1570
        %v1572 = vpop.f32.mrb[0].mxu0
        %1573 = vmatprep.mubr.bf16.mxu0 %v1074
        %1574 = vmatmul.mubr.bf16.gmra.mrb[0].mxu0 %v1073
        %v1575 = vpop.f32.mrb[0].mxu0
        %v1576 = vadd.f32 %v1511, %v1575
        %v1577 = vpop.f32.mrb[0].mxu0
        %v1578 = vpop.f32.mrb[0].mxu0
        %v1579 = vadd.f32 %v1514, %v1578
        %v1580 = vpop.f32.mrb[0].mxu0
        %1581 = vdwg.mxu0
        %s1582 = scalar_lea.vmem %s188, 8 [#allocation2]
        %1583 = vst [vmem:[%s1582] sm:$0xff] %v1552
        %1584 = vst [vmem:[%s1582 + $0x10] sm:$0xff] %v1555
        %1585 = vst [vmem:[%s1582 + $0x20] sm:$0xff] %v1560
        %1586 = vst [vmem:[%s1582 + $0x30] sm:$0xff] %v1563
        %1587 = vst [vmem:[%s1582 + $0x40] sm:$0xff] %v1568
        %1588 = vst [vmem:[%s1582 + $0x50] sm:$0xff] %v1571
        %1589 = vst [vmem:[%s1582 + $0x60] sm:$0xff] %v1576
        %1590 = vst [vmem:[%s1582 + $0x70] sm:$0xff] %v1579
        %s1591 = sadd.s32 %s19, 1
        %s1592 = smul.u32 %s1591, 54
        %s1593 = smul.addr %s1592, 4
        %s1594 = scalar_lea.vmem %s193, %s1593
        %v1595 = vld [vmem:[%s1594] sm:$0xff]
        %v1596 = vld [vmem:[%s1594 + $0x8] sm:$0xff]
        %v1597 = vld [vmem:[%s1594 + $0x10] sm:$0xff]
        %v1598 = vld [vmem:[%s1594 + $0x18] sm:$0xff]
        %v1599 = vld [vmem:[%s1594 + $0x20] sm:$0xff]
        %v1600 = vld [vmem:[%s1594 + $0x28] sm:$0xff]
        %v1601 = vld [vmem:[%s1594 + $0x30] sm:$0xff]
        %v1602 = vld [vmem:[%s1594 + $0x38] sm:$0xff]
        %v1603 = vld [vmem:[%s1594 + $0x40] sm:$0xff]
        %v1604 = vld [vmem:[%s1594 + $0x48] sm:$0xff]
        %v1605 = vld [vmem:[%s1594 + $0x50] sm:$0xff]
        %v1606 = vld [vmem:[%s1594 + $0x58] sm:$0xff]
        %v1607 = vld [vmem:[%s1594 + $0x60] sm:$0xff]
        %v1608 = vld [vmem:[%s1594 + $0x68] sm:$0xff]
        %v1609 = vld [vmem:[%s1594 + $0x70] sm:$0xff]
        %v1610 = vld [vmem:[%s1594 + $0x78] sm:$0xff]
        %v1611 = vld [vmem:[%s1594 + $0x80] sm:$0xff]
        %v1612 = vld [vmem:[%s1594 + $0x88] sm:$0xff]
        %v1613 = vld [vmem:[%s1594 + $0x90] sm:$0xff]
        %v1614 = vld [vmem:[%s1594 + $0x98] sm:$0xff]
        %v1615 = vld [vmem:[%s1594 + $0xa0] sm:$0xff]
        %v1616 = vld [vmem:[%s1594 + $0xa8] sm:$0xff]
        %v1617 = vld [vmem:[%s1594 + $0xb0] sm:$0xff]
        %v1618 = vld [vmem:[%s1594 + $0xb8] sm:$0xff]
        %v1619 = vld [vmem:[%s1594 + $0xc0] sm:$0xff]
        %v1620 = vld [vmem:[%s1594 + $0xc8] sm:$0xff]
        %v1621 = vld [vmem:[%s1594 + $0xd0] sm:$0xff]
        %v1646 = vunpack.c.l.b16 %v1595
        %v1647 = vunpack.c.h.b16 %v1595
        %v1648 = vunpack.c.l.b16 %v1596
        %v1649 = vunpack.c.h.b16 %v1596
        %v1650 = vunpack.c.l.b16 %v1597
        %v1651 = vunpack.c.h.b16 %v1597
        %v1652 = vunpack.c.l.b16 %v1598
        %v1653 = vunpack.c.h.b16 %v1598
        %v1654 = vunpack.c.l.b16 %v1599
        %v1655 = vunpack.c.h.b16 %v1599
        %v1656 = vunpack.c.l.b16 %v1600
        %v1657 = vunpack.c.h.b16 %v1600
        %v1658 = vunpack.c.l.b16 %v1601
        %v1659 = vunpack.c.h.b16 %v1601
        %v1660 = vunpack.c.l.b16 %v1602
        %v1661 = vunpack.c.h.b16 %v1602
        %v1662 = vunpack.c.l.b16 %v1603
        %v1663 = vunpack.c.h.b16 %v1603
        %v1664 = vunpack.c.l.b16 %v1604
        %v1665 = vunpack.c.h.b16 %v1604
        %v1666 = vunpack.c.l.b16 %v1605
        %v1667 = vunpack.c.h.b16 %v1605
        %v1668 = vunpack.c.l.b16 %v1606
        %v1669 = vunpack.c.h.b16 %v1606
        %v1670 = vunpack.c.l.b16 %v1607
        %v1671 = vunpack.c.h.b16 %v1607
        %v1672 = vunpack.c.l.b16 %v1608
        %v1673 = vunpack.c.h.b16 %v1608
        %v1674 = vunpack.c.l.b16 %v1609
        %v1675 = vunpack.c.h.b16 %v1609
        %v1676 = vunpack.c.l.b16 %v1610
        %v1677 = vunpack.c.h.b16 %v1610
        %v1678 = vunpack.c.l.b16 %v1611
        %v1679 = vunpack.c.h.b16 %v1611
        %v1680 = vunpack.c.l.b16 %v1612
        %v1681 = vunpack.c.h.b16 %v1612
        %v1682 = vunpack.c.l.b16 %v1613
        %v1683 = vunpack.c.h.b16 %v1613
        %v1684 = vunpack.c.l.b16 %v1614
        %v1685 = vunpack.c.h.b16 %v1614
        %v1686 = vunpack.c.l.b16 %v1615
        %v1687 = vunpack.c.h.b16 %v1615
        %v1688 = vunpack.c.l.b16 %v1616
        %v1689 = vunpack.c.h.b16 %v1616
        %v1690 = vunpack.c.l.b16 %v1617
        %v1691 = vunpack.c.h.b16 %v1617
        %v1692 = vunpack.c.l.b16 %v1618
        %v1693 = vunpack.c.h.b16 %v1618
        %v1694 = vpack.c.b16 %v1652, %v1646
        %v1695 = vpack.c.b16 %v1653, %v1647
        %v1696 = vpack.c.b16 %v1654, %v1648
        %v1697 = vpack.c.b16 %v1655, %v1649
        %v1698 = vpack.c.b16 %v1656, %v1650
        %v1699 = vpack.c.b16 %v1657, %v1651
        %v1700 = vpack.c.b16 %v1664, %v1658
        %v1701 = vpack.c.b16 %v1665, %v1659
        %v1702 = vpack.c.b16 %v1666, %v1660
        %v1703 = vpack.c.b16 %v1667, %v1661
        %v1704 = vpack.c.b16 %v1668, %v1662
        %v1705 = vpack.c.b16 %v1669, %v1663
        %v1706 = vpack.c.b16 %v1676, %v1670
        %v1707 = vpack.c.b16 %v1677, %v1671
        %v1708 = vpack.c.b16 %v1678, %v1672
        %v1709 = vpack.c.b16 %v1679, %v1673
        %v1710 = vpack.c.b16 %v1680, %v1674
        %v1711 = vpack.c.b16 %v1681, %v1675
        %v1712 = vpack.c.b16 %v1688, %v1682
        %v1713 = vpack.c.b16 %v1689, %v1683
        %v1714 = vpack.c.b16 %v1690, %v1684
        %v1715 = vpack.c.b16 %v1691, %v1685
        %v1716 = vpack.c.b16 %v1692, %v1686
        %v1717 = vpack.c.b16 %v1693, %v1687
        %1742 = vmatprep.subr.bf16.mxu0 0
        %1743 = vmatpush1.bf16.msra.mxu0 %v743
        %1744 = vmatprep.subr.bf16.mxu0 0
        %1745 = vmatpush1.bf16.msra.mxu0 %v744
        %1746 = vmatprep.subr.bf16.mxu0 0
        %1747 = vmatpush1.bf16.msra.mxu0 %v745
        %1748 = vmatprep.subr.bf16.mxu0 0
        %1749 = vmatpush1.bf16.msra.mxu0 %v746
        %1750 = vmatprep.subr.bf16.mxu0 0
        %1751 = vmatpush1.bf16.msra.mxu0 %v747
        %1752 = vmatprep.subr.bf16.mxu0 0
        %1753 = vmatpush1.bf16.msra.mxu0 %v748
        %1754 = vmatprep.subr.bf16.mxu0 0
        %1755 = vmatpush1.bf16.msra.mxu0 %v749
        %1756 = vmatprep.subr.bf16.mxu0 0
        %1757 = vmatpush1.bf16.msra.mxu0 %v750
        %1758 = vmatprep.subr.bf16.mxu0 0
        %1759 = vmatpush1.bf16.msra.mxu0 %v751
        %1760 = vmatprep.subr.bf16.mxu0 0
        %1761 = vmatpush1.bf16.msra.mxu0 %v752
        %1762 = vmatprep.subr.bf16.mxu0 0
        %1763 = vmatpush1.bf16.msra.mxu0 %v753
        %1764 = vmatprep.subr.bf16.mxu0 0
        %1765 = vmatpush1.bf16.msra.mxu0 %v754
        %1766 = vmatprep.subr.bf16.mxu0 0
        %1767 = vmatpush1.bf16.msra.mxu0 %v755
        %1768 = vmatprep.subr.bf16.mxu0 0
        %1769 = vmatpush1.bf16.msra.mxu0 %v756
        %1770 = vmatprep.subr.bf16.mxu0 0
        %1771 = vmatpush1.bf16.msra.mxu0 %v757
        %1772 = vmatprep.subr.bf16.mxu0 0
        %1773 = vmatpush1.bf16.msra.mxu0 %v758
        %1774 = vmatprep.mubr.bf16.mxu0 %v1695
        %1775 = vmatmul.mubr.bf16.gmra.mrb[0].mxu0 %v1694
        %v1776 = vpop.f32.mrb[0].mxu0
        %v1777 = vadd.f32 %v399, %v1776
        %v1778 = vpop.f32.mrb[0].mxu0
        %v1779 = vpop.f32.mrb[0].mxu0
        %v1780 = vadd.f32 %v399, %v1779
        %v1781 = vpop.f32.mrb[0].mxu0
        %1782 = vmatprep.mubr.bf16.mxu0 %v1701
        %1783 = vmatmul.mubr.bf16.gmra.mrb[0].mxu0 %v1700
        %v1784 = vpop.f32.mrb[0].mxu0
        %v1785 = vadd.f32 %v399, %v1784
        %v1786 = vpop.f32.mrb[0].mxu0
        %v1787 = vpop.f32.mrb[0].mxu0
        %v1788 = vadd.f32 %v399, %v1787
        %v1789 = vpop.f32.mrb[0].mxu0
        %1790 = vmatprep.mubr.bf16.mxu0 %v1707
        %1791 = vmatmul.mubr.bf16.gmra.mrb[0].mxu0 %v1706
        %v1792 = vpop.f32.mrb[0].mxu0
        %v1793 = vadd.f32 %v399, %v1792
        %v1794 = vpop.f32.mrb[0].mxu0
        %v1795 = vpop.f32.mrb[0].mxu0
        %v1796 = vadd.f32 %v399, %v1795
        %v1797 = vpop.f32.mrb[0].mxu0
        %1798 = vmatprep.mubr.bf16.mxu0 %v1713
        %1799 = vmatmul.mubr.bf16.gmra.mrb[0].mxu0 %v1712
        %v1800 = vpop.f32.mrb[0].mxu0
        %v1801 = vadd.f32 %v399, %v1800
        %v1802 = vpop.f32.mrb[0].mxu0
        %v1803 = vpop.f32.mrb[0].mxu0
        %v1804 = vadd.f32 %v399, %v1803
        %v1805 = vpop.f32.mrb[0].mxu0
        %1806 = vdwg.mxu0
        %1807 = vmatprep.subr.bf16.mxu0 0
        %1808 = vmatpush1.bf16.msra.mxu0 %v759
        %1809 = vmatprep.subr.bf16.mxu0 0
        %1810 = vmatpush1.bf16.msra.mxu0 %v760
        %1811 = vmatprep.subr.bf16.mxu0 0
        %1812 = vmatpush1.bf16.msra.mxu0 %v761
        %1813 = vmatprep.subr.bf16.mxu0 0
        %1814 = vmatpush1.bf16.msra.mxu0 %v762
        %1815 = vmatprep.subr.bf16.mxu0 0
        %1816 = vmatpush1.bf16.msra.mxu0 %v763
        %1817 = vmatprep.subr.bf16.mxu0 0
        %1818 = vmatpush1.bf16.msra.mxu0 %v764
        %1819 = vmatprep.subr.bf16.mxu0 0
        %1820 = vmatpush1.bf16.msra.mxu0 %v765
        %1821 = vmatprep.subr.bf16.mxu0 0
        %1822 = vmatpush1.bf16.msra.mxu0 %v766
        %1823 = vmatprep.subr.bf16.mxu0 0
        %1824 = vmatpush1.bf16.msra.mxu0 %v767
        %1825 = vmatprep.subr.bf16.mxu0 0
        %1826 = vmatpush1.bf16.msra.mxu0 %v768
        %1827 = vmatprep.subr.bf16.mxu0 0
        %1828 = vmatpush1.bf16.msra.mxu0 %v769
        %1829 = vmatprep.subr.bf16.mxu0 0
        %1830 = vmatpush1.bf16.msra.mxu0 %v770
        %1831 = vmatprep.subr.bf16.mxu0 0
        %1832 = vmatpush1.bf16.msra.mxu0 %v771
        %1833 = vmatprep.subr.bf16.mxu0 0
        %1834 = vmatpush1.bf16.msra.mxu0 %v772
        %1835 = vmatprep.subr.bf16.mxu0 0
        %1836 = vmatpush1.bf16.msra.mxu0 %v773
        %1837 = vmatprep.subr.bf16.mxu0 0
        %1838 = vmatpush1.bf16.msra.mxu0 %v774
        %1839 = vmatprep.mubr.bf16.mxu0 %v1697
        %1840 = vmatmul.mubr.bf16.gmra.mrb[0].mxu0 %v1696
        %v1841 = vpop.f32.mrb[0].mxu0
        %v1842 = vadd.f32 %v1777, %v1841
        %v1843 = vpop.f32.mrb[0].mxu0
        %v1844 = vpop.f32.mrb[0].mxu0
        %v1845 = vadd.f32 %v1780, %v1844
        %v1846 = vpop.f32.mrb[0].mxu0
        %1847 = vmatprep.mubr.bf16.mxu0 %v1703
        %1848 = vmatmul.mubr.bf16.gmra.mrb[0].mxu0 %v1702
        %v1849 = vpop.f32.mrb[0].mxu0
        %v1850 = vadd.f32 %v1785, %v1849
        %v1851 = vpop.f32.mrb[0].mxu0
        %v1852 = vpop.f32.mrb[0].mxu0
        %v1853 = vadd.f32 %v1788, %v1852
        %v1854 = vpop.f32.mrb[0].mxu0
        %1855 = vmatprep.mubr.bf16.mxu0 %v1709
        %1856 = vmatmul.mubr.bf16.gmra.mrb[0].mxu0 %v1708
        %v1857 = vpop.f32.mrb[0].mxu0
        %v1858 = vadd.f32 %v1793, %v1857
        %v1859 = vpop.f32.mrb[0].mxu0
        %v1860 = vpop.f32.mrb[0].mxu0
        %v1861 = vadd.f32 %v1796, %v1860
        %v1862 = vpop.f32.mrb[0].mxu0
        %1863 = vmatprep.mubr.bf16.mxu0 %v1715
        %1864 = vmatmul.mubr.bf16.gmra.mrb[0].mxu0 %v1714
        %v1865 = vpop.f32.mrb[0].mxu0
        %v1866 = vadd.f32 %v1801, %v1865
        %v1867 = vpop.f32.mrb[0].mxu0
        %v1868 = vpop.f32.mrb[0].mxu0
        %v1869 = vadd.f32 %v1804, %v1868
        %v1870 = vpop.f32.mrb[0].mxu0
        %1871 = vdwg.mxu0
        %1872 = vmatprep.subr.bf16.mxu0 0
        %1873 = vmatpush1.bf16.msra.mxu0 %v775
        %1874 = vmatprep.subr.bf16.mxu0 0
        %1875 = vmatpush1.bf16.msra.mxu0 %v776
        %1876 = vmatprep.subr.bf16.mxu0 0
        %1877 = vmatpush1.bf16.msra.mxu0 %v777
        %1878 = vmatprep.subr.bf16.mxu0 0
        %1879 = vmatpush1.bf16.msra.mxu0 %v778
        %1880 = vmatprep.subr.bf16.mxu0 0
        %1881 = vmatpush1.bf16.msra.mxu0 %v779
        %1882 = vmatprep.subr.bf16.mxu0 0
        %1883 = vmatpush1.bf16.msra.mxu0 %v780
        %1884 = vmatprep.subr.bf16.mxu0 0
        %1885 = vmatpush1.bf16.msra.mxu0 %v781
        %1886 = vmatprep.subr.bf16.mxu0 0
        %1887 = vmatpush1.bf16.msra.mxu0 %v782
        %1888 = vmatprep.subr.bf16.mxu0 0
        %1889 = vmatpush1.bf16.msra.mxu0 %v783
        %1890 = vmatprep.subr.bf16.mxu0 0
        %1891 = vmatpush1.bf16.msra.mxu0 %v784
        %1892 = vmatprep.subr.bf16.mxu0 0
        %1893 = vmatpush1.bf16.msra.mxu0 %v785
        %1894 = vmatprep.subr.bf16.mxu0 0
        %1895 = vmatpush1.bf16.msra.mxu0 %v786
        %1896 = vmatprep.subr.bf16.mxu0 0
        %1897 = vmatpush1.bf16.msra.mxu0 %v787
        %1898 = vmatprep.subr.bf16.mxu0 0
        %1899 = vmatpush1.bf16.msra.mxu0 %v788
        %1900 = vmatprep.subr.bf16.mxu0 0
        %1901 = vmatpush1.bf16.msra.mxu0 %v789
        %1902 = vmatprep.subr.bf16.mxu0 0
        %1903 = vmatpush1.bf16.msra.mxu0 %v790
        %1904 = vmatprep.mubr.bf16.mxu0 %v1699
        %1905 = vmatmul.mubr.bf16.gmra.mrb[0].mxu0 %v1698
        %v1906 = vpop.f32.mrb[0].mxu0
        %v1907 = vadd.f32 %v1842, %v1906
        %v1908 = vpop.f32.mrb[0].mxu0
        %v1909 = vpop.f32.mrb[0].mxu0
        %v1910 = vadd.f32 %v1845, %v1909
        %v1911 = vpop.f32.mrb[0].mxu0
        %1912 = vmatprep.mubr.bf16.mxu0 %v1705
        %1913 = vmatmul.mubr.bf16.gmra.mrb[0].mxu0 %v1704
        %v1914 = vpop.f32.mrb[0].mxu0
        %v1915 = vadd.f32 %v1850, %v1914
        %v1916 = vpop.f32.mrb[0].mxu0
        %v1917 = vpop.f32.mrb[0].mxu0
        %v1918 = vadd.f32 %v1853, %v1917
        %v1919 = vpop.f32.mrb[0].mxu0
        %1920 = vmatprep.mubr.bf16.mxu0 %v1711
        %1921 = vmatmul.mubr.bf16.gmra.mrb[0].mxu0 %v1710
        %v1922 = vpop.f32.mrb[0].mxu0
        %v1923 = vadd.f32 %v1858, %v1922
        %v1924 = vpop.f32.mrb[0].mxu0
        %v1925 = vpop.f32.mrb[0].mxu0
        %v1926 = vadd.f32 %v1861, %v1925
        %v1927 = vpop.f32.mrb[0].mxu0
        %1928 = vmatprep.mubr.bf16.mxu0 %v1717
        %1929 = vmatmul.mubr.bf16.gmra.mrb[0].mxu0 %v1716
        %v1930 = vpop.f32.mrb[0].mxu0
        %v1931 = vadd.f32 %v1866, %v1930
        %v1932 = vpop.f32.mrb[0].mxu0
        %v1933 = vpop.f32.mrb[0].mxu0
        %v1934 = vadd.f32 %v1869, %v1933
        %v1935 = vpop.f32.mrb[0].mxu0
        %1936 = vdwg.mxu0
        %s1937 = scalar_lea.vmem %s188, 128 [#allocation2]
        %1938 = vst [vmem:[%s1937] sm:$0xff] %v1907
        %1939 = vst [vmem:[%s1937 + $0x10] sm:$0xff] %v1910
        %1940 = vst [vmem:[%s1937 + $0x20] sm:$0xff] %v1915
        %1941 = vst [vmem:[%s1937 + $0x30] sm:$0xff] %v1918
        %1942 = vst [vmem:[%s1937 + $0x40] sm:$0xff] %v1923
        %1943 = vst [vmem:[%s1937 + $0x50] sm:$0xff] %v1926
        %1944 = vst [vmem:[%s1937 + $0x60] sm:$0xff] %v1931
        %1945 = vst [vmem:[%s1937 + $0x70] sm:$0xff] %v1934
        %v1949 = vunpack.c.l.b16 %v1619
        %v1950 = vunpack.c.h.b16 %v1619
        %v1951 = vunpack.c.l.b16 %v1620
        %v1952 = vunpack.c.h.b16 %v1620
        %v1953 = vunpack.c.l.b16 %v1621
        %v1954 = vunpack.c.h.b16 %v1621
        %v1955 = vpack.c.b16 %v1658, %v1652
        %v1956 = vpack.c.b16 %v1659, %v1653
        %v1957 = vpack.c.b16 %v1660, %v1654
        %v1958 = vpack.c.b16 %v1661, %v1655
        %v1959 = vpack.c.b16 %v1662, %v1656
        %v1960 = vpack.c.b16 %v1663, %v1657
        %v1961 = vpack.c.b16 %v1670, %v1664
        %v1962 = vpack.c.b16 %v1671, %v1665
        %v1963 = vpack.c.b16 %v1672, %v1666
        %v1964 = vpack.c.b16 %v1673, %v1667
        %v1965 = vpack.c.b16 %v1674, %v1668
        %v1966 = vpack.c.b16 %v1675, %v1669
        %v1967 = vpack.c.b16 %v1682, %v1676
        %v1968 = vpack.c.b16 %v1683, %v1677
        %v1969 = vpack.c.b16 %v1684, %v1678
        %v1970 = vpack.c.b16 %v1685, %v1679
        %v1971 = vpack.c.b16 %v1686, %v1680
        %v1972 = vpack.c.b16 %v1687, %v1681
        %v1973 = vpack.c.b16 %v1949, %v1688
        %v1974 = vpack.c.b16 %v1950, %v1689
        %v1975 = vpack.c.b16 %v1951, %v1690
        %v1976 = vpack.c.b16 %v1952, %v1691
        %v1977 = vpack.c.b16 %v1953, %v1692
        %v1978 = vpack.c.b16 %v1954, %v1693
        %2003 = vmatprep.subr.bf16.mxu0 0
        %2004 = vmatpush1.bf16.msra.mxu0 %v1291
        %2005 = vmatprep.subr.bf16.mxu0 0
        %2006 = vmatpush1.bf16.msra.mxu0 %v1292
        %2007 = vmatprep.subr.bf16.mxu0 0
        %2008 = vmatpush1.bf16.msra.mxu0 %v1293
        %2009 = vmatprep.subr.bf16.mxu0 0
        %2010 = vmatpush1.bf16.msra.mxu0 %v1294
        %2011 = vmatprep.subr.bf16.mxu0 0
        %2012 = vmatpush1.bf16.msra.mxu0 %v1295
        %2013 = vmatprep.subr.bf16.mxu0 0
        %2014 = vmatpush1.bf16.msra.mxu0 %v1296
        %2015 = vmatprep.subr.bf16.mxu0 0
        %2016 = vmatpush1.bf16.msra.mxu0 %v1297
        %2017 = vmatprep.subr.bf16.mxu0 0
        %2018 = vmatpush1.bf16.msra.mxu0 %v1298
        %2019 = vmatprep.subr.bf16.mxu0 0
        %2020 = vmatpush1.bf16.msra.mxu0 %v1299
        %2021 = vmatprep.subr.bf16.mxu0 0
        %2022 = vmatpush1.bf16.msra.mxu0 %v1300
        %2023 = vmatprep.subr.bf16.mxu0 0
        %2024 = vmatpush1.bf16.msra.mxu0 %v1301
        %2025 = vmatprep.subr.bf16.mxu0 0
        %2026 = vmatpush1.bf16.msra.mxu0 %v1302
        %2027 = vmatprep.subr.bf16.mxu0 0
        %2028 = vmatpush1.bf16.msra.mxu0 %v1303
        %2029 = vmatprep.subr.bf16.mxu0 0
        %2030 = vmatpush1.bf16.msra.mxu0 %v1304
        %2031 = vmatprep.subr.bf16.mxu0 0
        %2032 = vmatpush1.bf16.msra.mxu0 %v1305
        %2033 = vmatprep.subr.bf16.mxu0 0
        %2034 = vmatpush1.bf16.msra.mxu0 %v1306
        %2035 = vmatprep.mubr.bf16.mxu0 %v1956
        %2036 = vmatmul.mubr.bf16.gmra.mrb[0].mxu0 %v1955
        %v2037 = vpop.f32.mrb[0].mxu0
        %v2038 = vadd.f32 %v399, %v2037
        %v2039 = vpop.f32.mrb[0].mxu0
        %v2040 = vpop.f32.mrb[0].mxu0
        %v2041 = vadd.f32 %v399, %v2040
        %v2042 = vpop.f32.mrb[0].mxu0
        %2043 = vmatprep.mubr.bf16.mxu0 %v1962
        %2044 = vmatmul.mubr.bf16.gmra.mrb[0].mxu0 %v1961
        %v2045 = vpop.f32.mrb[0].mxu0
        %v2046 = vadd.f32 %v399, %v2045
        %v2047 = vpop.f32.mrb[0].mxu0
        %v2048 = vpop.f32.mrb[0].mxu0
        %v2049 = vadd.f32 %v399, %v2048
        %v2050 = vpop.f32.mrb[0].mxu0
        %2051 = vmatprep.mubr.bf16.mxu0 %v1968
        %2052 = vmatmul.mubr.bf16.gmra.mrb[0].mxu0 %v1967
        %v2053 = vpop.f32.mrb[0].mxu0
        %v2054 = vadd.f32 %v399, %v2053
        %v2055 = vpop.f32.mrb[0].mxu0
        %v2056 = vpop.f32.mrb[0].mxu0
        %v2057 = vadd.f32 %v399, %v2056
        %v2058 = vpop.f32.mrb[0].mxu0
        %2059 = vmatprep.mubr.bf16.mxu0 %v1974
        %2060 = vmatmul.mubr.bf16.gmra.mrb[0].mxu0 %v1973
        %v2061 = vpop.f32.mrb[0].mxu0
        %v2062 = vadd.f32 %v399, %v2061
        %v2063 = vpop.f32.mrb[0].mxu0
        %v2064 = vpop.f32.mrb[0].mxu0
        %v2065 = vadd.f32 %v399, %v2064
        %v2066 = vpop.f32.mrb[0].mxu0
        %2067 = vdwg.mxu0
        %2068 = vmatprep.subr.bf16.mxu0 0
        %2069 = vmatpush1.bf16.msra.mxu0 %v1307
        %2070 = vmatprep.subr.bf16.mxu0 0
        %2071 = vmatpush1.bf16.msra.mxu0 %v1308
        %2072 = vmatprep.subr.bf16.mxu0 0
        %2073 = vmatpush1.bf16.msra.mxu0 %v1309
        %2074 = vmatprep.subr.bf16.mxu0 0
        %2075 = vmatpush1.bf16.msra.mxu0 %v1310
        %2076 = vmatprep.subr.bf16.mxu0 0
        %2077 = vmatpush1.bf16.msra.mxu0 %v1311
        %2078 = vmatprep.subr.bf16.mxu0 0
        %2079 = vmatpush1.bf16.msra.mxu0 %v1312
        %2080 = vmatprep.subr.bf16.mxu0 0
        %2081 = vmatpush1.bf16.msra.mxu0 %v1313
        %2082 = vmatprep.subr.bf16.mxu0 0
        %2083 = vmatpush1.bf16.msra.mxu0 %v1314
        %2084 = vmatprep.subr.bf16.mxu0 0
        %2085 = vmatpush1.bf16.msra.mxu0 %v1315
        %2086 = vmatprep.subr.bf16.mxu0 0
        %2087 = vmatpush1.bf16.msra.mxu0 %v1316
        %2088 = vmatprep.subr.bf16.mxu0 0
        %2089 = vmatpush1.bf16.msra.mxu0 %v1317
        %2090 = vmatprep.subr.bf16.mxu0 0
        %2091 = vmatpush1.bf16.msra.mxu0 %v1318
        %2092 = vmatprep.subr.bf16.mxu0 0
        %2093 = vmatpush1.bf16.msra.mxu0 %v1319
        %2094 = vmatprep.subr.bf16.mxu0 0
        %2095 = vmatpush1.bf16.msra.mxu0 %v1320
        %2096 = vmatprep.subr.bf16.mxu0 0
        %2097 = vmatpush1.bf16.msra.mxu0 %v1321
        %2098 = vmatprep.subr.bf16.mxu0 0
        %2099 = vmatpush1.bf16.msra.mxu0 %v1322
        %2100 = vmatprep.mubr.bf16.mxu0 %v1958
        %2101 = vmatmul.mubr.bf16.gmra.mrb[0].mxu0 %v1957
        %v2102 = vpop.f32.mrb[0].mxu0
        %v2103 = vadd.f32 %v2038, %v2102
        %v2104 = vpop.f32.mrb[0].mxu0
        %v2105 = vpop.f32.mrb[0].mxu0
        %v2106 = vadd.f32 %v2041, %v2105
        %v2107 = vpop.f32.mrb[0].mxu0
        %2108 = vmatprep.mubr.bf16.mxu0 %v1964
        %2109 = vmatmul.mubr.bf16.gmra.mrb[0].mxu0 %v1963
        %v2110 = vpop.f32.mrb[0].mxu0
        %v2111 = vadd.f32 %v2046, %v2110
        %v2112 = vpop.f32.mrb[0].mxu0
        %v2113 = vpop.f32.mrb[0].mxu0
        %v2114 = vadd.f32 %v2049, %v2113
        %v2115 = vpop.f32.mrb[0].mxu0
        %2116 = vmatprep.mubr.bf16.mxu0 %v1970
        %2117 = vmatmul.mubr.bf16.gmra.mrb[0].mxu0 %v1969
        %v2118 = vpop.f32.mrb[0].mxu0
        %v2119 = vadd.f32 %v2054, %v2118
        %v2120 = vpop.f32.mrb[0].mxu0
        %v2121 = vpop.f32.mrb[0].mxu0
        %v2122 = vadd.f32 %v2057, %v2121
        %v2123 = vpop.f32.mrb[0].mxu0
        %2124 = vmatprep.mubr.bf16.mxu0 %v1976
        %2125 = vmatmul.mubr.bf16.gmra.mrb[0].mxu0 %v1975
        %v2126 = vpop.f32.mrb[0].mxu0
        %v2127 = vadd.f32 %v2062, %v2126
        %v2128 = vpop.f32.mrb[0].mxu0
        %v2129 = vpop.f32.mrb[0].mxu0
        %v2130 = vadd.f32 %v2065, %v2129
        %v2131 = vpop.f32.mrb[0].mxu0
        %2132 = vdwg.mxu0
        %2133 = vmatprep.subr.bf16.mxu0 0
        %2134 = vmatpush1.bf16.msra.mxu0 %v1323
        %2135 = vmatprep.subr.bf16.mxu0 0
        %2136 = vmatpush1.bf16.msra.mxu0 %v1324
        %2137 = vmatprep.subr.bf16.mxu0 0
        %2138 = vmatpush1.bf16.msra.mxu0 %v1325
        %2139 = vmatprep.subr.bf16.mxu0 0
        %2140 = vmatpush1.bf16.msra.mxu0 %v1326
        %2141 = vmatprep.subr.bf16.mxu0 0
        %2142 = vmatpush1.bf16.msra.mxu0 %v1327
        %2143 = vmatprep.subr.bf16.mxu0 0
        %2144 = vmatpush1.bf16.msra.mxu0 %v1328
        %2145 = vmatprep.subr.bf16.mxu0 0
        %2146 = vmatpush1.bf16.msra.mxu0 %v1329
        %2147 = vmatprep.subr.bf16.mxu0 0
        %2148 = vmatpush1.bf16.msra.mxu0 %v1330
        %2149 = vmatprep.subr.bf16.mxu0 0
        %2150 = vmatpush1.bf16.msra.mxu0 %v1331
        %2151 = vmatprep.subr.bf16.mxu0 0
        %2152 = vmatpush1.bf16.msra.mxu0 %v1332
        %2153 = vmatprep.subr.bf16.mxu0 0
        %2154 = vmatpush1.bf16.msra.mxu0 %v1333
        %2155 = vmatprep.subr.bf16.mxu0 0
        %2156 = vmatpush1.bf16.msra.mxu0 %v1334
        %2157 = vmatprep.subr.bf16.mxu0 0
        %2158 = vmatpush1.bf16.msra.mxu0 %v1335
        %2159 = vmatprep.subr.bf16.mxu0 0
        %2160 = vmatpush1.bf16.msra.mxu0 %v1336
        %2161 = vmatprep.subr.bf16.mxu0 0
        %2162 = vmatpush1.bf16.msra.mxu0 %v1337
        %2163 = vmatprep.subr.bf16.mxu0 0
        %2164 = vmatpush1.bf16.msra.mxu0 %v1338
        %2165 = vmatprep.mubr.bf16.mxu0 %v1960
        %2166 = vmatmul.mubr.bf16.gmra.mrb[0].mxu0 %v1959
        %v2167 = vpop.f32.mrb[0].mxu0
        %v2168 = vadd.f32 %v2103, %v2167
        %v2169 = vpop.f32.mrb[0].mxu0
        %v2170 = vpop.f32.mrb[0].mxu0
        %v2171 = vadd.f32 %v2106, %v2170
        %v2172 = vpop.f32.mrb[0].mxu0
        %2173 = vmatprep.mubr.bf16.mxu0 %v1966
        %2174 = vmatmul.mubr.bf16.gmra.mrb[0].mxu0 %v1965
        %v2175 = vpop.f32.mrb[0].mxu0
        %v2176 = vadd.f32 %v2111, %v2175
        %v2177 = vpop.f32.mrb[0].mxu0
        %v2178 = vpop.f32.mrb[0].mxu0
        %v2179 = vadd.f32 %v2114, %v2178
        %v2180 = vpop.f32.mrb[0].mxu0
        %2181 = vmatprep.mubr.bf16.mxu0 %v1972
        %2182 = vmatmul.mubr.bf16.gmra.mrb[0].mxu0 %v1971
        %v2183 = vpop.f32.mrb[0].mxu0
        %v2184 = vadd.f32 %v2119, %v2183
        %v2185 = vpop.f32.mrb[0].mxu0
        %v2186 = vpop.f32.mrb[0].mxu0
        %v2187 = vadd.f32 %v2122, %v2186
        %v2188 = vpop.f32.mrb[0].mxu0
        %2189 = vmatprep.mubr.bf16.mxu0 %v1978
        %2190 = vmatmul.mubr.bf16.gmra.mrb[0].mxu0 %v1977
        %v2191 = vpop.f32.mrb[0].mxu0
        %v2192 = vadd.f32 %v2127, %v2191
        %v2193 = vpop.f32.mrb[0].mxu0
        %v2194 = vpop.f32.mrb[0].mxu0
        %v2195 = vadd.f32 %v2130, %v2194
        %v2196 = vpop.f32.mrb[0].mxu0
        %2197 = vdwg.mxu0
        %s2198 = scalar_lea.vmem %s188, 136 [#allocation2]
        %2199 = vst [vmem:[%s2198] sm:$0xff] %v2168
        %2200 = vst [vmem:[%s2198 + $0x10] sm:$0xff] %v2171
        %2201 = vst [vmem:[%s2198 + $0x20] sm:$0xff] %v2176
        %2202 = vst [vmem:[%s2198 + $0x30] sm:$0xff] %v2179
        %2203 = vst [vmem:[%s2198 + $0x40] sm:$0xff] %v2184
        %2204 = vst [vmem:[%s2198 + $0x50] sm:$0xff] %v2187
        %2205 = vst [vmem:[%s2198 + $0x60] sm:$0xff] %v2192
        %2206 = vst [vmem:[%s2198 + $0x70] sm:$0xff] %v2195
        %s2207 = sadd.s32 %s19, 2
        %s2208 = smul.u32 %s2207, 54
        %s2209 = smul.addr %s2208, 4
        %s2210 = scalar_lea.vmem %s193, %s2209
        %v2211 = vld [vmem:[%s2210] sm:$0xff]
        %v2212 = vld [vmem:[%s2210 + $0x8] sm:$0xff]
        %v2213 = vld [vmem:[%s2210 + $0x10] sm:$0xff]
        %v2214 = vld [vmem:[%s2210 + $0x18] sm:$0xff]
        %v2215 = vld [vmem:[%s2210 + $0x20] sm:$0xff]
        %v2216 = vld [vmem:[%s2210 + $0x28] sm:$0xff]
        %v2217 = vld [vmem:[%s2210 + $0x30] sm:$0xff]
        %v2218 = vld [vmem:[%s2210 + $0x38] sm:$0xff]
        %v2219 = vld [vmem:[%s2210 + $0x40] sm:$0xff]
        %v2220 = vld [vmem:[%s2210 + $0x48] sm:$0xff]
        %v2221 = vld [vmem:[%s2210 + $0x50] sm:$0xff]
        %v2222 = vld [vmem:[%s2210 + $0x58] sm:$0xff]
        %v2223 = vld [vmem:[%s2210 + $0x60] sm:$0xff]
        %v2224 = vld [vmem:[%s2210 + $0x68] sm:$0xff]
        %v2225 = vld [vmem:[%s2210 + $0x70] sm:$0xff]
        %v2226 = vld [vmem:[%s2210 + $0x78] sm:$0xff]
        %v2227 = vld [vmem:[%s2210 + $0x80] sm:$0xff]
        %v2228 = vld [vmem:[%s2210 + $0x88] sm:$0xff]
        %v2229 = vld [vmem:[%s2210 + $0x90] sm:$0xff]
        %v2230 = vld [vmem:[%s2210 + $0x98] sm:$0xff]
        %v2231 = vld [vmem:[%s2210 + $0xa0] sm:$0xff]
        %v2232 = vld [vmem:[%s2210 + $0xa8] sm:$0xff]
        %v2233 = vld [vmem:[%s2210 + $0xb0] sm:$0xff]
        %v2234 = vld [vmem:[%s2210 + $0xb8] sm:$0xff]
        %v2235 = vld [vmem:[%s2210 + $0xc0] sm:$0xff]
        %v2236 = vld [vmem:[%s2210 + $0xc8] sm:$0xff]
        %v2237 = vld [vmem:[%s2210 + $0xd0] sm:$0xff]
        %v2262 = vunpack.c.l.b16 %v2211
        %v2263 = vunpack.c.h.b16 %v2211
        %v2264 = vunpack.c.l.b16 %v2212
        %v2265 = vunpack.c.h.b16 %v2212
        %v2266 = vunpack.c.l.b16 %v2213
        %v2267 = vunpack.c.h.b16 %v2213
        %v2268 = vunpack.c.l.b16 %v2214
        %v2269 = vunpack.c.h.b16 %v2214
        %v2270 = vunpack.c.l.b16 %v2215
        %v2271 = vunpack.c.h.b16 %v2215
        %v2272 = vunpack.c.l.b16 %v2216
        %v2273 = vunpack.c.h.b16 %v2216
        %v2274 = vunpack.c.l.b16 %v2217
        %v2275 = vunpack.c.h.b16 %v2217
        %v2276 = vunpack.c.l.b16 %v2218
        %v2277 = vunpack.c.h.b16 %v2218
        %v2278 = vunpack.c.l.b16 %v2219
        %v2279 = vunpack.c.h.b16 %v2219
        %v2280 = vunpack.c.l.b16 %v2220
        %v2281 = vunpack.c.h.b16 %v2220
        %v2282 = vunpack.c.l.b16 %v2221
        %v2283 = vunpack.c.h.b16 %v2221
        %v2284 = vunpack.c.l.b16 %v2222
        %v2285 = vunpack.c.h.b16 %v2222
        %v2286 = vunpack.c.l.b16 %v2223
        %v2287 = vunpack.c.h.b16 %v2223
        %v2288 = vunpack.c.l.b16 %v2224
        %v2289 = vunpack.c.h.b16 %v2224
        %v2290 = vunpack.c.l.b16 %v2225
        %v2291 = vunpack.c.h.b16 %v2225
        %v2292 = vunpack.c.l.b16 %v2226
        %v2293 = vunpack.c.h.b16 %v2226
        %v2294 = vunpack.c.l.b16 %v2227
        %v2295 = vunpack.c.h.b16 %v2227
        %v2296 = vunpack.c.l.b16 %v2228
        %v2297 = vunpack.c.h.b16 %v2228
        %v2298 = vunpack.c.l.b16 %v2229
        %v2299 = vunpack.c.h.b16 %v2229
        %v2300 = vunpack.c.l.b16 %v2230
        %v2301 = vunpack.c.h.b16 %v2230
        %v2302 = vunpack.c.l.b16 %v2231
        %v2303 = vunpack.c.h.b16 %v2231
        %v2304 = vunpack.c.l.b16 %v2232
        %v2305 = vunpack.c.h.b16 %v2232
        %v2306 = vunpack.c.l.b16 %v2233
        %v2307 = vunpack.c.h.b16 %v2233
        %v2308 = vunpack.c.l.b16 %v2234
        %v2309 = vunpack.c.h.b16 %v2234
        %v2310 = vpack.c.b16 %v2268, %v2262
        %v2311 = vpack.c.b16 %v2269, %v2263
        %v2312 = vpack.c.b16 %v2270, %v2264
        %v2313 = vpack.c.b16 %v2271, %v2265
        %v2314 = vpack.c.b16 %v2272, %v2266
        %v2315 = vpack.c.b16 %v2273, %v2267
        %v2316 = vpack.c.b16 %v2280, %v2274
        %v2317 = vpack.c.b16 %v2281, %v2275
        %v2318 = vpack.c.b16 %v2282, %v2276
        %v2319 = vpack.c.b16 %v2283, %v2277
        %v2320 = vpack.c.b16 %v2284, %v2278
        %v2321 = vpack.c.b16 %v2285, %v2279
        %v2322 = vpack.c.b16 %v2292, %v2286
        %v2323 = vpack.c.b16 %v2293, %v2287
        %v2324 = vpack.c.b16 %v2294, %v2288
        %v2325 = vpack.c.b16 %v2295, %v2289
        %v2326 = vpack.c.b16 %v2296, %v2290
        %v2327 = vpack.c.b16 %v2297, %v2291
        %v2328 = vpack.c.b16 %v2304, %v2298
        %v2329 = vpack.c.b16 %v2305, %v2299
        %v2330 = vpack.c.b16 %v2306, %v2300
        %v2331 = vpack.c.b16 %v2307, %v2301
        %v2332 = vpack.c.b16 %v2308, %v2302
        %v2333 = vpack.c.b16 %v2309, %v2303
        %2358 = vmatprep.subr.bf16.mxu0 0
        %2359 = vmatpush1.bf16.msra.mxu0 %v743
        %2360 = vmatprep.subr.bf16.mxu0 0
        %2361 = vmatpush1.bf16.msra.mxu0 %v744
        %2362 = vmatprep.subr.bf16.mxu0 0
        %2363 = vmatpush1.bf16.msra.mxu0 %v745
        %2364 = vmatprep.subr.bf16.mxu0 0
        %2365 = vmatpush1.bf16.msra.mxu0 %v746
        %2366 = vmatprep.subr.bf16.mxu0 0
        %2367 = vmatpush1.bf16.msra.mxu0 %v747
        %2368 = vmatprep.subr.bf16.mxu0 0
        %2369 = vmatpush1.bf16.msra.mxu0 %v748
        %2370 = vmatprep.subr.bf16.mxu0 0
        %2371 = vmatpush1.bf16.msra.mxu0 %v749
        %2372 = vmatprep.subr.bf16.mxu0 0
        %2373 = vmatpush1.bf16.msra.mxu0 %v750
        %2374 = vmatprep.subr.bf16.mxu0 0
        %2375 = vmatpush1.bf16.msra.mxu0 %v751
        %2376 = vmatprep.subr.bf16.mxu0 0
        %2377 = vmatpush1.bf16.msra.mxu0 %v752
        %2378 = vmatprep.subr.bf16.mxu0 0
        %2379 = vmatpush1.bf16.msra.mxu0 %v753
        %2380 = vmatprep.subr.bf16.mxu0 0
        %2381 = vmatpush1.bf16.msra.mxu0 %v754
        %2382 = vmatprep.subr.bf16.mxu0 0
        %2383 = vmatpush1.bf16.msra.mxu0 %v755
        %2384 = vmatprep.subr.bf16.mxu0 0
        %2385 = vmatpush1.bf16.msra.mxu0 %v756
        %2386 = vmatprep.subr.bf16.mxu0 0
        %2387 = vmatpush1.bf16.msra.mxu0 %v757
        %2388 = vmatprep.subr.bf16.mxu0 0
        %2389 = vmatpush1.bf16.msra.mxu0 %v758
        %2390 = vmatprep.mubr.bf16.mxu0 %v2311
        %2391 = vmatmul.mubr.bf16.gmra.mrb[0].mxu0 %v2310
        %v2392 = vpop.f32.mrb[0].mxu0
        %v2393 = vadd.f32 %v399, %v2392
        %v2394 = vpop.f32.mrb[0].mxu0
        %v2395 = vpop.f32.mrb[0].mxu0
        %v2396 = vadd.f32 %v399, %v2395
        %v2397 = vpop.f32.mrb[0].mxu0
        %2398 = vmatprep.mubr.bf16.mxu0 %v2317
        %2399 = vmatmul.mubr.bf16.gmra.mrb[0].mxu0 %v2316
        %v2400 = vpop.f32.mrb[0].mxu0
        %v2401 = vadd.f32 %v399, %v2400
        %v2402 = vpop.f32.mrb[0].mxu0
        %v2403 = vpop.f32.mrb[0].mxu0
        %v2404 = vadd.f32 %v399, %v2403
        %v2405 = vpop.f32.mrb[0].mxu0
        %2406 = vmatprep.mubr.bf16.mxu0 %v2323
        %2407 = vmatmul.mubr.bf16.gmra.mrb[0].mxu0 %v2322
        %v2408 = vpop.f32.mrb[0].mxu0
        %v2409 = vadd.f32 %v399, %v2408
        %v2410 = vpop.f32.mrb[0].mxu0
        %v2411 = vpop.f32.mrb[0].mxu0
        %v2412 = vadd.f32 %v399, %v2411
        %v2413 = vpop.f32.mrb[0].mxu0
        %2414 = vmatprep.mubr.bf16.mxu0 %v2329
        %2415 = vmatmul.mubr.bf16.gmra.mrb[0].mxu0 %v2328
        %v2416 = vpop.f32.mrb[0].mxu0
        %v2417 = vadd.f32 %v399, %v2416
        %v2418 = vpop.f32.mrb[0].mxu0
        %v2419 = vpop.f32.mrb[0].mxu0
        %v2420 = vadd.f32 %v399, %v2419
        %v2421 = vpop.f32.mrb[0].mxu0
        %2422 = vdwg.mxu0
        %2423 = vmatprep.subr.bf16.mxu0 0
        %2424 = vmatpush1.bf16.msra.mxu0 %v759
        %2425 = vmatprep.subr.bf16.mxu0 0
        %2426 = vmatpush1.bf16.msra.mxu0 %v760
        %2427 = vmatprep.subr.bf16.mxu0 0
        %2428 = vmatpush1.bf16.msra.mxu0 %v761
        %2429 = vmatprep.subr.bf16.mxu0 0
        %2430 = vmatpush1.bf16.msra.mxu0 %v762
        %2431 = vmatprep.subr.bf16.mxu0 0
        %2432 = vmatpush1.bf16.msra.mxu0 %v763
        %2433 = vmatprep.subr.bf16.mxu0 0
        %2434 = vmatpush1.bf16.msra.mxu0 %v764
        %2435 = vmatprep.subr.bf16.mxu0 0
        %2436 = vmatpush1.bf16.msra.mxu0 %v765
        %2437 = vmatprep.subr.bf16.mxu0 0
        %2438 = vmatpush1.bf16.msra.mxu0 %v766
        %2439 = vmatprep.subr.bf16.mxu0 0
        %2440 = vmatpush1.bf16.msra.mxu0 %v767
        %2441 = vmatprep.subr.bf16.mxu0 0
        %2442 = vmatpush1.bf16.msra.mxu0 %v768
        %2443 = vmatprep.subr.bf16.mxu0 0
        %2444 = vmatpush1.bf16.msra.mxu0 %v769
        %2445 = vmatprep.subr.bf16.mxu0 0
        %2446 = vmatpush1.bf16.msra.mxu0 %v770
        %2447 = vmatprep.subr.bf16.mxu0 0
        %2448 = vmatpush1.bf16.msra.mxu0 %v771
        %2449 = vmatprep.subr.bf16.mxu0 0
        %2450 = vmatpush1.bf16.msra.mxu0 %v772
        %2451 = vmatprep.subr.bf16.mxu0 0
        %2452 = vmatpush1.bf16.msra.mxu0 %v773
        %2453 = vmatprep.subr.bf16.mxu0 0
        %2454 = vmatpush1.bf16.msra.mxu0 %v774
        %2455 = vmatprep.mubr.bf16.mxu0 %v2313
        %2456 = vmatmul.mubr.bf16.gmra.mrb[0].mxu0 %v2312
        %v2457 = vpop.f32.mrb[0].mxu0
        %v2458 = vadd.f32 %v2393, %v2457
        %v2459 = vpop.f32.mrb[0].mxu0
        %v2460 = vpop.f32.mrb[0].mxu0
        %v2461 = vadd.f32 %v2396, %v2460
        %v2462 = vpop.f32.mrb[0].mxu0
        %2463 = vmatprep.mubr.bf16.mxu0 %v2319
        %2464 = vmatmul.mubr.bf16.gmra.mrb[0].mxu0 %v2318
        %v2465 = vpop.f32.mrb[0].mxu0
        %v2466 = vadd.f32 %v2401, %v2465
        %v2467 = vpop.f32.mrb[0].mxu0
        %v2468 = vpop.f32.mrb[0].mxu0
        %v2469 = vadd.f32 %v2404, %v2468
        %v2470 = vpop.f32.mrb[0].mxu0
        %2471 = vmatprep.mubr.bf16.mxu0 %v2325
        %2472 = vmatmul.mubr.bf16.gmra.mrb[0].mxu0 %v2324
        %v2473 = vpop.f32.mrb[0].mxu0
        %v2474 = vadd.f32 %v2409, %v2473
        %v2475 = vpop.f32.mrb[0].mxu0
        %v2476 = vpop.f32.mrb[0].mxu0
        %v2477 = vadd.f32 %v2412, %v2476
        %v2478 = vpop.f32.mrb[0].mxu0
        %2479 = vmatprep.mubr.bf16.mxu0 %v2331
        %2480 = vmatmul.mubr.bf16.gmra.mrb[0].mxu0 %v2330
        %v2481 = vpop.f32.mrb[0].mxu0
        %v2482 = vadd.f32 %v2417, %v2481
        %v2483 = vpop.f32.mrb[0].mxu0
        %v2484 = vpop.f32.mrb[0].mxu0
        %v2485 = vadd.f32 %v2420, %v2484
        %v2486 = vpop.f32.mrb[0].mxu0
        %2487 = vdwg.mxu0
        %2488 = vmatprep.subr.bf16.mxu0 0
        %2489 = vmatpush1.bf16.msra.mxu0 %v775
        %2490 = vmatprep.subr.bf16.mxu0 0
        %2491 = vmatpush1.bf16.msra.mxu0 %v776
        %2492 = vmatprep.subr.bf16.mxu0 0
        %2493 = vmatpush1.bf16.msra.mxu0 %v777
        %2494 = vmatprep.subr.bf16.mxu0 0
        %2495 = vmatpush1.bf16.msra.mxu0 %v778
        %2496 = vmatprep.subr.bf16.mxu0 0
        %2497 = vmatpush1.bf16.msra.mxu0 %v779
        %2498 = vmatprep.subr.bf16.mxu0 0
        %2499 = vmatpush1.bf16.msra.mxu0 %v780
        %2500 = vmatprep.subr.bf16.mxu0 0
        %2501 = vmatpush1.bf16.msra.mxu0 %v781
        %2502 = vmatprep.subr.bf16.mxu0 0
        %2503 = vmatpush1.bf16.msra.mxu0 %v782
        %2504 = vmatprep.subr.bf16.mxu0 0
        %2505 = vmatpush1.bf16.msra.mxu0 %v783
        %2506 = vmatprep.subr.bf16.mxu0 0
        %2507 = vmatpush1.bf16.msra.mxu0 %v784
        %2508 = vmatprep.subr.bf16.mxu0 0
        %2509 = vmatpush1.bf16.msra.mxu0 %v785
        %2510 = vmatprep.subr.bf16.mxu0 0
        %2511 = vmatpush1.bf16.msra.mxu0 %v786
        %2512 = vmatprep.subr.bf16.mxu0 0
        %2513 = vmatpush1.bf16.msra.mxu0 %v787
        %2514 = vmatprep.subr.bf16.mxu0 0
        %2515 = vmatpush1.bf16.msra.mxu0 %v788
        %2516 = vmatprep.subr.bf16.mxu0 0
        %2517 = vmatpush1.bf16.msra.mxu0 %v789
        %2518 = vmatprep.subr.bf16.mxu0 0
        %2519 = vmatpush1.bf16.msra.mxu0 %v790
        %2520 = vmatprep.mubr.bf16.mxu0 %v2315
        %2521 = vmatmul.mubr.bf16.gmra.mrb[0].mxu0 %v2314
        %v2522 = vpop.f32.mrb[0].mxu0
        %v2523 = vadd.f32 %v2458, %v2522
        %v2524 = vpop.f32.mrb[0].mxu0
        %v2525 = vpop.f32.mrb[0].mxu0
        %v2526 = vadd.f32 %v2461, %v2525
        %v2527 = vpop.f32.mrb[0].mxu0
        %2528 = vmatprep.mubr.bf16.mxu0 %v2321
        %2529 = vmatmul.mubr.bf16.gmra.mrb[0].mxu0 %v2320
        %v2530 = vpop.f32.mrb[0].mxu0
        %v2531 = vadd.f32 %v2466, %v2530
        %v2532 = vpop.f32.mrb[0].mxu0
        %v2533 = vpop.f32.mrb[0].mxu0
        %v2534 = vadd.f32 %v2469, %v2533
        %v2535 = vpop.f32.mrb[0].mxu0
        %2536 = vmatprep.mubr.bf16.mxu0 %v2327
        %2537 = vmatmul.mubr.bf16.gmra.mrb[0].mxu0 %v2326
        %v2538 = vpop.f32.mrb[0].mxu0
        %v2539 = vadd.f32 %v2474, %v2538
        %v2540 = vpop.f32.mrb[0].mxu0
        %v2541 = vpop.f32.mrb[0].mxu0
        %v2542 = vadd.f32 %v2477, %v2541
        %v2543 = vpop.f32.mrb[0].mxu0
        %2544 = vmatprep.mubr.bf16.mxu0 %v2333
        %2545 = vmatmul.mubr.bf16.gmra.mrb[0].mxu0 %v2332
        %v2546 = vpop.f32.mrb[0].mxu0
        %v2547 = vadd.f32 %v2482, %v2546
        %v2548 = vpop.f32.mrb[0].mxu0
        %v2549 = vpop.f32.mrb[0].mxu0
        %v2550 = vadd.f32 %v2485, %v2549
        %v2551 = vpop.f32.mrb[0].mxu0
        %2552 = vdwg.mxu0
        %s2553 = scalar_lea.vmem %s188, 256 [#allocation2]
        %2554 = vst [vmem:[%s2553] sm:$0xff] %v2523
        %2555 = vst [vmem:[%s2553 + $0x10] sm:$0xff] %v2526
        %2556 = vst [vmem:[%s2553 + $0x20] sm:$0xff] %v2531
        %2557 = vst [vmem:[%s2553 + $0x30] sm:$0xff] %v2534
        %2558 = vst [vmem:[%s2553 + $0x40] sm:$0xff] %v2539
        %2559 = vst [vmem:[%s2553 + $0x50] sm:$0xff] %v2542
        %2560 = vst [vmem:[%s2553 + $0x60] sm:$0xff] %v2547
        %2561 = vst [vmem:[%s2553 + $0x70] sm:$0xff] %v2550
        %v2565 = vunpack.c.l.b16 %v2235
        %v2566 = vunpack.c.h.b16 %v2235
        %v2567 = vunpack.c.l.b16 %v2236
        %v2568 = vunpack.c.h.b16 %v2236
        %v2569 = vunpack.c.l.b16 %v2237
        %v2570 = vunpack.c.h.b16 %v2237
        %v2571 = vpack.c.b16 %v2274, %v2268
        %v2572 = vpack.c.b16 %v2275, %v2269
        %v2573 = vpack.c.b16 %v2276, %v2270
        %v2574 = vpack.c.b16 %v2277, %v2271
        %v2575 = vpack.c.b16 %v2278, %v2272
        %v2576 = vpack.c.b16 %v2279, %v2273
        %v2577 = vpack.c.b16 %v2286, %v2280
        %v2578 = vpack.c.b16 %v2287, %v2281
        %v2579 = vpack.c.b16 %v2288, %v2282
        %v2580 = vpack.c.b16 %v2289, %v2283
        %v2581 = vpack.c.b16 %v2290, %v2284
        %v2582 = vpack.c.b16 %v2291, %v2285
        %v2583 = vpack.c.b16 %v2298, %v2292
        %v2584 = vpack.c.b16 %v2299, %v2293
        %v2585 = vpack.c.b16 %v2300, %v2294
        %v2586 = vpack.c.b16 %v2301, %v2295
        %v2587 = vpack.c.b16 %v2302, %v2296
        %v2588 = vpack.c.b16 %v2303, %v2297
        %v2589 = vpack.c.b16 %v2565, %v2304
        %v2590 = vpack.c.b16 %v2566, %v2305
        %v2591 = vpack.c.b16 %v2567, %v2306
        %v2592 = vpack.c.b16 %v2568, %v2307
        %v2593 = vpack.c.b16 %v2569, %v2308
        %v2594 = vpack.c.b16 %v2570, %v2309
        %2619 = vmatprep.subr.bf16.mxu0 0
        %2620 = vmatpush1.bf16.msra.mxu0 %v1291
        %2621 = vmatprep.subr.bf16.mxu0 0
        %2622 = vmatpush1.bf16.msra.mxu0 %v1292
        %2623 = vmatprep.subr.bf16.mxu0 0
        %2624 = vmatpush1.bf16.msra.mxu0 %v1293
        %2625 = vmatprep.subr.bf16.mxu0 0
        %2626 = vmatpush1.bf16.msra.mxu0 %v1294
        %2627 = vmatprep.subr.bf16.mxu0 0
        %2628 = vmatpush1.bf16.msra.mxu0 %v1295
        %2629 = vmatprep.subr.bf16.mxu0 0
        %2630 = vmatpush1.bf16.msra.mxu0 %v1296
        %2631 = vmatprep.subr.bf16.mxu0 0
        %2632 = vmatpush1.bf16.msra.mxu0 %v1297
        %2633 = vmatprep.subr.bf16.mxu0 0
        %2634 = vmatpush1.bf16.msra.mxu0 %v1298
        %2635 = vmatprep.subr.bf16.mxu0 0
        %2636 = vmatpush1.bf16.msra.mxu0 %v1299
        %2637 = vmatprep.subr.bf16.mxu0 0
        %2638 = vmatpush1.bf16.msra.mxu0 %v1300
        %2639 = vmatprep.subr.bf16.mxu0 0
        %2640 = vmatpush1.bf16.msra.mxu0 %v1301
        %2641 = vmatprep.subr.bf16.mxu0 0
        %2642 = vmatpush1.bf16.msra.mxu0 %v1302
        %2643 = vmatprep.subr.bf16.mxu0 0
        %2644 = vmatpush1.bf16.msra.mxu0 %v1303
        %2645 = vmatprep.subr.bf16.mxu0 0
        %2646 = vmatpush1.bf16.msra.mxu0 %v1304
        %2647 = vmatprep.subr.bf16.mxu0 0
        %2648 = vmatpush1.bf16.msra.mxu0 %v1305
        %2649 = vmatprep.subr.bf16.mxu0 0
        %2650 = vmatpush1.bf16.msra.mxu0 %v1306
        %2651 = vmatprep.mubr.bf16.mxu0 %v2572
        %2652 = vmatmul.mubr.bf16.gmra.mrb[0].mxu0 %v2571
        %v2653 = vpop.f32.mrb[0].mxu0
        %v2654 = vadd.f32 %v399, %v2653
        %v2655 = vpop.f32.mrb[0].mxu0
        %v2656 = vpop.f32.mrb[0].mxu0
        %v2657 = vadd.f32 %v399, %v2656
        %v2658 = vpop.f32.mrb[0].mxu0
        %2659 = vmatprep.mubr.bf16.mxu0 %v2578
        %2660 = vmatmul.mubr.bf16.gmra.mrb[0].mxu0 %v2577
        %v2661 = vpop.f32.mrb[0].mxu0
        %v2662 = vadd.f32 %v399, %v2661
        %v2663 = vpop.f32.mrb[0].mxu0
        %v2664 = vpop.f32.mrb[0].mxu0
        %v2665 = vadd.f32 %v399, %v2664
        %v2666 = vpop.f32.mrb[0].mxu0
        %2667 = vmatprep.mubr.bf16.mxu0 %v2584
        %2668 = vmatmul.mubr.bf16.gmra.mrb[0].mxu0 %v2583
        %v2669 = vpop.f32.mrb[0].mxu0
        %v2670 = vadd.f32 %v399, %v2669
        %v2671 = vpop.f32.mrb[0].mxu0
        %v2672 = vpop.f32.mrb[0].mxu0
        %v2673 = vadd.f32 %v399, %v2672
        %v2674 = vpop.f32.mrb[0].mxu0
        %2675 = vmatprep.mubr.bf16.mxu0 %v2590
        %2676 = vmatmul.mubr.bf16.gmra.mrb[0].mxu0 %v2589
        %v2677 = vpop.f32.mrb[0].mxu0
        %v2678 = vadd.f32 %v399, %v2677
        %v2679 = vpop.f32.mrb[0].mxu0
        %v2680 = vpop.f32.mrb[0].mxu0
        %v2681 = vadd.f32 %v399, %v2680
        %v2682 = vpop.f32.mrb[0].mxu0
        %2683 = vdwg.mxu0
        %2684 = vmatprep.subr.bf16.mxu0 0
        %2685 = vmatpush1.bf16.msra.mxu0 %v1307
        %2686 = vmatprep.subr.bf16.mxu0 0
        %2687 = vmatpush1.bf16.msra.mxu0 %v1308
        %2688 = vmatprep.subr.bf16.mxu0 0
        %2689 = vmatpush1.bf16.msra.mxu0 %v1309
        %2690 = vmatprep.subr.bf16.mxu0 0
        %2691 = vmatpush1.bf16.msra.mxu0 %v1310
        %2692 = vmatprep.subr.bf16.mxu0 0
        %2693 = vmatpush1.bf16.msra.mxu0 %v1311
        %2694 = vmatprep.subr.bf16.mxu0 0
        %2695 = vmatpush1.bf16.msra.mxu0 %v1312
        %2696 = vmatprep.subr.bf16.mxu0 0
        %2697 = vmatpush1.bf16.msra.mxu0 %v1313
        %2698 = vmatprep.subr.bf16.mxu0 0
        %2699 = vmatpush1.bf16.msra.mxu0 %v1314
        %2700 = vmatprep.subr.bf16.mxu0 0
        %2701 = vmatpush1.bf16.msra.mxu0 %v1315
        %2702 = vmatprep.subr.bf16.mxu0 0
        %2703 = vmatpush1.bf16.msra.mxu0 %v1316
        %2704 = vmatprep.subr.bf16.mxu0 0
        %2705 = vmatpush1.bf16.msra.mxu0 %v1317
        %2706 = vmatprep.subr.bf16.mxu0 0
        %2707 = vmatpush1.bf16.msra.mxu0 %v1318
        %2708 = vmatprep.subr.bf16.mxu0 0
        %2709 = vmatpush1.bf16.msra.mxu0 %v1319
        %2710 = vmatprep.subr.bf16.mxu0 0
        %2711 = vmatpush1.bf16.msra.mxu0 %v1320
        %2712 = vmatprep.subr.bf16.mxu0 0
        %2713 = vmatpush1.bf16.msra.mxu0 %v1321
        %2714 = vmatprep.subr.bf16.mxu0 0
        %2715 = vmatpush1.bf16.msra.mxu0 %v1322
        %2716 = vmatprep.mubr.bf16.mxu0 %v2574
        %2717 = vmatmul.mubr.bf16.gmra.mrb[0].mxu0 %v2573
        %v2718 = vpop.f32.mrb[0].mxu0
        %v2719 = vadd.f32 %v2654, %v2718
        %v2720 = vpop.f32.mrb[0].mxu0
        %v2721 = vpop.f32.mrb[0].mxu0
        %v2722 = vadd.f32 %v2657, %v2721
        %v2723 = vpop.f32.mrb[0].mxu0
        %2724 = vmatprep.mubr.bf16.mxu0 %v2580
        %2725 = vmatmul.mubr.bf16.gmra.mrb[0].mxu0 %v2579
        %v2726 = vpop.f32.mrb[0].mxu0
        %v2727 = vadd.f32 %v2662, %v2726
        %v2728 = vpop.f32.mrb[0].mxu0
        %v2729 = vpop.f32.mrb[0].mxu0
        %v2730 = vadd.f32 %v2665, %v2729
        %v2731 = vpop.f32.mrb[0].mxu0
        %2732 = vmatprep.mubr.bf16.mxu0 %v2586
        %2733 = vmatmul.mubr.bf16.gmra.mrb[0].mxu0 %v2585
        %v2734 = vpop.f32.mrb[0].mxu0
        %v2735 = vadd.f32 %v2670, %v2734
        %v2736 = vpop.f32.mrb[0].mxu0
        %v2737 = vpop.f32.mrb[0].mxu0
        %v2738 = vadd.f32 %v2673, %v2737
        %v2739 = vpop.f32.mrb[0].mxu0
        %2740 = vmatprep.mubr.bf16.mxu0 %v2592
        %2741 = vmatmul.mubr.bf16.gmra.mrb[0].mxu0 %v2591
        %v2742 = vpop.f32.mrb[0].mxu0
        %v2743 = vadd.f32 %v2678, %v2742
        %v2744 = vpop.f32.mrb[0].mxu0
        %v2745 = vpop.f32.mrb[0].mxu0
        %v2746 = vadd.f32 %v2681, %v2745
        %v2747 = vpop.f32.mrb[0].mxu0
        %2748 = vdwg.mxu0
        %2749 = vmatprep.subr.bf16.mxu0 0
        %2750 = vmatpush1.bf16.msra.mxu0 %v1323
        %2751 = vmatprep.subr.bf16.mxu0 0
        %2752 = vmatpush1.bf16.msra.mxu0 %v1324
        %2753 = vmatprep.subr.bf16.mxu0 0
        %2754 = vmatpush1.bf16.msra.mxu0 %v1325
        %2755 = vmatprep.subr.bf16.mxu0 0
        %2756 = vmatpush1.bf16.msra.mxu0 %v1326
        %2757 = vmatprep.subr.bf16.mxu0 0
        %2758 = vmatpush1.bf16.msra.mxu0 %v1327
        %2759 = vmatprep.subr.bf16.mxu0 0
        %2760 = vmatpush1.bf16.msra.mxu0 %v1328
        %2761 = vmatprep.subr.bf16.mxu0 0
        %2762 = vmatpush1.bf16.msra.mxu0 %v1329
        %2763 = vmatprep.subr.bf16.mxu0 0
        %2764 = vmatpush1.bf16.msra.mxu0 %v1330
        %2765 = vmatprep.subr.bf16.mxu0 0
        %2766 = vmatpush1.bf16.msra.mxu0 %v1331
        %2767 = vmatprep.subr.bf16.mxu0 0
        %2768 = vmatpush1.bf16.msra.mxu0 %v1332
        %2769 = vmatprep.subr.bf16.mxu0 0
        %2770 = vmatpush1.bf16.msra.mxu0 %v1333
        %2771 = vmatprep.subr.bf16.mxu0 0
        %2772 = vmatpush1.bf16.msra.mxu0 %v1334
        %2773 = vmatprep.subr.bf16.mxu0 0
        %2774 = vmatpush1.bf16.msra.mxu0 %v1335
        %2775 = vmatprep.subr.bf16.mxu0 0
        %2776 = vmatpush1.bf16.msra.mxu0 %v1336
        %2777 = vmatprep.subr.bf16.mxu0 0
        %2778 = vmatpush1.bf16.msra.mxu0 %v1337
        %2779 = vmatprep.subr.bf16.mxu0 0
        %2780 = vmatpush1.bf16.msra.mxu0 %v1338
        %2781 = vmatprep.mubr.bf16.mxu0 %v2576
        %2782 = vmatmul.mubr.bf16.gmra.mrb[0].mxu0 %v2575
        %v2783 = vpop.f32.mrb[0].mxu0
        %v2784 = vadd.f32 %v2719, %v2783
        %v2785 = vpop.f32.mrb[0].mxu0
        %v2786 = vpop.f32.mrb[0].mxu0
        %v2787 = vadd.f32 %v2722, %v2786
        %v2788 = vpop.f32.mrb[0].mxu0
        %2789 = vmatprep.mubr.bf16.mxu0 %v2582
        %2790 = vmatmul.mubr.bf16.gmra.mrb[0].mxu0 %v2581
        %v2791 = vpop.f32.mrb[0].mxu0
        %v2792 = vadd.f32 %v2727, %v2791
        %v2793 = vpop.f32.mrb[0].mxu0
        %v2794 = vpop.f32.mrb[0].mxu0
        %v2795 = vadd.f32 %v2730, %v2794
        %v2796 = vpop.f32.mrb[0].mxu0
        %2797 = vmatprep.mubr.bf16.mxu0 %v2588
        %2798 = vmatmul.mubr.bf16.gmra.mrb[0].mxu0 %v2587
        %v2799 = vpop.f32.mrb[0].mxu0
        %v2800 = vadd.f32 %v2735, %v2799
        %v2801 = vpop.f32.mrb[0].mxu0
        %v2802 = vpop.f32.mrb[0].mxu0
        %v2803 = vadd.f32 %v2738, %v2802
        %v2804 = vpop.f32.mrb[0].mxu0
        %2805 = vmatprep.mubr.bf16.mxu0 %v2594
        %2806 = vmatmul.mubr.bf16.gmra.mrb[0].mxu0 %v2593
        %v2807 = vpop.f32.mrb[0].mxu0
        %v2808 = vadd.f32 %v2743, %v2807
        %v2809 = vpop.f32.mrb[0].mxu0
        %v2810 = vpop.f32.mrb[0].mxu0
        %v2811 = vadd.f32 %v2746, %v2810
        %v2812 = vpop.f32.mrb[0].mxu0
        %2813 = vdwg.mxu0
        %s2814 = scalar_lea.vmem %s188, 264 [#allocation2]
        %2815 = vst [vmem:[%s2814] sm:$0xff] %v2784
        %2816 = vst [vmem:[%s2814 + $0x10] sm:$0xff] %v2787
        %2817 = vst [vmem:[%s2814 + $0x20] sm:$0xff] %v2792
        %2818 = vst [vmem:[%s2814 + $0x30] sm:$0xff] %v2795
        %2819 = vst [vmem:[%s2814 + $0x40] sm:$0xff] %v2800
        %2820 = vst [vmem:[%s2814 + $0x50] sm:$0xff] %v2803
        %2821 = vst [vmem:[%s2814 + $0x60] sm:$0xff] %v2808
        %2822 = vst [vmem:[%s2814 + $0x70] sm:$0xff] %v2811
        %s2823 = sadd.s32 %s19, 3
        %s2824 = smul.u32 %s2823, 54
        %s2825 = smul.addr %s2824, 4
        %s2826 = scalar_lea.vmem %s193, %s2825
        %v2827 = vld [vmem:[%s2826] sm:$0xff]
        %v2828 = vld [vmem:[%s2826 + $0x8] sm:$0xff]
        %v2829 = vld [vmem:[%s2826 + $0x10] sm:$0xff]
        %v2830 = vld [vmem:[%s2826 + $0x18] sm:$0xff]
        %v2831 = vld [vmem:[%s2826 + $0x20] sm:$0xff]
        %v2832 = vld [vmem:[%s2826 + $0x28] sm:$0xff]
        %v2833 = vld [vmem:[%s2826 + $0x30] sm:$0xff]
        %v2834 = vld [vmem:[%s2826 + $0x38] sm:$0xff]
        %v2835 = vld [vmem:[%s2826 + $0x40] sm:$0xff]
        %v2836 = vld [vmem:[%s2826 + $0x48] sm:$0xff]
        %v2837 = vld [vmem:[%s2826 + $0x50] sm:$0xff]
        %v2838 = vld [vmem:[%s2826 + $0x58] sm:$0xff]
        %v2839 = vld [vmem:[%s2826 + $0x60] sm:$0xff]
        %v2840 = vld [vmem:[%s2826 + $0x68] sm:$0xff]
        %v2841 = vld [vmem:[%s2826 + $0x70] sm:$0xff]
        %v2842 = vld [vmem:[%s2826 + $0x78] sm:$0xff]
        %v2843 = vld [vmem:[%s2826 + $0x80] sm:$0xff]
        %v2844 = vld [vmem:[%s2826 + $0x88] sm:$0xff]
        %v2845 = vld [vmem:[%s2826 + $0x90] sm:$0xff]
        %v2846 = vld [vmem:[%s2826 + $0x98] sm:$0xff]
        %v2847 = vld [vmem:[%s2826 + $0xa0] sm:$0xff]
        %v2848 = vld [vmem:[%s2826 + $0xa8] sm:$0xff]
        %v2849 = vld [vmem:[%s2826 + $0xb0] sm:$0xff]
        %v2850 = vld [vmem:[%s2826 + $0xb8] sm:$0xff]
        %v2851 = vld [vmem:[%s2826 + $0xc0] sm:$0xff]
        %v2852 = vld [vmem:[%s2826 + $0xc8] sm:$0xff]
        %v2853 = vld [vmem:[%s2826 + $0xd0] sm:$0xff]
        %v2878 = vunpack.c.l.b16 %v2827
        %v2879 = vunpack.c.h.b16 %v2827
        %v2880 = vunpack.c.l.b16 %v2828
        %v2881 = vunpack.c.h.b16 %v2828
        %v2882 = vunpack.c.l.b16 %v2829
        %v2883 = vunpack.c.h.b16 %v2829
        %v2884 = vunpack.c.l.b16 %v2830
        %v2885 = vunpack.c.h.b16 %v2830
        %v2886 = vunpack.c.l.b16 %v2831
        %v2887 = vunpack.c.h.b16 %v2831
        %v2888 = vunpack.c.l.b16 %v2832
        %v2889 = vunpack.c.h.b16 %v2832
        %v2890 = vunpack.c.l.b16 %v2833
        %v2891 = vunpack.c.h.b16 %v2833
        %v2892 = vunpack.c.l.b16 %v2834
        %v2893 = vunpack.c.h.b16 %v2834
        %v2894 = vunpack.c.l.b16 %v2835
        %v2895 = vunpack.c.h.b16 %v2835
        %v2896 = vunpack.c.l.b16 %v2836
        %v2897 = vunpack.c.h.b16 %v2836
        %v2898 = vunpack.c.l.b16 %v2837
        %v2899 = vunpack.c.h.b16 %v2837
        %v2900 = vunpack.c.l.b16 %v2838
        %v2901 = vunpack.c.h.b16 %v2838
        %v2902 = vunpack.c.l.b16 %v2839
        %v2903 = vunpack.c.h.b16 %v2839
        %v2904 = vunpack.c.l.b16 %v2840
        %v2905 = vunpack.c.h.b16 %v2840
        %v2906 = vunpack.c.l.b16 %v2841
        %v2907 = vunpack.c.h.b16 %v2841
        %v2908 = vunpack.c.l.b16 %v2842
        %v2909 = vunpack.c.h.b16 %v2842
        %v2910 = vunpack.c.l.b16 %v2843
        %v2911 = vunpack.c.h.b16 %v2843
        %v2912 = vunpack.c.l.b16 %v2844
        %v2913 = vunpack.c.h.b16 %v2844
        %v2914 = vunpack.c.l.b16 %v2845
        %v2915 = vunpack.c.h.b16 %v2845
        %v2916 = vunpack.c.l.b16 %v2846
        %v2917 = vunpack.c.h.b16 %v2846
        %v2918 = vunpack.c.l.b16 %v2847
        %v2919 = vunpack.c.h.b16 %v2847
        %v2920 = vunpack.c.l.b16 %v2848
        %v2921 = vunpack.c.h.b16 %v2848
        %v2922 = vunpack.c.l.b16 %v2849
        %v2923 = vunpack.c.h.b16 %v2849
        %v2924 = vunpack.c.l.b16 %v2850
        %v2925 = vunpack.c.h.b16 %v2850
        %v2926 = vpack.c.b16 %v2884, %v2878
        %v2927 = vpack.c.b16 %v2885, %v2879
        %v2928 = vpack.c.b16 %v2886, %v2880
        %v2929 = vpack.c.b16 %v2887, %v2881
        %v2930 = vpack.c.b16 %v2888, %v2882
        %v2931 = vpack.c.b16 %v2889, %v2883
        %v2932 = vpack.c.b16 %v2896, %v2890
        %v2933 = vpack.c.b16 %v2897, %v2891
        %v2934 = vpack.c.b16 %v2898, %v2892
        %v2935 = vpack.c.b16 %v2899, %v2893
        %v2936 = vpack.c.b16 %v2900, %v2894
        %v2937 = vpack.c.b16 %v2901, %v2895
        %v2938 = vpack.c.b16 %v2908, %v2902
        %v2939 = vpack.c.b16 %v2909, %v2903
        %v2940 = vpack.c.b16 %v2910, %v2904
        %v2941 = vpack.c.b16 %v2911, %v2905
        %v2942 = vpack.c.b16 %v2912, %v2906
        %v2943 = vpack.c.b16 %v2913, %v2907
        %v2944 = vpack.c.b16 %v2920, %v2914
        %v2945 = vpack.c.b16 %v2921, %v2915
        %v2946 = vpack.c.b16 %v2922, %v2916
        %v2947 = vpack.c.b16 %v2923, %v2917
        %v2948 = vpack.c.b16 %v2924, %v2918
        %v2949 = vpack.c.b16 %v2925, %v2919
        %2974 = vmatprep.subr.bf16.mxu0 0
        %2975 = vmatpush1.bf16.msra.mxu0 %v743
        %2976 = vmatprep.subr.bf16.mxu0 0
        %2977 = vmatpush1.bf16.msra.mxu0 %v744
        %2978 = vmatprep.subr.bf16.mxu0 0
        %2979 = vmatpush1.bf16.msra.mxu0 %v745
        %2980 = vmatprep.subr.bf16.mxu0 0
        %2981 = vmatpush1.bf16.msra.mxu0 %v746
        %2982 = vmatprep.subr.bf16.mxu0 0
        %2983 = vmatpush1.bf16.msra.mxu0 %v747
        %2984 = vmatprep.subr.bf16.mxu0 0
        %2985 = vmatpush1.bf16.msra.mxu0 %v748
        %2986 = vmatprep.subr.bf16.mxu0 0
        %2987 = vmatpush1.bf16.msra.mxu0 %v749
        %2988 = vmatprep.subr.bf16.mxu0 0
        %2989 = vmatpush1.bf16.msra.mxu0 %v750
        %2990 = vmatprep.subr.bf16.mxu0 0
        %2991 = vmatpush1.bf16.msra.mxu0 %v751
        %2992 = vmatprep.subr.bf16.mxu0 0
        %2993 = vmatpush1.bf16.msra.mxu0 %v752
        %2994 = vmatprep.subr.bf16.mxu0 0
        %2995 = vmatpush1.bf16.msra.mxu0 %v753
        %2996 = vmatprep.subr.bf16.mxu0 0
        %2997 = vmatpush1.bf16.msra.mxu0 %v754
        %2998 = vmatprep.subr.bf16.mxu0 0
        %2999 = vmatpush1.bf16.msra.mxu0 %v755
        %3000 = vmatprep.subr.bf16.mxu0 0
        %3001 = vmatpush1.bf16.msra.mxu0 %v756
        %3002 = vmatprep.subr.bf16.mxu0 0
        %3003 = vmatpush1.bf16.msra.mxu0 %v757
        %3004 = vmatprep.subr.bf16.mxu0 0
        %3005 = vmatpush1.bf16.msra.mxu0 %v758
        %3006 = vmatprep.mubr.bf16.mxu0 %v2927
        %3007 = vmatmul.mubr.bf16.gmra.mrb[0].mxu0 %v2926
        %v3008 = vpop.f32.mrb[0].mxu0
        %v3009 = vadd.f32 %v399, %v3008
        %v3010 = vpop.f32.mrb[0].mxu0
        %v3011 = vpop.f32.mrb[0].mxu0
        %v3012 = vadd.f32 %v399, %v3011
        %v3013 = vpop.f32.mrb[0].mxu0
        %3014 = vmatprep.mubr.bf16.mxu0 %v2933
        %3015 = vmatmul.mubr.bf16.gmra.mrb[0].mxu0 %v2932
        %v3016 = vpop.f32.mrb[0].mxu0
        %v3017 = vadd.f32 %v399, %v3016
        %v3018 = vpop.f32.mrb[0].mxu0
        %v3019 = vpop.f32.mrb[0].mxu0
        %v3020 = vadd.f32 %v399, %v3019
        %v3021 = vpop.f32.mrb[0].mxu0
        %3022 = vmatprep.mubr.bf16.mxu0 %v2939
        %3023 = vmatmul.mubr.bf16.gmra.mrb[0].mxu0 %v2938
        %v3024 = vpop.f32.mrb[0].mxu0
        %v3025 = vadd.f32 %v399, %v3024
        %v3026 = vpop.f32.mrb[0].mxu0
        %v3027 = vpop.f32.mrb[0].mxu0
        %v3028 = vadd.f32 %v399, %v3027
        %v3029 = vpop.f32.mrb[0].mxu0
        %3030 = vmatprep.mubr.bf16.mxu0 %v2945
        %3031 = vmatmul.mubr.bf16.gmra.mrb[0].mxu0 %v2944
        %v3032 = vpop.f32.mrb[0].mxu0
        %v3033 = vadd.f32 %v399, %v3032
        %v3034 = vpop.f32.mrb[0].mxu0
        %v3035 = vpop.f32.mrb[0].mxu0
        %v3036 = vadd.f32 %v399, %v3035
        %v3037 = vpop.f32.mrb[0].mxu0
        %3038 = vdwg.mxu0
        %3039 = vmatprep.subr.bf16.mxu0 0
        %3040 = vmatpush1.bf16.msra.mxu0 %v759
        %3041 = vmatprep.subr.bf16.mxu0 0
        %3042 = vmatpush1.bf16.msra.mxu0 %v760
        %3043 = vmatprep.subr.bf16.mxu0 0
        %3044 = vmatpush1.bf16.msra.mxu0 %v761
        %3045 = vmatprep.subr.bf16.mxu0 0
        %3046 = vmatpush1.bf16.msra.mxu0 %v762
        %3047 = vmatprep.subr.bf16.mxu0 0
        %3048 = vmatpush1.bf16.msra.mxu0 %v763
        %3049 = vmatprep.subr.bf16.mxu0 0
        %3050 = vmatpush1.bf16.msra.mxu0 %v764
        %3051 = vmatprep.subr.bf16.mxu0 0
        %3052 = vmatpush1.bf16.msra.mxu0 %v765
        %3053 = vmatprep.subr.bf16.mxu0 0
        %3054 = vmatpush1.bf16.msra.mxu0 %v766
        %3055 = vmatprep.subr.bf16.mxu0 0
        %3056 = vmatpush1.bf16.msra.mxu0 %v767
        %3057 = vmatprep.subr.bf16.mxu0 0
        %3058 = vmatpush1.bf16.msra.mxu0 %v768
        %3059 = vmatprep.subr.bf16.mxu0 0
        %3060 = vmatpush1.bf16.msra.mxu0 %v769
        %3061 = vmatprep.subr.bf16.mxu0 0
        %3062 = vmatpush1.bf16.msra.mxu0 %v770
        %3063 = vmatprep.subr.bf16.mxu0 0
        %3064 = vmatpush1.bf16.msra.mxu0 %v771
        %3065 = vmatprep.subr.bf16.mxu0 0
        %3066 = vmatpush1.bf16.msra.mxu0 %v772
        %3067 = vmatprep.subr.bf16.mxu0 0
        %3068 = vmatpush1.bf16.msra.mxu0 %v773
        %3069 = vmatprep.subr.bf16.mxu0 0
        %3070 = vmatpush1.bf16.msra.mxu0 %v774
        %3071 = vmatprep.mubr.bf16.mxu0 %v2929
        %3072 = vmatmul.mubr.bf16.gmra.mrb[0].mxu0 %v2928
        %v3073 = vpop.f32.mrb[0].mxu0
        %v3074 = vadd.f32 %v3009, %v3073
        %v3075 = vpop.f32.mrb[0].mxu0
        %v3076 = vpop.f32.mrb[0].mxu0
        %v3077 = vadd.f32 %v3012, %v3076
        %v3078 = vpop.f32.mrb[0].mxu0
        %3079 = vmatprep.mubr.bf16.mxu0 %v2935
        %3080 = vmatmul.mubr.bf16.gmra.mrb[0].mxu0 %v2934
        %v3081 = vpop.f32.mrb[0].mxu0
        %v3082 = vadd.f32 %v3017, %v3081
        %v3083 = vpop.f32.mrb[0].mxu0
        %v3084 = vpop.f32.mrb[0].mxu0
        %v3085 = vadd.f32 %v3020, %v3084
        %v3086 = vpop.f32.mrb[0].mxu0
        %3087 = vmatprep.mubr.bf16.mxu0 %v2941
        %3088 = vmatmul.mubr.bf16.gmra.mrb[0].mxu0 %v2940
        %v3089 = vpop.f32.mrb[0].mxu0
        %v3090 = vadd.f32 %v3025, %v3089
        %v3091 = vpop.f32.mrb[0].mxu0
        %v3092 = vpop.f32.mrb[0].mxu0
        %v3093 = vadd.f32 %v3028, %v3092
        %v3094 = vpop.f32.mrb[0].mxu0
        %3095 = vmatprep.mubr.bf16.mxu0 %v2947
        %3096 = vmatmul.mubr.bf16.gmra.mrb[0].mxu0 %v2946
        %v3097 = vpop.f32.mrb[0].mxu0
        %v3098 = vadd.f32 %v3033, %v3097
        %v3099 = vpop.f32.mrb[0].mxu0
        %v3100 = vpop.f32.mrb[0].mxu0
        %v3101 = vadd.f32 %v3036, %v3100
        %v3102 = vpop.f32.mrb[0].mxu0
        %3103 = vdwg.mxu0
        %3104 = vmatprep.subr.bf16.mxu0 0
        %3105 = vmatpush1.bf16.msra.mxu0 %v775
        %3106 = vmatprep.subr.bf16.mxu0 0
        %3107 = vmatpush1.bf16.msra.mxu0 %v776
        %3108 = vmatprep.subr.bf16.mxu0 0
        %3109 = vmatpush1.bf16.msra.mxu0 %v777
        %3110 = vmatprep.subr.bf16.mxu0 0
        %3111 = vmatpush1.bf16.msra.mxu0 %v778
        %3112 = vmatprep.subr.bf16.mxu0 0
        %3113 = vmatpush1.bf16.msra.mxu0 %v779
        %3114 = vmatprep.subr.bf16.mxu0 0
        %3115 = vmatpush1.bf16.msra.mxu0 %v780
        %3116 = vmatprep.subr.bf16.mxu0 0
        %3117 = vmatpush1.bf16.msra.mxu0 %v781
        %3118 = vmatprep.subr.bf16.mxu0 0
        %3119 = vmatpush1.bf16.msra.mxu0 %v782
        %3120 = vmatprep.subr.bf16.mxu0 0
        %3121 = vmatpush1.bf16.msra.mxu0 %v783
        %3122 = vmatprep.subr.bf16.mxu0 0
        %3123 = vmatpush1.bf16.msra.mxu0 %v784
        %3124 = vmatprep.subr.bf16.mxu0 0
        %3125 = vmatpush1.bf16.msra.mxu0 %v785
        %3126 = vmatprep.subr.bf16.mxu0 0
        %3127 = vmatpush1.bf16.msra.mxu0 %v786
        %3128 = vmatprep.subr.bf16.mxu0 0
        %3129 = vmatpush1.bf16.msra.mxu0 %v787
        %3130 = vmatprep.subr.bf16.mxu0 0
        %3131 = vmatpush1.bf16.msra.mxu0 %v788
        %3132 = vmatprep.subr.bf16.mxu0 0
        %3133 = vmatpush1.bf16.msra.mxu0 %v789
        %3134 = vmatprep.subr.bf16.mxu0 0
        %3135 = vmatpush1.bf16.msra.mxu0 %v790
        %3136 = vmatprep.mubr.bf16.mxu0 %v2931
        %3137 = vmatmul.mubr.bf16.gmra.mrb[0].mxu0 %v2930
        %v3138 = vpop.f32.mrb[0].mxu0
        %v3139 = vadd.f32 %v3074, %v3138
        %v3140 = vpop.f32.mrb[0].mxu0
        %v3141 = vpop.f32.mrb[0].mxu0
        %v3142 = vadd.f32 %v3077, %v3141
        %v3143 = vpop.f32.mrb[0].mxu0
        %3144 = vmatprep.mubr.bf16.mxu0 %v2937
        %3145 = vmatmul.mubr.bf16.gmra.mrb[0].mxu0 %v2936
        %v3146 = vpop.f32.mrb[0].mxu0
        %v3147 = vadd.f32 %v3082, %v3146
        %v3148 = vpop.f32.mrb[0].mxu0
        %v3149 = vpop.f32.mrb[0].mxu0
        %v3150 = vadd.f32 %v3085, %v3149
        %v3151 = vpop.f32.mrb[0].mxu0
        %3152 = vmatprep.mubr.bf16.mxu0 %v2943
        %3153 = vmatmul.mubr.bf16.gmra.mrb[0].mxu0 %v2942
        %v3154 = vpop.f32.mrb[0].mxu0
        %v3155 = vadd.f32 %v3090, %v3154
        %v3156 = vpop.f32.mrb[0].mxu0
        %v3157 = vpop.f32.mrb[0].mxu0
        %v3158 = vadd.f32 %v3093, %v3157
        %v3159 = vpop.f32.mrb[0].mxu0
        %3160 = vmatprep.mubr.bf16.mxu0 %v2949
        %3161 = vmatmul.mubr.bf16.gmra.mrb[0].mxu0 %v2948
        %v3162 = vpop.f32.mrb[0].mxu0
        %v3163 = vadd.f32 %v3098, %v3162
        %v3164 = vpop.f32.mrb[0].mxu0
        %v3165 = vpop.f32.mrb[0].mxu0
        %v3166 = vadd.f32 %v3101, %v3165
        %v3167 = vpop.f32.mrb[0].mxu0
        %3168 = vdwg.mxu0
        %s3169 = scalar_lea.vmem %s188, 384 [#allocation2]
        %3170 = vst [vmem:[%s3169] sm:$0xff] %v3139
        %3171 = vst [vmem:[%s3169 + $0x10] sm:$0xff] %v3142
        %3172 = vst [vmem:[%s3169 + $0x20] sm:$0xff] %v3147
        %3173 = vst [vmem:[%s3169 + $0x30] sm:$0xff] %v3150
        %3174 = vst [vmem:[%s3169 + $0x40] sm:$0xff] %v3155
        %3175 = vst [vmem:[%s3169 + $0x50] sm:$0xff] %v3158
        %3176 = vst [vmem:[%s3169 + $0x60] sm:$0xff] %v3163
        %3177 = vst [vmem:[%s3169 + $0x70] sm:$0xff] %v3166
        %v3181 = vunpack.c.l.b16 %v2851
        %v3182 = vunpack.c.h.b16 %v2851
        %v3183 = vunpack.c.l.b16 %v2852
        %v3184 = vunpack.c.h.b16 %v2852
        %v3185 = vunpack.c.l.b16 %v2853
        %v3186 = vunpack.c.h.b16 %v2853
        %v3187 = vpack.c.b16 %v2890, %v2884
        %v3188 = vpack.c.b16 %v2891, %v2885
        %v3189 = vpack.c.b16 %v2892, %v2886
        %v3190 = vpack.c.b16 %v2893, %v2887
        %v3191 = vpack.c.b16 %v2894, %v2888
        %v3192 = vpack.c.b16 %v2895, %v2889
        %v3193 = vpack.c.b16 %v2902, %v2896
        %v3194 = vpack.c.b16 %v2903, %v2897
        %v3195 = vpack.c.b16 %v2904, %v2898
        %v3196 = vpack.c.b16 %v2905, %v2899
        %v3197 = vpack.c.b16 %v2906, %v2900
        %v3198 = vpack.c.b16 %v2907, %v2901
        %v3199 = vpack.c.b16 %v2914, %v2908
        %v3200 = vpack.c.b16 %v2915, %v2909
        %v3201 = vpack.c.b16 %v2916, %v2910
        %v3202 = vpack.c.b16 %v2917, %v2911
        %v3203 = vpack.c.b16 %v2918, %v2912
        %v3204 = vpack.c.b16 %v2919, %v2913
        %v3205 = vpack.c.b16 %v3181, %v2920
        %v3206 = vpack.c.b16 %v3182, %v2921
        %v3207 = vpack.c.b16 %v3183, %v2922
        %v3208 = vpack.c.b16 %v3184, %v2923
        %v3209 = vpack.c.b16 %v3185, %v2924
        %v3210 = vpack.c.b16 %v3186, %v2925
        %3235 = vmatprep.subr.bf16.mxu0 0
        %3236 = vmatpush1.bf16.msra.mxu0 %v1291
        %3237 = vmatprep.subr.bf16.mxu0 0
        %3238 = vmatpush1.bf16.msra.mxu0 %v1292
        %3239 = vmatprep.subr.bf16.mxu0 0
        %3240 = vmatpush1.bf16.msra.mxu0 %v1293
        %3241 = vmatprep.subr.bf16.mxu0 0
        %3242 = vmatpush1.bf16.msra.mxu0 %v1294
        %3243 = vmatprep.subr.bf16.mxu0 0
        %3244 = vmatpush1.bf16.msra.mxu0 %v1295
        %3245 = vmatprep.subr.bf16.mxu0 0
        %3246 = vmatpush1.bf16.msra.mxu0 %v1296
        %3247 = vmatprep.subr.bf16.mxu0 0
        %3248 = vmatpush1.bf16.msra.mxu0 %v1297
        %3249 = vmatprep.subr.bf16.mxu0 0
        %3250 = vmatpush1.bf16.msra.mxu0 %v1298
        %3251 = vmatprep.subr.bf16.mxu0 0
        %3252 = vmatpush1.bf16.msra.mxu0 %v1299
        %3253 = vmatprep.subr.bf16.mxu0 0
        %3254 = vmatpush1.bf16.msra.mxu0 %v1300
        %3255 = vmatprep.subr.bf16.mxu0 0
        %3256 = vmatpush1.bf16.msra.mxu0 %v1301
        %3257 = vmatprep.subr.bf16.mxu0 0
        %3258 = vmatpush1.bf16.msra.mxu0 %v1302
        %3259 = vmatprep.subr.bf16.mxu0 0
        %3260 = vmatpush1.bf16.msra.mxu0 %v1303
        %3261 = vmatprep.subr.bf16.mxu0 0
        %3262 = vmatpush1.bf16.msra.mxu0 %v1304
        %3263 = vmatprep.subr.bf16.mxu0 0
        %3264 = vmatpush1.bf16.msra.mxu0 %v1305
        %3265 = vmatprep.subr.bf16.mxu0 0
        %3266 = vmatpush1.bf16.msra.mxu0 %v1306
        %3267 = vmatprep.mubr.bf16.mxu0 %v3188
        %3268 = vmatmul.mubr.bf16.gmra.mrb[0].mxu0 %v3187
        %v3269 = vpop.f32.mrb[0].mxu0
        %v3270 = vadd.f32 %v399, %v3269
        %v3271 = vpop.f32.mrb[0].mxu0
        %v3272 = vpop.f32.mrb[0].mxu0
        %v3273 = vadd.f32 %v399, %v3272
        %v3274 = vpop.f32.mrb[0].mxu0
        %3275 = vmatprep.mubr.bf16.mxu0 %v3194
        %3276 = vmatmul.mubr.bf16.gmra.mrb[0].mxu0 %v3193
        %v3277 = vpop.f32.mrb[0].mxu0
        %v3278 = vadd.f32 %v399, %v3277
        %v3279 = vpop.f32.mrb[0].mxu0
        %v3280 = vpop.f32.mrb[0].mxu0
        %v3281 = vadd.f32 %v399, %v3280
        %v3282 = vpop.f32.mrb[0].mxu0
        %3283 = vmatprep.mubr.bf16.mxu0 %v3200
        %3284 = vmatmul.mubr.bf16.gmra.mrb[0].mxu0 %v3199
        %v3285 = vpop.f32.mrb[0].mxu0
        %v3286 = vadd.f32 %v399, %v3285
        %v3287 = vpop.f32.mrb[0].mxu0
        %v3288 = vpop.f32.mrb[0].mxu0
        %v3289 = vadd.f32 %v399, %v3288
        %v3290 = vpop.f32.mrb[0].mxu0
        %3291 = vmatprep.mubr.bf16.mxu0 %v3206
        %3292 = vmatmul.mubr.bf16.gmra.mrb[0].mxu0 %v3205
        %v3293 = vpop.f32.mrb[0].mxu0
        %v3294 = vadd.f32 %v399, %v3293
        %v3295 = vpop.f32.mrb[0].mxu0
        %v3296 = vpop.f32.mrb[0].mxu0
        %v3297 = vadd.f32 %v399, %v3296
        %v3298 = vpop.f32.mrb[0].mxu0
        %3299 = vdwg.mxu0
        %3300 = vmatprep.subr.bf16.mxu0 0
        %3301 = vmatpush1.bf16.msra.mxu0 %v1307
        %3302 = vmatprep.subr.bf16.mxu0 0
        %3303 = vmatpush1.bf16.msra.mxu0 %v1308
        %3304 = vmatprep.subr.bf16.mxu0 0
        %3305 = vmatpush1.bf16.msra.mxu0 %v1309
        %3306 = vmatprep.subr.bf16.mxu0 0
        %3307 = vmatpush1.bf16.msra.mxu0 %v1310
        %3308 = vmatprep.subr.bf16.mxu0 0
        %3309 = vmatpush1.bf16.msra.mxu0 %v1311
        %3310 = vmatprep.subr.bf16.mxu0 0
        %3311 = vmatpush1.bf16.msra.mxu0 %v1312
        %3312 = vmatprep.subr.bf16.mxu0 0
        %3313 = vmatpush1.bf16.msra.mxu0 %v1313
        %3314 = vmatprep.subr.bf16.mxu0 0
        %3315 = vmatpush1.bf16.msra.mxu0 %v1314
        %3316 = vmatprep.subr.bf16.mxu0 0
        %3317 = vmatpush1.bf16.msra.mxu0 %v1315
        %3318 = vmatprep.subr.bf16.mxu0 0
        %3319 = vmatpush1.bf16.msra.mxu0 %v1316
        %3320 = vmatprep.subr.bf16.mxu0 0
        %3321 = vmatpush1.bf16.msra.mxu0 %v1317
        %3322 = vmatprep.subr.bf16.mxu0 0
        %3323 = vmatpush1.bf16.msra.mxu0 %v1318
        %3324 = vmatprep.subr.bf16.mxu0 0
        %3325 = vmatpush1.bf16.msra.mxu0 %v1319
        %3326 = vmatprep.subr.bf16.mxu0 0
        %3327 = vmatpush1.bf16.msra.mxu0 %v1320
        %3328 = vmatprep.subr.bf16.mxu0 0
        %3329 = vmatpush1.bf16.msra.mxu0 %v1321
        %3330 = vmatprep.subr.bf16.mxu0 0
        %3331 = vmatpush1.bf16.msra.mxu0 %v1322
        %3332 = vmatprep.mubr.bf16.mxu0 %v3190
        %3333 = vmatmul.mubr.bf16.gmra.mrb[0].mxu0 %v3189
        %v3334 = vpop.f32.mrb[0].mxu0
        %v3335 = vadd.f32 %v3270, %v3334
        %v3336 = vpop.f32.mrb[0].mxu0
        %v3337 = vpop.f32.mrb[0].mxu0
        %v3338 = vadd.f32 %v3273, %v3337
        %v3339 = vpop.f32.mrb[0].mxu0
        %3340 = vmatprep.mubr.bf16.mxu0 %v3196
        %3341 = vmatmul.mubr.bf16.gmra.mrb[0].mxu0 %v3195
        %v3342 = vpop.f32.mrb[0].mxu0
        %v3343 = vadd.f32 %v3278, %v3342
        %v3344 = vpop.f32.mrb[0].mxu0
        %v3345 = vpop.f32.mrb[0].mxu0
        %v3346 = vadd.f32 %v3281, %v3345
        %v3347 = vpop.f32.mrb[0].mxu0
        %3348 = vmatprep.mubr.bf16.mxu0 %v3202
        %3349 = vmatmul.mubr.bf16.gmra.mrb[0].mxu0 %v3201
        %v3350 = vpop.f32.mrb[0].mxu0
        %v3351 = vadd.f32 %v3286, %v3350
        %v3352 = vpop.f32.mrb[0].mxu0
        %v3353 = vpop.f32.mrb[0].mxu0
        %v3354 = vadd.f32 %v3289, %v3353
        %v3355 = vpop.f32.mrb[0].mxu0
        %3356 = vmatprep.mubr.bf16.mxu0 %v3208
        %3357 = vmatmul.mubr.bf16.gmra.mrb[0].mxu0 %v3207
        %v3358 = vpop.f32.mrb[0].mxu0
        %v3359 = vadd.f32 %v3294, %v3358
        %v3360 = vpop.f32.mrb[0].mxu0
        %v3361 = vpop.f32.mrb[0].mxu0
        %v3362 = vadd.f32 %v3297, %v3361
        %v3363 = vpop.f32.mrb[0].mxu0
        %3364 = vdwg.mxu0
        %3365 = vmatprep.subr.bf16.mxu0 0
        %3366 = vmatpush1.bf16.msra.mxu0 %v1323
        %3367 = vmatprep.subr.bf16.mxu0 0
        %3368 = vmatpush1.bf16.msra.mxu0 %v1324
        %3369 = vmatprep.subr.bf16.mxu0 0
        %3370 = vmatpush1.bf16.msra.mxu0 %v1325
        %3371 = vmatprep.subr.bf16.mxu0 0
        %3372 = vmatpush1.bf16.msra.mxu0 %v1326
        %3373 = vmatprep.subr.bf16.mxu0 0
        %3374 = vmatpush1.bf16.msra.mxu0 %v1327
        %3375 = vmatprep.subr.bf16.mxu0 0
        %3376 = vmatpush1.bf16.msra.mxu0 %v1328
        %3377 = vmatprep.subr.bf16.mxu0 0
        %3378 = vmatpush1.bf16.msra.mxu0 %v1329
        %3379 = vmatprep.subr.bf16.mxu0 0
        %3380 = vmatpush1.bf16.msra.mxu0 %v1330
        %3381 = vmatprep.subr.bf16.mxu0 0
        %3382 = vmatpush1.bf16.msra.mxu0 %v1331
        %3383 = vmatprep.subr.bf16.mxu0 0
        %3384 = vmatpush1.bf16.msra.mxu0 %v1332
        %3385 = vmatprep.subr.bf16.mxu0 0
        %3386 = vmatpush1.bf16.msra.mxu0 %v1333
        %3387 = vmatprep.subr.bf16.mxu0 0
        %3388 = vmatpush1.bf16.msra.mxu0 %v1334
        %3389 = vmatprep.subr.bf16.mxu0 0
        %3390 = vmatpush1.bf16.msra.mxu0 %v1335
        %3391 = vmatprep.subr.bf16.mxu0 0
        %3392 = vmatpush1.bf16.msra.mxu0 %v1336
        %3393 = vmatprep.subr.bf16.mxu0 0
        %3394 = vmatpush1.bf16.msra.mxu0 %v1337
        %3395 = vmatprep.subr.bf16.mxu0 0
        %3396 = vmatpush1.bf16.msra.mxu0 %v1338
        %3397 = vmatprep.mubr.bf16.mxu0 %v3192
        %3398 = vmatmul.mubr.bf16.gmra.mrb[0].mxu0 %v3191
        %v3399 = vpop.f32.mrb[0].mxu0
        %v3400 = vadd.f32 %v3335, %v3399
        %v3401 = vpop.f32.mrb[0].mxu0
        %v3402 = vpop.f32.mrb[0].mxu0
        %v3403 = vadd.f32 %v3338, %v3402
        %v3404 = vpop.f32.mrb[0].mxu0
        %3405 = vmatprep.mubr.bf16.mxu0 %v3198
        %3406 = vmatmul.mubr.bf16.gmra.mrb[0].mxu0 %v3197
        %v3407 = vpop.f32.mrb[0].mxu0
        %v3408 = vadd.f32 %v3343, %v3407
        %v3409 = vpop.f32.mrb[0].mxu0
        %v3410 = vpop.f32.mrb[0].mxu0
        %v3411 = vadd.f32 %v3346, %v3410
        %v3412 = vpop.f32.mrb[0].mxu0
        %3413 = vmatprep.mubr.bf16.mxu0 %v3204
        %3414 = vmatmul.mubr.bf16.gmra.mrb[0].mxu0 %v3203
        %v3415 = vpop.f32.mrb[0].mxu0
        %v3416 = vadd.f32 %v3351, %v3415
        %v3417 = vpop.f32.mrb[0].mxu0
        %v3418 = vpop.f32.mrb[0].mxu0
        %v3419 = vadd.f32 %v3354, %v3418
        %v3420 = vpop.f32.mrb[0].mxu0
        %3421 = vmatprep.mubr.bf16.mxu0 %v3210
        %3422 = vmatmul.mubr.bf16.gmra.mrb[0].mxu0 %v3209
        %v3423 = vpop.f32.mrb[0].mxu0
        %v3424 = vadd.f32 %v3359, %v3423
        %v3425 = vpop.f32.mrb[0].mxu0
        %v3426 = vpop.f32.mrb[0].mxu0
        %v3427 = vadd.f32 %v3362, %v3426
        %v3428 = vpop.f32.mrb[0].mxu0
        %3429 = vdwg.mxu0
        %s3430 = scalar_lea.vmem %s188, 392 [#allocation2]
        %3431 = vst [vmem:[%s3430] sm:$0xff] %v3400
        %3432 = vst [vmem:[%s3430 + $0x10] sm:$0xff] %v3403
        %3433 = vst [vmem:[%s3430 + $0x20] sm:$0xff] %v3408
        %3434 = vst [vmem:[%s3430 + $0x30] sm:$0xff] %v3411
        %3435 = vst [vmem:[%s3430 + $0x40] sm:$0xff] %v3416
        %3436 = vst [vmem:[%s3430 + $0x50] sm:$0xff] %v3419
        %3437 = vst [vmem:[%s3430 + $0x60] sm:$0xff] %v3424
        %3438 = vst [vmem:[%s3430 + $0x70] sm:$0xff] %v3427
        %s3439 = sadd.s32 %s19, 4
        %s3440 = smul.u32 %s3439, 54
        %s3441 = smul.addr %s3440, 4
        %s3442 = scalar_lea.vmem %s193, %s3441
        %v3443 = vld [vmem:[%s3442] sm:$0xff]
        %v3444 = vld [vmem:[%s3442 + $0x8] sm:$0xff]
        %v3445 = vld [vmem:[%s3442 + $0x10] sm:$0xff]
        %v3446 = vld [vmem:[%s3442 + $0x18] sm:$0xff]
        %v3447 = vld [vmem:[%s3442 + $0x20] sm:$0xff]
        %v3448 = vld [vmem:[%s3442 + $0x28] sm:$0xff]
        %v3449 = vld [vmem:[%s3442 + $0x30] sm:$0xff]
        %v3450 = vld [vmem:[%s3442 + $0x38] sm:$0xff]
        %v3451 = vld [vmem:[%s3442 + $0x40] sm:$0xff]
        %v3452 = vld [vmem:[%s3442 + $0x48] sm:$0xff]
        %v3453 = vld [vmem:[%s3442 + $0x50] sm:$0xff]
        %v3454 = vld [vmem:[%s3442 + $0x58] sm:$0xff]
        %v3455 = vld [vmem:[%s3442 + $0x60] sm:$0xff]
        %v3456 = vld [vmem:[%s3442 + $0x68] sm:$0xff]
        %v3457 = vld [vmem:[%s3442 + $0x70] sm:$0xff]
        %v3458 = vld [vmem:[%s3442 + $0x78] sm:$0xff]
        %v3459 = vld [vmem:[%s3442 + $0x80] sm:$0xff]
        %v3460 = vld [vmem:[%s3442 + $0x88] sm:$0xff]
        %v3461 = vld [vmem:[%s3442 + $0x90] sm:$0xff]
        %v3462 = vld [vmem:[%s3442 + $0x98] sm:$0xff]
        %v3463 = vld [vmem:[%s3442 + $0xa0] sm:$0xff]
        %v3464 = vld [vmem:[%s3442 + $0xa8] sm:$0xff]
        %v3465 = vld [vmem:[%s3442 + $0xb0] sm:$0xff]
        %v3466 = vld [vmem:[%s3442 + $0xb8] sm:$0xff]
        %v3467 = vld [vmem:[%s3442 + $0xc0] sm:$0xff]
        %v3468 = vld [vmem:[%s3442 + $0xc8] sm:$0xff]
        %v3469 = vld [vmem:[%s3442 + $0xd0] sm:$0xff]
        %v3494 = vunpack.c.l.b16 %v3443
        %v3495 = vunpack.c.h.b16 %v3443
        %v3496 = vunpack.c.l.b16 %v3444
        %v3497 = vunpack.c.h.b16 %v3444
        %v3498 = vunpack.c.l.b16 %v3445
        %v3499 = vunpack.c.h.b16 %v3445
        %v3500 = vunpack.c.l.b16 %v3446
        %v3501 = vunpack.c.h.b16 %v3446
        %v3502 = vunpack.c.l.b16 %v3447
        %v3503 = vunpack.c.h.b16 %v3447
        %v3504 = vunpack.c.l.b16 %v3448
        %v3505 = vunpack.c.h.b16 %v3448
        %v3506 = vunpack.c.l.b16 %v3449
        %v3507 = vunpack.c.h.b16 %v3449
        %v3508 = vunpack.c.l.b16 %v3450
        %v3509 = vunpack.c.h.b16 %v3450
        %v3510 = vunpack.c.l.b16 %v3451
        %v3511 = vunpack.c.h.b16 %v3451
        %v3512 = vunpack.c.l.b16 %v3452
        %v3513 = vunpack.c.h.b16 %v3452
        %v3514 = vunpack.c.l.b16 %v3453
        %v3515 = vunpack.c.h.b16 %v3453
        %v3516 = vunpack.c.l.b16 %v3454
        %v3517 = vunpack.c.h.b16 %v3454
        %v3518 = vunpack.c.l.b16 %v3455
        %v3519 = vunpack.c.h.b16 %v3455
        %v3520 = vunpack.c.l.b16 %v3456
        %v3521 = vunpack.c.h.b16 %v3456
        %v3522 = vunpack.c.l.b16 %v3457
        %v3523 = vunpack.c.h.b16 %v3457
        %v3524 = vunpack.c.l.b16 %v3458
        %v3525 = vunpack.c.h.b16 %v3458
        %v3526 = vunpack.c.l.b16 %v3459
        %v3527 = vunpack.c.h.b16 %v3459
        %v3528 = vunpack.c.l.b16 %v3460
        %v3529 = vunpack.c.h.b16 %v3460
        %v3530 = vunpack.c.l.b16 %v3461
        %v3531 = vunpack.c.h.b16 %v3461
        %v3532 = vunpack.c.l.b16 %v3462
        %v3533 = vunpack.c.h.b16 %v3462
        %v3534 = vunpack.c.l.b16 %v3463
        %v3535 = vunpack.c.h.b16 %v3463
        %v3536 = vunpack.c.l.b16 %v3464
        %v3537 = vunpack.c.h.b16 %v3464
        %v3538 = vunpack.c.l.b16 %v3465
        %v3539 = vunpack.c.h.b16 %v3465
        %v3540 = vunpack.c.l.b16 %v3466
        %v3541 = vunpack.c.h.b16 %v3466
        %v3542 = vpack.c.b16 %v3500, %v3494
        %v3543 = vpack.c.b16 %v3501, %v3495
        %v3544 = vpack.c.b16 %v3502, %v3496
        %v3545 = vpack.c.b16 %v3503, %v3497
        %v3546 = vpack.c.b16 %v3504, %v3498
        %v3547 = vpack.c.b16 %v3505, %v3499
        %v3548 = vpack.c.b16 %v3512, %v3506
        %v3549 = vpack.c.b16 %v3513, %v3507
        %v3550 = vpack.c.b16 %v3514, %v3508
        %v3551 = vpack.c.b16 %v3515, %v3509
        %v3552 = vpack.c.b16 %v3516, %v3510
        %v3553 = vpack.c.b16 %v3517, %v3511
        %v3554 = vpack.c.b16 %v3524, %v3518
        %v3555 = vpack.c.b16 %v3525, %v3519
        %v3556 = vpack.c.b16 %v3526, %v3520
        %v3557 = vpack.c.b16 %v3527, %v3521
        %v3558 = vpack.c.b16 %v3528, %v3522
        %v3559 = vpack.c.b16 %v3529, %v3523
        %v3560 = vpack.c.b16 %v3536, %v3530
        %v3561 = vpack.c.b16 %v3537, %v3531
        %v3562 = vpack.c.b16 %v3538, %v3532
        %v3563 = vpack.c.b16 %v3539, %v3533
        %v3564 = vpack.c.b16 %v3540, %v3534
        %v3565 = vpack.c.b16 %v3541, %v3535
        %3590 = vmatprep.subr.bf16.mxu0 0
        %3591 = vmatpush1.bf16.msra.mxu0 %v743
        %3592 = vmatprep.subr.bf16.mxu0 0
        %3593 = vmatpush1.bf16.msra.mxu0 %v744
        %3594 = vmatprep.subr.bf16.mxu0 0
        %3595 = vmatpush1.bf16.msra.mxu0 %v745
        %3596 = vmatprep.subr.bf16.mxu0 0
        %3597 = vmatpush1.bf16.msra.mxu0 %v746
        %3598 = vmatprep.subr.bf16.mxu0 0
        %3599 = vmatpush1.bf16.msra.mxu0 %v747
        %3600 = vmatprep.subr.bf16.mxu0 0
        %3601 = vmatpush1.bf16.msra.mxu0 %v748
        %3602 = vmatprep.subr.bf16.mxu0 0
        %3603 = vmatpush1.bf16.msra.mxu0 %v749
        %3604 = vmatprep.subr.bf16.mxu0 0
        %3605 = vmatpush1.bf16.msra.mxu0 %v750
        %3606 = vmatprep.subr.bf16.mxu0 0
        %3607 = vmatpush1.bf16.msra.mxu0 %v751
        %3608 = vmatprep.subr.bf16.mxu0 0
        %3609 = vmatpush1.bf16.msra.mxu0 %v752
        %3610 = vmatprep.subr.bf16.mxu0 0
        %3611 = vmatpush1.bf16.msra.mxu0 %v753
        %3612 = vmatprep.subr.bf16.mxu0 0
        %3613 = vmatpush1.bf16.msra.mxu0 %v754
        %3614 = vmatprep.subr.bf16.mxu0 0
        %3615 = vmatpush1.bf16.msra.mxu0 %v755
        %3616 = vmatprep.subr.bf16.mxu0 0
        %3617 = vmatpush1.bf16.msra.mxu0 %v756
        %3618 = vmatprep.subr.bf16.mxu0 0
        %3619 = vmatpush1.bf16.msra.mxu0 %v757
        %3620 = vmatprep.subr.bf16.mxu0 0
        %3621 = vmatpush1.bf16.msra.mxu0 %v758
        %3622 = vmatprep.mubr.bf16.mxu0 %v3543
        %3623 = vmatmul.mubr.bf16.gmra.mrb[0].mxu0 %v3542
        %v3624 = vpop.f32.mrb[0].mxu0
        %v3625 = vadd.f32 %v399, %v3624
        %v3626 = vpop.f32.mrb[0].mxu0
        %v3627 = vpop.f32.mrb[0].mxu0
        %v3628 = vadd.f32 %v399, %v3627
        %v3629 = vpop.f32.mrb[0].mxu0
        %3630 = vmatprep.mubr.bf16.mxu0 %v3549
        %3631 = vmatmul.mubr.bf16.gmra.mrb[0].mxu0 %v3548
        %v3632 = vpop.f32.mrb[0].mxu0
        %v3633 = vadd.f32 %v399, %v3632
        %v3634 = vpop.f32.mrb[0].mxu0
        %v3635 = vpop.f32.mrb[0].mxu0
        %v3636 = vadd.f32 %v399, %v3635
        %v3637 = vpop.f32.mrb[0].mxu0
        %3638 = vmatprep.mubr.bf16.mxu0 %v3555
        %3639 = vmatmul.mubr.bf16.gmra.mrb[0].mxu0 %v3554
        %v3640 = vpop.f32.mrb[0].mxu0
        %v3641 = vadd.f32 %v399, %v3640
        %v3642 = vpop.f32.mrb[0].mxu0
        %v3643 = vpop.f32.mrb[0].mxu0
        %v3644 = vadd.f32 %v399, %v3643
        %v3645 = vpop.f32.mrb[0].mxu0
        %3646 = vmatprep.mubr.bf16.mxu0 %v3561
        %3647 = vmatmul.mubr.bf16.gmra.mrb[0].mxu0 %v3560
        %v3648 = vpop.f32.mrb[0].mxu0
        %v3649 = vadd.f32 %v399, %v3648
        %v3650 = vpop.f32.mrb[0].mxu0
        %v3651 = vpop.f32.mrb[0].mxu0
        %v3652 = vadd.f32 %v399, %v3651
        %v3653 = vpop.f32.mrb[0].mxu0
        %3654 = vdwg.mxu0
        %3655 = vmatprep.subr.bf16.mxu0 0
        %3656 = vmatpush1.bf16.msra.mxu0 %v759
        %3657 = vmatprep.subr.bf16.mxu0 0
        %3658 = vmatpush1.bf16.msra.mxu0 %v760
        %3659 = vmatprep.subr.bf16.mxu0 0
        %3660 = vmatpush1.bf16.msra.mxu0 %v761
        %3661 = vmatprep.subr.bf16.mxu0 0
        %3662 = vmatpush1.bf16.msra.mxu0 %v762
        %3663 = vmatprep.subr.bf16.mxu0 0
        %3664 = vmatpush1.bf16.msra.mxu0 %v763
        %3665 = vmatprep.subr.bf16.mxu0 0
        %3666 = vmatpush1.bf16.msra.mxu0 %v764
        %3667 = vmatprep.subr.bf16.mxu0 0
        %3668 = vmatpush1.bf16.msra.mxu0 %v765
        %3669 = vmatprep.subr.bf16.mxu0 0
        %3670 = vmatpush1.bf16.msra.mxu0 %v766
        %3671 = vmatprep.subr.bf16.mxu0 0
        %3672 = vmatpush1.bf16.msra.mxu0 %v767
        %3673 = vmatprep.subr.bf16.mxu0 0
        %3674 = vmatpush1.bf16.msra.mxu0 %v768
        %3675 = vmatprep.subr.bf16.mxu0 0
        %3676 = vmatpush1.bf16.msra.mxu0 %v769
        %3677 = vmatprep.subr.bf16.mxu0 0
        %3678 = vmatpush1.bf16.msra.mxu0 %v770
        %3679 = vmatprep.subr.bf16.mxu0 0
        %3680 = vmatpush1.bf16.msra.mxu0 %v771
        %3681 = vmatprep.subr.bf16.mxu0 0
        %3682 = vmatpush1.bf16.msra.mxu0 %v772
        %3683 = vmatprep.subr.bf16.mxu0 0
        %3684 = vmatpush1.bf16.msra.mxu0 %v773
        %3685 = vmatprep.subr.bf16.mxu0 0
        %3686 = vmatpush1.bf16.msra.mxu0 %v774
        %3687 = vmatprep.mubr.bf16.mxu0 %v3545
        %3688 = vmatmul.mubr.bf16.gmra.mrb[0].mxu0 %v3544
        %v3689 = vpop.f32.mrb[0].mxu0
        %v3690 = vadd.f32 %v3625, %v3689
        %v3691 = vpop.f32.mrb[0].mxu0
        %v3692 = vpop.f32.mrb[0].mxu0
        %v3693 = vadd.f32 %v3628, %v3692
        %v3694 = vpop.f32.mrb[0].mxu0
        %3695 = vmatprep.mubr.bf16.mxu0 %v3551
        %3696 = vmatmul.mubr.bf16.gmra.mrb[0].mxu0 %v3550
        %v3697 = vpop.f32.mrb[0].mxu0
        %v3698 = vadd.f32 %v3633, %v3697
        %v3699 = vpop.f32.mrb[0].mxu0
        %v3700 = vpop.f32.mrb[0].mxu0
        %v3701 = vadd.f32 %v3636, %v3700
        %v3702 = vpop.f32.mrb[0].mxu0
        %3703 = vmatprep.mubr.bf16.mxu0 %v3557
        %3704 = vmatmul.mubr.bf16.gmra.mrb[0].mxu0 %v3556
        %v3705 = vpop.f32.mrb[0].mxu0
        %v3706 = vadd.f32 %v3641, %v3705
        %v3707 = vpop.f32.mrb[0].mxu0
        %v3708 = vpop.f32.mrb[0].mxu0
        %v3709 = vadd.f32 %v3644, %v3708
        %v3710 = vpop.f32.mrb[0].mxu0
        %3711 = vmatprep.mubr.bf16.mxu0 %v3563
        %3712 = vmatmul.mubr.bf16.gmra.mrb[0].mxu0 %v3562
        %v3713 = vpop.f32.mrb[0].mxu0
        %v3714 = vadd.f32 %v3649, %v3713
        %v3715 = vpop.f32.mrb[0].mxu0
        %v3716 = vpop.f32.mrb[0].mxu0
        %v3717 = vadd.f32 %v3652, %v3716
        %v3718 = vpop.f32.mrb[0].mxu0
        %3719 = vdwg.mxu0
        %3720 = vmatprep.subr.bf16.mxu0 0
        %3721 = vmatpush1.bf16.msra.mxu0 %v775
        %3722 = vmatprep.subr.bf16.mxu0 0
        %3723 = vmatpush1.bf16.msra.mxu0 %v776
        %3724 = vmatprep.subr.bf16.mxu0 0
        %3725 = vmatpush1.bf16.msra.mxu0 %v777
        %3726 = vmatprep.subr.bf16.mxu0 0
        %3727 = vmatpush1.bf16.msra.mxu0 %v778
        %3728 = vmatprep.subr.bf16.mxu0 0
        %3729 = vmatpush1.bf16.msra.mxu0 %v779
        %3730 = vmatprep.subr.bf16.mxu0 0
        %3731 = vmatpush1.bf16.msra.mxu0 %v780
        %3732 = vmatprep.subr.bf16.mxu0 0
        %3733 = vmatpush1.bf16.msra.mxu0 %v781
        %3734 = vmatprep.subr.bf16.mxu0 0
        %3735 = vmatpush1.bf16.msra.mxu0 %v782
        %3736 = vmatprep.subr.bf16.mxu0 0
        %3737 = vmatpush1.bf16.msra.mxu0 %v783
        %3738 = vmatprep.subr.bf16.mxu0 0
        %3739 = vmatpush1.bf16.msra.mxu0 %v784
        %3740 = vmatprep.subr.bf16.mxu0 0
        %3741 = vmatpush1.bf16.msra.mxu0 %v785
        %3742 = vmatprep.subr.bf16.mxu0 0
        %3743 = vmatpush1.bf16.msra.mxu0 %v786
        %3744 = vmatprep.subr.bf16.mxu0 0
        %3745 = vmatpush1.bf16.msra.mxu0 %v787
        %3746 = vmatprep.subr.bf16.mxu0 0
        %3747 = vmatpush1.bf16.msra.mxu0 %v788
        %3748 = vmatprep.subr.bf16.mxu0 0
        %3749 = vmatpush1.bf16.msra.mxu0 %v789
        %3750 = vmatprep.subr.bf16.mxu0 0
        %3751 = vmatpush1.bf16.msra.mxu0 %v790
        %3752 = vmatprep.mubr.bf16.mxu0 %v3547
        %3753 = vmatmul.mubr.bf16.gmra.mrb[0].mxu0 %v3546
        %v3754 = vpop.f32.mrb[0].mxu0
        %v3755 = vadd.f32 %v3690, %v3754
        %v3756 = vpop.f32.mrb[0].mxu0
        %v3757 = vpop.f32.mrb[0].mxu0
        %v3758 = vadd.f32 %v3693, %v3757
        %v3759 = vpop.f32.mrb[0].mxu0
        %3760 = vmatprep.mubr.bf16.mxu0 %v3553
        %3761 = vmatmul.mubr.bf16.gmra.mrb[0].mxu0 %v3552
        %v3762 = vpop.f32.mrb[0].mxu0
        %v3763 = vadd.f32 %v3698, %v3762
        %v3764 = vpop.f32.mrb[0].mxu0
        %v3765 = vpop.f32.mrb[0].mxu0
        %v3766 = vadd.f32 %v3701, %v3765
        %v3767 = vpop.f32.mrb[0].mxu0
        %3768 = vmatprep.mubr.bf16.mxu0 %v3559
        %3769 = vmatmul.mubr.bf16.gmra.mrb[0].mxu0 %v3558
        %v3770 = vpop.f32.mrb[0].mxu0
        %v3771 = vadd.f32 %v3706, %v3770
        %v3772 = vpop.f32.mrb[0].mxu0
        %v3773 = vpop.f32.mrb[0].mxu0
        %v3774 = vadd.f32 %v3709, %v3773
        %v3775 = vpop.f32.mrb[0].mxu0
        %3776 = vmatprep.mubr.bf16.mxu0 %v3565
        %3777 = vmatmul.mubr.bf16.gmra.mrb[0].mxu0 %v3564
        %v3778 = vpop.f32.mrb[0].mxu0
        %v3779 = vadd.f32 %v3714, %v3778
        %v3780 = vpop.f32.mrb[0].mxu0
        %v3781 = vpop.f32.mrb[0].mxu0
        %v3782 = vadd.f32 %v3717, %v3781
        %v3783 = vpop.f32.mrb[0].mxu0
        %3784 = vdwg.mxu0
        %s3785 = scalar_lea.vmem %s188, 512 [#allocation2]
        %3786 = vst [vmem:[%s3785] sm:$0xff] %v3755
        %3787 = vst [vmem:[%s3785 + $0x10] sm:$0xff] %v3758
        %3788 = vst [vmem:[%s3785 + $0x20] sm:$0xff] %v3763
        %3789 = vst [vmem:[%s3785 + $0x30] sm:$0xff] %v3766
        %3790 = vst [vmem:[%s3785 + $0x40] sm:$0xff] %v3771
        %3791 = vst [vmem:[%s3785 + $0x50] sm:$0xff] %v3774
        %3792 = vst [vmem:[%s3785 + $0x60] sm:$0xff] %v3779
        %3793 = vst [vmem:[%s3785 + $0x70] sm:$0xff] %v3782
        %v3797 = vunpack.c.l.b16 %v3467
        %v3798 = vunpack.c.h.b16 %v3467
        %v3799 = vunpack.c.l.b16 %v3468
        %v3800 = vunpack.c.h.b16 %v3468
        %v3801 = vunpack.c.l.b16 %v3469
        %v3802 = vunpack.c.h.b16 %v3469
        %v3803 = vpack.c.b16 %v3506, %v3500
        %v3804 = vpack.c.b16 %v3507, %v3501
        %v3805 = vpack.c.b16 %v3508, %v3502
        %v3806 = vpack.c.b16 %v3509, %v3503
        %v3807 = vpack.c.b16 %v3510, %v3504
        %v3808 = vpack.c.b16 %v3511, %v3505
        %v3809 = vpack.c.b16 %v3518, %v3512
        %v3810 = vpack.c.b16 %v3519, %v3513
        %v3811 = vpack.c.b16 %v3520, %v3514
        %v3812 = vpack.c.b16 %v3521, %v3515
        %v3813 = vpack.c.b16 %v3522, %v3516
        %v3814 = vpack.c.b16 %v3523, %v3517
        %v3815 = vpack.c.b16 %v3530, %v3524
        %v3816 = vpack.c.b16 %v3531, %v3525
        %v3817 = vpack.c.b16 %v3532, %v3526
        %v3818 = vpack.c.b16 %v3533, %v3527
        %v3819 = vpack.c.b16 %v3534, %v3528
        %v3820 = vpack.c.b16 %v3535, %v3529
        %v3821 = vpack.c.b16 %v3797, %v3536
        %v3822 = vpack.c.b16 %v3798, %v3537
        %v3823 = vpack.c.b16 %v3799, %v3538
        %v3824 = vpack.c.b16 %v3800, %v3539
        %v3825 = vpack.c.b16 %v3801, %v3540
        %v3826 = vpack.c.b16 %v3802, %v3541
        %3851 = vmatprep.subr.bf16.mxu0 0
        %3852 = vmatpush1.bf16.msra.mxu0 %v1291
        %3853 = vmatprep.subr.bf16.mxu0 0
        %3854 = vmatpush1.bf16.msra.mxu0 %v1292
        %3855 = vmatprep.subr.bf16.mxu0 0
        %3856 = vmatpush1.bf16.msra.mxu0 %v1293
        %3857 = vmatprep.subr.bf16.mxu0 0
        %3858 = vmatpush1.bf16.msra.mxu0 %v1294
        %3859 = vmatprep.subr.bf16.mxu0 0
        %3860 = vmatpush1.bf16.msra.mxu0 %v1295
        %3861 = vmatprep.subr.bf16.mxu0 0
        %3862 = vmatpush1.bf16.msra.mxu0 %v1296
        %3863 = vmatprep.subr.bf16.mxu0 0
        %3864 = vmatpush1.bf16.msra.mxu0 %v1297
        %3865 = vmatprep.subr.bf16.mxu0 0
        %3866 = vmatpush1.bf16.msra.mxu0 %v1298
        %3867 = vmatprep.subr.bf16.mxu0 0
        %3868 = vmatpush1.bf16.msra.mxu0 %v1299
        %3869 = vmatprep.subr.bf16.mxu0 0
        %3870 = vmatpush1.bf16.msra.mxu0 %v1300
        %3871 = vmatprep.subr.bf16.mxu0 0
        %3872 = vmatpush1.bf16.msra.mxu0 %v1301
        %3873 = vmatprep.subr.bf16.mxu0 0
        %3874 = vmatpush1.bf16.msra.mxu0 %v1302
        %3875 = vmatprep.subr.bf16.mxu0 0
        %3876 = vmatpush1.bf16.msra.mxu0 %v1303
        %3877 = vmatprep.subr.bf16.mxu0 0
        %3878 = vmatpush1.bf16.msra.mxu0 %v1304
        %3879 = vmatprep.subr.bf16.mxu0 0
        %3880 = vmatpush1.bf16.msra.mxu0 %v1305
        %3881 = vmatprep.subr.bf16.mxu0 0
        %3882 = vmatpush1.bf16.msra.mxu0 %v1306
        %3883 = vmatprep.mubr.bf16.mxu0 %v3804
        %3884 = vmatmul.mubr.bf16.gmra.mrb[0].mxu0 %v3803
        %v3885 = vpop.f32.mrb[0].mxu0
        %v3886 = vadd.f32 %v399, %v3885
        %v3887 = vpop.f32.mrb[0].mxu0
        %v3888 = vpop.f32.mrb[0].mxu0
        %v3889 = vadd.f32 %v399, %v3888
        %v3890 = vpop.f32.mrb[0].mxu0
        %3891 = vmatprep.mubr.bf16.mxu0 %v3810
        %3892 = vmatmul.mubr.bf16.gmra.mrb[0].mxu0 %v3809
        %v3893 = vpop.f32.mrb[0].mxu0
        %v3894 = vadd.f32 %v399, %v3893
        %v3895 = vpop.f32.mrb[0].mxu0
        %v3896 = vpop.f32.mrb[0].mxu0
        %v3897 = vadd.f32 %v399, %v3896
        %v3898 = vpop.f32.mrb[0].mxu0
        %3899 = vmatprep.mubr.bf16.mxu0 %v3816
        %3900 = vmatmul.mubr.bf16.gmra.mrb[0].mxu0 %v3815
        %v3901 = vpop.f32.mrb[0].mxu0
        %v3902 = vadd.f32 %v399, %v3901
        %v3903 = vpop.f32.mrb[0].mxu0
        %v3904 = vpop.f32.mrb[0].mxu0
        %v3905 = vadd.f32 %v399, %v3904
        %v3906 = vpop.f32.mrb[0].mxu0
        %3907 = vmatprep.mubr.bf16.mxu0 %v3822
        %3908 = vmatmul.mubr.bf16.gmra.mrb[0].mxu0 %v3821
        %v3909 = vpop.f32.mrb[0].mxu0
        %v3910 = vadd.f32 %v399, %v3909
        %v3911 = vpop.f32.mrb[0].mxu0
        %v3912 = vpop.f32.mrb[0].mxu0
        %v3913 = vadd.f32 %v399, %v3912
        %v3914 = vpop.f32.mrb[0].mxu0
        %3915 = vdwg.mxu0
        %3916 = vmatprep.subr.bf16.mxu0 0
        %3917 = vmatpush1.bf16.msra.mxu0 %v1307
        %3918 = vmatprep.subr.bf16.mxu0 0
        %3919 = vmatpush1.bf16.msra.mxu0 %v1308
        %3920 = vmatprep.subr.bf16.mxu0 0
        %3921 = vmatpush1.bf16.msra.mxu0 %v1309
        %3922 = vmatprep.subr.bf16.mxu0 0
        %3923 = vmatpush1.bf16.msra.mxu0 %v1310
        %3924 = vmatprep.subr.bf16.mxu0 0
        %3925 = vmatpush1.bf16.msra.mxu0 %v1311
        %3926 = vmatprep.subr.bf16.mxu0 0
        %3927 = vmatpush1.bf16.msra.mxu0 %v1312
        %3928 = vmatprep.subr.bf16.mxu0 0
        %3929 = vmatpush1.bf16.msra.mxu0 %v1313
        %3930 = vmatprep.subr.bf16.mxu0 0
        %3931 = vmatpush1.bf16.msra.mxu0 %v1314
        %3932 = vmatprep.subr.bf16.mxu0 0
        %3933 = vmatpush1.bf16.msra.mxu0 %v1315
        %3934 = vmatprep.subr.bf16.mxu0 0
        %3935 = vmatpush1.bf16.msra.mxu0 %v1316
        %3936 = vmatprep.subr.bf16.mxu0 0
        %3937 = vmatpush1.bf16.msra.mxu0 %v1317
        %3938 = vmatprep.subr.bf16.mxu0 0
        %3939 = vmatpush1.bf16.msra.mxu0 %v1318
        %3940 = vmatprep.subr.bf16.mxu0 0
        %3941 = vmatpush1.bf16.msra.mxu0 %v1319
        %3942 = vmatprep.subr.bf16.mxu0 0
        %3943 = vmatpush1.bf16.msra.mxu0 %v1320
        %3944 = vmatprep.subr.bf16.mxu0 0
        %3945 = vmatpush1.bf16.msra.mxu0 %v1321
        %3946 = vmatprep.subr.bf16.mxu0 0
        %3947 = vmatpush1.bf16.msra.mxu0 %v1322
        %3948 = vmatprep.mubr.bf16.mxu0 %v3806
        %3949 = vmatmul.mubr.bf16.gmra.mrb[0].mxu0 %v3805
        %v3950 = vpop.f32.mrb[0].mxu0
        %v3951 = vadd.f32 %v3886, %v3950
        %v3952 = vpop.f32.mrb[0].mxu0
        %v3953 = vpop.f32.mrb[0].mxu0
        %v3954 = vadd.f32 %v3889, %v3953
        %v3955 = vpop.f32.mrb[0].mxu0
        %3956 = vmatprep.mubr.bf16.mxu0 %v3812
        %3957 = vmatmul.mubr.bf16.gmra.mrb[0].mxu0 %v3811
        %v3958 = vpop.f32.mrb[0].mxu0
        %v3959 = vadd.f32 %v3894, %v3958
        %v3960 = vpop.f32.mrb[0].mxu0
        %v3961 = vpop.f32.mrb[0].mxu0
        %v3962 = vadd.f32 %v3897, %v3961
        %v3963 = vpop.f32.mrb[0].mxu0
        %3964 = vmatprep.mubr.bf16.mxu0 %v3818
        %3965 = vmatmul.mubr.bf16.gmra.mrb[0].mxu0 %v3817
        %v3966 = vpop.f32.mrb[0].mxu0
        %v3967 = vadd.f32 %v3902, %v3966
        %v3968 = vpop.f32.mrb[0].mxu0
        %v3969 = vpop.f32.mrb[0].mxu0
        %v3970 = vadd.f32 %v3905, %v3969
        %v3971 = vpop.f32.mrb[0].mxu0
        %3972 = vmatprep.mubr.bf16.mxu0 %v3824
        %3973 = vmatmul.mubr.bf16.gmra.mrb[0].mxu0 %v3823
        %v3974 = vpop.f32.mrb[0].mxu0
        %v3975 = vadd.f32 %v3910, %v3974
        %v3976 = vpop.f32.mrb[0].mxu0
        %v3977 = vpop.f32.mrb[0].mxu0
        %v3978 = vadd.f32 %v3913, %v3977
        %v3979 = vpop.f32.mrb[0].mxu0
        %3980 = vdwg.mxu0
        %3981 = vmatprep.subr.bf16.mxu0 0
        %3982 = vmatpush1.bf16.msra.mxu0 %v1323
        %3983 = vmatprep.subr.bf16.mxu0 0
        %3984 = vmatpush1.bf16.msra.mxu0 %v1324
        %3985 = vmatprep.subr.bf16.mxu0 0
        %3986 = vmatpush1.bf16.msra.mxu0 %v1325
        %3987 = vmatprep.subr.bf16.mxu0 0
        %3988 = vmatpush1.bf16.msra.mxu0 %v1326
        %3989 = vmatprep.subr.bf16.mxu0 0
        %3990 = vmatpush1.bf16.msra.mxu0 %v1327
        %3991 = vmatprep.subr.bf16.mxu0 0
        %3992 = vmatpush1.bf16.msra.mxu0 %v1328
        %3993 = vmatprep.subr.bf16.mxu0 0
        %3994 = vmatpush1.bf16.msra.mxu0 %v1329
        %3995 = vmatprep.subr.bf16.mxu0 0
        %3996 = vmatpush1.bf16.msra.mxu0 %v1330
        %3997 = vmatprep.subr.bf16.mxu0 0
        %3998 = vmatpush1.bf16.msra.mxu0 %v1331
        %3999 = vmatprep.subr.bf16.mxu0 0
        %4000 = vmatpush1.bf16.msra.mxu0 %v1332
        %4001 = vmatprep.subr.bf16.mxu0 0
        %4002 = vmatpush1.bf16.msra.mxu0 %v1333
        %4003 = vmatprep.subr.bf16.mxu0 0
        %4004 = vmatpush1.bf16.msra.mxu0 %v1334
        %4005 = vmatprep.subr.bf16.mxu0 0
        %4006 = vmatpush1.bf16.msra.mxu0 %v1335
        %4007 = vmatprep.subr.bf16.mxu0 0
        %4008 = vmatpush1.bf16.msra.mxu0 %v1336
        %4009 = vmatprep.subr.bf16.mxu0 0
        %4010 = vmatpush1.bf16.msra.mxu0 %v1337
        %4011 = vmatprep.subr.bf16.mxu0 0
        %4012 = vmatpush1.bf16.msra.mxu0 %v1338
        %4013 = vmatprep.mubr.bf16.mxu0 %v3808
        %4014 = vmatmul.mubr.bf16.gmra.mrb[0].mxu0 %v3807
        %v4015 = vpop.f32.mrb[0].mxu0
        %v4016 = vadd.f32 %v3951, %v4015
        %v4017 = vpop.f32.mrb[0].mxu0
        %v4018 = vpop.f32.mrb[0].mxu0
        %v4019 = vadd.f32 %v3954, %v4018
        %v4020 = vpop.f32.mrb[0].mxu0
        %4021 = vmatprep.mubr.bf16.mxu0 %v3814
        %4022 = vmatmul.mubr.bf16.gmra.mrb[0].mxu0 %v3813
        %v4023 = vpop.f32.mrb[0].mxu0
        %v4024 = vadd.f32 %v3959, %v4023
        %v4025 = vpop.f32.mrb[0].mxu0
        %v4026 = vpop.f32.mrb[0].mxu0
        %v4027 = vadd.f32 %v3962, %v4026
        %v4028 = vpop.f32.mrb[0].mxu0
        %4029 = vmatprep.mubr.bf16.mxu0 %v3820
        %4030 = vmatmul.mubr.bf16.gmra.mrb[0].mxu0 %v3819
        %v4031 = vpop.f32.mrb[0].mxu0
        %v4032 = vadd.f32 %v3967, %v4031
        %v4033 = vpop.f32.mrb[0].mxu0
        %v4034 = vpop.f32.mrb[0].mxu0
        %v4035 = vadd.f32 %v3970, %v4034
        %v4036 = vpop.f32.mrb[0].mxu0
        %4037 = vmatprep.mubr.bf16.mxu0 %v3826
        %4038 = vmatmul.mubr.bf16.gmra.mrb[0].mxu0 %v3825
        %v4039 = vpop.f32.mrb[0].mxu0
        %v4040 = vadd.f32 %v3975, %v4039
        %v4041 = vpop.f32.mrb[0].mxu0
        %v4042 = vpop.f32.mrb[0].mxu0
        %v4043 = vadd.f32 %v3978, %v4042
        %v4044 = vpop.f32.mrb[0].mxu0
        %4045 = vdwg.mxu0
        %s4046 = scalar_lea.vmem %s188, 520 [#allocation2]
        %4047 = vst [vmem:[%s4046] sm:$0xff] %v4016
        %4048 = vst [vmem:[%s4046 + $0x10] sm:$0xff] %v4019
        %4049 = vst [vmem:[%s4046 + $0x20] sm:$0xff] %v4024
        %4050 = vst [vmem:[%s4046 + $0x30] sm:$0xff] %v4027
        %4051 = vst [vmem:[%s4046 + $0x40] sm:$0xff] %v4032
        %4052 = vst [vmem:[%s4046 + $0x50] sm:$0xff] %v4035
        %4053 = vst [vmem:[%s4046 + $0x60] sm:$0xff] %v4040
        %4054 = vst [vmem:[%s4046 + $0x70] sm:$0xff] %v4043
        %s4055 = sadd.s32 %s19, 5
        %s4056 = smul.u32 %s4055, 54
        %s4057 = smul.addr %s4056, 4
        %s4058 = scalar_lea.vmem %s193, %s4057
        %v4059 = vld [vmem:[%s4058] sm:$0xff]
        %v4060 = vld [vmem:[%s4058 + $0x8] sm:$0xff]
        %v4061 = vld [vmem:[%s4058 + $0x10] sm:$0xff]
        %v4062 = vld [vmem:[%s4058 + $0x18] sm:$0xff]
        %v4063 = vld [vmem:[%s4058 + $0x20] sm:$0xff]
        %v4064 = vld [vmem:[%s4058 + $0x28] sm:$0xff]
        %v4065 = vld [vmem:[%s4058 + $0x30] sm:$0xff]
        %v4066 = vld [vmem:[%s4058 + $0x38] sm:$0xff]
        %v4067 = vld [vmem:[%s4058 + $0x40] sm:$0xff]
        %v4068 = vld [vmem:[%s4058 + $0x48] sm:$0xff]
        %v4069 = vld [vmem:[%s4058 + $0x50] sm:$0xff]
        %v4070 = vld [vmem:[%s4058 + $0x58] sm:$0xff]
        %v4071 = vld [vmem:[%s4058 + $0x60] sm:$0xff]
        %v4072 = vld [vmem:[%s4058 + $0x68] sm:$0xff]
        %v4073 = vld [vmem:[%s4058 + $0x70] sm:$0xff]
        %v4074 = vld [vmem:[%s4058 + $0x78] sm:$0xff]
        %v4075 = vld [vmem:[%s4058 + $0x80] sm:$0xff]
        %v4076 = vld [vmem:[%s4058 + $0x88] sm:$0xff]
        %v4077 = vld [vmem:[%s4058 + $0x90] sm:$0xff]
        %v4078 = vld [vmem:[%s4058 + $0x98] sm:$0xff]
        %v4079 = vld [vmem:[%s4058 + $0xa0] sm:$0xff]
        %v4080 = vld [vmem:[%s4058 + $0xa8] sm:$0xff]
        %v4081 = vld [vmem:[%s4058 + $0xb0] sm:$0xff]
        %v4082 = vld [vmem:[%s4058 + $0xb8] sm:$0xff]
        %v4083 = vld [vmem:[%s4058 + $0xc0] sm:$0xff]
        %v4084 = vld [vmem:[%s4058 + $0xc8] sm:$0xff]
        %v4085 = vld [vmem:[%s4058 + $0xd0] sm:$0xff]
        %v4110 = vunpack.c.l.b16 %v4059
        %v4111 = vunpack.c.h.b16 %v4059
        %v4112 = vunpack.c.l.b16 %v4060
        %v4113 = vunpack.c.h.b16 %v4060
        %v4114 = vunpack.c.l.b16 %v4061
        %v4115 = vunpack.c.h.b16 %v4061
        %v4116 = vunpack.c.l.b16 %v4062
        %v4117 = vunpack.c.h.b16 %v4062
        %v4118 = vunpack.c.l.b16 %v4063
        %v4119 = vunpack.c.h.b16 %v4063
        %v4120 = vunpack.c.l.b16 %v4064
        %v4121 = vunpack.c.h.b16 %v4064
        %v4122 = vunpack.c.l.b16 %v4065
        %v4123 = vunpack.c.h.b16 %v4065
        %v4124 = vunpack.c.l.b16 %v4066
        %v4125 = vunpack.c.h.b16 %v4066
        %v4126 = vunpack.c.l.b16 %v4067
        %v4127 = vunpack.c.h.b16 %v4067
        %v4128 = vunpack.c.l.b16 %v4068
        %v4129 = vunpack.c.h.b16 %v4068
        %v4130 = vunpack.c.l.b16 %v4069
        %v4131 = vunpack.c.h.b16 %v4069
        %v4132 = vunpack.c.l.b16 %v4070
        %v4133 = vunpack.c.h.b16 %v4070
        %v4134 = vunpack.c.l.b16 %v4071
        %v4135 = vunpack.c.h.b16 %v4071
        %v4136 = vunpack.c.l.b16 %v4072
        %v4137 = vunpack.c.h.b16 %v4072
        %v4138 = vunpack.c.l.b16 %v4073
        %v4139 = vunpack.c.h.b16 %v4073
        %v4140 = vunpack.c.l.b16 %v4074
        %v4141 = vunpack.c.h.b16 %v4074
        %v4142 = vunpack.c.l.b16 %v4075
        %v4143 = vunpack.c.h.b16 %v4075
        %v4144 = vunpack.c.l.b16 %v4076
        %v4145 = vunpack.c.h.b16 %v4076
        %v4146 = vunpack.c.l.b16 %v4077
        %v4147 = vunpack.c.h.b16 %v4077
        %v4148 = vunpack.c.l.b16 %v4078
        %v4149 = vunpack.c.h.b16 %v4078
        %v4150 = vunpack.c.l.b16 %v4079
        %v4151 = vunpack.c.h.b16 %v4079
        %v4152 = vunpack.c.l.b16 %v4080
        %v4153 = vunpack.c.h.b16 %v4080
        %v4154 = vunpack.c.l.b16 %v4081
        %v4155 = vunpack.c.h.b16 %v4081
        %v4156 = vunpack.c.l.b16 %v4082
        %v4157 = vunpack.c.h.b16 %v4082
        %v4158 = vpack.c.b16 %v4116, %v4110
        %v4159 = vpack.c.b16 %v4117, %v4111
        %v4160 = vpack.c.b16 %v4118, %v4112
        %v4161 = vpack.c.b16 %v4119, %v4113
        %v4162 = vpack.c.b16 %v4120, %v4114
        %v4163 = vpack.c.b16 %v4121, %v4115
        %v4164 = vpack.c.b16 %v4128, %v4122
        %v4165 = vpack.c.b16 %v4129, %v4123
        %v4166 = vpack.c.b16 %v4130, %v4124
        %v4167 = vpack.c.b16 %v4131, %v4125
        %v4168 = vpack.c.b16 %v4132, %v4126
        %v4169 = vpack.c.b16 %v4133, %v4127
        %v4170 = vpack.c.b16 %v4140, %v4134
        %v4171 = vpack.c.b16 %v4141, %v4135
        %v4172 = vpack.c.b16 %v4142, %v4136
        %v4173 = vpack.c.b16 %v4143, %v4137
        %v4174 = vpack.c.b16 %v4144, %v4138
        %v4175 = vpack.c.b16 %v4145, %v4139
        %v4176 = vpack.c.b16 %v4152, %v4146
        %v4177 = vpack.c.b16 %v4153, %v4147
        %v4178 = vpack.c.b16 %v4154, %v4148
        %v4179 = vpack.c.b16 %v4155, %v4149
        %v4180 = vpack.c.b16 %v4156, %v4150
        %v4181 = vpack.c.b16 %v4157, %v4151
        %4206 = vmatprep.subr.bf16.mxu0 0
        %4207 = vmatpush1.bf16.msra.mxu0 %v743
        %4208 = vmatprep.subr.bf16.mxu0 0
        %4209 = vmatpush1.bf16.msra.mxu0 %v744
        %4210 = vmatprep.subr.bf16.mxu0 0
        %4211 = vmatpush1.bf16.msra.mxu0 %v745
        %4212 = vmatprep.subr.bf16.mxu0 0
        %4213 = vmatpush1.bf16.msra.mxu0 %v746
        %4214 = vmatprep.subr.bf16.mxu0 0
        %4215 = vmatpush1.bf16.msra.mxu0 %v747
        %4216 = vmatprep.subr.bf16.mxu0 0
        %4217 = vmatpush1.bf16.msra.mxu0 %v748
        %4218 = vmatprep.subr.bf16.mxu0 0
        %4219 = vmatpush1.bf16.msra.mxu0 %v749
        %4220 = vmatprep.subr.bf16.mxu0 0
        %4221 = vmatpush1.bf16.msra.mxu0 %v750
        %4222 = vmatprep.subr.bf16.mxu0 0
        %4223 = vmatpush1.bf16.msra.mxu0 %v751
        %4224 = vmatprep.subr.bf16.mxu0 0
        %4225 = vmatpush1.bf16.msra.mxu0 %v752
        %4226 = vmatprep.subr.bf16.mxu0 0
        %4227 = vmatpush1.bf16.msra.mxu0 %v753
        %4228 = vmatprep.subr.bf16.mxu0 0
        %4229 = vmatpush1.bf16.msra.mxu0 %v754
        %4230 = vmatprep.subr.bf16.mxu0 0
        %4231 = vmatpush1.bf16.msra.mxu0 %v755
        %4232 = vmatprep.subr.bf16.mxu0 0
        %4233 = vmatpush1.bf16.msra.mxu0 %v756
        %4234 = vmatprep.subr.bf16.mxu0 0
        %4235 = vmatpush1.bf16.msra.mxu0 %v757
        %4236 = vmatprep.subr.bf16.mxu0 0
        %4237 = vmatpush1.bf16.msra.mxu0 %v758
        %4238 = vmatprep.mubr.bf16.mxu0 %v4159
        %4239 = vmatmul.mubr.bf16.gmra.mrb[0].mxu0 %v4158
        %v4240 = vpop.f32.mrb[0].mxu0
        %v4241 = vadd.f32 %v399, %v4240
        %v4242 = vpop.f32.mrb[0].mxu0
        %v4243 = vpop.f32.mrb[0].mxu0
        %v4244 = vadd.f32 %v399, %v4243
        %v4245 = vpop.f32.mrb[0].mxu0
        %4246 = vmatprep.mubr.bf16.mxu0 %v4165
        %4247 = vmatmul.mubr.bf16.gmra.mrb[0].mxu0 %v4164
        %v4248 = vpop.f32.mrb[0].mxu0
        %v4249 = vadd.f32 %v399, %v4248
        %v4250 = vpop.f32.mrb[0].mxu0
        %v4251 = vpop.f32.mrb[0].mxu0
        %v4252 = vadd.f32 %v399, %v4251
        %v4253 = vpop.f32.mrb[0].mxu0
        %4254 = vmatprep.mubr.bf16.mxu0 %v4171
        %4255 = vmatmul.mubr.bf16.gmra.mrb[0].mxu0 %v4170
        %v4256 = vpop.f32.mrb[0].mxu0
        %v4257 = vadd.f32 %v399, %v4256
        %v4258 = vpop.f32.mrb[0].mxu0
        %v4259 = vpop.f32.mrb[0].mxu0
        %v4260 = vadd.f32 %v399, %v4259
        %v4261 = vpop.f32.mrb[0].mxu0
        %4262 = vmatprep.mubr.bf16.mxu0 %v4177
        %4263 = vmatmul.mubr.bf16.gmra.mrb[0].mxu0 %v4176
        %v4264 = vpop.f32.mrb[0].mxu0
        %v4265 = vadd.f32 %v399, %v4264
        %v4266 = vpop.f32.mrb[0].mxu0
        %v4267 = vpop.f32.mrb[0].mxu0
        %v4268 = vadd.f32 %v399, %v4267
        %v4269 = vpop.f32.mrb[0].mxu0
        %4270 = vdwg.mxu0
        %4271 = vmatprep.subr.bf16.mxu0 0
        %4272 = vmatpush1.bf16.msra.mxu0 %v759
        %4273 = vmatprep.subr.bf16.mxu0 0
        %4274 = vmatpush1.bf16.msra.mxu0 %v760
        %4275 = vmatprep.subr.bf16.mxu0 0
        %4276 = vmatpush1.bf16.msra.mxu0 %v761
        %4277 = vmatprep.subr.bf16.mxu0 0
        %4278 = vmatpush1.bf16.msra.mxu0 %v762
        %4279 = vmatprep.subr.bf16.mxu0 0
        %4280 = vmatpush1.bf16.msra.mxu0 %v763
        %4281 = vmatprep.subr.bf16.mxu0 0
        %4282 = vmatpush1.bf16.msra.mxu0 %v764
        %4283 = vmatprep.subr.bf16.mxu0 0
        %4284 = vmatpush1.bf16.msra.mxu0 %v765
        %4285 = vmatprep.subr.bf16.mxu0 0
        %4286 = vmatpush1.bf16.msra.mxu0 %v766
        %4287 = vmatprep.subr.bf16.mxu0 0
        %4288 = vmatpush1.bf16.msra.mxu0 %v767
        %4289 = vmatprep.subr.bf16.mxu0 0
        %4290 = vmatpush1.bf16.msra.mxu0 %v768
        %4291 = vmatprep.subr.bf16.mxu0 0
        %4292 = vmatpush1.bf16.msra.mxu0 %v769
        %4293 = vmatprep.subr.bf16.mxu0 0
        %4294 = vmatpush1.bf16.msra.mxu0 %v770
        %4295 = vmatprep.subr.bf16.mxu0 0
        %4296 = vmatpush1.bf16.msra.mxu0 %v771
        %4297 = vmatprep.subr.bf16.mxu0 0
        %4298 = vmatpush1.bf16.msra.mxu0 %v772
        %4299 = vmatprep.subr.bf16.mxu0 0
        %4300 = vmatpush1.bf16.msra.mxu0 %v773
        %4301 = vmatprep.subr.bf16.mxu0 0
        %4302 = vmatpush1.bf16.msra.mxu0 %v774
        %4303 = vmatprep.mubr.bf16.mxu0 %v4161
        %4304 = vmatmul.mubr.bf16.gmra.mrb[0].mxu0 %v4160
        %v4305 = vpop.f32.mrb[0].mxu0
        %v4306 = vadd.f32 %v4241, %v4305
        %v4307 = vpop.f32.mrb[0].mxu0
        %v4308 = vpop.f32.mrb[0].mxu0
        %v4309 = vadd.f32 %v4244, %v4308
        %v4310 = vpop.f32.mrb[0].mxu0
        %4311 = vmatprep.mubr.bf16.mxu0 %v4167
        %4312 = vmatmul.mubr.bf16.gmra.mrb[0].mxu0 %v4166
        %v4313 = vpop.f32.mrb[0].mxu0
        %v4314 = vadd.f32 %v4249, %v4313
        %v4315 = vpop.f32.mrb[0].mxu0
        %v4316 = vpop.f32.mrb[0].mxu0
        %v4317 = vadd.f32 %v4252, %v4316
        %v4318 = vpop.f32.mrb[0].mxu0
        %4319 = vmatprep.mubr.bf16.mxu0 %v4173
        %4320 = vmatmul.mubr.bf16.gmra.mrb[0].mxu0 %v4172
        %v4321 = vpop.f32.mrb[0].mxu0
        %v4322 = vadd.f32 %v4257, %v4321
        %v4323 = vpop.f32.mrb[0].mxu0
        %v4324 = vpop.f32.mrb[0].mxu0
        %v4325 = vadd.f32 %v4260, %v4324
        %v4326 = vpop.f32.mrb[0].mxu0
        %4327 = vmatprep.mubr.bf16.mxu0 %v4179
        %4328 = vmatmul.mubr.bf16.gmra.mrb[0].mxu0 %v4178
        %v4329 = vpop.f32.mrb[0].mxu0
        %v4330 = vadd.f32 %v4265, %v4329
        %v4331 = vpop.f32.mrb[0].mxu0
        %v4332 = vpop.f32.mrb[0].mxu0
        %v4333 = vadd.f32 %v4268, %v4332
        %v4334 = vpop.f32.mrb[0].mxu0
        %4335 = vdwg.mxu0
        %4336 = vmatprep.subr.bf16.mxu0 0
        %4337 = vmatpush1.bf16.msra.mxu0 %v775
        %4338 = vmatprep.subr.bf16.mxu0 0
        %4339 = vmatpush1.bf16.msra.mxu0 %v776
        %4340 = vmatprep.subr.bf16.mxu0 0
        %4341 = vmatpush1.bf16.msra.mxu0 %v777
        %4342 = vmatprep.subr.bf16.mxu0 0
        %4343 = vmatpush1.bf16.msra.mxu0 %v778
        %4344 = vmatprep.subr.bf16.mxu0 0
        %4345 = vmatpush1.bf16.msra.mxu0 %v779
        %4346 = vmatprep.subr.bf16.mxu0 0
        %4347 = vmatpush1.bf16.msra.mxu0 %v780
        %4348 = vmatprep.subr.bf16.mxu0 0
        %4349 = vmatpush1.bf16.msra.mxu0 %v781
        %4350 = vmatprep.subr.bf16.mxu0 0
        %4351 = vmatpush1.bf16.msra.mxu0 %v782
        %4352 = vmatprep.subr.bf16.mxu0 0
        %4353 = vmatpush1.bf16.msra.mxu0 %v783
        %4354 = vmatprep.subr.bf16.mxu0 0
        %4355 = vmatpush1.bf16.msra.mxu0 %v784
        %4356 = vmatprep.subr.bf16.mxu0 0
        %4357 = vmatpush1.bf16.msra.mxu0 %v785
        %4358 = vmatprep.subr.bf16.mxu0 0
        %4359 = vmatpush1.bf16.msra.mxu0 %v786
        %4360 = vmatprep.subr.bf16.mxu0 0
        %4361 = vmatpush1.bf16.msra.mxu0 %v787
        %4362 = vmatprep.subr.bf16.mxu0 0
        %4363 = vmatpush1.bf16.msra.mxu0 %v788
        %4364 = vmatprep.subr.bf16.mxu0 0
        %4365 = vmatpush1.bf16.msra.mxu0 %v789
        %4366 = vmatprep.subr.bf16.mxu0 0
        %4367 = vmatpush1.bf16.msra.mxu0 %v790
        %4368 = vmatprep.mubr.bf16.mxu0 %v4163
        %4369 = vmatmul.mubr.bf16.gmra.mrb[0].mxu0 %v4162
        %v4370 = vpop.f32.mrb[0].mxu0
        %v4371 = vadd.f32 %v4306, %v4370
        %v4372 = vpop.f32.mrb[0].mxu0
        %v4373 = vpop.f32.mrb[0].mxu0
        %v4374 = vadd.f32 %v4309, %v4373
        %v4375 = vpop.f32.mrb[0].mxu0
        %4376 = vmatprep.mubr.bf16.mxu0 %v4169
        %4377 = vmatmul.mubr.bf16.gmra.mrb[0].mxu0 %v4168
        %v4378 = vpop.f32.mrb[0].mxu0
        %v4379 = vadd.f32 %v4314, %v4378
        %v4380 = vpop.f32.mrb[0].mxu0
        %v4381 = vpop.f32.mrb[0].mxu0
        %v4382 = vadd.f32 %v4317, %v4381
        %v4383 = vpop.f32.mrb[0].mxu0
        %4384 = vmatprep.mubr.bf16.mxu0 %v4175
        %4385 = vmatmul.mubr.bf16.gmra.mrb[0].mxu0 %v4174
        %v4386 = vpop.f32.mrb[0].mxu0
        %v4387 = vadd.f32 %v4322, %v4386
        %v4388 = vpop.f32.mrb[0].mxu0
        %v4389 = vpop.f32.mrb[0].mxu0
        %v4390 = vadd.f32 %v4325, %v4389
        %v4391 = vpop.f32.mrb[0].mxu0
        %4392 = vmatprep.mubr.bf16.mxu0 %v4181
        %4393 = vmatmul.mubr.bf16.gmra.mrb[0].mxu0 %v4180
        %v4394 = vpop.f32.mrb[0].mxu0
        %v4395 = vadd.f32 %v4330, %v4394
        %v4396 = vpop.f32.mrb[0].mxu0
        %v4397 = vpop.f32.mrb[0].mxu0
        %v4398 = vadd.f32 %v4333, %v4397
        %v4399 = vpop.f32.mrb[0].mxu0
        %4400 = vdwg.mxu0
        %s4401 = scalar_lea.vmem %s188, 640 [#allocation2]
        %4402 = vst [vmem:[%s4401] sm:$0xff] %v4371
        %4403 = vst [vmem:[%s4401 + $0x10] sm:$0xff] %v4374
        %4404 = vst [vmem:[%s4401 + $0x20] sm:$0xff] %v4379
        %4405 = vst [vmem:[%s4401 + $0x30] sm:$0xff] %v4382
        %4406 = vst [vmem:[%s4401 + $0x40] sm:$0xff] %v4387
        %4407 = vst [vmem:[%s4401 + $0x50] sm:$0xff] %v4390
        %4408 = vst [vmem:[%s4401 + $0x60] sm:$0xff] %v4395
        %4409 = vst [vmem:[%s4401 + $0x70] sm:$0xff] %v4398
        %v4413 = vunpack.c.l.b16 %v4083
        %v4414 = vunpack.c.h.b16 %v4083
        %v4415 = vunpack.c.l.b16 %v4084
        %v4416 = vunpack.c.h.b16 %v4084
        %v4417 = vunpack.c.l.b16 %v4085
        %v4418 = vunpack.c.h.b16 %v4085
        %v4419 = vpack.c.b16 %v4122, %v4116
        %v4420 = vpack.c.b16 %v4123, %v4117
        %v4421 = vpack.c.b16 %v4124, %v4118
        %v4422 = vpack.c.b16 %v4125, %v4119
        %v4423 = vpack.c.b16 %v4126, %v4120
        %v4424 = vpack.c.b16 %v4127, %v4121
        %v4425 = vpack.c.b16 %v4134, %v4128
        %v4426 = vpack.c.b16 %v4135, %v4129
        %v4427 = vpack.c.b16 %v4136, %v4130
        %v4428 = vpack.c.b16 %v4137, %v4131
        %v4429 = vpack.c.b16 %v4138, %v4132
        %v4430 = vpack.c.b16 %v4139, %v4133
        %v4431 = vpack.c.b16 %v4146, %v4140
        %v4432 = vpack.c.b16 %v4147, %v4141
        %v4433 = vpack.c.b16 %v4148, %v4142
        %v4434 = vpack.c.b16 %v4149, %v4143
        %v4435 = vpack.c.b16 %v4150, %v4144
        %v4436 = vpack.c.b16 %v4151, %v4145
        %v4437 = vpack.c.b16 %v4413, %v4152
        %v4438 = vpack.c.b16 %v4414, %v4153
        %v4439 = vpack.c.b16 %v4415, %v4154
        %v4440 = vpack.c.b16 %v4416, %v4155
        %v4441 = vpack.c.b16 %v4417, %v4156
        %v4442 = vpack.c.b16 %v4418, %v4157
        %4467 = vmatprep.subr.bf16.mxu0 0
        %4468 = vmatpush1.bf16.msra.mxu0 %v1291
        %4469 = vmatprep.subr.bf16.mxu0 0
        %4470 = vmatpush1.bf16.msra.mxu0 %v1292
        %4471 = vmatprep.subr.bf16.mxu0 0
        %4472 = vmatpush1.bf16.msra.mxu0 %v1293
        %4473 = vmatprep.subr.bf16.mxu0 0
        %4474 = vmatpush1.bf16.msra.mxu0 %v1294
        %4475 = vmatprep.subr.bf16.mxu0 0
        %4476 = vmatpush1.bf16.msra.mxu0 %v1295
        %4477 = vmatprep.subr.bf16.mxu0 0
        %4478 = vmatpush1.bf16.msra.mxu0 %v1296
        %4479 = vmatprep.subr.bf16.mxu0 0
        %4480 = vmatpush1.bf16.msra.mxu0 %v1297
        %4481 = vmatprep.subr.bf16.mxu0 0
        %4482 = vmatpush1.bf16.msra.mxu0 %v1298
        %4483 = vmatprep.subr.bf16.mxu0 0
        %4484 = vmatpush1.bf16.msra.mxu0 %v1299
        %4485 = vmatprep.subr.bf16.mxu0 0
        %4486 = vmatpush1.bf16.msra.mxu0 %v1300
        %4487 = vmatprep.subr.bf16.mxu0 0
        %4488 = vmatpush1.bf16.msra.mxu0 %v1301
        %4489 = vmatprep.subr.bf16.mxu0 0
        %4490 = vmatpush1.bf16.msra.mxu0 %v1302
        %4491 = vmatprep.subr.bf16.mxu0 0
        %4492 = vmatpush1.bf16.msra.mxu0 %v1303
        %4493 = vmatprep.subr.bf16.mxu0 0
        %4494 = vmatpush1.bf16.msra.mxu0 %v1304
        %4495 = vmatprep.subr.bf16.mxu0 0
        %4496 = vmatpush1.bf16.msra.mxu0 %v1305
        %4497 = vmatprep.subr.bf16.mxu0 0
        %4498 = vmatpush1.bf16.msra.mxu0 %v1306
        %4499 = vmatprep.mubr.bf16.mxu0 %v4420
        %4500 = vmatmul.mubr.bf16.gmra.mrb[0].mxu0 %v4419
        %v4501 = vpop.f32.mrb[0].mxu0
        %v4502 = vadd.f32 %v399, %v4501
        %v4503 = vpop.f32.mrb[0].mxu0
        %v4504 = vpop.f32.mrb[0].mxu0
        %v4505 = vadd.f32 %v399, %v4504
        %v4506 = vpop.f32.mrb[0].mxu0
        %4507 = vmatprep.mubr.bf16.mxu0 %v4426
        %4508 = vmatmul.mubr.bf16.gmra.mrb[0].mxu0 %v4425
        %v4509 = vpop.f32.mrb[0].mxu0
        %v4510 = vadd.f32 %v399, %v4509
        %v4511 = vpop.f32.mrb[0].mxu0
        %v4512 = vpop.f32.mrb[0].mxu0
        %v4513 = vadd.f32 %v399, %v4512
        %v4514 = vpop.f32.mrb[0].mxu0
        %4515 = vmatprep.mubr.bf16.mxu0 %v4432
        %4516 = vmatmul.mubr.bf16.gmra.mrb[0].mxu0 %v4431
        %v4517 = vpop.f32.mrb[0].mxu0
        %v4518 = vadd.f32 %v399, %v4517
        %v4519 = vpop.f32.mrb[0].mxu0
        %v4520 = vpop.f32.mrb[0].mxu0
        %v4521 = vadd.f32 %v399, %v4520
        %v4522 = vpop.f32.mrb[0].mxu0
        %4523 = vmatprep.mubr.bf16.mxu0 %v4438
        %4524 = vmatmul.mubr.bf16.gmra.mrb[0].mxu0 %v4437
        %v4525 = vpop.f32.mrb[0].mxu0
        %v4526 = vadd.f32 %v399, %v4525
        %v4527 = vpop.f32.mrb[0].mxu0
        %v4528 = vpop.f32.mrb[0].mxu0
        %v4529 = vadd.f32 %v399, %v4528
        %v4530 = vpop.f32.mrb[0].mxu0
        %4531 = vdwg.mxu0
        %4532 = vmatprep.subr.bf16.mxu0 0
        %4533 = vmatpush1.bf16.msra.mxu0 %v1307
        %4534 = vmatprep.subr.bf16.mxu0 0
        %4535 = vmatpush1.bf16.msra.mxu0 %v1308
        %4536 = vmatprep.subr.bf16.mxu0 0
        %4537 = vmatpush1.bf16.msra.mxu0 %v1309
        %4538 = vmatprep.subr.bf16.mxu0 0
        %4539 = vmatpush1.bf16.msra.mxu0 %v1310
        %4540 = vmatprep.subr.bf16.mxu0 0
        %4541 = vmatpush1.bf16.msra.mxu0 %v1311
        %4542 = vmatprep.subr.bf16.mxu0 0
        %4543 = vmatpush1.bf16.msra.mxu0 %v1312
        %4544 = vmatprep.subr.bf16.mxu0 0
        %4545 = vmatpush1.bf16.msra.mxu0 %v1313
        %4546 = vmatprep.subr.bf16.mxu0 0
        %4547 = vmatpush1.bf16.msra.mxu0 %v1314
        %4548 = vmatprep.subr.bf16.mxu0 0
        %4549 = vmatpush1.bf16.msra.mxu0 %v1315
        %4550 = vmatprep.subr.bf16.mxu0 0
        %4551 = vmatpush1.bf16.msra.mxu0 %v1316
        %4552 = vmatprep.subr.bf16.mxu0 0
        %4553 = vmatpush1.bf16.msra.mxu0 %v1317
        %4554 = vmatprep.subr.bf16.mxu0 0
        %4555 = vmatpush1.bf16.msra.mxu0 %v1318
        %4556 = vmatprep.subr.bf16.mxu0 0
        %4557 = vmatpush1.bf16.msra.mxu0 %v1319
        %4558 = vmatprep.subr.bf16.mxu0 0
        %4559 = vmatpush1.bf16.msra.mxu0 %v1320
        %4560 = vmatprep.subr.bf16.mxu0 0
        %4561 = vmatpush1.bf16.msra.mxu0 %v1321
        %4562 = vmatprep.subr.bf16.mxu0 0
        %4563 = vmatpush1.bf16.msra.mxu0 %v1322
        %4564 = vmatprep.mubr.bf16.mxu0 %v4422
        %4565 = vmatmul.mubr.bf16.gmra.mrb[0].mxu0 %v4421
        %v4566 = vpop.f32.mrb[0].mxu0
        %v4567 = vadd.f32 %v4502, %v4566
        %v4568 = vpop.f32.mrb[0].mxu0
        %v4569 = vpop.f32.mrb[0].mxu0
        %v4570 = vadd.f32 %v4505, %v4569
        %v4571 = vpop.f32.mrb[0].mxu0
        %4572 = vmatprep.mubr.bf16.mxu0 %v4428
        %4573 = vmatmul.mubr.bf16.gmra.mrb[0].mxu0 %v4427
        %v4574 = vpop.f32.mrb[0].mxu0
        %v4575 = vadd.f32 %v4510, %v4574
        %v4576 = vpop.f32.mrb[0].mxu0
        %v4577 = vpop.f32.mrb[0].mxu0
        %v4578 = vadd.f32 %v4513, %v4577
        %v4579 = vpop.f32.mrb[0].mxu0
        %4580 = vmatprep.mubr.bf16.mxu0 %v4434
        %4581 = vmatmul.mubr.bf16.gmra.mrb[0].mxu0 %v4433
        %v4582 = vpop.f32.mrb[0].mxu0
        %v4583 = vadd.f32 %v4518, %v4582
        %v4584 = vpop.f32.mrb[0].mxu0
        %v4585 = vpop.f32.mrb[0].mxu0
        %v4586 = vadd.f32 %v4521, %v4585
        %v4587 = vpop.f32.mrb[0].mxu0
        %4588 = vmatprep.mubr.bf16.mxu0 %v4440
        %4589 = vmatmul.mubr.bf16.gmra.mrb[0].mxu0 %v4439
        %v4590 = vpop.f32.mrb[0].mxu0
        %v4591 = vadd.f32 %v4526, %v4590
        %v4592 = vpop.f32.mrb[0].mxu0
        %v4593 = vpop.f32.mrb[0].mxu0
        %v4594 = vadd.f32 %v4529, %v4593
        %v4595 = vpop.f32.mrb[0].mxu0
        %4596 = vdwg.mxu0
        %4597 = vmatprep.subr.bf16.mxu0 0
        %4598 = vmatpush1.bf16.msra.mxu0 %v1323
        %4599 = vmatprep.subr.bf16.mxu0 0
        %4600 = vmatpush1.bf16.msra.mxu0 %v1324
        %4601 = vmatprep.subr.bf16.mxu0 0
        %4602 = vmatpush1.bf16.msra.mxu0 %v1325
        %4603 = vmatprep.subr.bf16.mxu0 0
        %4604 = vmatpush1.bf16.msra.mxu0 %v1326
        %4605 = vmatprep.subr.bf16.mxu0 0
        %4606 = vmatpush1.bf16.msra.mxu0 %v1327
        %4607 = vmatprep.subr.bf16.mxu0 0
        %4608 = vmatpush1.bf16.msra.mxu0 %v1328
        %4609 = vmatprep.subr.bf16.mxu0 0
        %4610 = vmatpush1.bf16.msra.mxu0 %v1329
        %4611 = vmatprep.subr.bf16.mxu0 0
        %4612 = vmatpush1.bf16.msra.mxu0 %v1330
        %4613 = vmatprep.subr.bf16.mxu0 0
        %4614 = vmatpush1.bf16.msra.mxu0 %v1331
        %4615 = vmatprep.subr.bf16.mxu0 0
        %4616 = vmatpush1.bf16.msra.mxu0 %v1332
        %4617 = vmatprep.subr.bf16.mxu0 0
        %4618 = vmatpush1.bf16.msra.mxu0 %v1333
        %4619 = vmatprep.subr.bf16.mxu0 0
        %4620 = vmatpush1.bf16.msra.mxu0 %v1334
        %4621 = vmatprep.subr.bf16.mxu0 0
        %4622 = vmatpush1.bf16.msra.mxu0 %v1335
        %4623 = vmatprep.subr.bf16.mxu0 0
        %4624 = vmatpush1.bf16.msra.mxu0 %v1336
        %4625 = vmatprep.subr.bf16.mxu0 0
        %4626 = vmatpush1.bf16.msra.mxu0 %v1337
        %4627 = vmatprep.subr.bf16.mxu0 0
        %4628 = vmatpush1.bf16.msra.mxu0 %v1338
        %4629 = vmatprep.mubr.bf16.mxu0 %v4424
        %4630 = vmatmul.mubr.bf16.gmra.mrb[0].mxu0 %v4423
        %v4631 = vpop.f32.mrb[0].mxu0
        %v4632 = vadd.f32 %v4567, %v4631
        %v4633 = vpop.f32.mrb[0].mxu0
        %v4634 = vpop.f32.mrb[0].mxu0
        %v4635 = vadd.f32 %v4570, %v4634
        %v4636 = vpop.f32.mrb[0].mxu0
        %4637 = vmatprep.mubr.bf16.mxu0 %v4430
        %4638 = vmatmul.mubr.bf16.gmra.mrb[0].mxu0 %v4429
        %v4639 = vpop.f32.mrb[0].mxu0
        %v4640 = vadd.f32 %v4575, %v4639
        %v4641 = vpop.f32.mrb[0].mxu0
        %v4642 = vpop.f32.mrb[0].mxu0
        %v4643 = vadd.f32 %v4578, %v4642
        %v4644 = vpop.f32.mrb[0].mxu0
        %4645 = vmatprep.mubr.bf16.mxu0 %v4436
        %4646 = vmatmul.mubr.bf16.gmra.mrb[0].mxu0 %v4435
        %v4647 = vpop.f32.mrb[0].mxu0
        %v4648 = vadd.f32 %v4583, %v4647
        %v4649 = vpop.f32.mrb[0].mxu0
        %v4650 = vpop.f32.mrb[0].mxu0
        %v4651 = vadd.f32 %v4586, %v4650
        %v4652 = vpop.f32.mrb[0].mxu0
        %4653 = vmatprep.mubr.bf16.mxu0 %v4442
        %4654 = vmatmul.mubr.bf16.gmra.mrb[0].mxu0 %v4441
        %v4655 = vpop.f32.mrb[0].mxu0
        %v4656 = vadd.f32 %v4591, %v4655
        %v4657 = vpop.f32.mrb[0].mxu0
        %v4658 = vpop.f32.mrb[0].mxu0
        %v4659 = vadd.f32 %v4594, %v4658
        %v4660 = vpop.f32.mrb[0].mxu0
        %4661 = vdwg.mxu0
        %s4662 = scalar_lea.vmem %s188, 648 [#allocation2]
        %4663 = vst [vmem:[%s4662] sm:$0xff] %v4632
        %4664 = vst [vmem:[%s4662 + $0x10] sm:$0xff] %v4635
        %4665 = vst [vmem:[%s4662 + $0x20] sm:$0xff] %v4640
        %4666 = vst [vmem:[%s4662 + $0x30] sm:$0xff] %v4643
        %4667 = vst [vmem:[%s4662 + $0x40] sm:$0xff] %v4648
        %4668 = vst [vmem:[%s4662 + $0x50] sm:$0xff] %v4651
        %4669 = vst [vmem:[%s4662 + $0x60] sm:$0xff] %v4656
        %4670 = vst [vmem:[%s4662 + $0x70] sm:$0xff] %v4659
        %s4671 = sadd.s32 %s19, 6
        %s4672 = smul.u32 %s4671, 54
        %s4673 = smul.addr %s4672, 4
        %s4674 = scalar_lea.vmem %s193, %s4673
        %v4675 = vld [vmem:[%s4674] sm:$0xff]
        %v4676 = vld [vmem:[%s4674 + $0x8] sm:$0xff]
        %v4677 = vld [vmem:[%s4674 + $0x10] sm:$0xff]
        %v4678 = vld [vmem:[%s4674 + $0x18] sm:$0xff]
        %v4679 = vld [vmem:[%s4674 + $0x20] sm:$0xff]
        %v4680 = vld [vmem:[%s4674 + $0x28] sm:$0xff]
        %v4681 = vld [vmem:[%s4674 + $0x30] sm:$0xff]
        %v4682 = vld [vmem:[%s4674 + $0x38] sm:$0xff]
        %v4683 = vld [vmem:[%s4674 + $0x40] sm:$0xff]
        %v4684 = vld [vmem:[%s4674 + $0x48] sm:$0xff]
        %v4685 = vld [vmem:[%s4674 + $0x50] sm:$0xff]
        %v4686 = vld [vmem:[%s4674 + $0x58] sm:$0xff]
        %v4687 = vld [vmem:[%s4674 + $0x60] sm:$0xff]
        %v4688 = vld [vmem:[%s4674 + $0x68] sm:$0xff]
        %v4689 = vld [vmem:[%s4674 + $0x70] sm:$0xff]
        %v4690 = vld [vmem:[%s4674 + $0x78] sm:$0xff]
        %v4691 = vld [vmem:[%s4674 + $0x80] sm:$0xff]
        %v4692 = vld [vmem:[%s4674 + $0x88] sm:$0xff]
        %v4693 = vld [vmem:[%s4674 + $0x90] sm:$0xff]
        %v4694 = vld [vmem:[%s4674 + $0x98] sm:$0xff]
        %v4695 = vld [vmem:[%s4674 + $0xa0] sm:$0xff]
        %v4696 = vld [vmem:[%s4674 + $0xa8] sm:$0xff]
        %v4697 = vld [vmem:[%s4674 + $0xb0] sm:$0xff]
        %v4698 = vld [vmem:[%s4674 + $0xb8] sm:$0xff]
        %v4699 = vld [vmem:[%s4674 + $0xc0] sm:$0xff]
        %v4700 = vld [vmem:[%s4674 + $0xc8] sm:$0xff]
        %v4701 = vld [vmem:[%s4674 + $0xd0] sm:$0xff]
        %v4726 = vunpack.c.l.b16 %v4675
        %v4727 = vunpack.c.h.b16 %v4675
        %v4728 = vunpack.c.l.b16 %v4676
        %v4729 = vunpack.c.h.b16 %v4676
        %v4730 = vunpack.c.l.b16 %v4677
        %v4731 = vunpack.c.h.b16 %v4677
        %v4732 = vunpack.c.l.b16 %v4678
        %v4733 = vunpack.c.h.b16 %v4678
        %v4734 = vunpack.c.l.b16 %v4679
        %v4735 = vunpack.c.h.b16 %v4679
        %v4736 = vunpack.c.l.b16 %v4680
        %v4737 = vunpack.c.h.b16 %v4680
        %v4738 = vunpack.c.l.b16 %v4681
        %v4739 = vunpack.c.h.b16 %v4681
        %v4740 = vunpack.c.l.b16 %v4682
        %v4741 = vunpack.c.h.b16 %v4682
        %v4742 = vunpack.c.l.b16 %v4683
        %v4743 = vunpack.c.h.b16 %v4683
        %v4744 = vunpack.c.l.b16 %v4684
        %v4745 = vunpack.c.h.b16 %v4684
        %v4746 = vunpack.c.l.b16 %v4685
        %v4747 = vunpack.c.h.b16 %v4685
        %v4748 = vunpack.c.l.b16 %v4686
        %v4749 = vunpack.c.h.b16 %v4686
        %v4750 = vunpack.c.l.b16 %v4687
        %v4751 = vunpack.c.h.b16 %v4687
        %v4752 = vunpack.c.l.b16 %v4688
        %v4753 = vunpack.c.h.b16 %v4688
        %v4754 = vunpack.c.l.b16 %v4689
        %v4755 = vunpack.c.h.b16 %v4689
        %v4756 = vunpack.c.l.b16 %v4690
        %v4757 = vunpack.c.h.b16 %v4690
        %v4758 = vunpack.c.l.b16 %v4691
        %v4759 = vunpack.c.h.b16 %v4691
        %v4760 = vunpack.c.l.b16 %v4692
        %v4761 = vunpack.c.h.b16 %v4692
        %v4762 = vunpack.c.l.b16 %v4693
        %v4763 = vunpack.c.h.b16 %v4693
        %v4764 = vunpack.c.l.b16 %v4694
        %v4765 = vunpack.c.h.b16 %v4694
        %v4766 = vunpack.c.l.b16 %v4695
        %v4767 = vunpack.c.h.b16 %v4695
        %v4768 = vunpack.c.l.b16 %v4696
        %v4769 = vunpack.c.h.b16 %v4696
        %v4770 = vunpack.c.l.b16 %v4697
        %v4771 = vunpack.c.h.b16 %v4697
        %v4772 = vunpack.c.l.b16 %v4698
        %v4773 = vunpack.c.h.b16 %v4698
        %v4774 = vpack.c.b16 %v4732, %v4726
        %v4775 = vpack.c.b16 %v4733, %v4727
        %v4776 = vpack.c.b16 %v4734, %v4728
        %v4777 = vpack.c.b16 %v4735, %v4729
        %v4778 = vpack.c.b16 %v4736, %v4730
        %v4779 = vpack.c.b16 %v4737, %v4731
        %v4780 = vpack.c.b16 %v4744, %v4738
        %v4781 = vpack.c.b16 %v4745, %v4739
        %v4782 = vpack.c.b16 %v4746, %v4740
        %v4783 = vpack.c.b16 %v4747, %v4741
        %v4784 = vpack.c.b16 %v4748, %v4742
        %v4785 = vpack.c.b16 %v4749, %v4743
        %v4786 = vpack.c.b16 %v4756, %v4750
        %v4787 = vpack.c.b16 %v4757, %v4751
        %v4788 = vpack.c.b16 %v4758, %v4752
        %v4789 = vpack.c.b16 %v4759, %v4753
        %v4790 = vpack.c.b16 %v4760, %v4754
        %v4791 = vpack.c.b16 %v4761, %v4755
        %v4792 = vpack.c.b16 %v4768, %v4762
        %v4793 = vpack.c.b16 %v4769, %v4763
        %v4794 = vpack.c.b16 %v4770, %v4764
        %v4795 = vpack.c.b16 %v4771, %v4765
        %v4796 = vpack.c.b16 %v4772, %v4766
        %v4797 = vpack.c.b16 %v4773, %v4767
        %4822 = vmatprep.subr.bf16.mxu0 0
        %4823 = vmatpush1.bf16.msra.mxu0 %v743
        %4824 = vmatprep.subr.bf16.mxu0 0
        %4825 = vmatpush1.bf16.msra.mxu0 %v744
        %4826 = vmatprep.subr.bf16.mxu0 0
        %4827 = vmatpush1.bf16.msra.mxu0 %v745
        %4828 = vmatprep.subr.bf16.mxu0 0
        %4829 = vmatpush1.bf16.msra.mxu0 %v746
        %4830 = vmatprep.subr.bf16.mxu0 0
        %4831 = vmatpush1.bf16.msra.mxu0 %v747
        %4832 = vmatprep.subr.bf16.mxu0 0
        %4833 = vmatpush1.bf16.msra.mxu0 %v748
        %4834 = vmatprep.subr.bf16.mxu0 0
        %4835 = vmatpush1.bf16.msra.mxu0 %v749
        %4836 = vmatprep.subr.bf16.mxu0 0
        %4837 = vmatpush1.bf16.msra.mxu0 %v750
        %4838 = vmatprep.subr.bf16.mxu0 0
        %4839 = vmatpush1.bf16.msra.mxu0 %v751
        %4840 = vmatprep.subr.bf16.mxu0 0
        %4841 = vmatpush1.bf16.msra.mxu0 %v752
        %4842 = vmatprep.subr.bf16.mxu0 0
        %4843 = vmatpush1.bf16.msra.mxu0 %v753
        %4844 = vmatprep.subr.bf16.mxu0 0
        %4845 = vmatpush1.bf16.msra.mxu0 %v754
        %4846 = vmatprep.subr.bf16.mxu0 0
        %4847 = vmatpush1.bf16.msra.mxu0 %v755
        %4848 = vmatprep.subr.bf16.mxu0 0
        %4849 = vmatpush1.bf16.msra.mxu0 %v756
        %4850 = vmatprep.subr.bf16.mxu0 0
        %4851 = vmatpush1.bf16.msra.mxu0 %v757
        %4852 = vmatprep.subr.bf16.mxu0 0
        %4853 = vmatpush1.bf16.msra.mxu0 %v758
        %4854 = vmatprep.mubr.bf16.mxu0 %v4775
        %4855 = vmatmul.mubr.bf16.gmra.mrb[0].mxu0 %v4774
        %v4856 = vpop.f32.mrb[0].mxu0
        %v4857 = vadd.f32 %v399, %v4856
        %v4858 = vpop.f32.mrb[0].mxu0
        %v4859 = vpop.f32.mrb[0].mxu0
        %v4860 = vadd.f32 %v399, %v4859
        %v4861 = vpop.f32.mrb[0].mxu0
        %4862 = vmatprep.mubr.bf16.mxu0 %v4781
        %4863 = vmatmul.mubr.bf16.gmra.mrb[0].mxu0 %v4780
        %v4864 = vpop.f32.mrb[0].mxu0
        %v4865 = vadd.f32 %v399, %v4864
        %v4866 = vpop.f32.mrb[0].mxu0
        %v4867 = vpop.f32.mrb[0].mxu0
        %v4868 = vadd.f32 %v399, %v4867
        %v4869 = vpop.f32.mrb[0].mxu0
        %4870 = vmatprep.mubr.bf16.mxu0 %v4787
        %4871 = vmatmul.mubr.bf16.gmra.mrb[0].mxu0 %v4786
        %v4872 = vpop.f32.mrb[0].mxu0
        %v4873 = vadd.f32 %v399, %v4872
        %v4874 = vpop.f32.mrb[0].mxu0
        %v4875 = vpop.f32.mrb[0].mxu0
        %v4876 = vadd.f32 %v399, %v4875
        %v4877 = vpop.f32.mrb[0].mxu0
        %4878 = vmatprep.mubr.bf16.mxu0 %v4793
        %4879 = vmatmul.mubr.bf16.gmra.mrb[0].mxu0 %v4792
        %v4880 = vpop.f32.mrb[0].mxu0
        %v4881 = vadd.f32 %v399, %v4880
        %v4882 = vpop.f32.mrb[0].mxu0
        %v4883 = vpop.f32.mrb[0].mxu0
        %v4884 = vadd.f32 %v399, %v4883
        %v4885 = vpop.f32.mrb[0].mxu0
        %4886 = vdwg.mxu0
        %4887 = vmatprep.subr.bf16.mxu0 0
        %4888 = vmatpush1.bf16.msra.mxu0 %v759
        %4889 = vmatprep.subr.bf16.mxu0 0
        %4890 = vmatpush1.bf16.msra.mxu0 %v760
        %4891 = vmatprep.subr.bf16.mxu0 0
        %4892 = vmatpush1.bf16.msra.mxu0 %v761
        %4893 = vmatprep.subr.bf16.mxu0 0
        %4894 = vmatpush1.bf16.msra.mxu0 %v762
        %4895 = vmatprep.subr.bf16.mxu0 0
        %4896 = vmatpush1.bf16.msra.mxu0 %v763
        %4897 = vmatprep.subr.bf16.mxu0 0
        %4898 = vmatpush1.bf16.msra.mxu0 %v764
        %4899 = vmatprep.subr.bf16.mxu0 0
        %4900 = vmatpush1.bf16.msra.mxu0 %v765
        %4901 = vmatprep.subr.bf16.mxu0 0
        %4902 = vmatpush1.bf16.msra.mxu0 %v766
        %4903 = vmatprep.subr.bf16.mxu0 0
        %4904 = vmatpush1.bf16.msra.mxu0 %v767
        %4905 = vmatprep.subr.bf16.mxu0 0
        %4906 = vmatpush1.bf16.msra.mxu0 %v768
        %4907 = vmatprep.subr.bf16.mxu0 0
        %4908 = vmatpush1.bf16.msra.mxu0 %v769
        %4909 = vmatprep.subr.bf16.mxu0 0
        %4910 = vmatpush1.bf16.msra.mxu0 %v770
        %4911 = vmatprep.subr.bf16.mxu0 0
        %4912 = vmatpush1.bf16.msra.mxu0 %v771
        %4913 = vmatprep.subr.bf16.mxu0 0
        %4914 = vmatpush1.bf16.msra.mxu0 %v772
        %4915 = vmatprep.subr.bf16.mxu0 0
        %4916 = vmatpush1.bf16.msra.mxu0 %v773
        %4917 = vmatprep.subr.bf16.mxu0 0
        %4918 = vmatpush1.bf16.msra.mxu0 %v774
        %4919 = vmatprep.mubr.bf16.mxu0 %v4777
        %4920 = vmatmul.mubr.bf16.gmra.mrb[0].mxu0 %v4776
        %v4921 = vpop.f32.mrb[0].mxu0
        %v4922 = vadd.f32 %v4857, %v4921
        %v4923 = vpop.f32.mrb[0].mxu0
        %v4924 = vpop.f32.mrb[0].mxu0
        %v4925 = vadd.f32 %v4860, %v4924
        %v4926 = vpop.f32.mrb[0].mxu0
        %4927 = vmatprep.mubr.bf16.mxu0 %v4783
        %4928 = vmatmul.mubr.bf16.gmra.mrb[0].mxu0 %v4782
        %v4929 = vpop.f32.mrb[0].mxu0
        %v4930 = vadd.f32 %v4865, %v4929
        %v4931 = vpop.f32.mrb[0].mxu0
        %v4932 = vpop.f32.mrb[0].mxu0
        %v4933 = vadd.f32 %v4868, %v4932
        %v4934 = vpop.f32.mrb[0].mxu0
        %4935 = vmatprep.mubr.bf16.mxu0 %v4789
        %4936 = vmatmul.mubr.bf16.gmra.mrb[0].mxu0 %v4788
        %v4937 = vpop.f32.mrb[0].mxu0
        %v4938 = vadd.f32 %v4873, %v4937
        %v4939 = vpop.f32.mrb[0].mxu0
        %v4940 = vpop.f32.mrb[0].mxu0
        %v4941 = vadd.f32 %v4876, %v4940
        %v4942 = vpop.f32.mrb[0].mxu0
        %4943 = vmatprep.mubr.bf16.mxu0 %v4795
        %4944 = vmatmul.mubr.bf16.gmra.mrb[0].mxu0 %v4794
        %v4945 = vpop.f32.mrb[0].mxu0
        %v4946 = vadd.f32 %v4881, %v4945
        %v4947 = vpop.f32.mrb[0].mxu0
        %v4948 = vpop.f32.mrb[0].mxu0
        %v4949 = vadd.f32 %v4884, %v4948
        %v4950 = vpop.f32.mrb[0].mxu0
        %4951 = vdwg.mxu0
        %4952 = vmatprep.subr.bf16.mxu0 0
        %4953 = vmatpush1.bf16.msra.mxu0 %v775
        %4954 = vmatprep.subr.bf16.mxu0 0
        %4955 = vmatpush1.bf16.msra.mxu0 %v776
        %4956 = vmatprep.subr.bf16.mxu0 0
        %4957 = vmatpush1.bf16.msra.mxu0 %v777
        %4958 = vmatprep.subr.bf16.mxu0 0
        %4959 = vmatpush1.bf16.msra.mxu0 %v778
        %4960 = vmatprep.subr.bf16.mxu0 0
        %4961 = vmatpush1.bf16.msra.mxu0 %v779
        %4962 = vmatprep.subr.bf16.mxu0 0
        %4963 = vmatpush1.bf16.msra.mxu0 %v780
        %4964 = vmatprep.subr.bf16.mxu0 0
        %4965 = vmatpush1.bf16.msra.mxu0 %v781
        %4966 = vmatprep.subr.bf16.mxu0 0
        %4967 = vmatpush1.bf16.msra.mxu0 %v782
        %4968 = vmatprep.subr.bf16.mxu0 0
        %4969 = vmatpush1.bf16.msra.mxu0 %v783
        %4970 = vmatprep.subr.bf16.mxu0 0
        %4971 = vmatpush1.bf16.msra.mxu0 %v784
        %4972 = vmatprep.subr.bf16.mxu0 0
        %4973 = vmatpush1.bf16.msra.mxu0 %v785
        %4974 = vmatprep.subr.bf16.mxu0 0
        %4975 = vmatpush1.bf16.msra.mxu0 %v786
        %4976 = vmatprep.subr.bf16.mxu0 0
        %4977 = vmatpush1.bf16.msra.mxu0 %v787
        %4978 = vmatprep.subr.bf16.mxu0 0
        %4979 = vmatpush1.bf16.msra.mxu0 %v788
        %4980 = vmatprep.subr.bf16.mxu0 0
        %4981 = vmatpush1.bf16.msra.mxu0 %v789
        %4982 = vmatprep.subr.bf16.mxu0 0
        %4983 = vmatpush1.bf16.msra.mxu0 %v790
        %4984 = vmatprep.mubr.bf16.mxu0 %v4779
        %4985 = vmatmul.mubr.bf16.gmra.mrb[0].mxu0 %v4778
        %v4986 = vpop.f32.mrb[0].mxu0
        %v4987 = vadd.f32 %v4922, %v4986
        %v4988 = vpop.f32.mrb[0].mxu0
        %v4989 = vpop.f32.mrb[0].mxu0
        %v4990 = vadd.f32 %v4925, %v4989
        %v4991 = vpop.f32.mrb[0].mxu0
        %4992 = vmatprep.mubr.bf16.mxu0 %v4785
        %4993 = vmatmul.mubr.bf16.gmra.mrb[0].mxu0 %v4784
        %v4994 = vpop.f32.mrb[0].mxu0
        %v4995 = vadd.f32 %v4930, %v4994
        %v4996 = vpop.f32.mrb[0].mxu0
        %v4997 = vpop.f32.mrb[0].mxu0
        %v4998 = vadd.f32 %v4933, %v4997
        %v4999 = vpop.f32.mrb[0].mxu0
        %5000 = vmatprep.mubr.bf16.mxu0 %v4791
        %5001 = vmatmul.mubr.bf16.gmra.mrb[0].mxu0 %v4790
        %v5002 = vpop.f32.mrb[0].mxu0
        %v5003 = vadd.f32 %v4938, %v5002
        %v5004 = vpop.f32.mrb[0].mxu0
        %v5005 = vpop.f32.mrb[0].mxu0
        %v5006 = vadd.f32 %v4941, %v5005
        %v5007 = vpop.f32.mrb[0].mxu0
        %5008 = vmatprep.mubr.bf16.mxu0 %v4797
        %5009 = vmatmul.mubr.bf16.gmra.mrb[0].mxu0 %v4796
        %v5010 = vpop.f32.mrb[0].mxu0
        %v5011 = vadd.f32 %v4946, %v5010
        %v5012 = vpop.f32.mrb[0].mxu0
        %v5013 = vpop.f32.mrb[0].mxu0
        %v5014 = vadd.f32 %v4949, %v5013
        %v5015 = vpop.f32.mrb[0].mxu0
        %5016 = vdwg.mxu0
        %s5017 = scalar_lea.vmem %s188, 768 [#allocation2]
        %5018 = vst [vmem:[%s5017] sm:$0xff] %v4987
        %5019 = vst [vmem:[%s5017 + $0x10] sm:$0xff] %v4990
        %5020 = vst [vmem:[%s5017 + $0x20] sm:$0xff] %v4995
        %5021 = vst [vmem:[%s5017 + $0x30] sm:$0xff] %v4998
        %5022 = vst [vmem:[%s5017 + $0x40] sm:$0xff] %v5003
        %5023 = vst [vmem:[%s5017 + $0x50] sm:$0xff] %v5006
        %5024 = vst [vmem:[%s5017 + $0x60] sm:$0xff] %v5011
        %5025 = vst [vmem:[%s5017 + $0x70] sm:$0xff] %v5014
        %v5029 = vunpack.c.l.b16 %v4699
        %v5030 = vunpack.c.h.b16 %v4699
        %v5031 = vunpack.c.l.b16 %v4700
        %v5032 = vunpack.c.h.b16 %v4700
        %v5033 = vunpack.c.l.b16 %v4701
        %v5034 = vunpack.c.h.b16 %v4701
        %v5035 = vpack.c.b16 %v4738, %v4732
        %v5036 = vpack.c.b16 %v4739, %v4733
        %v5037 = vpack.c.b16 %v4740, %v4734
        %v5038 = vpack.c.b16 %v4741, %v4735
        %v5039 = vpack.c.b16 %v4742, %v4736
        %v5040 = vpack.c.b16 %v4743, %v4737
        %v5041 = vpack.c.b16 %v4750, %v4744
        %v5042 = vpack.c.b16 %v4751, %v4745
        %v5043 = vpack.c.b16 %v4752, %v4746
        %v5044 = vpack.c.b16 %v4753, %v4747
        %v5045 = vpack.c.b16 %v4754, %v4748
        %v5046 = vpack.c.b16 %v4755, %v4749
        %v5047 = vpack.c.b16 %v4762, %v4756
        %v5048 = vpack.c.b16 %v4763, %v4757
        %v5049 = vpack.c.b16 %v4764, %v4758
        %v5050 = vpack.c.b16 %v4765, %v4759
        %v5051 = vpack.c.b16 %v4766, %v4760
        %v5052 = vpack.c.b16 %v4767, %v4761
        %v5053 = vpack.c.b16 %v5029, %v4768
        %v5054 = vpack.c.b16 %v5030, %v4769
        %v5055 = vpack.c.b16 %v5031, %v4770
        %v5056 = vpack.c.b16 %v5032, %v4771
        %v5057 = vpack.c.b16 %v5033, %v4772
        %v5058 = vpack.c.b16 %v5034, %v4773
        %5083 = vmatprep.subr.bf16.mxu0 0
        %5084 = vmatpush1.bf16.msra.mxu0 %v1291
        %5085 = vmatprep.subr.bf16.mxu0 0
        %5086 = vmatpush1.bf16.msra.mxu0 %v1292
        %5087 = vmatprep.subr.bf16.mxu0 0
        %5088 = vmatpush1.bf16.msra.mxu0 %v1293
        %5089 = vmatprep.subr.bf16.mxu0 0
        %5090 = vmatpush1.bf16.msra.mxu0 %v1294
        %5091 = vmatprep.subr.bf16.mxu0 0
        %5092 = vmatpush1.bf16.msra.mxu0 %v1295
        %5093 = vmatprep.subr.bf16.mxu0 0
        %5094 = vmatpush1.bf16.msra.mxu0 %v1296
        %5095 = vmatprep.subr.bf16.mxu0 0
        %5096 = vmatpush1.bf16.msra.mxu0 %v1297
        %5097 = vmatprep.subr.bf16.mxu0 0
        %5098 = vmatpush1.bf16.msra.mxu0 %v1298
        %5099 = vmatprep.subr.bf16.mxu0 0
        %5100 = vmatpush1.bf16.msra.mxu0 %v1299
        %5101 = vmatprep.subr.bf16.mxu0 0
        %5102 = vmatpush1.bf16.msra.mxu0 %v1300
        %5103 = vmatprep.subr.bf16.mxu0 0
        %5104 = vmatpush1.bf16.msra.mxu0 %v1301
        %5105 = vmatprep.subr.bf16.mxu0 0
        %5106 = vmatpush1.bf16.msra.mxu0 %v1302
        %5107 = vmatprep.subr.bf16.mxu0 0
        %5108 = vmatpush1.bf16.msra.mxu0 %v1303
        %5109 = vmatprep.subr.bf16.mxu0 0
        %5110 = vmatpush1.bf16.msra.mxu0 %v1304
        %5111 = vmatprep.subr.bf16.mxu0 0
        %5112 = vmatpush1.bf16.msra.mxu0 %v1305
        %5113 = vmatprep.subr.bf16.mxu0 0
        %5114 = vmatpush1.bf16.msra.mxu0 %v1306
        %5115 = vmatprep.mubr.bf16.mxu0 %v5036
        %5116 = vmatmul.mubr.bf16.gmra.mrb[0].mxu0 %v5035
        %v5117 = vpop.f32.mrb[0].mxu0
        %v5118 = vadd.f32 %v399, %v5117
        %v5119 = vpop.f32.mrb[0].mxu0
        %v5120 = vpop.f32.mrb[0].mxu0
        %v5121 = vadd.f32 %v399, %v5120
        %v5122 = vpop.f32.mrb[0].mxu0
        %5123 = vmatprep.mubr.bf16.mxu0 %v5042
        %5124 = vmatmul.mubr.bf16.gmra.mrb[0].mxu0 %v5041
        %v5125 = vpop.f32.mrb[0].mxu0
        %v5126 = vadd.f32 %v399, %v5125
        %v5127 = vpop.f32.mrb[0].mxu0
        %v5128 = vpop.f32.mrb[0].mxu0
        %v5129 = vadd.f32 %v399, %v5128
        %v5130 = vpop.f32.mrb[0].mxu0
        %5131 = vmatprep.mubr.bf16.mxu0 %v5048
        %5132 = vmatmul.mubr.bf16.gmra.mrb[0].mxu0 %v5047
        %v5133 = vpop.f32.mrb[0].mxu0
        %v5134 = vadd.f32 %v399, %v5133
        %v5135 = vpop.f32.mrb[0].mxu0
        %v5136 = vpop.f32.mrb[0].mxu0
        %v5137 = vadd.f32 %v399, %v5136
        %v5138 = vpop.f32.mrb[0].mxu0
        %5139 = vmatprep.mubr.bf16.mxu0 %v5054
        %5140 = vmatmul.mubr.bf16.gmra.mrb[0].mxu0 %v5053
        %v5141 = vpop.f32.mrb[0].mxu0
        %v5142 = vadd.f32 %v399, %v5141
        %v5143 = vpop.f32.mrb[0].mxu0
        %v5144 = vpop.f32.mrb[0].mxu0
        %v5145 = vadd.f32 %v399, %v5144
        %v5146 = vpop.f32.mrb[0].mxu0
        %5147 = vdwg.mxu0
        %5148 = vmatprep.subr.bf16.mxu0 0
        %5149 = vmatpush1.bf16.msra.mxu0 %v1307
        %5150 = vmatprep.subr.bf16.mxu0 0
        %5151 = vmatpush1.bf16.msra.mxu0 %v1308
        %5152 = vmatprep.subr.bf16.mxu0 0
        %5153 = vmatpush1.bf16.msra.mxu0 %v1309
        %5154 = vmatprep.subr.bf16.mxu0 0
        %5155 = vmatpush1.bf16.msra.mxu0 %v1310
        %5156 = vmatprep.subr.bf16.mxu0 0
        %5157 = vmatpush1.bf16.msra.mxu0 %v1311
        %5158 = vmatprep.subr.bf16.mxu0 0
        %5159 = vmatpush1.bf16.msra.mxu0 %v1312
        %5160 = vmatprep.subr.bf16.mxu0 0
        %5161 = vmatpush1.bf16.msra.mxu0 %v1313
        %5162 = vmatprep.subr.bf16.mxu0 0
        %5163 = vmatpush1.bf16.msra.mxu0 %v1314
        %5164 = vmatprep.subr.bf16.mxu0 0
        %5165 = vmatpush1.bf16.msra.mxu0 %v1315
        %5166 = vmatprep.subr.bf16.mxu0 0
        %5167 = vmatpush1.bf16.msra.mxu0 %v1316
        %5168 = vmatprep.subr.bf16.mxu0 0
        %5169 = vmatpush1.bf16.msra.mxu0 %v1317
        %5170 = vmatprep.subr.bf16.mxu0 0
        %5171 = vmatpush1.bf16.msra.mxu0 %v1318
        %5172 = vmatprep.subr.bf16.mxu0 0
        %5173 = vmatpush1.bf16.msra.mxu0 %v1319
        %5174 = vmatprep.subr.bf16.mxu0 0
        %5175 = vmatpush1.bf16.msra.mxu0 %v1320
        %5176 = vmatprep.subr.bf16.mxu0 0
        %5177 = vmatpush1.bf16.msra.mxu0 %v1321
        %5178 = vmatprep.subr.bf16.mxu0 0
        %5179 = vmatpush1.bf16.msra.mxu0 %v1322
        %5180 = vmatprep.mubr.bf16.mxu0 %v5038
        %5181 = vmatmul.mubr.bf16.gmra.mrb[0].mxu0 %v5037
        %v5182 = vpop.f32.mrb[0].mxu0
        %v5183 = vadd.f32 %v5118, %v5182
        %v5184 = vpop.f32.mrb[0].mxu0
        %v5185 = vpop.f32.mrb[0].mxu0
        %v5186 = vadd.f32 %v5121, %v5185
        %v5187 = vpop.f32.mrb[0].mxu0
        %5188 = vmatprep.mubr.bf16.mxu0 %v5044
        %5189 = vmatmul.mubr.bf16.gmra.mrb[0].mxu0 %v5043
        %v5190 = vpop.f32.mrb[0].mxu0
        %v5191 = vadd.f32 %v5126, %v5190
        %v5192 = vpop.f32.mrb[0].mxu0
        %v5193 = vpop.f32.mrb[0].mxu0
        %v5194 = vadd.f32 %v5129, %v5193
        %v5195 = vpop.f32.mrb[0].mxu0
        %5196 = vmatprep.mubr.bf16.mxu0 %v5050
        %5197 = vmatmul.mubr.bf16.gmra.mrb[0].mxu0 %v5049
        %v5198 = vpop.f32.mrb[0].mxu0
        %v5199 = vadd.f32 %v5134, %v5198
        %v5200 = vpop.f32.mrb[0].mxu0
        %v5201 = vpop.f32.mrb[0].mxu0
        %v5202 = vadd.f32 %v5137, %v5201
        %v5203 = vpop.f32.mrb[0].mxu0
        %5204 = vmatprep.mubr.bf16.mxu0 %v5056
        %5205 = vmatmul.mubr.bf16.gmra.mrb[0].mxu0 %v5055
        %v5206 = vpop.f32.mrb[0].mxu0
        %v5207 = vadd.f32 %v5142, %v5206
        %v5208 = vpop.f32.mrb[0].mxu0
        %v5209 = vpop.f32.mrb[0].mxu0
        %v5210 = vadd.f32 %v5145, %v5209
        %v5211 = vpop.f32.mrb[0].mxu0
        %5212 = vdwg.mxu0
        %5213 = vmatprep.subr.bf16.mxu0 0
        %5214 = vmatpush1.bf16.msra.mxu0 %v1323
        %5215 = vmatprep.subr.bf16.mxu0 0
        %5216 = vmatpush1.bf16.msra.mxu0 %v1324
        %5217 = vmatprep.subr.bf16.mxu0 0
        %5218 = vmatpush1.bf16.msra.mxu0 %v1325
        %5219 = vmatprep.subr.bf16.mxu0 0
        %5220 = vmatpush1.bf16.msra.mxu0 %v1326
        %5221 = vmatprep.subr.bf16.mxu0 0
        %5222 = vmatpush1.bf16.msra.mxu0 %v1327
        %5223 = vmatprep.subr.bf16.mxu0 0
        %5224 = vmatpush1.bf16.msra.mxu0 %v1328
        %5225 = vmatprep.subr.bf16.mxu0 0
        %5226 = vmatpush1.bf16.msra.mxu0 %v1329
        %5227 = vmatprep.subr.bf16.mxu0 0
        %5228 = vmatpush1.bf16.msra.mxu0 %v1330
        %5229 = vmatprep.subr.bf16.mxu0 0
        %5230 = vmatpush1.bf16.msra.mxu0 %v1331
        %5231 = vmatprep.subr.bf16.mxu0 0
        %5232 = vmatpush1.bf16.msra.mxu0 %v1332
        %5233 = vmatprep.subr.bf16.mxu0 0
        %5234 = vmatpush1.bf16.msra.mxu0 %v1333
        %5235 = vmatprep.subr.bf16.mxu0 0
        %5236 = vmatpush1.bf16.msra.mxu0 %v1334
        %5237 = vmatprep.subr.bf16.mxu0 0
        %5238 = vmatpush1.bf16.msra.mxu0 %v1335
        %5239 = vmatprep.subr.bf16.mxu0 0
        %5240 = vmatpush1.bf16.msra.mxu0 %v1336
        %5241 = vmatprep.subr.bf16.mxu0 0
        %5242 = vmatpush1.bf16.msra.mxu0 %v1337
        %5243 = vmatprep.subr.bf16.mxu0 0
        %5244 = vmatpush1.bf16.msra.mxu0 %v1338
        %5245 = vmatprep.mubr.bf16.mxu0 %v5040
        %5246 = vmatmul.mubr.bf16.gmra.mrb[0].mxu0 %v5039
        %v5247 = vpop.f32.mrb[0].mxu0
        %v5248 = vadd.f32 %v5183, %v5247
        %v5249 = vpop.f32.mrb[0].mxu0
        %v5250 = vpop.f32.mrb[0].mxu0
        %v5251 = vadd.f32 %v5186, %v5250
        %v5252 = vpop.f32.mrb[0].mxu0
        %5253 = vmatprep.mubr.bf16.mxu0 %v5046
        %5254 = vmatmul.mubr.bf16.gmra.mrb[0].mxu0 %v5045
        %v5255 = vpop.f32.mrb[0].mxu0
        %v5256 = vadd.f32 %v5191, %v5255
        %v5257 = vpop.f32.mrb[0].mxu0
        %v5258 = vpop.f32.mrb[0].mxu0
        %v5259 = vadd.f32 %v5194, %v5258
        %v5260 = vpop.f32.mrb[0].mxu0
        %5261 = vmatprep.mubr.bf16.mxu0 %v5052
        %5262 = vmatmul.mubr.bf16.gmra.mrb[0].mxu0 %v5051
        %v5263 = vpop.f32.mrb[0].mxu0
        %v5264 = vadd.f32 %v5199, %v5263
        %v5265 = vpop.f32.mrb[0].mxu0
        %v5266 = vpop.f32.mrb[0].mxu0
        %v5267 = vadd.f32 %v5202, %v5266
        %v5268 = vpop.f32.mrb[0].mxu0
        %5269 = vmatprep.mubr.bf16.mxu0 %v5058
        %5270 = vmatmul.mubr.bf16.gmra.mrb[0].mxu0 %v5057
        %v5271 = vpop.f32.mrb[0].mxu0
        %v5272 = vadd.f32 %v5207, %v5271
        %v5273 = vpop.f32.mrb[0].mxu0
        %v5274 = vpop.f32.mrb[0].mxu0
        %v5275 = vadd.f32 %v5210, %v5274
        %v5276 = vpop.f32.mrb[0].mxu0
        %5277 = vdwg.mxu0
        %s5278 = scalar_lea.vmem %s188, 776 [#allocation2]
        %5279 = vst [vmem:[%s5278] sm:$0xff] %v5248
        %5280 = vst [vmem:[%s5278 + $0x10] sm:$0xff] %v5251
        %5281 = vst [vmem:[%s5278 + $0x20] sm:$0xff] %v5256
        %5282 = vst [vmem:[%s5278 + $0x30] sm:$0xff] %v5259
        %5283 = vst [vmem:[%s5278 + $0x40] sm:$0xff] %v5264
        %5284 = vst [vmem:[%s5278 + $0x50] sm:$0xff] %v5267
        %5285 = vst [vmem:[%s5278 + $0x60] sm:$0xff] %v5272
        %5286 = vst [vmem:[%s5278 + $0x70] sm:$0xff] %v5275
        %s5287 = sadd.s32 %s19, 7
        %s5288 = smul.u32 %s5287, 54
        %s5289 = smul.addr %s5288, 4
        %s5290 = scalar_lea.vmem %s193, %s5289
        %v5291 = vld [vmem:[%s5290] sm:$0xff]
        %v5292 = vld [vmem:[%s5290 + $0x8] sm:$0xff]
        %v5293 = vld [vmem:[%s5290 + $0x10] sm:$0xff]
        %v5294 = vld [vmem:[%s5290 + $0x18] sm:$0xff]
        %v5295 = vld [vmem:[%s5290 + $0x20] sm:$0xff]
        %v5296 = vld [vmem:[%s5290 + $0x28] sm:$0xff]
        %v5297 = vld [vmem:[%s5290 + $0x30] sm:$0xff]
        %v5298 = vld [vmem:[%s5290 + $0x38] sm:$0xff]
        %v5299 = vld [vmem:[%s5290 + $0x40] sm:$0xff]
        %v5300 = vld [vmem:[%s5290 + $0x48] sm:$0xff]
        %v5301 = vld [vmem:[%s5290 + $0x50] sm:$0xff]
        %v5302 = vld [vmem:[%s5290 + $0x58] sm:$0xff]
        %v5303 = vld [vmem:[%s5290 + $0x60] sm:$0xff]
        %v5304 = vld [vmem:[%s5290 + $0x68] sm:$0xff]
        %v5305 = vld [vmem:[%s5290 + $0x70] sm:$0xff]
        %v5306 = vld [vmem:[%s5290 + $0x78] sm:$0xff]
        %v5307 = vld [vmem:[%s5290 + $0x80] sm:$0xff]
        %v5308 = vld [vmem:[%s5290 + $0x88] sm:$0xff]
        %v5309 = vld [vmem:[%s5290 + $0x90] sm:$0xff]
        %v5310 = vld [vmem:[%s5290 + $0x98] sm:$0xff]
        %v5311 = vld [vmem:[%s5290 + $0xa0] sm:$0xff]
        %v5312 = vld [vmem:[%s5290 + $0xa8] sm:$0xff]
        %v5313 = vld [vmem:[%s5290 + $0xb0] sm:$0xff]
        %v5314 = vld [vmem:[%s5290 + $0xb8] sm:$0xff]
        %v5315 = vld [vmem:[%s5290 + $0xc0] sm:$0xff]
        %v5316 = vld [vmem:[%s5290 + $0xc8] sm:$0xff]
        %v5317 = vld [vmem:[%s5290 + $0xd0] sm:$0xff]
        %v5342 = vunpack.c.l.b16 %v5291
        %v5343 = vunpack.c.h.b16 %v5291
        %v5344 = vunpack.c.l.b16 %v5292
        %v5345 = vunpack.c.h.b16 %v5292
        %v5346 = vunpack.c.l.b16 %v5293
        %v5347 = vunpack.c.h.b16 %v5293
        %v5348 = vunpack.c.l.b16 %v5294
        %v5349 = vunpack.c.h.b16 %v5294
        %v5350 = vunpack.c.l.b16 %v5295
        %v5351 = vunpack.c.h.b16 %v5295
        %v5352 = vunpack.c.l.b16 %v5296
        %v5353 = vunpack.c.h.b16 %v5296
        %v5354 = vunpack.c.l.b16 %v5297
        %v5355 = vunpack.c.h.b16 %v5297
        %v5356 = vunpack.c.l.b16 %v5298
        %v5357 = vunpack.c.h.b16 %v5298
        %v5358 = vunpack.c.l.b16 %v5299
        %v5359 = vunpack.c.h.b16 %v5299
        %v5360 = vunpack.c.l.b16 %v5300
        %v5361 = vunpack.c.h.b16 %v5300
        %v5362 = vunpack.c.l.b16 %v5301
        %v5363 = vunpack.c.h.b16 %v5301
        %v5364 = vunpack.c.l.b16 %v5302
        %v5365 = vunpack.c.h.b16 %v5302
        %v5366 = vunpack.c.l.b16 %v5303
        %v5367 = vunpack.c.h.b16 %v5303
        %v5368 = vunpack.c.l.b16 %v5304
        %v5369 = vunpack.c.h.b16 %v5304
        %v5370 = vunpack.c.l.b16 %v5305
        %v5371 = vunpack.c.h.b16 %v5305
        %v5372 = vunpack.c.l.b16 %v5306
        %v5373 = vunpack.c.h.b16 %v5306
        %v5374 = vunpack.c.l.b16 %v5307
        %v5375 = vunpack.c.h.b16 %v5307
        %v5376 = vunpack.c.l.b16 %v5308
        %v5377 = vunpack.c.h.b16 %v5308
        %v5378 = vunpack.c.l.b16 %v5309
        %v5379 = vunpack.c.h.b16 %v5309
        %v5380 = vunpack.c.l.b16 %v5310
        %v5381 = vunpack.c.h.b16 %v5310
        %v5382 = vunpack.c.l.b16 %v5311
        %v5383 = vunpack.c.h.b16 %v5311
        %v5384 = vunpack.c.l.b16 %v5312
        %v5385 = vunpack.c.h.b16 %v5312
        %v5386 = vunpack.c.l.b16 %v5313
        %v5387 = vunpack.c.h.b16 %v5313
        %v5388 = vunpack.c.l.b16 %v5314
        %v5389 = vunpack.c.h.b16 %v5314
        %v5390 = vpack.c.b16 %v5348, %v5342
        %v5391 = vpack.c.b16 %v5349, %v5343
        %v5392 = vpack.c.b16 %v5350, %v5344
        %v5393 = vpack.c.b16 %v5351, %v5345
        %v5394 = vpack.c.b16 %v5352, %v5346
        %v5395 = vpack.c.b16 %v5353, %v5347
        %v5396 = vpack.c.b16 %v5360, %v5354
        %v5397 = vpack.c.b16 %v5361, %v5355
        %v5398 = vpack.c.b16 %v5362, %v5356
        %v5399 = vpack.c.b16 %v5363, %v5357
        %v5400 = vpack.c.b16 %v5364, %v5358
        %v5401 = vpack.c.b16 %v5365, %v5359
        %v5402 = vpack.c.b16 %v5372, %v5366
        %v5403 = vpack.c.b16 %v5373, %v5367
        %v5404 = vpack.c.b16 %v5374, %v5368
        %v5405 = vpack.c.b16 %v5375, %v5369
        %v5406 = vpack.c.b16 %v5376, %v5370
        %v5407 = vpack.c.b16 %v5377, %v5371
        %v5408 = vpack.c.b16 %v5384, %v5378
        %v5409 = vpack.c.b16 %v5385, %v5379
        %v5410 = vpack.c.b16 %v5386, %v5380
        %v5411 = vpack.c.b16 %v5387, %v5381
        %v5412 = vpack.c.b16 %v5388, %v5382
        %v5413 = vpack.c.b16 %v5389, %v5383
        %5438 = vmatprep.subr.bf16.mxu0 0
        %5439 = vmatpush1.bf16.msra.mxu0 %v743
        %5440 = vmatprep.subr.bf16.mxu0 0
        %5441 = vmatpush1.bf16.msra.mxu0 %v744
        %5442 = vmatprep.subr.bf16.mxu0 0
        %5443 = vmatpush1.bf16.msra.mxu0 %v745
        %5444 = vmatprep.subr.bf16.mxu0 0
        %5445 = vmatpush1.bf16.msra.mxu0 %v746
        %5446 = vmatprep.subr.bf16.mxu0 0
        %5447 = vmatpush1.bf16.msra.mxu0 %v747
        %5448 = vmatprep.subr.bf16.mxu0 0
        %5449 = vmatpush1.bf16.msra.mxu0 %v748
        %5450 = vmatprep.subr.bf16.mxu0 0
        %5451 = vmatpush1.bf16.msra.mxu0 %v749
        %5452 = vmatprep.subr.bf16.mxu0 0
        %5453 = vmatpush1.bf16.msra.mxu0 %v750
        %5454 = vmatprep.subr.bf16.mxu0 0
        %5455 = vmatpush1.bf16.msra.mxu0 %v751
        %5456 = vmatprep.subr.bf16.mxu0 0
        %5457 = vmatpush1.bf16.msra.mxu0 %v752
        %5458 = vmatprep.subr.bf16.mxu0 0
        %5459 = vmatpush1.bf16.msra.mxu0 %v753
        %5460 = vmatprep.subr.bf16.mxu0 0
        %5461 = vmatpush1.bf16.msra.mxu0 %v754
        %5462 = vmatprep.subr.bf16.mxu0 0
        %5463 = vmatpush1.bf16.msra.mxu0 %v755
        %5464 = vmatprep.subr.bf16.mxu0 0
        %5465 = vmatpush1.bf16.msra.mxu0 %v756
        %5466 = vmatprep.subr.bf16.mxu0 0
        %5467 = vmatpush1.bf16.msra.mxu0 %v757
        %5468 = vmatprep.subr.bf16.mxu0 0
        %5469 = vmatpush1.bf16.msra.mxu0 %v758
        %5470 = vmatprep.mubr.bf16.mxu0 %v5391
        %5471 = vmatmul.mubr.bf16.gmra.mrb[0].mxu0 %v5390
        %v5472 = vpop.f32.mrb[0].mxu0
        %v5473 = vadd.f32 %v399, %v5472
        %v5474 = vpop.f32.mrb[0].mxu0
        %v5475 = vpop.f32.mrb[0].mxu0
        %v5476 = vadd.f32 %v399, %v5475
        %v5477 = vpop.f32.mrb[0].mxu0
        %5478 = vmatprep.mubr.bf16.mxu0 %v5397
        %5479 = vmatmul.mubr.bf16.gmra.mrb[0].mxu0 %v5396
        %v5480 = vpop.f32.mrb[0].mxu0
        %v5481 = vadd.f32 %v399, %v5480
        %v5482 = vpop.f32.mrb[0].mxu0
        %v5483 = vpop.f32.mrb[0].mxu0
        %v5484 = vadd.f32 %v399, %v5483
        %v5485 = vpop.f32.mrb[0].mxu0
        %5486 = vmatprep.mubr.bf16.mxu0 %v5403
        %5487 = vmatmul.mubr.bf16.gmra.mrb[0].mxu0 %v5402
        %v5488 = vpop.f32.mrb[0].mxu0
        %v5489 = vadd.f32 %v399, %v5488
        %v5490 = vpop.f32.mrb[0].mxu0
        %v5491 = vpop.f32.mrb[0].mxu0
        %v5492 = vadd.f32 %v399, %v5491
        %v5493 = vpop.f32.mrb[0].mxu0
        %5494 = vmatprep.mubr.bf16.mxu0 %v5409
        %5495 = vmatmul.mubr.bf16.gmra.mrb[0].mxu0 %v5408
        %v5496 = vpop.f32.mrb[0].mxu0
        %v5497 = vadd.f32 %v399, %v5496
        %v5498 = vpop.f32.mrb[0].mxu0
        %v5499 = vpop.f32.mrb[0].mxu0
        %v5500 = vadd.f32 %v399, %v5499
        %v5501 = vpop.f32.mrb[0].mxu0
        %5502 = vdwg.mxu0
        %5503 = vmatprep.subr.bf16.mxu0 0
        %5504 = vmatpush1.bf16.msra.mxu0 %v759
        %5505 = vmatprep.subr.bf16.mxu0 0
        %5506 = vmatpush1.bf16.msra.mxu0 %v760
        %5507 = vmatprep.subr.bf16.mxu0 0
        %5508 = vmatpush1.bf16.msra.mxu0 %v761
        %5509 = vmatprep.subr.bf16.mxu0 0
        %5510 = vmatpush1.bf16.msra.mxu0 %v762
        %5511 = vmatprep.subr.bf16.mxu0 0
        %5512 = vmatpush1.bf16.msra.mxu0 %v763
        %5513 = vmatprep.subr.bf16.mxu0 0
        %5514 = vmatpush1.bf16.msra.mxu0 %v764
        %5515 = vmatprep.subr.bf16.mxu0 0
        %5516 = vmatpush1.bf16.msra.mxu0 %v765
        %5517 = vmatprep.subr.bf16.mxu0 0
        %5518 = vmatpush1.bf16.msra.mxu0 %v766
        %5519 = vmatprep.subr.bf16.mxu0 0
        %5520 = vmatpush1.bf16.msra.mxu0 %v767
        %5521 = vmatprep.subr.bf16.mxu0 0
        %5522 = vmatpush1.bf16.msra.mxu0 %v768
        %5523 = vmatprep.subr.bf16.mxu0 0
        %5524 = vmatpush1.bf16.msra.mxu0 %v769
        %5525 = vmatprep.subr.bf16.mxu0 0
        %5526 = vmatpush1.bf16.msra.mxu0 %v770
        %5527 = vmatprep.subr.bf16.mxu0 0
        %5528 = vmatpush1.bf16.msra.mxu0 %v771
        %5529 = vmatprep.subr.bf16.mxu0 0
        %5530 = vmatpush1.bf16.msra.mxu0 %v772
        %5531 = vmatprep.subr.bf16.mxu0 0
        %5532 = vmatpush1.bf16.msra.mxu0 %v773
        %5533 = vmatprep.subr.bf16.mxu0 0
        %5534 = vmatpush1.bf16.msra.mxu0 %v774
        %5535 = vmatprep.mubr.bf16.mxu0 %v5393
        %5536 = vmatmul.mubr.bf16.gmra.mrb[0].mxu0 %v5392
        %v5537 = vpop.f32.mrb[0].mxu0
        %v5538 = vadd.f32 %v5473, %v5537
        %v5539 = vpop.f32.mrb[0].mxu0
        %v5540 = vpop.f32.mrb[0].mxu0
        %v5541 = vadd.f32 %v5476, %v5540
        %v5542 = vpop.f32.mrb[0].mxu0
        %5543 = vmatprep.mubr.bf16.mxu0 %v5399
        %5544 = vmatmul.mubr.bf16.gmra.mrb[0].mxu0 %v5398
        %v5545 = vpop.f32.mrb[0].mxu0
        %v5546 = vadd.f32 %v5481, %v5545
        %v5547 = vpop.f32.mrb[0].mxu0
        %v5548 = vpop.f32.mrb[0].mxu0
        %v5549 = vadd.f32 %v5484, %v5548
        %v5550 = vpop.f32.mrb[0].mxu0
        %5551 = vmatprep.mubr.bf16.mxu0 %v5405
        %5552 = vmatmul.mubr.bf16.gmra.mrb[0].mxu0 %v5404
        %v5553 = vpop.f32.mrb[0].mxu0
        %v5554 = vadd.f32 %v5489, %v5553
        %v5555 = vpop.f32.mrb[0].mxu0
        %v5556 = vpop.f32.mrb[0].mxu0
        %v5557 = vadd.f32 %v5492, %v5556
        %v5558 = vpop.f32.mrb[0].mxu0
        %5559 = vmatprep.mubr.bf16.mxu0 %v5411
        %5560 = vmatmul.mubr.bf16.gmra.mrb[0].mxu0 %v5410
        %v5561 = vpop.f32.mrb[0].mxu0
        %v5562 = vadd.f32 %v5497, %v5561
        %v5563 = vpop.f32.mrb[0].mxu0
        %v5564 = vpop.f32.mrb[0].mxu0
        %v5565 = vadd.f32 %v5500, %v5564
        %v5566 = vpop.f32.mrb[0].mxu0
        %5567 = vdwg.mxu0
        %5568 = vmatprep.subr.bf16.mxu0 0
        %5569 = vmatpush1.bf16.msra.mxu0 %v775
        %5570 = vmatprep.subr.bf16.mxu0 0
        %5571 = vmatpush1.bf16.msra.mxu0 %v776
        %5572 = vmatprep.subr.bf16.mxu0 0
        %5573 = vmatpush1.bf16.msra.mxu0 %v777
        %5574 = vmatprep.subr.bf16.mxu0 0
        %5575 = vmatpush1.bf16.msra.mxu0 %v778
        %5576 = vmatprep.subr.bf16.mxu0 0
        %5577 = vmatpush1.bf16.msra.mxu0 %v779
        %5578 = vmatprep.subr.bf16.mxu0 0
        %5579 = vmatpush1.bf16.msra.mxu0 %v780
        %5580 = vmatprep.subr.bf16.mxu0 0
        %5581 = vmatpush1.bf16.msra.mxu0 %v781
        %5582 = vmatprep.subr.bf16.mxu0 0
        %5583 = vmatpush1.bf16.msra.mxu0 %v782
        %5584 = vmatprep.subr.bf16.mxu0 0
        %5585 = vmatpush1.bf16.msra.mxu0 %v783
        %5586 = vmatprep.subr.bf16.mxu0 0
        %5587 = vmatpush1.bf16.msra.mxu0 %v784
        %5588 = vmatprep.subr.bf16.mxu0 0
        %5589 = vmatpush1.bf16.msra.mxu0 %v785
        %5590 = vmatprep.subr.bf16.mxu0 0
        %5591 = vmatpush1.bf16.msra.mxu0 %v786
        %5592 = vmatprep.subr.bf16.mxu0 0
        %5593 = vmatpush1.bf16.msra.mxu0 %v787
        %5594 = vmatprep.subr.bf16.mxu0 0
        %5595 = vmatpush1.bf16.msra.mxu0 %v788
        %5596 = vmatprep.subr.bf16.mxu0 0
        %5597 = vmatpush1.bf16.msra.mxu0 %v789
        %5598 = vmatprep.subr.bf16.mxu0 0
        %5599 = vmatpush1.bf16.msra.mxu0 %v790
        %5600 = vmatprep.mubr.bf16.mxu0 %v5395
        %5601 = vmatmul.mubr.bf16.gmra.mrb[0].mxu0 %v5394
        %v5602 = vpop.f32.mrb[0].mxu0
        %v5603 = vadd.f32 %v5538, %v5602
        %v5604 = vpop.f32.mrb[0].mxu0
        %v5605 = vpop.f32.mrb[0].mxu0
        %v5606 = vadd.f32 %v5541, %v5605
        %v5607 = vpop.f32.mrb[0].mxu0
        %5608 = vmatprep.mubr.bf16.mxu0 %v5401
        %5609 = vmatmul.mubr.bf16.gmra.mrb[0].mxu0 %v5400
        %v5610 = vpop.f32.mrb[0].mxu0
        %v5611 = vadd.f32 %v5546, %v5610
        %v5612 = vpop.f32.mrb[0].mxu0
        %v5613 = vpop.f32.mrb[0].mxu0
        %v5614 = vadd.f32 %v5549, %v5613
        %v5615 = vpop.f32.mrb[0].mxu0
        %5616 = vmatprep.mubr.bf16.mxu0 %v5407
        %5617 = vmatmul.mubr.bf16.gmra.mrb[0].mxu0 %v5406
        %v5618 = vpop.f32.mrb[0].mxu0
        %v5619 = vadd.f32 %v5554, %v5618
        %v5620 = vpop.f32.mrb[0].mxu0
        %v5621 = vpop.f32.mrb[0].mxu0
        %v5622 = vadd.f32 %v5557, %v5621
        %v5623 = vpop.f32.mrb[0].mxu0
        %5624 = vmatprep.mubr.bf16.mxu0 %v5413
        %5625 = vmatmul.mubr.bf16.gmra.mrb[0].mxu0 %v5412
        %v5626 = vpop.f32.mrb[0].mxu0
        %v5627 = vadd.f32 %v5562, %v5626
        %v5628 = vpop.f32.mrb[0].mxu0
        %v5629 = vpop.f32.mrb[0].mxu0
        %v5630 = vadd.f32 %v5565, %v5629
        %v5631 = vpop.f32.mrb[0].mxu0
        %5632 = vdwg.mxu0
        %s5633 = scalar_lea.vmem %s188, 896 [#allocation2]
        %5634 = vst [vmem:[%s5633] sm:$0xff] %v5603
        %5635 = vst [vmem:[%s5633 + $0x10] sm:$0xff] %v5606
        %5636 = vst [vmem:[%s5633 + $0x20] sm:$0xff] %v5611
        %5637 = vst [vmem:[%s5633 + $0x30] sm:$0xff] %v5614
        %5638 = vst [vmem:[%s5633 + $0x40] sm:$0xff] %v5619
        %5639 = vst [vmem:[%s5633 + $0x50] sm:$0xff] %v5622
        %5640 = vst [vmem:[%s5633 + $0x60] sm:$0xff] %v5627
        %5641 = vst [vmem:[%s5633 + $0x70] sm:$0xff] %v5630
        %v5645 = vunpack.c.l.b16 %v5315
        %v5646 = vunpack.c.h.b16 %v5315
        %v5647 = vunpack.c.l.b16 %v5316
        %v5648 = vunpack.c.h.b16 %v5316
        %v5649 = vunpack.c.l.b16 %v5317
        %v5650 = vunpack.c.h.b16 %v5317
        %v5651 = vpack.c.b16 %v5354, %v5348
        %v5652 = vpack.c.b16 %v5355, %v5349
        %v5653 = vpack.c.b16 %v5356, %v5350
        %v5654 = vpack.c.b16 %v5357, %v5351
        %v5655 = vpack.c.b16 %v5358, %v5352
        %v5656 = vpack.c.b16 %v5359, %v5353
        %v5657 = vpack.c.b16 %v5366, %v5360
        %v5658 = vpack.c.b16 %v5367, %v5361
        %v5659 = vpack.c.b16 %v5368, %v5362
        %v5660 = vpack.c.b16 %v5369, %v5363
        %v5661 = vpack.c.b16 %v5370, %v5364
        %v5662 = vpack.c.b16 %v5371, %v5365
        %v5663 = vpack.c.b16 %v5378, %v5372
        %v5664 = vpack.c.b16 %v5379, %v5373
        %v5665 = vpack.c.b16 %v5380, %v5374
        %v5666 = vpack.c.b16 %v5381, %v5375
        %v5667 = vpack.c.b16 %v5382, %v5376
        %v5668 = vpack.c.b16 %v5383, %v5377
        %v5669 = vpack.c.b16 %v5645, %v5384
        %v5670 = vpack.c.b16 %v5646, %v5385
        %v5671 = vpack.c.b16 %v5647, %v5386
        %v5672 = vpack.c.b16 %v5648, %v5387
        %v5673 = vpack.c.b16 %v5649, %v5388
        %v5674 = vpack.c.b16 %v5650, %v5389
        %5699 = vmatprep.subr.bf16.mxu0 0
        %5700 = vmatpush1.bf16.msra.mxu0 %v1291
        %5701 = vmatprep.subr.bf16.mxu0 0
        %5702 = vmatpush1.bf16.msra.mxu0 %v1292
        %5703 = vmatprep.subr.bf16.mxu0 0
        %5704 = vmatpush1.bf16.msra.mxu0 %v1293
        %5705 = vmatprep.subr.bf16.mxu0 0
        %5706 = vmatpush1.bf16.msra.mxu0 %v1294
        %5707 = vmatprep.subr.bf16.mxu0 0
        %5708 = vmatpush1.bf16.msra.mxu0 %v1295
        %5709 = vmatprep.subr.bf16.mxu0 0
        %5710 = vmatpush1.bf16.msra.mxu0 %v1296
        %5711 = vmatprep.subr.bf16.mxu0 0
        %5712 = vmatpush1.bf16.msra.mxu0 %v1297
        %5713 = vmatprep.subr.bf16.mxu0 0
        %5714 = vmatpush1.bf16.msra.mxu0 %v1298
        %5715 = vmatprep.subr.bf16.mxu0 0
        %5716 = vmatpush1.bf16.msra.mxu0 %v1299
        %5717 = vmatprep.subr.bf16.mxu0 0
        %5718 = vmatpush1.bf16.msra.mxu0 %v1300
        %5719 = vmatprep.subr.bf16.mxu0 0
        %5720 = vmatpush1.bf16.msra.mxu0 %v1301
        %5721 = vmatprep.subr.bf16.mxu0 0
        %5722 = vmatpush1.bf16.msra.mxu0 %v1302
        %5723 = vmatprep.subr.bf16.mxu0 0
        %5724 = vmatpush1.bf16.msra.mxu0 %v1303
        %5725 = vmatprep.subr.bf16.mxu0 0
        %5726 = vmatpush1.bf16.msra.mxu0 %v1304
        %5727 = vmatprep.subr.bf16.mxu0 0
        %5728 = vmatpush1.bf16.msra.mxu0 %v1305
        %5729 = vmatprep.subr.bf16.mxu0 0
        %5730 = vmatpush1.bf16.msra.mxu0 %v1306
        %5731 = vmatprep.mubr.bf16.mxu0 %v5652
        %5732 = vmatmul.mubr.bf16.gmra.mrb[0].mxu0 %v5651
        %v5733 = vpop.f32.mrb[0].mxu0
        %v5734 = vadd.f32 %v399, %v5733
        %v5735 = vpop.f32.mrb[0].mxu0
        %v5736 = vpop.f32.mrb[0].mxu0
        %v5737 = vadd.f32 %v399, %v5736
        %v5738 = vpop.f32.mrb[0].mxu0
        %5739 = vmatprep.mubr.bf16.mxu0 %v5658
        %5740 = vmatmul.mubr.bf16.gmra.mrb[0].mxu0 %v5657
        %v5741 = vpop.f32.mrb[0].mxu0
        %v5742 = vadd.f32 %v399, %v5741
        %v5743 = vpop.f32.mrb[0].mxu0
        %v5744 = vpop.f32.mrb[0].mxu0
        %v5745 = vadd.f32 %v399, %v5744
        %v5746 = vpop.f32.mrb[0].mxu0
        %5747 = vmatprep.mubr.bf16.mxu0 %v5664
        %5748 = vmatmul.mubr.bf16.gmra.mrb[0].mxu0 %v5663
        %v5749 = vpop.f32.mrb[0].mxu0
        %v5750 = vadd.f32 %v399, %v5749
        %v5751 = vpop.f32.mrb[0].mxu0
        %v5752 = vpop.f32.mrb[0].mxu0
        %v5753 = vadd.f32 %v399, %v5752
        %v5754 = vpop.f32.mrb[0].mxu0
        %5755 = vmatprep.mubr.bf16.mxu0 %v5670
        %5756 = vmatmul.mubr.bf16.gmra.mrb[0].mxu0 %v5669
        %v5757 = vpop.f32.mrb[0].mxu0
        %v5758 = vadd.f32 %v399, %v5757
        %v5759 = vpop.f32.mrb[0].mxu0
        %v5760 = vpop.f32.mrb[0].mxu0
        %v5761 = vadd.f32 %v399, %v5760
        %v5762 = vpop.f32.mrb[0].mxu0
        %5763 = vdwg.mxu0
        %5764 = vmatprep.subr.bf16.mxu0 0
        %5765 = vmatpush1.bf16.msra.mxu0 %v1307
        %5766 = vmatprep.subr.bf16.mxu0 0
        %5767 = vmatpush1.bf16.msra.mxu0 %v1308
        %5768 = vmatprep.subr.bf16.mxu0 0
        %5769 = vmatpush1.bf16.msra.mxu0 %v1309
        %5770 = vmatprep.subr.bf16.mxu0 0
        %5771 = vmatpush1.bf16.msra.mxu0 %v1310
        %5772 = vmatprep.subr.bf16.mxu0 0
        %5773 = vmatpush1.bf16.msra.mxu0 %v1311
        %5774 = vmatprep.subr.bf16.mxu0 0
        %5775 = vmatpush1.bf16.msra.mxu0 %v1312
        %5776 = vmatprep.subr.bf16.mxu0 0
        %5777 = vmatpush1.bf16.msra.mxu0 %v1313
        %5778 = vmatprep.subr.bf16.mxu0 0
        %5779 = vmatpush1.bf16.msra.mxu0 %v1314
        %5780 = vmatprep.subr.bf16.mxu0 0
        %5781 = vmatpush1.bf16.msra.mxu0 %v1315
        %5782 = vmatprep.subr.bf16.mxu0 0
        %5783 = vmatpush1.bf16.msra.mxu0 %v1316
        %5784 = vmatprep.subr.bf16.mxu0 0
        %5785 = vmatpush1.bf16.msra.mxu0 %v1317
        %5786 = vmatprep.subr.bf16.mxu0 0
        %5787 = vmatpush1.bf16.msra.mxu0 %v1318
        %5788 = vmatprep.subr.bf16.mxu0 0
        %5789 = vmatpush1.bf16.msra.mxu0 %v1319
        %5790 = vmatprep.subr.bf16.mxu0 0
        %5791 = vmatpush1.bf16.msra.mxu0 %v1320
        %5792 = vmatprep.subr.bf16.mxu0 0
        %5793 = vmatpush1.bf16.msra.mxu0 %v1321
        %5794 = vmatprep.subr.bf16.mxu0 0
        %5795 = vmatpush1.bf16.msra.mxu0 %v1322
        %5796 = vmatprep.mubr.bf16.mxu0 %v5654
        %5797 = vmatmul.mubr.bf16.gmra.mrb[0].mxu0 %v5653
        %v5798 = vpop.f32.mrb[0].mxu0
        %v5799 = vadd.f32 %v5734, %v5798
        %v5800 = vpop.f32.mrb[0].mxu0
        %v5801 = vpop.f32.mrb[0].mxu0
        %v5802 = vadd.f32 %v5737, %v5801
        %v5803 = vpop.f32.mrb[0].mxu0
        %5804 = vmatprep.mubr.bf16.mxu0 %v5660
        %5805 = vmatmul.mubr.bf16.gmra.mrb[0].mxu0 %v5659
        %v5806 = vpop.f32.mrb[0].mxu0
        %v5807 = vadd.f32 %v5742, %v5806
        %v5808 = vpop.f32.mrb[0].mxu0
        %v5809 = vpop.f32.mrb[0].mxu0
        %v5810 = vadd.f32 %v5745, %v5809
        %v5811 = vpop.f32.mrb[0].mxu0
        %5812 = vmatprep.mubr.bf16.mxu0 %v5666
        %5813 = vmatmul.mubr.bf16.gmra.mrb[0].mxu0 %v5665
        %v5814 = vpop.f32.mrb[0].mxu0
        %v5815 = vadd.f32 %v5750, %v5814
        %v5816 = vpop.f32.mrb[0].mxu0
        %v5817 = vpop.f32.mrb[0].mxu0
        %v5818 = vadd.f32 %v5753, %v5817
        %v5819 = vpop.f32.mrb[0].mxu0
        %5820 = vmatprep.mubr.bf16.mxu0 %v5672
        %5821 = vmatmul.mubr.bf16.gmra.mrb[0].mxu0 %v5671
        %v5822 = vpop.f32.mrb[0].mxu0
        %v5823 = vadd.f32 %v5758, %v5822
        %v5824 = vpop.f32.mrb[0].mxu0
        %v5825 = vpop.f32.mrb[0].mxu0
        %v5826 = vadd.f32 %v5761, %v5825
        %v5827 = vpop.f32.mrb[0].mxu0
        %5828 = vdwg.mxu0
        %5829 = vmatprep.subr.bf16.mxu0 0
        %5830 = vmatpush1.bf16.msra.mxu0 %v1323
        %5831 = vmatprep.subr.bf16.mxu0 0
        %5832 = vmatpush1.bf16.msra.mxu0 %v1324
        %5833 = vmatprep.subr.bf16.mxu0 0
        %5834 = vmatpush1.bf16.msra.mxu0 %v1325
        %5835 = vmatprep.subr.bf16.mxu0 0
        %5836 = vmatpush1.bf16.msra.mxu0 %v1326
        %5837 = vmatprep.subr.bf16.mxu0 0
        %5838 = vmatpush1.bf16.msra.mxu0 %v1327
        %5839 = vmatprep.subr.bf16.mxu0 0
        %5840 = vmatpush1.bf16.msra.mxu0 %v1328
        %5841 = vmatprep.subr.bf16.mxu0 0
        %5842 = vmatpush1.bf16.msra.mxu0 %v1329
        %5843 = vmatprep.subr.bf16.mxu0 0
        %5844 = vmatpush1.bf16.msra.mxu0 %v1330
        %5845 = vmatprep.subr.bf16.mxu0 0
        %5846 = vmatpush1.bf16.msra.mxu0 %v1331
        %5847 = vmatprep.subr.bf16.mxu0 0
        %5848 = vmatpush1.bf16.msra.mxu0 %v1332
        %5849 = vmatprep.subr.bf16.mxu0 0
        %5850 = vmatpush1.bf16.msra.mxu0 %v1333
        %5851 = vmatprep.subr.bf16.mxu0 0
        %5852 = vmatpush1.bf16.msra.mxu0 %v1334
        %5853 = vmatprep.subr.bf16.mxu0 0
        %5854 = vmatpush1.bf16.msra.mxu0 %v1335
        %5855 = vmatprep.subr.bf16.mxu0 0
        %5856 = vmatpush1.bf16.msra.mxu0 %v1336
        %5857 = vmatprep.subr.bf16.mxu0 0
        %5858 = vmatpush1.bf16.msra.mxu0 %v1337
        %5859 = vmatprep.subr.bf16.mxu0 0
        %5860 = vmatpush1.bf16.msra.mxu0 %v1338
        %5861 = vmatprep.mubr.bf16.mxu0 %v5656
        %5862 = vmatmul.mubr.bf16.gmra.mrb[0].mxu0 %v5655
        %v5863 = vpop.f32.mrb[0].mxu0
        %v5864 = vadd.f32 %v5799, %v5863
        %v5865 = vpop.f32.mrb[0].mxu0
        %v5866 = vpop.f32.mrb[0].mxu0
        %v5867 = vadd.f32 %v5802, %v5866
        %v5868 = vpop.f32.mrb[0].mxu0
        %5869 = vmatprep.mubr.bf16.mxu0 %v5662
        %5870 = vmatmul.mubr.bf16.gmra.mrb[0].mxu0 %v5661
        %v5871 = vpop.f32.mrb[0].mxu0
        %v5872 = vadd.f32 %v5807, %v5871
        %v5873 = vpop.f32.mrb[0].mxu0
        %v5874 = vpop.f32.mrb[0].mxu0
        %v5875 = vadd.f32 %v5810, %v5874
        %v5876 = vpop.f32.mrb[0].mxu0
        %5877 = vmatprep.mubr.bf16.mxu0 %v5668
        %5878 = vmatmul.mubr.bf16.gmra.mrb[0].mxu0 %v5667
        %v5879 = vpop.f32.mrb[0].mxu0
        %v5880 = vadd.f32 %v5815, %v5879
        %v5881 = vpop.f32.mrb[0].mxu0
        %v5882 = vpop.f32.mrb[0].mxu0
        %v5883 = vadd.f32 %v5818, %v5882
        %v5884 = vpop.f32.mrb[0].mxu0
        %5885 = vmatprep.mubr.bf16.mxu0 %v5674
        %5886 = vmatmul.mubr.bf16.gmra.mrb[0].mxu0 %v5673
        %v5887 = vpop.f32.mrb[0].mxu0
        %v5888 = vadd.f32 %v5823, %v5887
        %v5889 = vpop.f32.mrb[0].mxu0
        %v5890 = vpop.f32.mrb[0].mxu0
        %v5891 = vadd.f32 %v5826, %v5890
        %v5892 = vpop.f32.mrb[0].mxu0
        %5893 = vdwg.mxu0
        %s5894 = scalar_lea.vmem %s188, 904 [#allocation2]
        %5895 = vst [vmem:[%s5894] sm:$0xff] %v5864
        %5896 = vst [vmem:[%s5894 + $0x10] sm:$0xff] %v5867
        %5897 = vst [vmem:[%s5894 + $0x20] sm:$0xff] %v5872
        %5898 = vst [vmem:[%s5894 + $0x30] sm:$0xff] %v5875
        %5899 = vst [vmem:[%s5894 + $0x40] sm:$0xff] %v5880
        %5900 = vst [vmem:[%s5894 + $0x50] sm:$0xff] %v5883
        %5901 = vst [vmem:[%s5894 + $0x60] sm:$0xff] %v5888
        %5902 = vst [vmem:[%s5894 + $0x70] sm:$0xff] %v5891
        %s5903 = sand.u32 %s109, 1
        %s5904 = sand.u32 %s109, 1
        %s5905 = smul.addr %s5904, 1024
        %s5906 = scalar_lea.vmem [#allocation2], %s5905
        // Predicated region
        $region33: #{_lambda_.1} parent=31 // pred_check
          %p5907 = pneg %p119
        $region34: #{_lambda_.1} parent=31 // pred_check_branch
          %5909 = sbr.rel (%p5907) target = $region36
        $region35: #{_lambda_.1} parent=31 // pred_region
          %s5910 = smul.u32 8, %s18
          %s5911 = smul.addr %s19, 16
          %s5912 = smul.addr %s5910, 32
          %s5913 = sadd.s32 %s5911, %s5912
          %s5914 = smul.addr %s5913, 8
          %s5915 = scalar_lea.vmem %s3, %s5914
          // Predicated region
          $region37: #{_lambda_.1} parent=35 // pred_check
            _
          $region38: #{_lambda_.1} parent=35 // pred_check_branch
            %5917 = sbr.rel (0) target = $region40
          $region39: #{_lambda_.1} parent=35 // pred_region
            // Predicated region
            $region41: #{_lambda_.1} parent=39 // pred_check
              _
            $region42: #{_lambda_.1} parent=39 // pred_check_branch
              %5919 = sbr.rel (0) target = $region44
            $region43: #{_lambda_.1} parent=39 // pred_region
              // Predicated region
              $region56: #{_lambda_.1} parent=43 // pred_check
                _
              $region57: #{_lambda_.1} parent=43 // pred_check_branch
                %6188 = sbr.rel (0) target = $region59
              $region58: #{_lambda_.1} parent=43 // pred_region
                loop: start=0, step=1, limit=1
                $region60: #{_lambda_.1} parent=58 // loop_pre_header
                  _
                $region61: #{_lambda_.1} parent=58 // loop_header
                  %s6190 = sphi 0, %s6194
                  %p6191 = scmp.ge.s32.totalorder %s6190, 1
                  %s6195 = sphi %s5906, %s5906
                  %s6196 = sphi %s5915, %s5915
                $region62: #{_lambda_.1} parent=58 // loop_header_branch
                  %6193 = sbr.rel (%p6191) target = $region66
                $region63: #{_lambda_.1} parent=58 // loop_body
                  %v6197 = vld [vmem:[%s6195] sm:$0xff]
                  %6198 = vst [vmem:[%s6196] sm:$0xff] %v6197
                  %v6199 = vld [vmem:[%s6195 + $0x8] sm:$0xff]
                  %6200 = vst [vmem:[%s6196 + $0x8] sm:$0xff] %v6199
                  %v6201 = vld [vmem:[%s6195 + $0x10] sm:$0xff]
                  %6202 = vst [vmem:[%s6196 + $0x10] sm:$0xff] %v6201
                  %v6203 = vld [vmem:[%s6195 + $0x18] sm:$0xff]
                  %6204 = vst [vmem:[%s6196 + $0x18] sm:$0xff] %v6203
                  %v6205 = vld [vmem:[%s6195 + $0x20] sm:$0xff]
                  %6206 = vst [vmem:[%s6196 + $0x20] sm:$0xff] %v6205
                  %v6207 = vld [vmem:[%s6195 + $0x28] sm:$0xff]
                  %6208 = vst [vmem:[%s6196 + $0x28] sm:$0xff] %v6207
                  %v6209 = vld [vmem:[%s6195 + $0x30] sm:$0xff]
                  %6210 = vst [vmem:[%s6196 + $0x30] sm:$0xff] %v6209
                  %v6211 = vld [vmem:[%s6195 + $0x38] sm:$0xff]
                  %6212 = vst [vmem:[%s6196 + $0x38] sm:$0xff] %v6211
                  %v6213 = vld [vmem:[%s6195 + $0x40] sm:$0xff]
                  %6214 = vst [vmem:[%s6196 + $0x40] sm:$0xff] %v6213
                  %v6215 = vld [vmem:[%s6195 + $0x48] sm:$0xff]
                  %6216 = vst [vmem:[%s6196 + $0x48] sm:$0xff] %v6215
                  %v6217 = vld [vmem:[%s6195 + $0x50] sm:$0xff]
                  %6218 = vst [vmem:[%s6196 + $0x50] sm:$0xff] %v6217
                  %v6219 = vld [vmem:[%s6195 + $0x58] sm:$0xff]
                  %6220 = vst [vmem:[%s6196 + $0x58] sm:$0xff] %v6219
                  %v6221 = vld [vmem:[%s6195 + $0x60] sm:$0xff]
                  %6222 = vst [vmem:[%s6196 + $0x60] sm:$0xff] %v6221
                  %v6223 = vld [vmem:[%s6195 + $0x68] sm:$0xff]
                  %6224 = vst [vmem:[%s6196 + $0x68] sm:$0xff] %v6223
                  %v6225 = vld [vmem:[%s6195 + $0x70] sm:$0xff]
                  %6226 = vst [vmem:[%s6196 + $0x70] sm:$0xff] %v6225
                  %v6227 = vld [vmem:[%s6195 + $0x78] sm:$0xff]
                  %6228 = vst [vmem:[%s6196 + $0x78] sm:$0xff] %v6227
                  %v6229 = vld [vmem:[%s6195 + $0x80] sm:$0xff]
                  %6230 = vst [vmem:[%s6196 + $0x100] sm:$0xff] %v6229
                  %v6231 = vld [vmem:[%s6195 + $0x88] sm:$0xff]
                  %6232 = vst [vmem:[%s6196 + $0x108] sm:$0xff] %v6231
                  %v6233 = vld [vmem:[%s6195 + $0x90] sm:$0xff]
                  %6234 = vst [vmem:[%s6196 + $0x110] sm:$0xff] %v6233
                  %v6235 = vld [vmem:[%s6195 + $0x98] sm:$0xff]
                  %6236 = vst [vmem:[%s6196 + $0x118] sm:$0xff] %v6235
                  %v6237 = vld [vmem:[%s6195 + $0xa0] sm:$0xff]
                  %6238 = vst [vmem:[%s6196 + $0x120] sm:$0xff] %v6237
                  %v6239 = vld [vmem:[%s6195 + $0xa8] sm:$0xff]
                  %6240 = vst [vmem:[%s6196 + $0x128] sm:$0xff] %v6239
                  %v6241 = vld [vmem:[%s6195 + $0xb0] sm:$0xff]
                  %6242 = vst [vmem:[%s6196 + $0x130] sm:$0xff] %v6241
                  %v6243 = vld [vmem:[%s6195 + $0xb8] sm:$0xff]
                  %6244 = vst [vmem:[%s6196 + $0x138] sm:$0xff] %v6243
                  %v6245 = vld [vmem:[%s6195 + $0xc0] sm:$0xff]
                  %6246 = vst [vmem:[%s6196 + $0x140] sm:$0xff] %v6245
                  %v6247 = vld [vmem:[%s6195 + $0xc8] sm:$0xff]
                  %6248 = vst [vmem:[%s6196 + $0x148] sm:$0xff] %v6247
                  %v6249 = vld [vmem:[%s6195 + $0xd0] sm:$0xff]
                  %6250 = vst [vmem:[%s6196 + $0x150] sm:$0xff] %v6249
                  %v6251 = vld [vmem:[%s6195 + $0xd8] sm:$0xff]
                  %6252 = vst [vmem:[%s6196 + $0x158] sm:$0xff] %v6251
                  %v6253 = vld [vmem:[%s6195 + $0xe0] sm:$0xff]
                  %6254 = vst [vmem:[%s6196 + $0x160] sm:$0xff] %v6253
                  %v6255 = vld [vmem:[%s6195 + $0xe8] sm:$0xff]
                  %6256 = vst [vmem:[%s6196 + $0x168] sm:$0xff] %v6255
                  %v6257 = vld [vmem:[%s6195 + $0xf0] sm:$0xff]
                  %6258 = vst [vmem:[%s6196 + $0x170] sm:$0xff] %v6257
                  %v6259 = vld [vmem:[%s6195 + $0xf8] sm:$0xff]
                  %6260 = vst [vmem:[%s6196 + $0x178] sm:$0xff] %v6259
                  %v6261 = vld [vmem:[%s6195 + $0x100] sm:$0xff]
                  %6262 = vst [vmem:[%s6196 + $0x200] sm:$0xff] %v6261
                  %v6263 = vld [vmem:[%s6195 + $0x108] sm:$0xff]
                  %6264 = vst [vmem:[%s6196 + $0x208] sm:$0xff] %v6263
                  %v6265 = vld [vmem:[%s6195 + $0x110] sm:$0xff]
                  %6266 = vst [vmem:[%s6196 + $0x210] sm:$0xff] %v6265
                  %v6267 = vld [vmem:[%s6195 + $0x118] sm:$0xff]
                  %6268 = vst [vmem:[%s6196 + $0x218] sm:$0xff] %v6267
                  %v6269 = vld [vmem:[%s6195 + $0x120] sm:$0xff]
                  %6270 = vst [vmem:[%s6196 + $0x220] sm:$0xff] %v6269
                  %v6271 = vld [vmem:[%s6195 + $0x128] sm:$0xff]
                  %6272 = vst [vmem:[%s6196 + $0x228] sm:$0xff] %v6271
                  %v6273 = vld [vmem:[%s6195 + $0x130] sm:$0xff]
                  %6274 = vst [vmem:[%s6196 + $0x230] sm:$0xff] %v6273
                  %v6275 = vld [vmem:[%s6195 + $0x138] sm:$0xff]
                  %6276 = vst [vmem:[%s6196 + $0x238] sm:$0xff] %v6275
                  %v6277 = vld [vmem:[%s6195 + $0x140] sm:$0xff]
                  %6278 = vst [vmem:[%s6196 + $0x240] sm:$0xff] %v6277
                  %v6279 = vld [vmem:[%s6195 + $0x148] sm:$0xff]
                  %6280 = vst [vmem:[%s6196 + $0x248] sm:$0xff] %v6279
                  %v6281 = vld [vmem:[%s6195 + $0x150] sm:$0xff]
                  %6282 = vst [vmem:[%s6196 + $0x250] sm:$0xff] %v6281
                  %v6283 = vld [vmem:[%s6195 + $0x158] sm:$0xff]
                  %6284 = vst [vmem:[%s6196 + $0x258] sm:$0xff] %v6283
                  %v6285 = vld [vmem:[%s6195 + $0x160] sm:$0xff]
                  %6286 = vst [vmem:[%s6196 + $0x260] sm:$0xff] %v6285
                  %v6287 = vld [vmem:[%s6195 + $0x168] sm:$0xff]
                  %6288 = vst [vmem:[%s6196 + $0x268] sm:$0xff] %v6287
                  %v6289 = vld [vmem:[%s6195 + $0x170] sm:$0xff]
                  %6290 = vst [vmem:[%s6196 + $0x270] sm:$0xff] %v6289
                  %v6291 = vld [vmem:[%s6195 + $0x178] sm:$0xff]
                  %6292 = vst [vmem:[%s6196 + $0x278] sm:$0xff] %v6291
                  %v6293 = vld [vmem:[%s6195 + $0x180] sm:$0xff]
                  %6294 = vst [vmem:[%s6196 + $0x300] sm:$0xff] %v6293
                  %v6295 = vld [vmem:[%s6195 + $0x188] sm:$0xff]
                  %6296 = vst [vmem:[%s6196 + $0x308] sm:$0xff] %v6295
                  %v6297 = vld [vmem:[%s6195 + $0x190] sm:$0xff]
                  %6298 = vst [vmem:[%s6196 + $0x310] sm:$0xff] %v6297
                  %v6299 = vld [vmem:[%s6195 + $0x198] sm:$0xff]
                  %6300 = vst [vmem:[%s6196 + $0x318] sm:$0xff] %v6299
                  %v6301 = vld [vmem:[%s6195 + $0x1a0] sm:$0xff]
                  %6302 = vst [vmem:[%s6196 + $0x320] sm:$0xff] %v6301
                  %v6303 = vld [vmem:[%s6195 + $0x1a8] sm:$0xff]
                  %6304 = vst [vmem:[%s6196 + $0x328] sm:$0xff] %v6303
                  %v6305 = vld [vmem:[%s6195 + $0x1b0] sm:$0xff]
                  %6306 = vst [vmem:[%s6196 + $0x330] sm:$0xff] %v6305
                  %v6307 = vld [vmem:[%s6195 + $0x1b8] sm:$0xff]
                  %6308 = vst [vmem:[%s6196 + $0x338] sm:$0xff] %v6307
                  %v6309 = vld [vmem:[%s6195 + $0x1c0] sm:$0xff]
                  %6310 = vst [vmem:[%s6196 + $0x340] sm:$0xff] %v6309
                  %v6311 = vld [vmem:[%s6195 + $0x1c8] sm:$0xff]
                  %6312 = vst [vmem:[%s6196 + $0x348] sm:$0xff] %v6311
                  %v6313 = vld [vmem:[%s6195 + $0x1d0] sm:$0xff]
                  %6314 = vst [vmem:[%s6196 + $0x350] sm:$0xff] %v6313
                  %v6315 = vld [vmem:[%s6195 + $0x1d8] sm:$0xff]
                  %6316 = vst [vmem:[%s6196 + $0x358] sm:$0xff] %v6315
                  %v6317 = vld [vmem:[%s6195 + $0x1e0] sm:$0xff]
                  %6318 = vst [vmem:[%s6196 + $0x360] sm:$0xff] %v6317
                  %v6319 = vld [vmem:[%s6195 + $0x1e8] sm:$0xff]
                  %6320 = vst [vmem:[%s6196 + $0x368] sm:$0xff] %v6319
                  %v6321 = vld [vmem:[%s6195 + $0x1f0] sm:$0xff]
                  %6322 = vst [vmem:[%s6196 + $0x370] sm:$0xff] %v6321
                  %v6323 = vld [vmem:[%s6195 + $0x1f8] sm:$0xff]
                  %6324 = vst [vmem:[%s6196 + $0x378] sm:$0xff] %v6323
                  %v6325 = vld [vmem:[%s6195 + $0x200] sm:$0xff]
                  %6326 = vst [vmem:[%s6196 + $0x400] sm:$0xff] %v6325
                  %v6327 = vld [vmem:[%s6195 + $0x208] sm:$0xff]
                  %6328 = vst [vmem:[%s6196 + $0x408] sm:$0xff] %v6327
                  %v6329 = vld [vmem:[%s6195 + $0x210] sm:$0xff]
                  %6330 = vst [vmem:[%s6196 + $0x410] sm:$0xff] %v6329
                  %v6331 = vld [vmem:[%s6195 + $0x218] sm:$0xff]
                  %6332 = vst [vmem:[%s6196 + $0x418] sm:$0xff] %v6331
                  %v6333 = vld [vmem:[%s6195 + $0x220] sm:$0xff]
                  %6334 = vst [vmem:[%s6196 + $0x420] sm:$0xff] %v6333
                  %v6335 = vld [vmem:[%s6195 + $0x228] sm:$0xff]
                  %6336 = vst [vmem:[%s6196 + $0x428] sm:$0xff] %v6335
                  %v6337 = vld [vmem:[%s6195 + $0x230] sm:$0xff]
                  %6338 = vst [vmem:[%s6196 + $0x430] sm:$0xff] %v6337
                  %v6339 = vld [vmem:[%s6195 + $0x238] sm:$0xff]
                  %6340 = vst [vmem:[%s6196 + $0x438] sm:$0xff] %v6339
                  %v6341 = vld [vmem:[%s6195 + $0x240] sm:$0xff]
                  %6342 = vst [vmem:[%s6196 + $0x440] sm:$0xff] %v6341
                  %v6343 = vld [vmem:[%s6195 + $0x248] sm:$0xff]
                  %6344 = vst [vmem:[%s6196 + $0x448] sm:$0xff] %v6343
                  %v6345 = vld [vmem:[%s6195 + $0x250] sm:$0xff]
                  %6346 = vst [vmem:[%s6196 + $0x450] sm:$0xff] %v6345
                  %v6347 = vld [vmem:[%s6195 + $0x258] sm:$0xff]
                  %6348 = vst [vmem:[%s6196 + $0x458] sm:$0xff] %v6347
                  %v6349 = vld [vmem:[%s6195 + $0x260] sm:$0xff]
                  %6350 = vst [vmem:[%s6196 + $0x460] sm:$0xff] %v6349
                  %v6351 = vld [vmem:[%s6195 + $0x268] sm:$0xff]
                  %6352 = vst [vmem:[%s6196 + $0x468] sm:$0xff] %v6351
                  %v6353 = vld [vmem:[%s6195 + $0x270] sm:$0xff]
                  %6354 = vst [vmem:[%s6196 + $0x470] sm:$0xff] %v6353
                  %v6355 = vld [vmem:[%s6195 + $0x278] sm:$0xff]
                  %6356 = vst [vmem:[%s6196 + $0x478] sm:$0xff] %v6355
                  %v6357 = vld [vmem:[%s6195 + $0x280] sm:$0xff]
                  %6358 = vst [vmem:[%s6196 + $0x500] sm:$0xff] %v6357
                  %v6359 = vld [vmem:[%s6195 + $0x288] sm:$0xff]
                  %6360 = vst [vmem:[%s6196 + $0x508] sm:$0xff] %v6359
                  %v6361 = vld [vmem:[%s6195 + $0x290] sm:$0xff]
                  %6362 = vst [vmem:[%s6196 + $0x510] sm:$0xff] %v6361
                  %v6363 = vld [vmem:[%s6195 + $0x298] sm:$0xff]
                  %6364 = vst [vmem:[%s6196 + $0x518] sm:$0xff] %v6363
                  %v6365 = vld [vmem:[%s6195 + $0x2a0] sm:$0xff]
                  %6366 = vst [vmem:[%s6196 + $0x520] sm:$0xff] %v6365
                  %v6367 = vld [vmem:[%s6195 + $0x2a8] sm:$0xff]
                  %6368 = vst [vmem:[%s6196 + $0x528] sm:$0xff] %v6367
                  %v6369 = vld [vmem:[%s6195 + $0x2b0] sm:$0xff]
                  %6370 = vst [vmem:[%s6196 + $0x530] sm:$0xff] %v6369
                  %v6371 = vld [vmem:[%s6195 + $0x2b8] sm:$0xff]
                  %6372 = vst [vmem:[%s6196 + $0x538] sm:$0xff] %v6371
                  %v6373 = vld [vmem:[%s6195 + $0x2c0] sm:$0xff]
                  %6374 = vst [vmem:[%s6196 + $0x540] sm:$0xff] %v6373
                  %v6375 = vld [vmem:[%s6195 + $0x2c8] sm:$0xff]
                  %6376 = vst [vmem:[%s6196 + $0x548] sm:$0xff] %v6375
                  %v6377 = vld [vmem:[%s6195 + $0x2d0] sm:$0xff]
                  %6378 = vst [vmem:[%s6196 + $0x550] sm:$0xff] %v6377
                  %v6379 = vld [vmem:[%s6195 + $0x2d8] sm:$0xff]
                  %6380 = vst [vmem:[%s6196 + $0x558] sm:$0xff] %v6379
                  %v6381 = vld [vmem:[%s6195 + $0x2e0] sm:$0xff]
                  %6382 = vst [vmem:[%s6196 + $0x560] sm:$0xff] %v6381
                  %v6383 = vld [vmem:[%s6195 + $0x2e8] sm:$0xff]
                  %6384 = vst [vmem:[%s6196 + $0x568] sm:$0xff] %v6383
                  %v6385 = vld [vmem:[%s6195 + $0x2f0] sm:$0xff]
                  %6386 = vst [vmem:[%s6196 + $0x570] sm:$0xff] %v6385
                  %v6387 = vld [vmem:[%s6195 + $0x2f8] sm:$0xff]
                  %6388 = vst [vmem:[%s6196 + $0x578] sm:$0xff] %v6387
                  %v6389 = vld [vmem:[%s6195 + $0x300] sm:$0xff]
                  %6390 = vst [vmem:[%s6196 + $0x600] sm:$0xff] %v6389
                  %v6391 = vld [vmem:[%s6195 + $0x308] sm:$0xff]
                  %6392 = vst [vmem:[%s6196 + $0x608] sm:$0xff] %v6391
                  %v6393 = vld [vmem:[%s6195 + $0x310] sm:$0xff]
                  %6394 = vst [vmem:[%s6196 + $0x610] sm:$0xff] %v6393
                  %v6395 = vld [vmem:[%s6195 + $0x318] sm:$0xff]
                  %6396 = vst [vmem:[%s6196 + $0x618] sm:$0xff] %v6395
                  %v6397 = vld [vmem:[%s6195 + $0x320] sm:$0xff]
                  %6398 = vst [vmem:[%s6196 + $0x620] sm:$0xff] %v6397
                  %v6399 = vld [vmem:[%s6195 + $0x328] sm:$0xff]
                  %6400 = vst [vmem:[%s6196 + $0x628] sm:$0xff] %v6399
                  %v6401 = vld [vmem:[%s6195 + $0x330] sm:$0xff]
                  %6402 = vst [vmem:[%s6196 + $0x630] sm:$0xff] %v6401
                  %v6403 = vld [vmem:[%s6195 + $0x338] sm:$0xff]
                  %6404 = vst [vmem:[%s6196 + $0x638] sm:$0xff] %v6403
                  %v6405 = vld [vmem:[%s6195 + $0x340] sm:$0xff]
                  %6406 = vst [vmem:[%s6196 + $0x640] sm:$0xff] %v6405
                  %v6407 = vld [vmem:[%s6195 + $0x348] sm:$0xff]
                  %6408 = vst [vmem:[%s6196 + $0x648] sm:$0xff] %v6407
                  %v6409 = vld [vmem:[%s6195 + $0x350] sm:$0xff]
                  %6410 = vst [vmem:[%s6196 + $0x650] sm:$0xff] %v6409
                  %v6411 = vld [vmem:[%s6195 + $0x358] sm:$0xff]
                  %6412 = vst [vmem:[%s6196 + $0x658] sm:$0xff] %v6411
                  %v6413 = vld [vmem:[%s6195 + $0x360] sm:$0xff]
                  %6414 = vst [vmem:[%s6196 + $0x660] sm:$0xff] %v6413
                  %v6415 = vld [vmem:[%s6195 + $0x368] sm:$0xff]
                  %6416 = vst [vmem:[%s6196 + $0x668] sm:$0xff] %v6415
                  %v6417 = vld [vmem:[%s6195 + $0x370] sm:$0xff]
                  %6418 = vst [vmem:[%s6196 + $0x670] sm:$0xff] %v6417
                  %v6419 = vld [vmem:[%s6195 + $0x378] sm:$0xff]
                  %6420 = vst [vmem:[%s6196 + $0x678] sm:$0xff] %v6419
                  %v6421 = vld [vmem:[%s6195 + $0x380] sm:$0xff]
                  %6422 = vst [vmem:[%s6196 + $0x700] sm:$0xff] %v6421
                  %v6423 = vld [vmem:[%s6195 + $0x388] sm:$0xff]
                  %6424 = vst [vmem:[%s6196 + $0x708] sm:$0xff] %v6423
                  %v6425 = vld [vmem:[%s6195 + $0x390] sm:$0xff]
                  %6426 = vst [vmem:[%s6196 + $0x710] sm:$0xff] %v6425
                  %v6427 = vld [vmem:[%s6195 + $0x398] sm:$0xff]
                  %6428 = vst [vmem:[%s6196 + $0x718] sm:$0xff] %v6427
                  %v6429 = vld [vmem:[%s6195 + $0x3a0] sm:$0xff]
                  %6430 = vst [vmem:[%s6196 + $0x720] sm:$0xff] %v6429
                  %v6431 = vld [vmem:[%s6195 + $0x3a8] sm:$0xff]
                  %6432 = vst [vmem:[%s6196 + $0x728] sm:$0xff] %v6431
                  %v6433 = vld [vmem:[%s6195 + $0x3b0] sm:$0xff]
                  %6434 = vst [vmem:[%s6196 + $0x730] sm:$0xff] %v6433
                  %v6435 = vld [vmem:[%s6195 + $0x3b8] sm:$0xff]
                  %6436 = vst [vmem:[%s6196 + $0x738] sm:$0xff] %v6435
                  %v6437 = vld [vmem:[%s6195 + $0x3c0] sm:$0xff]
                  %6438 = vst [vmem:[%s6196 + $0x740] sm:$0xff] %v6437
                  %v6439 = vld [vmem:[%s6195 + $0x3c8] sm:$0xff]
                  %6440 = vst [vmem:[%s6196 + $0x748] sm:$0xff] %v6439
                  %v6441 = vld [vmem:[%s6195 + $0x3d0] sm:$0xff]
                  %6442 = vst [vmem:[%s6196 + $0x750] sm:$0xff] %v6441
                  %v6443 = vld [vmem:[%s6195 + $0x3d8] sm:$0xff]
                  %6444 = vst [vmem:[%s6196 + $0x758] sm:$0xff] %v6443
                  %v6445 = vld [vmem:[%s6195 + $0x3e0] sm:$0xff]
                  %6446 = vst [vmem:[%s6196 + $0x760] sm:$0xff] %v6445
                  %v6447 = vld [vmem:[%s6195 + $0x3e8] sm:$0xff]
                  %6448 = vst [vmem:[%s6196 + $0x768] sm:$0xff] %v6447
                  %v6449 = vld [vmem:[%s6195 + $0x3f0] sm:$0xff]
                  %6450 = vst [vmem:[%s6196 + $0x770] sm:$0xff] %v6449
                  %v6451 = vld [vmem:[%s6195 + $0x3f8] sm:$0xff]
                  %6452 = vst [vmem:[%s6196 + $0x778] sm:$0xff] %v6451
                $region64: #{_lambda_.1} parent=58 // loop_footer
                  %s6194 = sadd.s32 1, %s6190
                $region65: #{_lambda_.1} parent=58 // loop_footer_branch
                  %6189 = sbr.rel target = $region61
                $region66: #{_lambda_.1} parent=58 // loop_exit
                  _
              $region59: #{_lambda_.1} parent=43 // pred_fallthru
                _
              // Predicated region
              $region67: #{_lambda_.1} parent=43 // pred_check
                _
              $region68: #{_lambda_.1} parent=43 // pred_check_branch
                %6454 = sbr.rel target = $region70
              $region69: #{_lambda_.1} parent=43 // pred_region
                _
              $region70: #{_lambda_.1} parent=43 // pred_fallthru
                _
            $region44: #{_lambda_.1} parent=39 // pred_fallthru
              _
            // Predicated region
            $region45: #{_lambda_.1} parent=39 // pred_check
              _
            $region46: #{_lambda_.1} parent=39 // pred_check_branch
              %5921 = sbr.rel target = $region48
            $region47: #{_lambda_.1} parent=39 // pred_region
              loop: start=0, step=1, limit=1
              $region49: #{_lambda_.1} parent=47 // loop_pre_header
                _
              $region50: #{_lambda_.1} parent=47 // loop_header
                %s5924 = sphi 0, %s5928
                %p5925 = scmp.ge.s32.totalorder %s5924, 1
                %s5929 = sphi %s5906, %s5906
                %s5930 = sphi %s5915, %s5915
              $region51: #{_lambda_.1} parent=47 // loop_header_branch
                %5927 = sbr.rel (%p5925) target = $region55
              $region52: #{_lambda_.1} parent=47 // loop_body
                %v5931 = vld [vmem:[%s5929] sm:$0xff]
                %5932 = vst [vmem:[%s5930] sm:$0xff] %v5931
                %v5933 = vld [vmem:[%s5929 + $0x8] sm:$0xff]
                %5934 = vst [vmem:[%s5930 + $0x8] sm:$0xff] %v5933
                %v5935 = vld [vmem:[%s5929 + $0x10] sm:$0xff]
                %5936 = vst [vmem:[%s5930 + $0x10] sm:$0xff] %v5935
                %v5937 = vld [vmem:[%s5929 + $0x18] sm:$0xff]
                %5938 = vst [vmem:[%s5930 + $0x18] sm:$0xff] %v5937
                %v5939 = vld [vmem:[%s5929 + $0x20] sm:$0xff]
                %5940 = vst [vmem:[%s5930 + $0x20] sm:$0xff] %v5939
                %v5941 = vld [vmem:[%s5929 + $0x28] sm:$0xff]
                %5942 = vst [vmem:[%s5930 + $0x28] sm:$0xff] %v5941
                %v5943 = vld [vmem:[%s5929 + $0x30] sm:$0xff]
                %5944 = vst [vmem:[%s5930 + $0x30] sm:$0xff] %v5943
                %v5945 = vld [vmem:[%s5929 + $0x38] sm:$0xff]
                %5946 = vst [vmem:[%s5930 + $0x38] sm:$0xff] %v5945
                %v5947 = vld [vmem:[%s5929 + $0x40] sm:$0xff]
                %5948 = vst [vmem:[%s5930 + $0x40] sm:$0xff] %v5947
                %v5949 = vld [vmem:[%s5929 + $0x48] sm:$0xff]
                %5950 = vst [vmem:[%s5930 + $0x48] sm:$0xff] %v5949
                %v5951 = vld [vmem:[%s5929 + $0x50] sm:$0xff]
                %5952 = vst [vmem:[%s5930 + $0x50] sm:$0xff] %v5951
                %v5953 = vld [vmem:[%s5929 + $0x58] sm:$0xff]
                %5954 = vst [vmem:[%s5930 + $0x58] sm:$0xff] %v5953
                %v5955 = vld [vmem:[%s5929 + $0x60] sm:$0xff]
                %5956 = vst [vmem:[%s5930 + $0x60] sm:$0xff] %v5955
                %v5957 = vld [vmem:[%s5929 + $0x68] sm:$0xff]
                %5958 = vst [vmem:[%s5930 + $0x68] sm:$0xff] %v5957
                %v5959 = vld [vmem:[%s5929 + $0x70] sm:$0xff]
                %5960 = vst [vmem:[%s5930 + $0x70] sm:$0xff] %v5959
                %v5961 = vld [vmem:[%s5929 + $0x78] sm:$0xff]
                %5962 = vst [vmem:[%s5930 + $0x78] sm:$0xff] %v5961
                %v5963 = vld [vmem:[%s5929 + $0x80] sm:$0xff]
                %5964 = vst [vmem:[%s5930 + $0x100] sm:$0xff] %v5963
                %v5965 = vld [vmem:[%s5929 + $0x88] sm:$0xff]
                %5966 = vst [vmem:[%s5930 + $0x108] sm:$0xff] %v5965
                %v5967 = vld [vmem:[%s5929 + $0x90] sm:$0xff]
                %5968 = vst [vmem:[%s5930 + $0x110] sm:$0xff] %v5967
                %v5969 = vld [vmem:[%s5929 + $0x98] sm:$0xff]
                %5970 = vst [vmem:[%s5930 + $0x118] sm:$0xff] %v5969
                %v5971 = vld [vmem:[%s5929 + $0xa0] sm:$0xff]
                %5972 = vst [vmem:[%s5930 + $0x120] sm:$0xff] %v5971
                %v5973 = vld [vmem:[%s5929 + $0xa8] sm:$0xff]
                %5974 = vst [vmem:[%s5930 + $0x128] sm:$0xff] %v5973
                %v5975 = vld [vmem:[%s5929 + $0xb0] sm:$0xff]
                %5976 = vst [vmem:[%s5930 + $0x130] sm:$0xff] %v5975
                %v5977 = vld [vmem:[%s5929 + $0xb8] sm:$0xff]
                %5978 = vst [vmem:[%s5930 + $0x138] sm:$0xff] %v5977
                %v5979 = vld [vmem:[%s5929 + $0xc0] sm:$0xff]
                %5980 = vst [vmem:[%s5930 + $0x140] sm:$0xff] %v5979
                %v5981 = vld [vmem:[%s5929 + $0xc8] sm:$0xff]
                %5982 = vst [vmem:[%s5930 + $0x148] sm:$0xff] %v5981
                %v5983 = vld [vmem:[%s5929 + $0xd0] sm:$0xff]
                %5984 = vst [vmem:[%s5930 + $0x150] sm:$0xff] %v5983
                %v5985 = vld [vmem:[%s5929 + $0xd8] sm:$0xff]
                %5986 = vst [vmem:[%s5930 + $0x158] sm:$0xff] %v5985
                %v5987 = vld [vmem:[%s5929 + $0xe0] sm:$0xff]
                %5988 = vst [vmem:[%s5930 + $0x160] sm:$0xff] %v5987
                %v5989 = vld [vmem:[%s5929 + $0xe8] sm:$0xff]
                %5990 = vst [vmem:[%s5930 + $0x168] sm:$0xff] %v5989
                %v5991 = vld [vmem:[%s5929 + $0xf0] sm:$0xff]
                %5992 = vst [vmem:[%s5930 + $0x170] sm:$0xff] %v5991
                %v5993 = vld [vmem:[%s5929 + $0xf8] sm:$0xff]
                %5994 = vst [vmem:[%s5930 + $0x178] sm:$0xff] %v5993
                %v5995 = vld [vmem:[%s5929 + $0x100] sm:$0xff]
                %5996 = vst [vmem:[%s5930 + $0x200] sm:$0xff] %v5995
                %v5997 = vld [vmem:[%s5929 + $0x108] sm:$0xff]
                %5998 = vst [vmem:[%s5930 + $0x208] sm:$0xff] %v5997
                %v5999 = vld [vmem:[%s5929 + $0x110] sm:$0xff]
                %6000 = vst [vmem:[%s5930 + $0x210] sm:$0xff] %v5999
                %v6001 = vld [vmem:[%s5929 + $0x118] sm:$0xff]
                %6002 = vst [vmem:[%s5930 + $0x218] sm:$0xff] %v6001
                %v6003 = vld [vmem:[%s5929 + $0x120] sm:$0xff]
                %6004 = vst [vmem:[%s5930 + $0x220] sm:$0xff] %v6003
                %v6005 = vld [vmem:[%s5929 + $0x128] sm:$0xff]
                %6006 = vst [vmem:[%s5930 + $0x228] sm:$0xff] %v6005
                %v6007 = vld [vmem:[%s5929 + $0x130] sm:$0xff]
                %6008 = vst [vmem:[%s5930 + $0x230] sm:$0xff] %v6007
                %v6009 = vld [vmem:[%s5929 + $0x138] sm:$0xff]
                %6010 = vst [vmem:[%s5930 + $0x238] sm:$0xff] %v6009
                %v6011 = vld [vmem:[%s5929 + $0x140] sm:$0xff]
                %6012 = vst [vmem:[%s5930 + $0x240] sm:$0xff] %v6011
                %v6013 = vld [vmem:[%s5929 + $0x148] sm:$0xff]
                %6014 = vst [vmem:[%s5930 + $0x248] sm:$0xff] %v6013
                %v6015 = vld [vmem:[%s5929 + $0x150] sm:$0xff]
                %6016 = vst [vmem:[%s5930 + $0x250] sm:$0xff] %v6015
                %v6017 = vld [vmem:[%s5929 + $0x158] sm:$0xff]
                %6018 = vst [vmem:[%s5930 + $0x258] sm:$0xff] %v6017
                %v6019 = vld [vmem:[%s5929 + $0x160] sm:$0xff]
                %6020 = vst [vmem:[%s5930 + $0x260] sm:$0xff] %v6019
                %v6021 = vld [vmem:[%s5929 + $0x168] sm:$0xff]
                %6022 = vst [vmem:[%s5930 + $0x268] sm:$0xff] %v6021
                %v6023 = vld [vmem:[%s5929 + $0x170] sm:$0xff]
                %6024 = vst [vmem:[%s5930 + $0x270] sm:$0xff] %v6023
                %v6025 = vld [vmem:[%s5929 + $0x178] sm:$0xff]
                %6026 = vst [vmem:[%s5930 + $0x278] sm:$0xff] %v6025
                %v6027 = vld [vmem:[%s5929 + $0x180] sm:$0xff]
                %6028 = vst [vmem:[%s5930 + $0x300] sm:$0xff] %v6027
                %v6029 = vld [vmem:[%s5929 + $0x188] sm:$0xff]
                %6030 = vst [vmem:[%s5930 + $0x308] sm:$0xff] %v6029
                %v6031 = vld [vmem:[%s5929 + $0x190] sm:$0xff]
                %6032 = vst [vmem:[%s5930 + $0x310] sm:$0xff] %v6031
                %v6033 = vld [vmem:[%s5929 + $0x198] sm:$0xff]
                %6034 = vst [vmem:[%s5930 + $0x318] sm:$0xff] %v6033
                %v6035 = vld [vmem:[%s5929 + $0x1a0] sm:$0xff]
                %6036 = vst [vmem:[%s5930 + $0x320] sm:$0xff] %v6035
                %v6037 = vld [vmem:[%s5929 + $0x1a8] sm:$0xff]
                %6038 = vst [vmem:[%s5930 + $0x328] sm:$0xff] %v6037
                %v6039 = vld [vmem:[%s5929 + $0x1b0] sm:$0xff]
                %6040 = vst [vmem:[%s5930 + $0x330] sm:$0xff] %v6039
                %v6041 = vld [vmem:[%s5929 + $0x1b8] sm:$0xff]
                %6042 = vst [vmem:[%s5930 + $0x338] sm:$0xff] %v6041
                %v6043 = vld [vmem:[%s5929 + $0x1c0] sm:$0xff]
                %6044 = vst [vmem:[%s5930 + $0x340] sm:$0xff] %v6043
                %v6045 = vld [vmem:[%s5929 + $0x1c8] sm:$0xff]
                %6046 = vst [vmem:[%s5930 + $0x348] sm:$0xff] %v6045
                %v6047 = vld [vmem:[%s5929 + $0x1d0] sm:$0xff]
                %6048 = vst [vmem:[%s5930 + $0x350] sm:$0xff] %v6047
                %v6049 = vld [vmem:[%s5929 + $0x1d8] sm:$0xff]
                %6050 = vst [vmem:[%s5930 + $0x358] sm:$0xff] %v6049
                %v6051 = vld [vmem:[%s5929 + $0x1e0] sm:$0xff]
                %6052 = vst [vmem:[%s5930 + $0x360] sm:$0xff] %v6051
                %v6053 = vld [vmem:[%s5929 + $0x1e8] sm:$0xff]
                %6054 = vst [vmem:[%s5930 + $0x368] sm:$0xff] %v6053
                %v6055 = vld [vmem:[%s5929 + $0x1f0] sm:$0xff]
                %6056 = vst [vmem:[%s5930 + $0x370] sm:$0xff] %v6055
                %v6057 = vld [vmem:[%s5929 + $0x1f8] sm:$0xff]
                %6058 = vst [vmem:[%s5930 + $0x378] sm:$0xff] %v6057
                %v6059 = vld [vmem:[%s5929 + $0x200] sm:$0xff]
                %6060 = vst [vmem:[%s5930 + $0x400] sm:$0xff] %v6059
                %v6061 = vld [vmem:[%s5929 + $0x208] sm:$0xff]
                %6062 = vst [vmem:[%s5930 + $0x408] sm:$0xff] %v6061
                %v6063 = vld [vmem:[%s5929 + $0x210] sm:$0xff]
                %6064 = vst [vmem:[%s5930 + $0x410] sm:$0xff] %v6063
                %v6065 = vld [vmem:[%s5929 + $0x218] sm:$0xff]
                %6066 = vst [vmem:[%s5930 + $0x418] sm:$0xff] %v6065
                %v6067 = vld [vmem:[%s5929 + $0x220] sm:$0xff]
                %6068 = vst [vmem:[%s5930 + $0x420] sm:$0xff] %v6067
                %v6069 = vld [vmem:[%s5929 + $0x228] sm:$0xff]
                %6070 = vst [vmem:[%s5930 + $0x428] sm:$0xff] %v6069
                %v6071 = vld [vmem:[%s5929 + $0x230] sm:$0xff]
                %6072 = vst [vmem:[%s5930 + $0x430] sm:$0xff] %v6071
                %v6073 = vld [vmem:[%s5929 + $0x238] sm:$0xff]
                %6074 = vst [vmem:[%s5930 + $0x438] sm:$0xff] %v6073
                %v6075 = vld [vmem:[%s5929 + $0x240] sm:$0xff]
                %6076 = vst [vmem:[%s5930 + $0x440] sm:$0xff] %v6075
                %v6077 = vld [vmem:[%s5929 + $0x248] sm:$0xff]
                %6078 = vst [vmem:[%s5930 + $0x448] sm:$0xff] %v6077
                %v6079 = vld [vmem:[%s5929 + $0x250] sm:$0xff]
                %6080 = vst [vmem:[%s5930 + $0x450] sm:$0xff] %v6079
                %v6081 = vld [vmem:[%s5929 + $0x258] sm:$0xff]
                %6082 = vst [vmem:[%s5930 + $0x458] sm:$0xff] %v6081
                %v6083 = vld [vmem:[%s5929 + $0x260] sm:$0xff]
                %6084 = vst [vmem:[%s5930 + $0x460] sm:$0xff] %v6083
                %v6085 = vld [vmem:[%s5929 + $0x268] sm:$0xff]
                %6086 = vst [vmem:[%s5930 + $0x468] sm:$0xff] %v6085
                %v6087 = vld [vmem:[%s5929 + $0x270] sm:$0xff]
                %6088 = vst [vmem:[%s5930 + $0x470] sm:$0xff] %v6087
                %v6089 = vld [vmem:[%s5929 + $0x278] sm:$0xff]
                %6090 = vst [vmem:[%s5930 + $0x478] sm:$0xff] %v6089
                %v6091 = vld [vmem:[%s5929 + $0x280] sm:$0xff]
                %6092 = vst [vmem:[%s5930 + $0x500] sm:$0xff] %v6091
                %v6093 = vld [vmem:[%s5929 + $0x288] sm:$0xff]
                %6094 = vst [vmem:[%s5930 + $0x508] sm:$0xff] %v6093
                %v6095 = vld [vmem:[%s5929 + $0x290] sm:$0xff]
                %6096 = vst [vmem:[%s5930 + $0x510] sm:$0xff] %v6095
                %v6097 = vld [vmem:[%s5929 + $0x298] sm:$0xff]
                %6098 = vst [vmem:[%s5930 + $0x518] sm:$0xff] %v6097
                %v6099 = vld [vmem:[%s5929 + $0x2a0] sm:$0xff]
                %6100 = vst [vmem:[%s5930 + $0x520] sm:$0xff] %v6099
                %v6101 = vld [vmem:[%s5929 + $0x2a8] sm:$0xff]
                %6102 = vst [vmem:[%s5930 + $0x528] sm:$0xff] %v6101
                %v6103 = vld [vmem:[%s5929 + $0x2b0] sm:$0xff]
                %6104 = vst [vmem:[%s5930 + $0x530] sm:$0xff] %v6103
                %v6105 = vld [vmem:[%s5929 + $0x2b8] sm:$0xff]
                %6106 = vst [vmem:[%s5930 + $0x538] sm:$0xff] %v6105
                %v6107 = vld [vmem:[%s5929 + $0x2c0] sm:$0xff]
                %6108 = vst [vmem:[%s5930 + $0x540] sm:$0xff] %v6107
                %v6109 = vld [vmem:[%s5929 + $0x2c8] sm:$0xff]
                %6110 = vst [vmem:[%s5930 + $0x548] sm:$0xff] %v6109
                %v6111 = vld [vmem:[%s5929 + $0x2d0] sm:$0xff]
                %6112 = vst [vmem:[%s5930 + $0x550] sm:$0xff] %v6111
                %v6113 = vld [vmem:[%s5929 + $0x2d8] sm:$0xff]
                %6114 = vst [vmem:[%s5930 + $0x558] sm:$0xff] %v6113
                %v6115 = vld [vmem:[%s5929 + $0x2e0] sm:$0xff]
                %6116 = vst [vmem:[%s5930 + $0x560] sm:$0xff] %v6115
                %v6117 = vld [vmem:[%s5929 + $0x2e8] sm:$0xff]
                %6118 = vst [vmem:[%s5930 + $0x568] sm:$0xff] %v6117
                %v6119 = vld [vmem:[%s5929 + $0x2f0] sm:$0xff]
                %6120 = vst [vmem:[%s5930 + $0x570] sm:$0xff] %v6119
                %v6121 = vld [vmem:[%s5929 + $0x2f8] sm:$0xff]
                %6122 = vst [vmem:[%s5930 + $0x578] sm:$0xff] %v6121
                %v6123 = vld [vmem:[%s5929 + $0x300] sm:$0xff]
                %6124 = vst [vmem:[%s5930 + $0x600] sm:$0xff] %v6123
                %v6125 = vld [vmem:[%s5929 + $0x308] sm:$0xff]
                %6126 = vst [vmem:[%s5930 + $0x608] sm:$0xff] %v6125
                %v6127 = vld [vmem:[%s5929 + $0x310] sm:$0xff]
                %6128 = vst [vmem:[%s5930 + $0x610] sm:$0xff] %v6127
                %v6129 = vld [vmem:[%s5929 + $0x318] sm:$0xff]
                %6130 = vst [vmem:[%s5930 + $0x618] sm:$0xff] %v6129
                %v6131 = vld [vmem:[%s5929 + $0x320] sm:$0xff]
                %6132 = vst [vmem:[%s5930 + $0x620] sm:$0xff] %v6131
                %v6133 = vld [vmem:[%s5929 + $0x328] sm:$0xff]
                %6134 = vst [vmem:[%s5930 + $0x628] sm:$0xff] %v6133
                %v6135 = vld [vmem:[%s5929 + $0x330] sm:$0xff]
                %6136 = vst [vmem:[%s5930 + $0x630] sm:$0xff] %v6135
                %v6137 = vld [vmem:[%s5929 + $0x338] sm:$0xff]
                %6138 = vst [vmem:[%s5930 + $0x638] sm:$0xff] %v6137
                %v6139 = vld [vmem:[%s5929 + $0x340] sm:$0xff]
                %6140 = vst [vmem:[%s5930 + $0x640] sm:$0xff] %v6139
                %v6141 = vld [vmem:[%s5929 + $0x348] sm:$0xff]
                %6142 = vst [vmem:[%s5930 + $0x648] sm:$0xff] %v6141
                %v6143 = vld [vmem:[%s5929 + $0x350] sm:$0xff]
                %6144 = vst [vmem:[%s5930 + $0x650] sm:$0xff] %v6143
                %v6145 = vld [vmem:[%s5929 + $0x358] sm:$0xff]
                %6146 = vst [vmem:[%s5930 + $0x658] sm:$0xff] %v6145
                %v6147 = vld [vmem:[%s5929 + $0x360] sm:$0xff]
                %6148 = vst [vmem:[%s5930 + $0x660] sm:$0xff] %v6147
                %v6149 = vld [vmem:[%s5929 + $0x368] sm:$0xff]
                %6150 = vst [vmem:[%s5930 + $0x668] sm:$0xff] %v6149
                %v6151 = vld [vmem:[%s5929 + $0x370] sm:$0xff]
                %6152 = vst [vmem:[%s5930 + $0x670] sm:$0xff] %v6151
                %v6153 = vld [vmem:[%s5929 + $0x378] sm:$0xff]
                %6154 = vst [vmem:[%s5930 + $0x678] sm:$0xff] %v6153
                %v6155 = vld [vmem:[%s5929 + $0x380] sm:$0xff]
                %6156 = vst [vmem:[%s5930 + $0x700] sm:$0xff] %v6155
                %v6157 = vld [vmem:[%s5929 + $0x388] sm:$0xff]
                %6158 = vst [vmem:[%s5930 + $0x708] sm:$0xff] %v6157
                %v6159 = vld [vmem:[%s5929 + $0x390] sm:$0xff]
                %6160 = vst [vmem:[%s5930 + $0x710] sm:$0xff] %v6159
                %v6161 = vld [vmem:[%s5929 + $0x398] sm:$0xff]
                %6162 = vst [vmem:[%s5930 + $0x718] sm:$0xff] %v6161
                %v6163 = vld [vmem:[%s5929 + $0x3a0] sm:$0xff]
                %6164 = vst [vmem:[%s5930 + $0x720] sm:$0xff] %v6163
                %v6165 = vld [vmem:[%s5929 + $0x3a8] sm:$0xff]
                %6166 = vst [vmem:[%s5930 + $0x728] sm:$0xff] %v6165
                %v6167 = vld [vmem:[%s5929 + $0x3b0] sm:$0xff]
                %6168 = vst [vmem:[%s5930 + $0x730] sm:$0xff] %v6167
                %v6169 = vld [vmem:[%s5929 + $0x3b8] sm:$0xff]
                %6170 = vst [vmem:[%s5930 + $0x738] sm:$0xff] %v6169
                %v6171 = vld [vmem:[%s5929 + $0x3c0] sm:$0xff]
                %6172 = vst [vmem:[%s5930 + $0x740] sm:$0xff] %v6171
                %v6173 = vld [vmem:[%s5929 + $0x3c8] sm:$0xff]
                %6174 = vst [vmem:[%s5930 + $0x748] sm:$0xff] %v6173
                %v6175 = vld [vmem:[%s5929 + $0x3d0] sm:$0xff]
                %6176 = vst [vmem:[%s5930 + $0x750] sm:$0xff] %v6175
                %v6177 = vld [vmem:[%s5929 + $0x3d8] sm:$0xff]
                %6178 = vst [vmem:[%s5930 + $0x758] sm:$0xff] %v6177
                %v6179 = vld [vmem:[%s5929 + $0x3e0] sm:$0xff]
                %6180 = vst [vmem:[%s5930 + $0x760] sm:$0xff] %v6179
                %v6181 = vld [vmem:[%s5929 + $0x3e8] sm:$0xff]
                %6182 = vst [vmem:[%s5930 + $0x768] sm:$0xff] %v6181
                %v6183 = vld [vmem:[%s5929 + $0x3f0] sm:$0xff]
                %6184 = vst [vmem:[%s5930 + $0x770] sm:$0xff] %v6183
                %v6185 = vld [vmem:[%s5929 + $0x3f8] sm:$0xff]
                %6186 = vst [vmem:[%s5930 + $0x778] sm:$0xff] %v6185
              $region53: #{_lambda_.1} parent=47 // loop_footer
                %s5928 = sadd.s32 1, %s5924
              $region54: #{_lambda_.1} parent=47 // loop_footer_branch
                %5923 = sbr.rel target = $region50
              $region55: #{_lambda_.1} parent=47 // loop_exit
                _
            $region48: #{_lambda_.1} parent=39 // pred_fallthru
              _
          $region40: #{_lambda_.1} parent=35 // pred_fallthru
            _
          %6455 = vnop
        $region36: #{_lambda_.1} parent=31 // pred_fallthru
          _
      $region32: #{_lambda_.1} parent=5 // pred_fallthru
        _
      %p6456 = scmp.le.s32.totalorder 2, %s9
      // Predicated region
      $region71: #{_lambda_.1} parent=5 // pred_check
        %p6457 = pneg %p6456
      $region72: #{_lambda_.1} parent=5 // pred_check_branch
        %6459 = sbr.rel (%p6457) target = $region74
      $region73: #{_lambda_.1} parent=5 // pred_region
        %s6460 = ssub.s32 %s9, 2
        // Predicated region
        $region75: #{_lambda_.1} parent=73 // pred_check
          %p6461 = pneg %p125
        $region76: #{_lambda_.1} parent=73 // pred_check_branch
          %6463 = sbr.rel (%p6461) target = $region78
        $region77: #{_lambda_.1} parent=73 // pred_region
          %s6464 = sand.u32 %s110, 1
          %s6465 = sand.u32 %s110, 1
          %s6466 = smul.addr %s6465, 1024
          %s6467 = scalar_lea.vmem [#allocation2], %s6466
        $region78: #{_lambda_.1} parent=73 // pred_fallthru
          _
      $region74: #{_lambda_.1} parent=5 // pred_fallthru
        _
    $region6: #{_lambda_.1} parent=1 // loop_footer
      %s13 = sadd.s32 1, %s9
    $region7: #{_lambda_.1} parent=1 // loop_footer_branch
      %8 = sbr.rel target = $region3
    $region8: #{_lambda_.1} parent=1 // loop_exit
      _

</llo_original>
